<compile_context>
chip_gen: v7x
topology: tpu7x:2x2x1
jax: 0.10.0
libtpu: 0.0.40
codegen_flags: <defaults>
</compile_context>

<pallas_src>
import jax
import jax.numpy as jnp
from jax.experimental import pallas as pl
from jax.experimental.pallas import tpu as pltpu

EPS = 1e-5                     # PyTorch BatchNorm2d default eps
MXU_DTYPE = jnp.float32        # set to jnp.bfloat16 on v6e/v7x (see header note)


def _full_spec(shape):
    n = len(shape)
    return pl.BlockSpec(shape, lambda *args, n=n: (0,) * n)


def double_conv_kernel(xp_ref, w1_ref, g1_ref, b1_ref, w2_ref, g2_ref, b2_ref,
                       o_ref, p1_ref, h1p_ref, p2_ref):
    # xp_ref : (N, H+2, W+2, Cin)   zero-padded NHWC input
    # w*_ref : (9*Cin, Cout)        im2col weight (k = tap*Cin + cin)
    # g*/b*  : (1, C)               BatchNorm gamma / beta
    # o_ref  : (N*H*W, Cout)        output (wrapper reshapes back to NHWC/NCHW)
    # p1_ref : (N*H*W, 9*Cin)       VMEM scratch: conv1 im2col patch matrix
    # h1p_ref: (N, H+2, W+2, Cmid)  VMEM scratch: padded intermediate
    # p2_ref : (N*H*W, 9*Cmid)      VMEM scratch: conv2 im2col patch matrix
    N, Hp, Wp, Cin = xp_ref.shape
    H, W = Hp - 2, Wp - 2
    Cmid = w1_ref.shape[1]
    Cout = w2_ref.shape[1]
    M = N * H * W

    def conv3x3(src_ref, pat_ref, w_ref, cin):
        # im2col: gather the 9 shifted views once into a (M, 9*cin) patch
        # matrix, then a single MXU matmul with K = 9*cin.
        for ky in range(3):
            for kx in range(3):
                t = ky * 3 + kx
                patch = src_ref[:, ky:ky + H, kx:kx + W, :]        # (N,H,W,cin)
                pat_ref[:, t * cin:(t + 1) * cin] = patch.reshape(M, cin)
        return jnp.dot(pat_ref[...].astype(MXU_DTYPE),
                       w_ref[...].astype(MXU_DTYPE),
                       preferred_element_type=jnp.float32)         # (M, cout)

    def bn_relu(x, g_ref, b_ref):
        # Training-mode BatchNorm over (N,H,W) with biased variance, fused:
        # one stats pass, then a folded per-channel scale/shift + ReLU.
        inv_m = 1.0 / x.shape[0]
        s = jnp.sum(x, axis=0, keepdims=True)                      # (1, C)
        ss = jnp.sum(x * x, axis=0, keepdims=True)                 # (1, C)
        mean = s * inv_m
        var = ss * inv_m - mean * mean                             # biased var
        scale = g_ref[...] * jax.lax.rsqrt(var + EPS)              # (1, C)
        shift = b_ref[...] - mean * scale                          # (1, C)
        return jnp.maximum(x * scale + shift, 0.0)

    # ---- conv1 -> fused BN1 -> ReLU --------------------------------------
    h1 = bn_relu(conv3x3(xp_ref, p1_ref, w1_ref, Cin), g1_ref, b1_ref)  # (M,Cmid)

    # ---- re-pad the intermediate in VMEM: zero ONLY the 1-pixel halo -----
    h1p_ref[:, 0:1, :, :] = jnp.zeros((N, 1, Wp, Cmid), jnp.float32)
    h1p_ref[:, H + 1:Hp, :, :] = jnp.zeros((N, 1, Wp, Cmid), jnp.float32)
    h1p_ref[:, 1:H + 1, 0:1, :] = jnp.zeros((N, H, 1, Cmid), jnp.float32)
    h1p_ref[:, 1:H + 1, W + 1:Wp, :] = jnp.zeros((N, H, 1, Cmid), jnp.float32)
    h1p_ref[:, 1:H + 1, 1:W + 1, :] = h1.reshape(N, H, W, Cmid)

    # ---- conv2 -> fused BN2 -> ReLU --------------------------------------
    h2 = bn_relu(conv3x3(h1p_ref, p2_ref, w2_ref, Cmid), g2_ref, b2_ref)  # (M,Cout)
    o_ref[...] = h2


def double_conv(x_nchw, w1, g1, b1, w2, g2, b2):
    """x_nchw: (N, Cin, H, W). w1: (Cmid, Cin, 3, 3). w2: (Cout, Cmid, 3, 3)."""
    N, Cin, H, W = x_nchw.shape
    Cmid = w1.shape[0]
    Cout = w2.shape[0]
    M = N * H * W

    # Boundary glue in plain JAX: NCHW -> NHWC, zero pad (padding=1), and
    # OIHW weights -> (9*Cin, Cout) im2col layout (row k = tap*Cin + cin).
    x = jnp.transpose(x_nchw, (0, 2, 3, 1)).astype(jnp.float32)
    xp = jnp.pad(x, ((0, 0), (1, 1), (1, 1), (0, 0)))
    w1k = jnp.transpose(w1, (2, 3, 1, 0)).reshape(9 * Cin, Cmid).astype(jnp.float32)
    w2k = jnp.transpose(w2, (2, 3, 1, 0)).reshape(9 * Cmid, Cout).astype(jnp.float32)
    g1k = g1.reshape(1, Cmid).astype(jnp.float32)
    b1k = b1.reshape(1, Cmid).astype(jnp.float32)
    g2k = g2.reshape(1, Cout).astype(jnp.float32)
    b2k = b2.reshape(1, Cout).astype(jnp.float32)

    args = (xp, w1k, g1k, b1k, w2k, g2k, b2k)

    flops = int(2 * M * (9 * Cin) * Cmid + 2 * M * (9 * Cmid) * Cout
                + 8 * M * (Cmid + Cout))
    bytes_accessed = int(4 * (xp.size + w1k.size + w2k.size
                              + 2 * (Cmid + Cout) + M * Cout))

    out2d = pl.pallas_call(
        double_conv_kernel,
        out_shape=jax.ShapeDtypeStruct((M, Cout), jnp.float32),
        grid=(1,),
        in_specs=[_full_spec(a.shape) for a in args],
        out_specs=_full_spec((M, Cout)),
        scratch_shapes=[
            pltpu.VMEM((M, 9 * Cin), jnp.float32),            # conv1 im2col
            pltpu.VMEM((N, H + 2, W + 2, Cmid), jnp.float32),  # padded h1
            pltpu.VMEM((M, 9 * Cmid), jnp.float32),            # conv2 im2col
        ],
        compiler_params=pltpu.CompilerParams(
            dimension_semantics=("arbitrary",)),
        cost_estimate=pl.CostEstimate(
            flops=flops,
            transcendentals=int(2 * (Cmid + Cout)),
            bytes_accessed=bytes_accessed),
    )(*args)

    out_nhwc = out2d.reshape(N, H, W, Cout)
    return jnp.transpose(out_nhwc, (0, 3, 1, 2))                  # back to NCHW


def ref_double_conv(x, w1, g1, b1, w2, g2, b2):
    """Pure-JAX reference matching PyTorch training-mode forward."""
    def conv(x, w):
        return jax.lax.conv_general_dilated(
            x, w, (1, 1), ((1, 1), (1, 1)),
            dimension_numbers=("NCHW", "OIHW", "NCHW"),
            precision=jax.lax.Precision.HIGHEST)

    def bn_relu(x, g, b):
        mean = jnp.mean(x, axis=(0, 2, 3), keepdims=True)
        var = jnp.mean((x - mean) ** 2, axis=(0, 2, 3), keepdims=True)
        y = (x - mean) / jnp.sqrt(var + EPS)
        y = y * g.reshape(1, -1, 1, 1) + b.reshape(1, -1, 1, 1)
        return jnp.maximum(y, 0.0)

    h = bn_relu(conv(x, w1), g1, b1)
    return bn_relu(conv(h, w2), g2, b2)


if __name__ == "__main__":
    key = jax.random.PRNGKey(0)
    N, Cin, H, W = 2, 4, 16, 16
    Cmid = Cout = 8  # mid_channels defaults to out_channels

    k1, k2, k3 = jax.random.split(key, 3)
    x = jax.random.normal(k1, (N, Cin, H, W), jnp.float32)
    # deterministic synthetic parameters (kaiming-ish scale); BN affine at defaults
    w1 = jax.random.normal(k2, (Cmid, Cin, 3, 3), jnp.float32) / (Cin * 9) ** 0.5
    w2 = jax.random.normal(k3, (Cout, Cmid, 3, 3), jnp.float32) / (Cmid * 9) ** 0.5
    g1 = jnp.ones((Cmid,), jnp.float32)
    b1 = jnp.zeros((Cmid,), jnp.float32)
    g2 = jnp.ones((Cout,), jnp.float32)
    b2 = jnp.zeros((Cout,), jnp.float32)

    out = jax.block_until_ready(double_conv(x, w1, g1, b1, w2, g2, b2))
    ref = jax.block_until_ready(ref_double_conv(x, w1, g1, b1, w2, g2, b2))

    assert out.shape == (N, Cout, H, W), out.shape
    max_err = float(jnp.max(jnp.abs(out - ref)))
    assert jnp.allclose(out, ref, atol=2e-3, rtol=2e-3), max_err
    print("KERNEL_OK")
</pallas_src>

<mosaic_0001>
module attributes {stable_mosaic.version = 11 : i64} {
  func.func @double_conv_kernel(%arg0: i32, %arg1: memref<2x18x18x4xf32, #tpu.memory_space<vmem>>, %arg2: memref<36x8xf32, #tpu.memory_space<vmem>>, %arg3: memref<1x8xf32, #tpu.memory_space<vmem>>, %arg4: memref<1x8xf32, #tpu.memory_space<vmem>>, %arg5: memref<72x8xf32, #tpu.memory_space<vmem>>, %arg6: memref<1x8xf32, #tpu.memory_space<vmem>>, %arg7: memref<1x8xf32, #tpu.memory_space<vmem>>, %arg8: memref<512x8xf32, #tpu.memory_space<vmem>>, %arg9: memref<512x36xf32, #tpu.memory_space<vmem>>, %arg10: memref<2x18x18x8xf32, #tpu.memory_space<vmem>>, %arg11: memref<512x72xf32, #tpu.memory_space<vmem>>) attributes {dimension_semantics = [#tpu.dimension_semantics<arbitrary>], iteration_bounds = array<i64: 1>, scalar_prefetch = 0 : i64, scratch_operands = 3 : i64, tpu.core_type = #tpu.core_type<tc>, window_params = [{pipeline_mode = #tpu.pipeline_mode<synchronous>, transform_indices = @transform_0, window_bounds = array<i64: 2, 18, 18, 4>}, {pipeline_mode = #tpu.pipeline_mode<synchronous>, transform_indices = @transform_1, window_bounds = array<i64: 36, 8>}, {pipeline_mode = #tpu.pipeline_mode<synchronous>, transform_indices = @transform_2, window_bounds = array<i64: 1, 8>}, {pipeline_mode = #tpu.pipeline_mode<synchronous>, transform_indices = @transform_3, window_bounds = array<i64: 1, 8>}, {pipeline_mode = #tpu.pipeline_mode<synchronous>, transform_indices = @transform_4, window_bounds = array<i64: 72, 8>}, {pipeline_mode = #tpu.pipeline_mode<synchronous>, transform_indices = @transform_5, window_bounds = array<i64: 1, 8>}, {pipeline_mode = #tpu.pipeline_mode<synchronous>, transform_indices = @transform_6, window_bounds = array<i64: 1, 8>}, {pipeline_mode = #tpu.pipeline_mode<synchronous>, transform_indices = @transform_7, window_bounds = array<i64: 512, 8>}]} {
    %c0 = arith.constant 0 : index
    %c0_0 = arith.constant 0 : index
    %c0_1 = arith.constant 0 : index
    %c0_2 = arith.constant 0 : index
    %0 = vector.load %arg1[%c0, %c0_0, %c0_1, %c0_2] : memref<2x18x18x4xf32, #tpu.memory_space<vmem>>, vector<2x16x16x4xf32>
    %1 = vector.shape_cast %0 : vector<2x16x16x4xf32> to vector<512x4xf32>
    %c0_3 = arith.constant 0 : index
    %c0_4 = arith.constant 0 : index
    %2 = vector.load %arg9[%c0_3, %c0_4] : memref<512x36xf32, #tpu.memory_space<vmem>>, vector<512x4xf32>
    tpu.vector_store %arg9[%c0_3, %c0_4], %1 {strides = array<i32>} : memref<512x36xf32, #tpu.memory_space<vmem>>, vector<512x4xf32>,
    %c0_5 = arith.constant 0 : index
    %c0_6 = arith.constant 0 : index
    %c1 = arith.constant 1 : index
    %c0_7 = arith.constant 0 : index
    %3 = vector.load %arg1[%c0_5, %c0_6, %c1, %c0_7] : memref<2x18x18x4xf32, #tpu.memory_space<vmem>>, vector<2x16x16x4xf32>
    %4 = vector.shape_cast %3 : vector<2x16x16x4xf32> to vector<512x4xf32>
    %c0_8 = arith.constant 0 : index
    %c4 = arith.constant 4 : index
    %5 = vector.load %arg9[%c0_8, %c4] : memref<512x36xf32, #tpu.memory_space<vmem>>, vector<512x4xf32>
    tpu.vector_store %arg9[%c0_8, %c4], %4 {strides = array<i32>} : memref<512x36xf32, #tpu.memory_space<vmem>>, vector<512x4xf32>,
    %c0_9 = arith.constant 0 : index
    %c0_10 = arith.constant 0 : index
    %c2 = arith.constant 2 : index
    %c0_11 = arith.constant 0 : index
    %6 = vector.load %arg1[%c0_9, %c0_10, %c2, %c0_11] : memref<2x18x18x4xf32, #tpu.memory_space<vmem>>, vector<2x16x16x4xf32>
    %7 = vector.shape_cast %6 : vector<2x16x16x4xf32> to vector<512x4xf32>
    %c0_12 = arith.constant 0 : index
    %c8 = arith.constant 8 : index
    %8 = vector.load %arg9[%c0_12, %c8] : memref<512x36xf32, #tpu.memory_space<vmem>>, vector<512x4xf32>
    tpu.vector_store %arg9[%c0_12, %c8], %7 {strides = array<i32>} : memref<512x36xf32, #tpu.memory_space<vmem>>, vector<512x4xf32>,
    %c0_13 = arith.constant 0 : index
    %c1_14 = arith.constant 1 : index
    %c0_15 = arith.constant 0 : index
    %c0_16 = arith.constant 0 : index
    %9 = vector.load %arg1[%c0_13, %c1_14, %c0_15, %c0_16] : memref<2x18x18x4xf32, #tpu.memory_space<vmem>>, vector<2x16x16x4xf32>
    %10 = vector.shape_cast %9 : vector<2x16x16x4xf32> to vector<512x4xf32>
    %c0_17 = arith.constant 0 : index
    %c12 = arith.constant 12 : index
    %11 = vector.load %arg9[%c0_17, %c12] : memref<512x36xf32, #tpu.memory_space<vmem>>, vector<512x4xf32>
    tpu.vector_store %arg9[%c0_17, %c12], %10 {strides = array<i32>} : memref<512x36xf32, #tpu.memory_space<vmem>>, vector<512x4xf32>,
    %c0_18 = arith.constant 0 : index
    %c1_19 = arith.constant 1 : index
    %c1_20 = arith.constant 1 : index
    %c0_21 = arith.constant 0 : index
    %12 = vector.load %arg1[%c0_18, %c1_19, %c1_20, %c0_21] : memref<2x18x18x4xf32, #tpu.memory_space<vmem>>, vector<2x16x16x4xf32>
    %13 = vector.shape_cast %12 : vector<2x16x16x4xf32> to vector<512x4xf32>
    %c0_22 = arith.constant 0 : index
    %c16 = arith.constant 16 : index
    %14 = vector.load %arg9[%c0_22, %c16] : memref<512x36xf32, #tpu.memory_space<vmem>>, vector<512x4xf32>
    tpu.vector_store %arg9[%c0_22, %c16], %13 {strides = array<i32>} : memref<512x36xf32, #tpu.memory_space<vmem>>, vector<512x4xf32>,
    %c0_23 = arith.constant 0 : index
    %c1_24 = arith.constant 1 : index
    %c2_25 = arith.constant 2 : index
    %c0_26 = arith.constant 0 : index
    %15 = vector.load %arg1[%c0_23, %c1_24, %c2_25, %c0_26] : memref<2x18x18x4xf32, #tpu.memory_space<vmem>>, vector<2x16x16x4xf32>
    %16 = vector.shape_cast %15 : vector<2x16x16x4xf32> to vector<512x4xf32>
    %c0_27 = arith.constant 0 : index
    %c20 = arith.constant 20 : index
    %17 = vector.load %arg9[%c0_27, %c20] : memref<512x36xf32, #tpu.memory_space<vmem>>, vector<512x4xf32>
    tpu.vector_store %arg9[%c0_27, %c20], %16 {strides = array<i32>} : memref<512x36xf32, #tpu.memory_space<vmem>>, vector<512x4xf32>,
    %c0_28 = arith.constant 0 : index
    %c2_29 = arith.constant 2 : index
    %c0_30 = arith.constant 0 : index
    %c0_31 = arith.constant 0 : index
    %18 = vector.load %arg1[%c0_28, %c2_29, %c0_30, %c0_31] : memref<2x18x18x4xf32, #tpu.memory_space<vmem>>, vector<2x16x16x4xf32>
    %19 = vector.shape_cast %18 : vector<2x16x16x4xf32> to vector<512x4xf32>
    %c0_32 = arith.constant 0 : index
    %c24 = arith.constant 24 : index
    %20 = vector.load %arg9[%c0_32, %c24] : memref<512x36xf32, #tpu.memory_space<vmem>>, vector<512x4xf32>
    tpu.vector_store %arg9[%c0_32, %c24], %19 {strides = array<i32>} : memref<512x36xf32, #tpu.memory_space<vmem>>, vector<512x4xf32>,
    %c0_33 = arith.constant 0 : index
    %c2_34 = arith.constant 2 : index
    %c1_35 = arith.constant 1 : index
    %c0_36 = arith.constant 0 : index
    %21 = vector.load %arg1[%c0_33, %c2_34, %c1_35, %c0_36] : memref<2x18x18x4xf32, #tpu.memory_space<vmem>>, vector<2x16x16x4xf32>
    %22 = vector.shape_cast %21 : vector<2x16x16x4xf32> to vector<512x4xf32>
    %c0_37 = arith.constant 0 : index
    %c28 = arith.constant 28 : index
    %23 = vector.load %arg9[%c0_37, %c28] : memref<512x36xf32, #tpu.memory_space<vmem>>, vector<512x4xf32>
    tpu.vector_store %arg9[%c0_37, %c28], %22 {strides = array<i32>} : memref<512x36xf32, #tpu.memory_space<vmem>>, vector<512x4xf32>,
    %c0_38 = arith.constant 0 : index
    %c2_39 = arith.constant 2 : index
    %c2_40 = arith.constant 2 : index
    %c0_41 = arith.constant 0 : index
    %24 = vector.load %arg1[%c0_38, %c2_39, %c2_40, %c0_41] : memref<2x18x18x4xf32, #tpu.memory_space<vmem>>, vector<2x16x16x4xf32>
    %25 = vector.shape_cast %24 : vector<2x16x16x4xf32> to vector<512x4xf32>
    %c0_42 = arith.constant 0 : index
    %c32 = arith.constant 32 : index
    %26 = vector.load %arg9[%c0_42, %c32] : memref<512x36xf32, #tpu.memory_space<vmem>>, vector<512x4xf32>
    tpu.vector_store %arg9[%c0_42, %c32], %25 {strides = array<i32>} : memref<512x36xf32, #tpu.memory_space<vmem>>, vector<512x4xf32>,
    %c0_43 = arith.constant 0 : index
    %c0_44 = arith.constant 0 : index
    %27 = vector.load %arg9[%c0_43, %c0_44] : memref<512x36xf32, #tpu.memory_space<vmem>>, vector<512x36xf32>
    %c0_45 = arith.constant 0 : index
    %c0_46 = arith.constant 0 : index
    %28 = vector.load %arg2[%c0_45, %c0_46] : memref<36x8xf32, #tpu.memory_space<vmem>>, vector<36x8xf32>
    %cst = arith.constant dense<0.000000e+00> : vector<512x8xf32>
    %29 = tpu.matmul %27, %28, %cst {dimension_numbers = #tpu.dot_dimension_numbers<[1], [0], [0], [1], [0, 0, 1, 1], [], []>} : vector<512x36xf32>, vector<36x8xf32>, vector<512x8xf32> -> vector<512x8xf32>
    %cst_47 = arith.constant dense<0.000000e+00> : vector<8xf32>
    %30 = vector.multi_reduction <add>, %29, %cst_47 [0] : vector<512x8xf32> to vector<8xf32>
    %31 = vector.shape_cast %30 : vector<8xf32> to vector<1x8xf32>
    %32 = arith.mulf %29, %29 : vector<512x8xf32>
    %cst_48 = arith.constant dense<0.000000e+00> : vector<8xf32>
    %33 = vector.multi_reduction <add>, %32, %cst_48 [0] : vector<512x8xf32> to vector<8xf32>
    %34 = vector.shape_cast %33 : vector<8xf32> to vector<1x8xf32>
    %cst_49 = arith.constant 0.001953125 : f32
    %35 = vector.broadcast %cst_49 : f32 to vector<1x8xf32>
    %36 = arith.mulf %31, %35 : vector<1x8xf32>
    %cst_50 = arith.constant 0.001953125 : f32
    %37 = vector.broadcast %cst_50 : f32 to vector<1x8xf32>
    %38 = arith.mulf %34, %37 : vector<1x8xf32>
    %39 = arith.mulf %36, %36 : vector<1x8xf32>
    %40 = arith.subf %38, %39 : vector<1x8xf32>
    %c0_51 = arith.constant 0 : index
    %c0_52 = arith.constant 0 : index
    %41 = vector.load %arg3[%c0_51, %c0_52] : memref<1x8xf32, #tpu.memory_space<vmem>>, vector<1x8xf32>
    %cst_53 = arith.constant 9.99999974E-6 : f32
    %42 = vector.broadcast %cst_53 : f32 to vector<1x8xf32>
    %43 = arith.addf %40, %42 : vector<1x8xf32>
    %44 = math.rsqrt %43 : vector<1x8xf32>
    %45 = arith.mulf %41, %44 : vector<1x8xf32>
    %c0_54 = arith.constant 0 : index
    %c0_55 = arith.constant 0 : index
    %46 = vector.load %arg4[%c0_54, %c0_55] : memref<1x8xf32, #tpu.memory_space<vmem>>, vector<1x8xf32>
    %47 = arith.mulf %36, %45 : vector<1x8xf32>
    %48 = arith.subf %46, %47 : vector<1x8xf32>
    %49 = vector.broadcast %45 : vector<1x8xf32> to vector<512x8xf32>
    %50 = arith.mulf %29, %49 : vector<512x8xf32>
    %51 = vector.broadcast %48 : vector<1x8xf32> to vector<512x8xf32>
    %52 = arith.addf %50, %51 : vector<512x8xf32>
    %cst_56 = arith.constant 0.000000e+00 : f32
    %53 = vector.broadcast %cst_56 : f32 to vector<512x8xf32>
    %54 = arith.maximumf %52, %53 : vector<512x8xf32>
    %cst_57 = arith.constant 0.000000e+00 : f32
    %55 = vector.broadcast %cst_57 : f32 to vector<2x1x18x8xf32>
    %c0_58 = arith.constant 0 : index
    %c0_59 = arith.constant 0 : index
    %c0_60 = arith.constant 0 : index
    %c0_61 = arith.constant 0 : index
    %56 = vector.load %arg10[%c0_58, %c0_59, %c0_60, %c0_61] : memref<2x18x18x8xf32, #tpu.memory_space<vmem>>, vector<2x1x18x8xf32>
    tpu.vector_store %arg10[%c0_58, %c0_59, %c0_60, %c0_61], %55 {strides = array<i32>} : memref<2x18x18x8xf32, #tpu.memory_space<vmem>>, vector<2x1x18x8xf32>,
    %cst_62 = arith.constant 0.000000e+00 : f32
    %57 = vector.broadcast %cst_62 : f32 to vector<2x1x18x8xf32>
    %c0_63 = arith.constant 0 : index
    %c17 = arith.constant 17 : index
    %c0_64 = arith.constant 0 : index
    %c0_65 = arith.constant 0 : index
    %58 = vector.load %arg10[%c0_63, %c17, %c0_64, %c0_65] : memref<2x18x18x8xf32, #tpu.memory_space<vmem>>, vector<2x1x18x8xf32>
    tpu.vector_store %arg10[%c0_63, %c17, %c0_64, %c0_65], %57 {strides = array<i32>} : memref<2x18x18x8xf32, #tpu.memory_space<vmem>>, vector<2x1x18x8xf32>,
    %cst_66 = arith.constant 0.000000e+00 : f32
    %59 = vector.broadcast %cst_66 : f32 to vector<2x16x1x8xf32>
    %c0_67 = arith.constant 0 : index
    %c1_68 = arith.constant 1 : index
    %c0_69 = arith.constant 0 : index
    %c0_70 = arith.constant 0 : index
    %60 = vector.load %arg10[%c0_67, %c1_68, %c0_69, %c0_70] : memref<2x18x18x8xf32, #tpu.memory_space<vmem>>, vector<2x16x1x8xf32>
    tpu.vector_store %arg10[%c0_67, %c1_68, %c0_69, %c0_70], %59 {strides = array<i32>} : memref<2x18x18x8xf32, #tpu.memory_space<vmem>>, vector<2x16x1x8xf32>,
    %cst_71 = arith.constant 0.000000e+00 : f32
    %61 = vector.broadcast %cst_71 : f32 to vector<2x16x1x8xf32>
    %c0_72 = arith.constant 0 : index
    %c1_73 = arith.constant 1 : index
    %c17_74 = arith.constant 17 : index
    %c0_75 = arith.constant 0 : index
    %62 = vector.load %arg10[%c0_72, %c1_73, %c17_74, %c0_75] : memref<2x18x18x8xf32, #tpu.memory_space<vmem>>, vector<2x16x1x8xf32>
    tpu.vector_store %arg10[%c0_72, %c1_73, %c17_74, %c0_75], %61 {strides = array<i32>} : memref<2x18x18x8xf32, #tpu.memory_space<vmem>>, vector<2x16x1x8xf32>,
    %63 = vector.shape_cast %54 : vector<512x8xf32> to vector<2x16x16x8xf32>
    %c0_76 = arith.constant 0 : index
    %c1_77 = arith.constant 1 : index
    %c1_78 = arith.constant 1 : index
    %c0_79 = arith.constant 0 : index
    %64 = vector.load %arg10[%c0_76, %c1_77, %c1_78, %c0_79] : memref<2x18x18x8xf32, #tpu.memory_space<vmem>>, vector<2x16x16x8xf32>
    tpu.vector_store %arg10[%c0_76, %c1_77, %c1_78, %c0_79], %63 {strides = array<i32>} : memref<2x18x18x8xf32, #tpu.memory_space<vmem>>, vector<2x16x16x8xf32>,
    %c0_80 = arith.constant 0 : index
    %c0_81 = arith.constant 0 : index
    %c0_82 = arith.constant 0 : index
    %c0_83 = arith.constant 0 : index
    %65 = vector.load %arg10[%c0_80, %c0_81, %c0_82, %c0_83] : memref<2x18x18x8xf32, #tpu.memory_space<vmem>>, vector<2x16x16x8xf32>
    %66 = vector.shape_cast %65 : vector<2x16x16x8xf32> to vector<512x8xf32>
    %c0_84 = arith.constant 0 : index
    %c0_85 = arith.constant 0 : index
    %67 = vector.load %arg11[%c0_84, %c0_85] : memref<512x72xf32, #tpu.memory_space<vmem>>, vector<512x8xf32>
    tpu.vector_store %arg11[%c0_84, %c0_85], %66 {strides = array<i32>} : memref<512x72xf32, #tpu.memory_space<vmem>>, vector<512x8xf32>,
    %c0_86 = arith.constant 0 : index
    %c0_87 = arith.constant 0 : index
    %c1_88 = arith.constant 1 : index
    %c0_89 = arith.constant 0 : index
    %68 = vector.load %arg10[%c0_86, %c0_87, %c1_88, %c0_89] : memref<2x18x18x8xf32, #tpu.memory_space<vmem>>, vector<2x16x16x8xf32>
    %69 = vector.shape_cast %68 : vector<2x16x16x8xf32> to vector<512x8xf32>
    %c0_90 = arith.constant 0 : index
    %c8_91 = arith.constant 8 : index
    %70 = vector.load %arg11[%c0_90, %c8_91] : memref<512x72xf32, #tpu.memory_space<vmem>>, vector<512x8xf32>
    tpu.vector_store %arg11[%c0_90, %c8_91], %69 {strides = array<i32>} : memref<512x72xf32, #tpu.memory_space<vmem>>, vector<512x8xf32>,
    %c0_92 = arith.constant 0 : index
    %c0_93 = arith.constant 0 : index
    %c2_94 = arith.constant 2 : index
    %c0_95 = arith.constant 0 : index
    %71 = vector.load %arg10[%c0_92, %c0_93, %c2_94, %c0_95] : memref<2x18x18x8xf32, #tpu.memory_space<vmem>>, vector<2x16x16x8xf32>
    %72 = vector.shape_cast %71 : vector<2x16x16x8xf32> to vector<512x8xf32>
    %c0_96 = arith.constant 0 : index
    %c16_97 = arith.constant 16 : index
    %73 = vector.load %arg11[%c0_96, %c16_97] : memref<512x72xf32, #tpu.memory_space<vmem>>, vector<512x8xf32>
    tpu.vector_store %arg11[%c0_96, %c16_97], %72 {strides = array<i32>} : memref<512x72xf32, #tpu.memory_space<vmem>>, vector<512x8xf32>,
    %c0_98 = arith.constant 0 : index
    %c1_99 = arith.constant 1 : index
    %c0_100 = arith.constant 0 : index
    %c0_101 = arith.constant 0 : index
    %74 = vector.load %arg10[%c0_98, %c1_99, %c0_100, %c0_101] : memref<2x18x18x8xf32, #tpu.memory_space<vmem>>, vector<2x16x16x8xf32>
    %75 = vector.shape_cast %74 : vector<2x16x16x8xf32> to vector<512x8xf32>
    %c0_102 = arith.constant 0 : index
    %c24_103 = arith.constant 24 : index
    %76 = vector.load %arg11[%c0_102, %c24_103] : memref<512x72xf32, #tpu.memory_space<vmem>>, vector<512x8xf32>
    tpu.vector_store %arg11[%c0_102, %c24_103], %75 {strides = array<i32>} : memref<512x72xf32, #tpu.memory_space<vmem>>, vector<512x8xf32>,
    %c0_104 = arith.constant 0 : index
    %c1_105 = arith.constant 1 : index
    %c1_106 = arith.constant 1 : index
    %c0_107 = arith.constant 0 : index
    %77 = vector.load %arg10[%c0_104, %c1_105, %c1_106, %c0_107] : memref<2x18x18x8xf32, #tpu.memory_space<vmem>>, vector<2x16x16x8xf32>
    %78 = vector.shape_cast %77 : vector<2x16x16x8xf32> to vector<512x8xf32>
    %c0_108 = arith.constant 0 : index
    %c32_109 = arith.constant 32 : index
    %79 = vector.load %arg11[%c0_108, %c32_109] : memref<512x72xf32, #tpu.memory_space<vmem>>, vector<512x8xf32>
    tpu.vector_store %arg11[%c0_108, %c32_109], %78 {strides = array<i32>} : memref<512x72xf32, #tpu.memory_space<vmem>>, vector<512x8xf32>,
    %c0_110 = arith.constant 0 : index
    %c1_111 = arith.constant 1 : index
    %c2_112 = arith.constant 2 : index
    %c0_113 = arith.constant 0 : index
    %80 = vector.load %arg10[%c0_110, %c1_111, %c2_112, %c0_113] : memref<2x18x18x8xf32, #tpu.memory_space<vmem>>, vector<2x16x16x8xf32>
    %81 = vector.shape_cast %80 : vector<2x16x16x8xf32> to vector<512x8xf32>
    %c0_114 = arith.constant 0 : index
    %c40 = arith.constant 40 : index
    %82 = vector.load %arg11[%c0_114, %c40] : memref<512x72xf32, #tpu.memory_space<vmem>>, vector<512x8xf32>
    tpu.vector_store %arg11[%c0_114, %c40], %81 {strides = array<i32>} : memref<512x72xf32, #tpu.memory_space<vmem>>, vector<512x8xf32>,
    %c0_115 = arith.constant 0 : index
    %c2_116 = arith.constant 2 : index
    %c0_117 = arith.constant 0 : index
    %c0_118 = arith.constant 0 : index
    %83 = vector.load %arg10[%c0_115, %c2_116, %c0_117, %c0_118] : memref<2x18x18x8xf32, #tpu.memory_space<vmem>>, vector<2x16x16x8xf32>
    %84 = vector.shape_cast %83 : vector<2x16x16x8xf32> to vector<512x8xf32>
    %c0_119 = arith.constant 0 : index
    %c48 = arith.constant 48 : index
    %85 = vector.load %arg11[%c0_119, %c48] : memref<512x72xf32, #tpu.memory_space<vmem>>, vector<512x8xf32>
    tpu.vector_store %arg11[%c0_119, %c48], %84 {strides = array<i32>} : memref<512x72xf32, #tpu.memory_space<vmem>>, vector<512x8xf32>,
    %c0_120 = arith.constant 0 : index
    %c2_121 = arith.constant 2 : index
    %c1_122 = arith.constant 1 : index
    %c0_123 = arith.constant 0 : index
    %86 = vector.load %arg10[%c0_120, %c2_121, %c1_122, %c0_123] : memref<2x18x18x8xf32, #tpu.memory_space<vmem>>, vector<2x16x16x8xf32>
    %87 = vector.shape_cast %86 : vector<2x16x16x8xf32> to vector<512x8xf32>
    %c0_124 = arith.constant 0 : index
    %c56 = arith.constant 56 : index
    %88 = vector.load %arg11[%c0_124, %c56] : memref<512x72xf32, #tpu.memory_space<vmem>>, vector<512x8xf32>
    tpu.vector_store %arg11[%c0_124, %c56], %87 {strides = array<i32>} : memref<512x72xf32, #tpu.memory_space<vmem>>, vector<512x8xf32>,
    %c0_125 = arith.constant 0 : index
    %c2_126 = arith.constant 2 : index
    %c2_127 = arith.constant 2 : index
    %c0_128 = arith.constant 0 : index
    %89 = vector.load %arg10[%c0_125, %c2_126, %c2_127, %c0_128] : memref<2x18x18x8xf32, #tpu.memory_space<vmem>>, vector<2x16x16x8xf32>
    %90 = vector.shape_cast %89 : vector<2x16x16x8xf32> to vector<512x8xf32>
    %c0_129 = arith.constant 0 : index
    %c64 = arith.constant 64 : index
    %91 = vector.load %arg11[%c0_129, %c64] : memref<512x72xf32, #tpu.memory_space<vmem>>, vector<512x8xf32>
    tpu.vector_store %arg11[%c0_129, %c64], %90 {strides = array<i32>} : memref<512x72xf32, #tpu.memory_space<vmem>>, vector<512x8xf32>,
    %c0_130 = arith.constant 0 : index
    %c0_131 = arith.constant 0 : index
    %92 = vector.load %arg11[%c0_130, %c0_131] : memref<512x72xf32, #tpu.memory_space<vmem>>, vector<512x72xf32>
    %c0_132 = arith.constant 0 : index
    %c0_133 = arith.constant 0 : index
    %93 = vector.load %arg5[%c0_132, %c0_133] : memref<72x8xf32, #tpu.memory_space<vmem>>, vector<72x8xf32>
    %cst_134 = arith.constant dense<0.000000e+00> : vector<512x8xf32>
    %94 = tpu.matmul %92, %93, %cst_134 {dimension_numbers = #tpu.dot_dimension_numbers<[1], [0], [0], [1], [0, 0, 1, 1], [], []>} : vector<512x72xf32>, vector<72x8xf32>, vector<512x8xf32> -> vector<512x8xf32>
    %cst_135 = arith.constant dense<0.000000e+00> : vector<8xf32>
    %95 = vector.multi_reduction <add>, %94, %cst_135 [0] : vector<512x8xf32> to vector<8xf32>
    %96 = vector.shape_cast %95 : vector<8xf32> to vector<1x8xf32>
    %97 = arith.mulf %94, %94 : vector<512x8xf32>
    %cst_136 = arith.constant dense<0.000000e+00> : vector<8xf32>
    %98 = vector.multi_reduction <add>, %97, %cst_136 [0] : vector<512x8xf32> to vector<8xf32>
    %99 = vector.shape_cast %98 : vector<8xf32> to vector<1x8xf32>
    %cst_137 = arith.constant 0.001953125 : f32
    %100 = vector.broadcast %cst_137 : f32 to vector<1x8xf32>
    %101 = arith.mulf %96, %100 : vector<1x8xf32>
    %cst_138 = arith.constant 0.001953125 : f32
    %102 = vector.broadcast %cst_138 : f32 to vector<1x8xf32>
    %103 = arith.mulf %99, %102 : vector<1x8xf32>
    %104 = arith.mulf %101, %101 : vector<1x8xf32>
    %105 = arith.subf %103, %104 : vector<1x8xf32>
    %c0_139 = arith.constant 0 : index
    %c0_140 = arith.constant 0 : index
    %106 = vector.load %arg6[%c0_139, %c0_140] : memref<1x8xf32, #tpu.memory_space<vmem>>, vector<1x8xf32>
    %cst_141 = arith.constant 9.99999974E-6 : f32
    %107 = vector.broadcast %cst_141 : f32 to vector<1x8xf32>
    %108 = arith.addf %105, %107 : vector<1x8xf32>
    %109 = math.rsqrt %108 : vector<1x8xf32>
    %110 = arith.mulf %106, %109 : vector<1x8xf32>
    %c0_142 = arith.constant 0 : index
    %c0_143 = arith.constant 0 : index
    %111 = vector.load %arg7[%c0_142, %c0_143] : memref<1x8xf32, #tpu.memory_space<vmem>>, vector<1x8xf32>
    %112 = arith.mulf %101, %110 : vector<1x8xf32>
    %113 = arith.subf %111, %112 : vector<1x8xf32>
    %114 = vector.broadcast %110 : vector<1x8xf32> to vector<512x8xf32>
    %115 = arith.mulf %94, %114 : vector<512x8xf32>
    %116 = vector.broadcast %113 : vector<1x8xf32> to vector<512x8xf32>
    %117 = arith.addf %115, %116 : vector<512x8xf32>
    %cst_144 = arith.constant 0.000000e+00 : f32
    %118 = vector.broadcast %cst_144 : f32 to vector<512x8xf32>
    %119 = arith.maximumf %117, %118 : vector<512x8xf32>
    %c0_145 = arith.constant 0 : index
    %c0_146 = arith.constant 0 : index
    %120 = vector.load %arg8[%c0_145, %c0_146] : memref<512x8xf32, #tpu.memory_space<vmem>>, vector<512x8xf32>
    tpu.vector_store %arg8[%c0_145, %c0_146], %119 {strides = array<i32>} : memref<512x8xf32, #tpu.memory_space<vmem>>, vector<512x8xf32>,
    return
  }
  func.func @transform_0(%arg0: i32) -> (i32, i32, i32, i32) {
    %c0_i32 = arith.constant 0 : i32
    %c0_i32_0 = arith.constant 0 : i32
    %c0_i32_1 = arith.constant 0 : i32
    %c0_i32_2 = arith.constant 0 : i32
    %c0_i32_3 = arith.constant 0 : i32
    return %c0_i32, %c0_i32_0, %c0_i32_1, %c0_i32_2 : i32, i32, i32, i32
  }
  func.func @transform_1(%arg0: i32) -> (i32, i32) {
    %c0_i32 = arith.constant 0 : i32
    %c0_i32_0 = arith.constant 0 : i32
    %c0_i32_1 = arith.constant 0 : i32
    return %c0_i32, %c0_i32_0 : i32, i32
  }
  func.func @transform_2(%arg0: i32) -> (i32, i32) {
    %c0_i32 = arith.constant 0 : i32
    %c0_i32_0 = arith.constant 0 : i32
    %c0_i32_1 = arith.constant 0 : i32
    return %c0_i32, %c0_i32_0 : i32, i32
  }
  func.func @transform_3(%arg0: i32) -> (i32, i32) {
    %c0_i32 = arith.constant 0 : i32
    %c0_i32_0 = arith.constant 0 : i32
    %c0_i32_1 = arith.constant 0 : i32
    return %c0_i32, %c0_i32_0 : i32, i32
  }
  func.func @transform_4(%arg0: i32) -> (i32, i32) {
    %c0_i32 = arith.constant 0 : i32
    %c0_i32_0 = arith.constant 0 : i32
    %c0_i32_1 = arith.constant 0 : i32
    return %c0_i32, %c0_i32_0 : i32, i32
  }
  func.func @transform_5(%arg0: i32) -> (i32, i32) {
    %c0_i32 = arith.constant 0 : i32
    %c0_i32_0 = arith.constant 0 : i32
    %c0_i32_1 = arith.constant 0 : i32
    return %c0_i32, %c0_i32_0 : i32, i32
  }
  func.func @transform_6(%arg0: i32) -> (i32, i32) {
    %c0_i32 = arith.constant 0 : i32
    %c0_i32_0 = arith.constant 0 : i32
    %c0_i32_1 = arith.constant 0 : i32
    return %c0_i32, %c0_i32_0 : i32, i32
  }
  func.func @transform_7(%arg0: i32) -> (i32, i32) {
    %c0_i32 = arith.constant 0 : i32
    %c0_i32_0 = arith.constant 0 : i32
    %c0_i32_1 = arith.constant 0 : i32
    return %c0_i32, %c0_i32_0 : i32, i32
  }
}

</mosaic_0001>

<llo_original>
// kernel: tpu_custom_call.1
$region0: #{tpu_custom_call.1}
  #allocation0 [shape = 'u32[]', space=smem, size = 0x4, offset = 0x4, fixed_abs, tag = 'smem constant byte address 0x4 - core index']
  #allocation1 [shape = 'u32[144,128]{1,0:T(1,128)}', space=vmem, size = 0x12000, scoped, tag = 'internal scratch']
  #allocation2 [shape = 'f32[512,36]{1,0:T(8,128)}', space=vmem, size = 0x40000, scoped, tag = 'scratch operand']
  #allocation3 [shape = 'f32[2,18,18,8]{3,2,1,0:T(8,128)}', space=vmem, size = 0x6c000, scoped, tag = 'scratch operand']
  #allocation4 [shape = 'f32[512,72]{1,0:T(8,128)}', space=vmem, size = 0x40000, scoped, tag = 'scratch operand']
  %s0 = inlined_call_operand.vmem [shape: f32[2,18,18,4], index: 0, kind: input, shape index: {}]
  %s1 = inlined_call_operand.vmem [shape: f32[36,8], index: 1, kind: input, shape index: {}]
  %s2 = inlined_call_operand.vmem [shape: f32[1,8], index: 2, kind: input, shape index: {}]
  %s3 = inlined_call_operand.vmem [shape: f32[1,8], index: 3, kind: input, shape index: {}]
  %s4 = inlined_call_operand.vmem [shape: f32[72,8], index: 4, kind: input, shape index: {}]
  %s5 = inlined_call_operand.vmem [shape: f32[1,8], index: 5, kind: input, shape index: {}]
  %s6 = inlined_call_operand.vmem [shape: f32[1,8], index: 6, kind: input, shape index: {}]
  %s7 = inlined_call_operand.vmem [shape: f32[512,8], index: 7, kind: output, shape index: {}]
  %s8 = sld [smem:[#allocation0]]
  $region38: #{tpu_custom_call.1} parent=0
    _
  %s10 = ssub.s32 1, %s8
  %s11 = scalar_select 0, %s10, %s8
  // Predicated region
  $region2: #{tpu_custom_call.1} parent=0 // pred_check
    _
  $region3: #{tpu_custom_call.1} parent=0 // pred_check_branch
    %13 = sbr.rel (0) target = $region5
  $region4: #{tpu_custom_call.1} parent=0 // pred_region
    _
  $region5: #{tpu_custom_call.1} parent=0 // pred_fallthru
    _
  // Predicated region
  $region6: #{tpu_custom_call.1} parent=0 // pred_check
    _
  $region7: #{tpu_custom_call.1} parent=0 // pred_check_branch
    %15 = sbr.rel (0) target = $region9
  $region8: #{tpu_custom_call.1} parent=0 // pred_region
    _
  $region9: #{tpu_custom_call.1} parent=0 // pred_fallthru
    _
  // Predicated region
  $region10: #{tpu_custom_call.1} parent=0 // pred_check
    _
  $region11: #{tpu_custom_call.1} parent=0 // pred_check_branch
    %17 = sbr.rel (0) target = $region13
  $region12: #{tpu_custom_call.1} parent=0 // pred_region
    _
  $region13: #{tpu_custom_call.1} parent=0 // pred_fallthru
    _
  // Predicated region
  $region14: #{tpu_custom_call.1} parent=0 // pred_check
    _
  $region15: #{tpu_custom_call.1} parent=0 // pred_check_branch
    %19 = sbr.rel (0) target = $region17
  $region16: #{tpu_custom_call.1} parent=0 // pred_region
    _
  $region17: #{tpu_custom_call.1} parent=0 // pred_fallthru
    _
  // Predicated region
  $region18: #{tpu_custom_call.1} parent=0 // pred_check
    _
  $region19: #{tpu_custom_call.1} parent=0 // pred_check_branch
    %21 = sbr.rel (0) target = $region21
  $region20: #{tpu_custom_call.1} parent=0 // pred_region
    _
  $region21: #{tpu_custom_call.1} parent=0 // pred_fallthru
    _
  // Predicated region
  $region22: #{tpu_custom_call.1} parent=0 // pred_check
    _
  $region23: #{tpu_custom_call.1} parent=0 // pred_check_branch
    %23 = sbr.rel (0) target = $region25
  $region24: #{tpu_custom_call.1} parent=0 // pred_region
    _
  $region25: #{tpu_custom_call.1} parent=0 // pred_fallthru
    _
  // Predicated region
  $region26: #{tpu_custom_call.1} parent=0 // pred_check
    _
  $region27: #{tpu_custom_call.1} parent=0 // pred_check_branch
    %25 = sbr.rel (0) target = $region29
  $region28: #{tpu_custom_call.1} parent=0 // pred_region
    _
  $region29: #{tpu_custom_call.1} parent=0 // pred_fallthru
    _
  %v26 = vld [vmem:[%s0] sm:$0xff]
  %v27 = vld [vmem:[%s0 + $0x8] sm:$0xff]
  %v28 = vld [vmem:[%s0 + $0x18] sm:$0xff]
  %v29 = vld [vmem:[%s0 + $0x20] sm:$0xff]
  %v30 = vld [vmem:[%s0 + $0x30] sm:$0xff]
  %v31 = vld [vmem:[%s0 + $0x38] sm:$0xff]
  %v32 = vld [vmem:[%s0 + $0x48] sm:$0xff]
  %v33 = vld [vmem:[%s0 + $0x50] sm:$0xff]
  %v34 = vld [vmem:[%s0 + $0x60] sm:$0xff]
  %v35 = vld [vmem:[%s0 + $0x68] sm:$0xff]
  %v36 = vld [vmem:[%s0 + $0x78] sm:$0xff]
  %v37 = vld [vmem:[%s0 + $0x80] sm:$0xff]
  %v38 = vld [vmem:[%s0 + $0x90] sm:$0xff]
  %v39 = vld [vmem:[%s0 + $0x98] sm:$0xff]
  %v40 = vld [vmem:[%s0 + $0xa8] sm:$0xff]
  %v41 = vld [vmem:[%s0 + $0xb0] sm:$0xff]
  %v42 = vld [vmem:[%s0 + $0xc0] sm:$0xff]
  %v43 = vld [vmem:[%s0 + $0xc8] sm:$0xff]
  %v44 = vld [vmem:[%s0 + $0xd8] sm:$0xff]
  %v45 = vld [vmem:[%s0 + $0xe0] sm:$0xff]
  %v46 = vld [vmem:[%s0 + $0xf0] sm:$0xff]
  %v47 = vld [vmem:[%s0 + $0xf8] sm:$0xff]
  %v48 = vld [vmem:[%s0 + $0x108] sm:$0xff]
  %v49 = vld [vmem:[%s0 + $0x110] sm:$0xff]
  %v50 = vld [vmem:[%s0 + $0x120] sm:$0xff]
  %v51 = vld [vmem:[%s0 + $0x128] sm:$0xff]
  %v52 = vld [vmem:[%s0 + $0x138] sm:$0xff]
  %v53 = vld [vmem:[%s0 + $0x140] sm:$0xff]
  %v54 = vld [vmem:[%s0 + $0x150] sm:$0xff]
  %v55 = vld [vmem:[%s0 + $0x158] sm:$0xff]
  %v56 = vld [vmem:[%s0 + $0x168] sm:$0xff]
  %v57 = vld [vmem:[%s0 + $0x170] sm:$0xff]
  %v58 = vld [vmem:[%s0 + $0x1b0] sm:$0xff]
  %v59 = vld [vmem:[%s0 + $0x1b8] sm:$0xff]
  %v60 = vld [vmem:[%s0 + $0x1c8] sm:$0xff]
  %v61 = vld [vmem:[%s0 + $0x1d0] sm:$0xff]
  %v62 = vld [vmem:[%s0 + $0x1e0] sm:$0xff]
  %v63 = vld [vmem:[%s0 + $0x1e8] sm:$0xff]
  %v64 = vld [vmem:[%s0 + $0x1f8] sm:$0xff]
  %v65 = vld [vmem:[%s0 + $0x200] sm:$0xff]
  %v66 = vld [vmem:[%s0 + $0x210] sm:$0xff]
  %v67 = vld [vmem:[%s0 + $0x218] sm:$0xff]
  %v68 = vld [vmem:[%s0 + $0x228] sm:$0xff]
  %v69 = vld [vmem:[%s0 + $0x230] sm:$0xff]
  %v70 = vld [vmem:[%s0 + $0x240] sm:$0xff]
  %v71 = vld [vmem:[%s0 + $0x248] sm:$0xff]
  %v72 = vld [vmem:[%s0 + $0x258] sm:$0xff]
  %v73 = vld [vmem:[%s0 + $0x260] sm:$0xff]
  %v74 = vld [vmem:[%s0 + $0x270] sm:$0xff]
  %v75 = vld [vmem:[%s0 + $0x278] sm:$0xff]
  %v76 = vld [vmem:[%s0 + $0x288] sm:$0xff]
  %v77 = vld [vmem:[%s0 + $0x290] sm:$0xff]
  %v78 = vld [vmem:[%s0 + $0x2a0] sm:$0xff]
  %v79 = vld [vmem:[%s0 + $0x2a8] sm:$0xff]
  %v80 = vld [vmem:[%s0 + $0x2b8] sm:$0xff]
  %v81 = vld [vmem:[%s0 + $0x2c0] sm:$0xff]
  %v82 = vld [vmem:[%s0 + $0x2d0] sm:$0xff]
  %v83 = vld [vmem:[%s0 + $0x2d8] sm:$0xff]
  %v84 = vld [vmem:[%s0 + $0x2e8] sm:$0xff]
  %v85 = vld [vmem:[%s0 + $0x2f0] sm:$0xff]
  %v86 = vld [vmem:[%s0 + $0x300] sm:$0xff]
  %v87 = vld [vmem:[%s0 + $0x308] sm:$0xff]
  %v88 = vld [vmem:[%s0 + $0x318] sm:$0xff]
  %v89 = vld [vmem:[%s0 + $0x320] sm:$0xff]
  %vm90 = vcmask 31744
  %91 = vst.msk [vmem:[#allocation2] sm:$0xff] %vm90, %v26
  %92 = vst.msk [vmem:[#allocation2 + $0x8] sm:$0xff] %vm90, %v27
  %93 = vst.msk [vmem:[#allocation2 + $0x10] sm:$0xff] %vm90, %v28
  %94 = vst.msk [vmem:[#allocation2 + $0x18] sm:$0xff] %vm90, %v29
  %95 = vst.msk [vmem:[#allocation2 + $0x20] sm:$0xff] %vm90, %v30
  %96 = vst.msk [vmem:[#allocation2 + $0x28] sm:$0xff] %vm90, %v31
  %97 = vst.msk [vmem:[#allocation2 + $0x30] sm:$0xff] %vm90, %v32
  %98 = vst.msk [vmem:[#allocation2 + $0x38] sm:$0xff] %vm90, %v33
  %99 = vst.msk [vmem:[#allocation2 + $0x40] sm:$0xff] %vm90, %v34
  %100 = vst.msk [vmem:[#allocation2 + $0x48] sm:$0xff] %vm90, %v35
  %101 = vst.msk [vmem:[#allocation2 + $0x50] sm:$0xff] %vm90, %v36
  %102 = vst.msk [vmem:[#allocation2 + $0x58] sm:$0xff] %vm90, %v37
  %103 = vst.msk [vmem:[#allocation2 + $0x60] sm:$0xff] %vm90, %v38
  %104 = vst.msk [vmem:[#allocation2 + $0x68] sm:$0xff] %vm90, %v39
  %105 = vst.msk [vmem:[#allocation2 + $0x70] sm:$0xff] %vm90, %v40
  %106 = vst.msk [vmem:[#allocation2 + $0x78] sm:$0xff] %vm90, %v41
  %107 = vst.msk [vmem:[#allocation2 + $0x80] sm:$0xff] %vm90, %v42
  %108 = vst.msk [vmem:[#allocation2 + $0x88] sm:$0xff] %vm90, %v43
  %109 = vst.msk [vmem:[#allocation2 + $0x90] sm:$0xff] %vm90, %v44
  %110 = vst.msk [vmem:[#allocation2 + $0x98] sm:$0xff] %vm90, %v45
  %111 = vst.msk [vmem:[#allocation2 + $0xa0] sm:$0xff] %vm90, %v46
  %112 = vst.msk [vmem:[#allocation2 + $0xa8] sm:$0xff] %vm90, %v47
  %113 = vst.msk [vmem:[#allocation2 + $0xb0] sm:$0xff] %vm90, %v48
  %114 = vst.msk [vmem:[#allocation2 + $0xb8] sm:$0xff] %vm90, %v49
  %115 = vst.msk [vmem:[#allocation2 + $0xc0] sm:$0xff] %vm90, %v50
  %116 = vst.msk [vmem:[#allocation2 + $0xc8] sm:$0xff] %vm90, %v51
  %117 = vst.msk [vmem:[#allocation2 + $0xd0] sm:$0xff] %vm90, %v52
  %118 = vst.msk [vmem:[#allocation2 + $0xd8] sm:$0xff] %vm90, %v53
  %119 = vst.msk [vmem:[#allocation2 + $0xe0] sm:$0xff] %vm90, %v54
  %120 = vst.msk [vmem:[#allocation2 + $0xe8] sm:$0xff] %vm90, %v55
  %121 = vst.msk [vmem:[#allocation2 + $0xf0] sm:$0xff] %vm90, %v56
  %122 = vst.msk [vmem:[#allocation2 + $0xf8] sm:$0xff] %vm90, %v57
  %123 = vst.msk [vmem:[#allocation2 + $0x100] sm:$0xff] %vm90, %v58
  %124 = vst.msk [vmem:[#allocation2 + $0x108] sm:$0xff] %vm90, %v59
  %125 = vst.msk [vmem:[#allocation2 + $0x110] sm:$0xff] %vm90, %v60
  %126 = vst.msk [vmem:[#allocation2 + $0x118] sm:$0xff] %vm90, %v61
  %127 = vst.msk [vmem:[#allocation2 + $0x120] sm:$0xff] %vm90, %v62
  %128 = vst.msk [vmem:[#allocation2 + $0x128] sm:$0xff] %vm90, %v63
  %129 = vst.msk [vmem:[#allocation2 + $0x130] sm:$0xff] %vm90, %v64
  %130 = vst.msk [vmem:[#allocation2 + $0x138] sm:$0xff] %vm90, %v65
  %131 = vst.msk [vmem:[#allocation2 + $0x140] sm:$0xff] %vm90, %v66
  %132 = vst.msk [vmem:[#allocation2 + $0x148] sm:$0xff] %vm90, %v67
  %133 = vst.msk [vmem:[#allocation2 + $0x150] sm:$0xff] %vm90, %v68
  %134 = vst.msk [vmem:[#allocation2 + $0x158] sm:$0xff] %vm90, %v69
  %135 = vst.msk [vmem:[#allocation2 + $0x160] sm:$0xff] %vm90, %v70
  %136 = vst.msk [vmem:[#allocation2 + $0x168] sm:$0xff] %vm90, %v71
  %137 = vst.msk [vmem:[#allocation2 + $0x170] sm:$0xff] %vm90, %v72
  %138 = vst.msk [vmem:[#allocation2 + $0x178] sm:$0xff] %vm90, %v73
  %139 = vst.msk [vmem:[#allocation2 + $0x180] sm:$0xff] %vm90, %v74
  %140 = vst.msk [vmem:[#allocation2 + $0x188] sm:$0xff] %vm90, %v75
  %141 = vst.msk [vmem:[#allocation2 + $0x190] sm:$0xff] %vm90, %v76
  %142 = vst.msk [vmem:[#allocation2 + $0x198] sm:$0xff] %vm90, %v77
  %143 = vst.msk [vmem:[#allocation2 + $0x1a0] sm:$0xff] %vm90, %v78
  %144 = vst.msk [vmem:[#allocation2 + $0x1a8] sm:$0xff] %vm90, %v79
  %145 = vst.msk [vmem:[#allocation2 + $0x1b0] sm:$0xff] %vm90, %v80
  %146 = vst.msk [vmem:[#allocation2 + $0x1b8] sm:$0xff] %vm90, %v81
  %147 = vst.msk [vmem:[#allocation2 + $0x1c0] sm:$0xff] %vm90, %v82
  %148 = vst.msk [vmem:[#allocation2 + $0x1c8] sm:$0xff] %vm90, %v83
  %149 = vst.msk [vmem:[#allocation2 + $0x1d0] sm:$0xff] %vm90, %v84
  %150 = vst.msk [vmem:[#allocation2 + $0x1d8] sm:$0xff] %vm90, %v85
  %151 = vst.msk [vmem:[#allocation2 + $0x1e0] sm:$0xff] %vm90, %v86
  %152 = vst.msk [vmem:[#allocation2 + $0x1e8] sm:$0xff] %vm90, %v87
  %153 = vst.msk [vmem:[#allocation2 + $0x1f0] sm:$0xff] %vm90, %v88
  %154 = vst.msk [vmem:[#allocation2 + $0x1f8] sm:$0xff] %vm90, %v89
  %v155 = vld [vmem:[%s0 + $0x1] sm:$0xff]
  %v156 = vld [vmem:[%s0 + $0x9] sm:$0xff]
  %v157 = vld [vmem:[%s0 + $0x19] sm:$0xff]
  %v158 = vld [vmem:[%s0 + $0x21] sm:$0xff]
  %v159 = vld [vmem:[%s0 + $0x31] sm:$0xff]
  %v160 = vld [vmem:[%s0 + $0x39] sm:$0xff]
  %v161 = vld [vmem:[%s0 + $0x49] sm:$0xff]
  %v162 = vld [vmem:[%s0 + $0x51] sm:$0xff]
  %v163 = vld [vmem:[%s0 + $0x61] sm:$0xff]
  %v164 = vld [vmem:[%s0 + $0x69] sm:$0xff]
  %v165 = vld [vmem:[%s0 + $0x79] sm:$0xff]
  %v166 = vld [vmem:[%s0 + $0x81] sm:$0xff]
  %v167 = vld [vmem:[%s0 + $0x91] sm:$0xff]
  %v168 = vld [vmem:[%s0 + $0x99] sm:$0xff]
  %v169 = vld [vmem:[%s0 + $0xa9] sm:$0xff]
  %v170 = vld [vmem:[%s0 + $0xb1] sm:$0xff]
  %v171 = vld [vmem:[%s0 + $0xc1] sm:$0xff]
  %v172 = vld [vmem:[%s0 + $0xc9] sm:$0xff]
  %v173 = vld [vmem:[%s0 + $0xd9] sm:$0xff]
  %v174 = vld [vmem:[%s0 + $0xe1] sm:$0xff]
  %v175 = vld [vmem:[%s0 + $0xf1] sm:$0xff]
  %v176 = vld [vmem:[%s0 + $0xf9] sm:$0xff]
  %v177 = vld [vmem:[%s0 + $0x109] sm:$0xff]
  %v178 = vld [vmem:[%s0 + $0x111] sm:$0xff]
  %v179 = vld [vmem:[%s0 + $0x121] sm:$0xff]
  %v180 = vld [vmem:[%s0 + $0x129] sm:$0xff]
  %v181 = vld [vmem:[%s0 + $0x139] sm:$0xff]
  %v182 = vld [vmem:[%s0 + $0x141] sm:$0xff]
  %v183 = vld [vmem:[%s0 + $0x151] sm:$0xff]
  %v184 = vld [vmem:[%s0 + $0x159] sm:$0xff]
  %v185 = vld [vmem:[%s0 + $0x169] sm:$0xff]
  %v186 = vld [vmem:[%s0 + $0x171] sm:$0xff]
  %v187 = vld [vmem:[%s0 + $0x1b1] sm:$0xff]
  %v188 = vld [vmem:[%s0 + $0x1b9] sm:$0xff]
  %v189 = vld [vmem:[%s0 + $0x1c9] sm:$0xff]
  %v190 = vld [vmem:[%s0 + $0x1d1] sm:$0xff]
  %v191 = vld [vmem:[%s0 + $0x1e1] sm:$0xff]
  %v192 = vld [vmem:[%s0 + $0x1e9] sm:$0xff]
  %v193 = vld [vmem:[%s0 + $0x1f9] sm:$0xff]
  %v194 = vld [vmem:[%s0 + $0x201] sm:$0xff]
  %v195 = vld [vmem:[%s0 + $0x211] sm:$0xff]
  %v196 = vld [vmem:[%s0 + $0x219] sm:$0xff]
  %v197 = vld [vmem:[%s0 + $0x229] sm:$0xff]
  %v198 = vld [vmem:[%s0 + $0x231] sm:$0xff]
  %v199 = vld [vmem:[%s0 + $0x241] sm:$0xff]
  %v200 = vld [vmem:[%s0 + $0x249] sm:$0xff]
  %v201 = vld [vmem:[%s0 + $0x259] sm:$0xff]
  %v202 = vld [vmem:[%s0 + $0x261] sm:$0xff]
  %v203 = vld [vmem:[%s0 + $0x271] sm:$0xff]
  %v204 = vld [vmem:[%s0 + $0x279] sm:$0xff]
  %v205 = vld [vmem:[%s0 + $0x289] sm:$0xff]
  %v206 = vld [vmem:[%s0 + $0x291] sm:$0xff]
  %v207 = vld [vmem:[%s0 + $0x2a1] sm:$0xff]
  %v208 = vld [vmem:[%s0 + $0x2a9] sm:$0xff]
  %v209 = vld [vmem:[%s0 + $0x2b9] sm:$0xff]
  %v210 = vld [vmem:[%s0 + $0x2c1] sm:$0xff]
  %v211 = vld [vmem:[%s0 + $0x2d1] sm:$0xff]
  %v212 = vld [vmem:[%s0 + $0x2d9] sm:$0xff]
  %v213 = vld [vmem:[%s0 + $0x2e9] sm:$0xff]
  %v214 = vld [vmem:[%s0 + $0x2f1] sm:$0xff]
  %v215 = vld [vmem:[%s0 + $0x301] sm:$0xff]
  %v216 = vld [vmem:[%s0 + $0x309] sm:$0xff]
  %v217 = vld [vmem:[%s0 + $0x319] sm:$0xff]
  %v218 = vld [vmem:[%s0 + $0x321] sm:$0xff]
  %283 = vrot.lane.b32.xlu0 %v155, 4
  %v284 = vpop.permute.xlu0 %283
  %285 = vrot.lane.b32.xlu0 %v156, 4
  %v286 = vpop.permute.xlu0 %285
  %287 = vrot.lane.b32.xlu0 %v157, 4
  %v288 = vpop.permute.xlu0 %287
  %289 = vrot.lane.b32.xlu0 %v158, 4
  %v290 = vpop.permute.xlu0 %289
  %291 = vrot.lane.b32.xlu0 %v159, 4
  %v292 = vpop.permute.xlu0 %291
  %293 = vrot.lane.b32.xlu0 %v160, 4
  %v294 = vpop.permute.xlu0 %293
  %295 = vrot.lane.b32.xlu0 %v161, 4
  %v296 = vpop.permute.xlu0 %295
  %297 = vrot.lane.b32.xlu0 %v162, 4
  %v298 = vpop.permute.xlu0 %297
  %299 = vrot.lane.b32.xlu0 %v163, 4
  %v300 = vpop.permute.xlu0 %299
  %301 = vrot.lane.b32.xlu0 %v164, 4
  %v302 = vpop.permute.xlu0 %301
  %303 = vrot.lane.b32.xlu0 %v165, 4
  %v304 = vpop.permute.xlu0 %303
  %305 = vrot.lane.b32.xlu0 %v166, 4
  %v306 = vpop.permute.xlu0 %305
  %307 = vrot.lane.b32.xlu0 %v167, 4
  %v308 = vpop.permute.xlu0 %307
  %309 = vrot.lane.b32.xlu0 %v168, 4
  %v310 = vpop.permute.xlu0 %309
  %311 = vrot.lane.b32.xlu0 %v169, 4
  %v312 = vpop.permute.xlu0 %311
  %313 = vrot.lane.b32.xlu0 %v170, 4
  %v314 = vpop.permute.xlu0 %313
  %315 = vrot.lane.b32.xlu0 %v171, 4
  %v316 = vpop.permute.xlu0 %315
  %317 = vrot.lane.b32.xlu0 %v172, 4
  %v318 = vpop.permute.xlu0 %317
  %319 = vrot.lane.b32.xlu0 %v173, 4
  %v320 = vpop.permute.xlu0 %319
  %321 = vrot.lane.b32.xlu0 %v174, 4
  %v322 = vpop.permute.xlu0 %321
  %323 = vrot.lane.b32.xlu0 %v175, 4
  %v324 = vpop.permute.xlu0 %323
  %325 = vrot.lane.b32.xlu0 %v176, 4
  %v326 = vpop.permute.xlu0 %325
  %327 = vrot.lane.b32.xlu0 %v177, 4
  %v328 = vpop.permute.xlu0 %327
  %329 = vrot.lane.b32.xlu0 %v178, 4
  %v330 = vpop.permute.xlu0 %329
  %331 = vrot.lane.b32.xlu0 %v179, 4
  %v332 = vpop.permute.xlu0 %331
  %333 = vrot.lane.b32.xlu0 %v180, 4
  %v334 = vpop.permute.xlu0 %333
  %335 = vrot.lane.b32.xlu0 %v181, 4
  %v336 = vpop.permute.xlu0 %335
  %337 = vrot.lane.b32.xlu0 %v182, 4
  %v338 = vpop.permute.xlu0 %337
  %339 = vrot.lane.b32.xlu0 %v183, 4
  %v340 = vpop.permute.xlu0 %339
  %341 = vrot.lane.b32.xlu0 %v184, 4
  %v342 = vpop.permute.xlu0 %341
  %343 = vrot.lane.b32.xlu0 %v185, 4
  %v344 = vpop.permute.xlu0 %343
  %345 = vrot.lane.b32.xlu0 %v186, 4
  %v346 = vpop.permute.xlu0 %345
  %347 = vrot.lane.b32.xlu0 %v187, 4
  %v348 = vpop.permute.xlu0 %347
  %349 = vrot.lane.b32.xlu0 %v188, 4
  %v350 = vpop.permute.xlu0 %349
  %351 = vrot.lane.b32.xlu0 %v189, 4
  %v352 = vpop.permute.xlu0 %351
  %353 = vrot.lane.b32.xlu0 %v190, 4
  %v354 = vpop.permute.xlu0 %353
  %355 = vrot.lane.b32.xlu0 %v191, 4
  %v356 = vpop.permute.xlu0 %355
  %357 = vrot.lane.b32.xlu0 %v192, 4
  %v358 = vpop.permute.xlu0 %357
  %359 = vrot.lane.b32.xlu0 %v193, 4
  %v360 = vpop.permute.xlu0 %359
  %361 = vrot.lane.b32.xlu0 %v194, 4
  %v362 = vpop.permute.xlu0 %361
  %363 = vrot.lane.b32.xlu0 %v195, 4
  %v364 = vpop.permute.xlu0 %363
  %365 = vrot.lane.b32.xlu0 %v196, 4
  %v366 = vpop.permute.xlu0 %365
  %367 = vrot.lane.b32.xlu0 %v197, 4
  %v368 = vpop.permute.xlu0 %367
  %369 = vrot.lane.b32.xlu0 %v198, 4
  %v370 = vpop.permute.xlu0 %369
  %371 = vrot.lane.b32.xlu0 %v199, 4
  %v372 = vpop.permute.xlu0 %371
  %373 = vrot.lane.b32.xlu0 %v200, 4
  %v374 = vpop.permute.xlu0 %373
  %375 = vrot.lane.b32.xlu0 %v201, 4
  %v376 = vpop.permute.xlu0 %375
  %377 = vrot.lane.b32.xlu0 %v202, 4
  %v378 = vpop.permute.xlu0 %377
  %379 = vrot.lane.b32.xlu0 %v203, 4
  %v380 = vpop.permute.xlu0 %379
  %381 = vrot.lane.b32.xlu0 %v204, 4
  %v382 = vpop.permute.xlu0 %381
  %383 = vrot.lane.b32.xlu0 %v205, 4
  %v384 = vpop.permute.xlu0 %383
  %385 = vrot.lane.b32.xlu0 %v206, 4
  %v386 = vpop.permute.xlu0 %385
  %387 = vrot.lane.b32.xlu0 %v207, 4
  %v388 = vpop.permute.xlu0 %387
  %389 = vrot.lane.b32.xlu0 %v208, 4
  %v390 = vpop.permute.xlu0 %389
  %391 = vrot.lane.b32.xlu0 %v209, 4
  %v392 = vpop.permute.xlu0 %391
  %393 = vrot.lane.b32.xlu0 %v210, 4
  %v394 = vpop.permute.xlu0 %393
  %395 = vrot.lane.b32.xlu0 %v211, 4
  %v396 = vpop.permute.xlu0 %395
  %397 = vrot.lane.b32.xlu0 %v212, 4
  %v398 = vpop.permute.xlu0 %397
  %399 = vrot.lane.b32.xlu0 %v213, 4
  %v400 = vpop.permute.xlu0 %399
  %401 = vrot.lane.b32.xlu0 %v214, 4
  %v402 = vpop.permute.xlu0 %401
  %403 = vrot.lane.b32.xlu0 %v215, 4
  %v404 = vpop.permute.xlu0 %403
  %405 = vrot.lane.b32.xlu0 %v216, 4
  %v406 = vpop.permute.xlu0 %405
  %407 = vrot.lane.b32.xlu0 %v217, 4
  %v408 = vpop.permute.xlu0 %407
  %409 = vrot.lane.b32.xlu0 %v218, 4
  %v410 = vpop.permute.xlu0 %409
  %vm475 = vcmask 64544
  %476 = vst.msk [vmem:[#allocation2] sm:$0xff] %vm475, %v284
  %477 = vst.msk [vmem:[#allocation2 + $0x8] sm:$0xff] %vm475, %v286
  %478 = vst.msk [vmem:[#allocation2 + $0x10] sm:$0xff] %vm475, %v288
  %479 = vst.msk [vmem:[#allocation2 + $0x18] sm:$0xff] %vm475, %v290
  %480 = vst.msk [vmem:[#allocation2 + $0x20] sm:$0xff] %vm475, %v292
  %481 = vst.msk [vmem:[#allocation2 + $0x28] sm:$0xff] %vm475, %v294
  %482 = vst.msk [vmem:[#allocation2 + $0x30] sm:$0xff] %vm475, %v296
  %483 = vst.msk [vmem:[#allocation2 + $0x38] sm:$0xff] %vm475, %v298
  %484 = vst.msk [vmem:[#allocation2 + $0x40] sm:$0xff] %vm475, %v300
  %485 = vst.msk [vmem:[#allocation2 + $0x48] sm:$0xff] %vm475, %v302
  %486 = vst.msk [vmem:[#allocation2 + $0x50] sm:$0xff] %vm475, %v304
  %487 = vst.msk [vmem:[#allocation2 + $0x58] sm:$0xff] %vm475, %v306
  %488 = vst.msk [vmem:[#allocation2 + $0x60] sm:$0xff] %vm475, %v308
  %489 = vst.msk [vmem:[#allocation2 + $0x68] sm:$0xff] %vm475, %v310
  %490 = vst.msk [vmem:[#allocation2 + $0x70] sm:$0xff] %vm475, %v312
  %491 = vst.msk [vmem:[#allocation2 + $0x78] sm:$0xff] %vm475, %v314
  %492 = vst.msk [vmem:[#allocation2 + $0x80] sm:$0xff] %vm475, %v316
  %493 = vst.msk [vmem:[#allocation2 + $0x88] sm:$0xff] %vm475, %v318
  %494 = vst.msk [vmem:[#allocation2 + $0x90] sm:$0xff] %vm475, %v320
  %495 = vst.msk [vmem:[#allocation2 + $0x98] sm:$0xff] %vm475, %v322
  %496 = vst.msk [vmem:[#allocation2 + $0xa0] sm:$0xff] %vm475, %v324
  %497 = vst.msk [vmem:[#allocation2 + $0xa8] sm:$0xff] %vm475, %v326
  %498 = vst.msk [vmem:[#allocation2 + $0xb0] sm:$0xff] %vm475, %v328
  %499 = vst.msk [vmem:[#allocation2 + $0xb8] sm:$0xff] %vm475, %v330
  %500 = vst.msk [vmem:[#allocation2 + $0xc0] sm:$0xff] %vm475, %v332
  %501 = vst.msk [vmem:[#allocation2 + $0xc8] sm:$0xff] %vm475, %v334
  %502 = vst.msk [vmem:[#allocation2 + $0xd0] sm:$0xff] %vm475, %v336
  %503 = vst.msk [vmem:[#allocation2 + $0xd8] sm:$0xff] %vm475, %v338
  %504 = vst.msk [vmem:[#allocation2 + $0xe0] sm:$0xff] %vm475, %v340
  %505 = vst.msk [vmem:[#allocation2 + $0xe8] sm:$0xff] %vm475, %v342
  %506 = vst.msk [vmem:[#allocation2 + $0xf0] sm:$0xff] %vm475, %v344
  %507 = vst.msk [vmem:[#allocation2 + $0xf8] sm:$0xff] %vm475, %v346
  %508 = vst.msk [vmem:[#allocation2 + $0x100] sm:$0xff] %vm475, %v348
  %509 = vst.msk [vmem:[#allocation2 + $0x108] sm:$0xff] %vm475, %v350
  %510 = vst.msk [vmem:[#allocation2 + $0x110] sm:$0xff] %vm475, %v352
  %511 = vst.msk [vmem:[#allocation2 + $0x118] sm:$0xff] %vm475, %v354
  %512 = vst.msk [vmem:[#allocation2 + $0x120] sm:$0xff] %vm475, %v356
  %513 = vst.msk [vmem:[#allocation2 + $0x128] sm:$0xff] %vm475, %v358
  %514 = vst.msk [vmem:[#allocation2 + $0x130] sm:$0xff] %vm475, %v360
  %515 = vst.msk [vmem:[#allocation2 + $0x138] sm:$0xff] %vm475, %v362
  %516 = vst.msk [vmem:[#allocation2 + $0x140] sm:$0xff] %vm475, %v364
  %517 = vst.msk [vmem:[#allocation2 + $0x148] sm:$0xff] %vm475, %v366
  %518 = vst.msk [vmem:[#allocation2 + $0x150] sm:$0xff] %vm475, %v368
  %519 = vst.msk [vmem:[#allocation2 + $0x158] sm:$0xff] %vm475, %v370
  %520 = vst.msk [vmem:[#allocation2 + $0x160] sm:$0xff] %vm475, %v372
  %521 = vst.msk [vmem:[#allocation2 + $0x168] sm:$0xff] %vm475, %v374
  %522 = vst.msk [vmem:[#allocation2 + $0x170] sm:$0xff] %vm475, %v376
  %523 = vst.msk [vmem:[#allocation2 + $0x178] sm:$0xff] %vm475, %v378
  %524 = vst.msk [vmem:[#allocation2 + $0x180] sm:$0xff] %vm475, %v380
  %525 = vst.msk [vmem:[#allocation2 + $0x188] sm:$0xff] %vm475, %v382
  %526 = vst.msk [vmem:[#allocation2 + $0x190] sm:$0xff] %vm475, %v384
  %527 = vst.msk [vmem:[#allocation2 + $0x198] sm:$0xff] %vm475, %v386
  %528 = vst.msk [vmem:[#allocation2 + $0x1a0] sm:$0xff] %vm475, %v388
  %529 = vst.msk [vmem:[#allocation2 + $0x1a8] sm:$0xff] %vm475, %v390
  %530 = vst.msk [vmem:[#allocation2 + $0x1b0] sm:$0xff] %vm475, %v392
  %531 = vst.msk [vmem:[#allocation2 + $0x1b8] sm:$0xff] %vm475, %v394
  %532 = vst.msk [vmem:[#allocation2 + $0x1c0] sm:$0xff] %vm475, %v396
  %533 = vst.msk [vmem:[#allocation2 + $0x1c8] sm:$0xff] %vm475, %v398
  %534 = vst.msk [vmem:[#allocation2 + $0x1d0] sm:$0xff] %vm475, %v400
  %535 = vst.msk [vmem:[#allocation2 + $0x1d8] sm:$0xff] %vm475, %v402
  %536 = vst.msk [vmem:[#allocation2 + $0x1e0] sm:$0xff] %vm475, %v404
  %537 = vst.msk [vmem:[#allocation2 + $0x1e8] sm:$0xff] %vm475, %v406
  %538 = vst.msk [vmem:[#allocation2 + $0x1f0] sm:$0xff] %vm475, %v408
  %539 = vst.msk [vmem:[#allocation2 + $0x1f8] sm:$0xff] %vm475, %v410
  %v540 = vld [vmem:[%s0 + $0x2] sm:$0xff]
  %v541 = vld [vmem:[%s0 + $0xa] sm:$0xff]
  %v542 = vld [vmem:[%s0 + $0x1a] sm:$0xff]
  %v543 = vld [vmem:[%s0 + $0x22] sm:$0xff]
  %v544 = vld [vmem:[%s0 + $0x32] sm:$0xff]
  %v545 = vld [vmem:[%s0 + $0x3a] sm:$0xff]
  %v546 = vld [vmem:[%s0 + $0x4a] sm:$0xff]
  %v547 = vld [vmem:[%s0 + $0x52] sm:$0xff]
  %v548 = vld [vmem:[%s0 + $0x62] sm:$0xff]
  %v549 = vld [vmem:[%s0 + $0x6a] sm:$0xff]
  %v550 = vld [vmem:[%s0 + $0x7a] sm:$0xff]
  %v551 = vld [vmem:[%s0 + $0x82] sm:$0xff]
  %v552 = vld [vmem:[%s0 + $0x92] sm:$0xff]
  %v553 = vld [vmem:[%s0 + $0x9a] sm:$0xff]
  %v554 = vld [vmem:[%s0 + $0xaa] sm:$0xff]
  %v555 = vld [vmem:[%s0 + $0xb2] sm:$0xff]
  %v556 = vld [vmem:[%s0 + $0xc2] sm:$0xff]
  %v557 = vld [vmem:[%s0 + $0xca] sm:$0xff]
  %v558 = vld [vmem:[%s0 + $0xda] sm:$0xff]
  %v559 = vld [vmem:[%s0 + $0xe2] sm:$0xff]
  %v560 = vld [vmem:[%s0 + $0xf2] sm:$0xff]
  %v561 = vld [vmem:[%s0 + $0xfa] sm:$0xff]
  %v562 = vld [vmem:[%s0 + $0x10a] sm:$0xff]
  %v563 = vld [vmem:[%s0 + $0x112] sm:$0xff]
  %v564 = vld [vmem:[%s0 + $0x122] sm:$0xff]
  %v565 = vld [vmem:[%s0 + $0x12a] sm:$0xff]
  %v566 = vld [vmem:[%s0 + $0x13a] sm:$0xff]
  %v567 = vld [vmem:[%s0 + $0x142] sm:$0xff]
  %v568 = vld [vmem:[%s0 + $0x152] sm:$0xff]
  %v569 = vld [vmem:[%s0 + $0x15a] sm:$0xff]
  %v570 = vld [vmem:[%s0 + $0x16a] sm:$0xff]
  %v571 = vld [vmem:[%s0 + $0x172] sm:$0xff]
  %v572 = vld [vmem:[%s0 + $0x1b2] sm:$0xff]
  %v573 = vld [vmem:[%s0 + $0x1ba] sm:$0xff]
  %v574 = vld [vmem:[%s0 + $0x1ca] sm:$0xff]
  %v575 = vld [vmem:[%s0 + $0x1d2] sm:$0xff]
  %v576 = vld [vmem:[%s0 + $0x1e2] sm:$0xff]
  %v577 = vld [vmem:[%s0 + $0x1ea] sm:$0xff]
  %v578 = vld [vmem:[%s0 + $0x1fa] sm:$0xff]
  %v579 = vld [vmem:[%s0 + $0x202] sm:$0xff]
  %v580 = vld [vmem:[%s0 + $0x212] sm:$0xff]
  %v581 = vld [vmem:[%s0 + $0x21a] sm:$0xff]
  %v582 = vld [vmem:[%s0 + $0x22a] sm:$0xff]
  %v583 = vld [vmem:[%s0 + $0x232] sm:$0xff]
  %v584 = vld [vmem:[%s0 + $0x242] sm:$0xff]
  %v585 = vld [vmem:[%s0 + $0x24a] sm:$0xff]
  %v586 = vld [vmem:[%s0 + $0x25a] sm:$0xff]
  %v587 = vld [vmem:[%s0 + $0x262] sm:$0xff]
  %v588 = vld [vmem:[%s0 + $0x272] sm:$0xff]
  %v589 = vld [vmem:[%s0 + $0x27a] sm:$0xff]
  %v590 = vld [vmem:[%s0 + $0x28a] sm:$0xff]
  %v591 = vld [vmem:[%s0 + $0x292] sm:$0xff]
  %v592 = vld [vmem:[%s0 + $0x2a2] sm:$0xff]
  %v593 = vld [vmem:[%s0 + $0x2aa] sm:$0xff]
  %v594 = vld [vmem:[%s0 + $0x2ba] sm:$0xff]
  %v595 = vld [vmem:[%s0 + $0x2c2] sm:$0xff]
  %v596 = vld [vmem:[%s0 + $0x2d2] sm:$0xff]
  %v597 = vld [vmem:[%s0 + $0x2da] sm:$0xff]
  %v598 = vld [vmem:[%s0 + $0x2ea] sm:$0xff]
  %v599 = vld [vmem:[%s0 + $0x2f2] sm:$0xff]
  %v600 = vld [vmem:[%s0 + $0x302] sm:$0xff]
  %v601 = vld [vmem:[%s0 + $0x30a] sm:$0xff]
  %v602 = vld [vmem:[%s0 + $0x31a] sm:$0xff]
  %v603 = vld [vmem:[%s0 + $0x322] sm:$0xff]
  %668 = vrot.lane.b32.xlu0 %v540, 8
  %v669 = vpop.permute.xlu0 %668
  %670 = vrot.lane.b32.xlu0 %v541, 8
  %v671 = vpop.permute.xlu0 %670
  %672 = vrot.lane.b32.xlu0 %v542, 8
  %v673 = vpop.permute.xlu0 %672
  %674 = vrot.lane.b32.xlu0 %v543, 8
  %v675 = vpop.permute.xlu0 %674
  %676 = vrot.lane.b32.xlu0 %v544, 8
  %v677 = vpop.permute.xlu0 %676
  %678 = vrot.lane.b32.xlu0 %v545, 8
  %v679 = vpop.permute.xlu0 %678
  %680 = vrot.lane.b32.xlu0 %v546, 8
  %v681 = vpop.permute.xlu0 %680
  %682 = vrot.lane.b32.xlu0 %v547, 8
  %v683 = vpop.permute.xlu0 %682
  %684 = vrot.lane.b32.xlu0 %v548, 8
  %v685 = vpop.permute.xlu0 %684
  %686 = vrot.lane.b32.xlu0 %v549, 8
  %v687 = vpop.permute.xlu0 %686
  %688 = vrot.lane.b32.xlu0 %v550, 8
  %v689 = vpop.permute.xlu0 %688
  %690 = vrot.lane.b32.xlu0 %v551, 8
  %v691 = vpop.permute.xlu0 %690
  %692 = vrot.lane.b32.xlu0 %v552, 8
  %v693 = vpop.permute.xlu0 %692
  %694 = vrot.lane.b32.xlu0 %v553, 8
  %v695 = vpop.permute.xlu0 %694
  %696 = vrot.lane.b32.xlu0 %v554, 8
  %v697 = vpop.permute.xlu0 %696
  %698 = vrot.lane.b32.xlu0 %v555, 8
  %v699 = vpop.permute.xlu0 %698
  %700 = vrot.lane.b32.xlu0 %v556, 8
  %v701 = vpop.permute.xlu0 %700
  %702 = vrot.lane.b32.xlu0 %v557, 8
  %v703 = vpop.permute.xlu0 %702
  %704 = vrot.lane.b32.xlu0 %v558, 8
  %v705 = vpop.permute.xlu0 %704
  %706 = vrot.lane.b32.xlu0 %v559, 8
  %v707 = vpop.permute.xlu0 %706
  %708 = vrot.lane.b32.xlu0 %v560, 8
  %v709 = vpop.permute.xlu0 %708
  %710 = vrot.lane.b32.xlu0 %v561, 8
  %v711 = vpop.permute.xlu0 %710
  %712 = vrot.lane.b32.xlu0 %v562, 8
  %v713 = vpop.permute.xlu0 %712
  %714 = vrot.lane.b32.xlu0 %v563, 8
  %v715 = vpop.permute.xlu0 %714
  %716 = vrot.lane.b32.xlu0 %v564, 8
  %v717 = vpop.permute.xlu0 %716
  %718 = vrot.lane.b32.xlu0 %v565, 8
  %v719 = vpop.permute.xlu0 %718
  %720 = vrot.lane.b32.xlu0 %v566, 8
  %v721 = vpop.permute.xlu0 %720
  %722 = vrot.lane.b32.xlu0 %v567, 8
  %v723 = vpop.permute.xlu0 %722
  %724 = vrot.lane.b32.xlu0 %v568, 8
  %v725 = vpop.permute.xlu0 %724
  %726 = vrot.lane.b32.xlu0 %v569, 8
  %v727 = vpop.permute.xlu0 %726
  %728 = vrot.lane.b32.xlu0 %v570, 8
  %v729 = vpop.permute.xlu0 %728
  %730 = vrot.lane.b32.xlu0 %v571, 8
  %v731 = vpop.permute.xlu0 %730
  %732 = vrot.lane.b32.xlu0 %v572, 8
  %v733 = vpop.permute.xlu0 %732
  %734 = vrot.lane.b32.xlu0 %v573, 8
  %v735 = vpop.permute.xlu0 %734
  %736 = vrot.lane.b32.xlu0 %v574, 8
  %v737 = vpop.permute.xlu0 %736
  %738 = vrot.lane.b32.xlu0 %v575, 8
  %v739 = vpop.permute.xlu0 %738
  %740 = vrot.lane.b32.xlu0 %v576, 8
  %v741 = vpop.permute.xlu0 %740
  %742 = vrot.lane.b32.xlu0 %v577, 8
  %v743 = vpop.permute.xlu0 %742
  %744 = vrot.lane.b32.xlu0 %v578, 8
  %v745 = vpop.permute.xlu0 %744
  %746 = vrot.lane.b32.xlu0 %v579, 8
  %v747 = vpop.permute.xlu0 %746
  %748 = vrot.lane.b32.xlu0 %v580, 8
  %v749 = vpop.permute.xlu0 %748
  %750 = vrot.lane.b32.xlu0 %v581, 8
  %v751 = vpop.permute.xlu0 %750
  %752 = vrot.lane.b32.xlu0 %v582, 8
  %v753 = vpop.permute.xlu0 %752
  %754 = vrot.lane.b32.xlu0 %v583, 8
  %v755 = vpop.permute.xlu0 %754
  %756 = vrot.lane.b32.xlu0 %v584, 8
  %v757 = vpop.permute.xlu0 %756
  %758 = vrot.lane.b32.xlu0 %v585, 8
  %v759 = vpop.permute.xlu0 %758
  %760 = vrot.lane.b32.xlu0 %v586, 8
  %v761 = vpop.permute.xlu0 %760
  %762 = vrot.lane.b32.xlu0 %v587, 8
  %v763 = vpop.permute.xlu0 %762
  %764 = vrot.lane.b32.xlu0 %v588, 8
  %v765 = vpop.permute.xlu0 %764
  %766 = vrot.lane.b32.xlu0 %v589, 8
  %v767 = vpop.permute.xlu0 %766
  %768 = vrot.lane.b32.xlu0 %v590, 8
  %v769 = vpop.permute.xlu0 %768
  %770 = vrot.lane.b32.xlu0 %v591, 8
  %v771 = vpop.permute.xlu0 %770
  %772 = vrot.lane.b32.xlu0 %v592, 8
  %v773 = vpop.permute.xlu0 %772
  %774 = vrot.lane.b32.xlu0 %v593, 8
  %v775 = vpop.permute.xlu0 %774
  %776 = vrot.lane.b32.xlu0 %v594, 8
  %v777 = vpop.permute.xlu0 %776
  %778 = vrot.lane.b32.xlu0 %v595, 8
  %v779 = vpop.permute.xlu0 %778
  %780 = vrot.lane.b32.xlu0 %v596, 8
  %v781 = vpop.permute.xlu0 %780
  %782 = vrot.lane.b32.xlu0 %v597, 8
  %v783 = vpop.permute.xlu0 %782
  %784 = vrot.lane.b32.xlu0 %v598, 8
  %v785 = vpop.permute.xlu0 %784
  %786 = vrot.lane.b32.xlu0 %v599, 8
  %v787 = vpop.permute.xlu0 %786
  %788 = vrot.lane.b32.xlu0 %v600, 8
  %v789 = vpop.permute.xlu0 %788
  %790 = vrot.lane.b32.xlu0 %v601, 8
  %v791 = vpop.permute.xlu0 %790
  %792 = vrot.lane.b32.xlu0 %v602, 8
  %v793 = vpop.permute.xlu0 %792
  %794 = vrot.lane.b32.xlu0 %v603, 8
  %v795 = vpop.permute.xlu0 %794
  %vm860 = vcmask 97344
  %861 = vst.msk [vmem:[#allocation2] sm:$0xff] %vm860, %v669
  %862 = vst.msk [vmem:[#allocation2 + $0x8] sm:$0xff] %vm860, %v671
  %863 = vst.msk [vmem:[#allocation2 + $0x10] sm:$0xff] %vm860, %v673
  %864 = vst.msk [vmem:[#allocation2 + $0x18] sm:$0xff] %vm860, %v675
  %865 = vst.msk [vmem:[#allocation2 + $0x20] sm:$0xff] %vm860, %v677
  %866 = vst.msk [vmem:[#allocation2 + $0x28] sm:$0xff] %vm860, %v679
  %867 = vst.msk [vmem:[#allocation2 + $0x30] sm:$0xff] %vm860, %v681
  %868 = vst.msk [vmem:[#allocation2 + $0x38] sm:$0xff] %vm860, %v683
  %869 = vst.msk [vmem:[#allocation2 + $0x40] sm:$0xff] %vm860, %v685
  %870 = vst.msk [vmem:[#allocation2 + $0x48] sm:$0xff] %vm860, %v687
  %871 = vst.msk [vmem:[#allocation2 + $0x50] sm:$0xff] %vm860, %v689
  %872 = vst.msk [vmem:[#allocation2 + $0x58] sm:$0xff] %vm860, %v691
  %873 = vst.msk [vmem:[#allocation2 + $0x60] sm:$0xff] %vm860, %v693
  %874 = vst.msk [vmem:[#allocation2 + $0x68] sm:$0xff] %vm860, %v695
  %875 = vst.msk [vmem:[#allocation2 + $0x70] sm:$0xff] %vm860, %v697
  %876 = vst.msk [vmem:[#allocation2 + $0x78] sm:$0xff] %vm860, %v699
  %877 = vst.msk [vmem:[#allocation2 + $0x80] sm:$0xff] %vm860, %v701
  %878 = vst.msk [vmem:[#allocation2 + $0x88] sm:$0xff] %vm860, %v703
  %879 = vst.msk [vmem:[#allocation2 + $0x90] sm:$0xff] %vm860, %v705
  %880 = vst.msk [vmem:[#allocation2 + $0x98] sm:$0xff] %vm860, %v707
  %881 = vst.msk [vmem:[#allocation2 + $0xa0] sm:$0xff] %vm860, %v709
  %882 = vst.msk [vmem:[#allocation2 + $0xa8] sm:$0xff] %vm860, %v711
  %883 = vst.msk [vmem:[#allocation2 + $0xb0] sm:$0xff] %vm860, %v713
  %884 = vst.msk [vmem:[#allocation2 + $0xb8] sm:$0xff] %vm860, %v715
  %885 = vst.msk [vmem:[#allocation2 + $0xc0] sm:$0xff] %vm860, %v717
  %886 = vst.msk [vmem:[#allocation2 + $0xc8] sm:$0xff] %vm860, %v719
  %887 = vst.msk [vmem:[#allocation2 + $0xd0] sm:$0xff] %vm860, %v721
  %888 = vst.msk [vmem:[#allocation2 + $0xd8] sm:$0xff] %vm860, %v723
  %889 = vst.msk [vmem:[#allocation2 + $0xe0] sm:$0xff] %vm860, %v725
  %890 = vst.msk [vmem:[#allocation2 + $0xe8] sm:$0xff] %vm860, %v727
  %891 = vst.msk [vmem:[#allocation2 + $0xf0] sm:$0xff] %vm860, %v729
  %892 = vst.msk [vmem:[#allocation2 + $0xf8] sm:$0xff] %vm860, %v731
  %893 = vst.msk [vmem:[#allocation2 + $0x100] sm:$0xff] %vm860, %v733
  %894 = vst.msk [vmem:[#allocation2 + $0x108] sm:$0xff] %vm860, %v735
  %895 = vst.msk [vmem:[#allocation2 + $0x110] sm:$0xff] %vm860, %v737
  %896 = vst.msk [vmem:[#allocation2 + $0x118] sm:$0xff] %vm860, %v739
  %897 = vst.msk [vmem:[#allocation2 + $0x120] sm:$0xff] %vm860, %v741
  %898 = vst.msk [vmem:[#allocation2 + $0x128] sm:$0xff] %vm860, %v743
  %899 = vst.msk [vmem:[#allocation2 + $0x130] sm:$0xff] %vm860, %v745
  %900 = vst.msk [vmem:[#allocation2 + $0x138] sm:$0xff] %vm860, %v747
  %901 = vst.msk [vmem:[#allocation2 + $0x140] sm:$0xff] %vm860, %v749
  %902 = vst.msk [vmem:[#allocation2 + $0x148] sm:$0xff] %vm860, %v751
  %903 = vst.msk [vmem:[#allocation2 + $0x150] sm:$0xff] %vm860, %v753
  %904 = vst.msk [vmem:[#allocation2 + $0x158] sm:$0xff] %vm860, %v755
  %905 = vst.msk [vmem:[#allocation2 + $0x160] sm:$0xff] %vm860, %v757
  %906 = vst.msk [vmem:[#allocation2 + $0x168] sm:$0xff] %vm860, %v759
  %907 = vst.msk [vmem:[#allocation2 + $0x170] sm:$0xff] %vm860, %v761
  %908 = vst.msk [vmem:[#allocation2 + $0x178] sm:$0xff] %vm860, %v763
  %909 = vst.msk [vmem:[#allocation2 + $0x180] sm:$0xff] %vm860, %v765
  %910 = vst.msk [vmem:[#allocation2 + $0x188] sm:$0xff] %vm860, %v767
  %911 = vst.msk [vmem:[#allocation2 + $0x190] sm:$0xff] %vm860, %v769
  %912 = vst.msk [vmem:[#allocation2 + $0x198] sm:$0xff] %vm860, %v771
  %913 = vst.msk [vmem:[#allocation2 + $0x1a0] sm:$0xff] %vm860, %v773
  %914 = vst.msk [vmem:[#allocation2 + $0x1a8] sm:$0xff] %vm860, %v775
  %915 = vst.msk [vmem:[#allocation2 + $0x1b0] sm:$0xff] %vm860, %v777
  %916 = vst.msk [vmem:[#allocation2 + $0x1b8] sm:$0xff] %vm860, %v779
  %917 = vst.msk [vmem:[#allocation2 + $0x1c0] sm:$0xff] %vm860, %v781
  %918 = vst.msk [vmem:[#allocation2 + $0x1c8] sm:$0xff] %vm860, %v783
  %919 = vst.msk [vmem:[#allocation2 + $0x1d0] sm:$0xff] %vm860, %v785
  %920 = vst.msk [vmem:[#allocation2 + $0x1d8] sm:$0xff] %vm860, %v787
  %921 = vst.msk [vmem:[#allocation2 + $0x1e0] sm:$0xff] %vm860, %v789
  %922 = vst.msk [vmem:[#allocation2 + $0x1e8] sm:$0xff] %vm860, %v791
  %923 = vst.msk [vmem:[#allocation2 + $0x1f0] sm:$0xff] %vm860, %v793
  %924 = vst.msk [vmem:[#allocation2 + $0x1f8] sm:$0xff] %vm860, %v795
  %s925 = scalar_lea.vmem %s0, 24
  %v926 = vld [vmem:[%s925] sm:$0xff]
  %v927 = vld [vmem:[%s925 + $0x8] sm:$0xff]
  %v928 = vld [vmem:[%s925 + $0x18] sm:$0xff]
  %v929 = vld [vmem:[%s925 + $0x20] sm:$0xff]
  %v930 = vld [vmem:[%s925 + $0x30] sm:$0xff]
  %v931 = vld [vmem:[%s925 + $0x38] sm:$0xff]
  %v932 = vld [vmem:[%s925 + $0x48] sm:$0xff]
  %v933 = vld [vmem:[%s925 + $0x50] sm:$0xff]
  %v934 = vld [vmem:[%s925 + $0x60] sm:$0xff]
  %v935 = vld [vmem:[%s925 + $0x68] sm:$0xff]
  %v936 = vld [vmem:[%s925 + $0x78] sm:$0xff]
  %v937 = vld [vmem:[%s925 + $0x80] sm:$0xff]
  %v938 = vld [vmem:[%s925 + $0x90] sm:$0xff]
  %v939 = vld [vmem:[%s925 + $0x98] sm:$0xff]
  %v940 = vld [vmem:[%s925 + $0xa8] sm:$0xff]
  %v941 = vld [vmem:[%s925 + $0xb0] sm:$0xff]
  %v942 = vld [vmem:[%s925 + $0xc0] sm:$0xff]
  %v943 = vld [vmem:[%s925 + $0xc8] sm:$0xff]
  %v944 = vld [vmem:[%s925 + $0xd8] sm:$0xff]
  %v945 = vld [vmem:[%s925 + $0xe0] sm:$0xff]
  %v946 = vld [vmem:[%s925 + $0xf0] sm:$0xff]
  %v947 = vld [vmem:[%s925 + $0xf8] sm:$0xff]
  %v948 = vld [vmem:[%s925 + $0x108] sm:$0xff]
  %v949 = vld [vmem:[%s925 + $0x110] sm:$0xff]
  %v950 = vld [vmem:[%s925 + $0x120] sm:$0xff]
  %v951 = vld [vmem:[%s925 + $0x128] sm:$0xff]
  %v952 = vld [vmem:[%s925 + $0x138] sm:$0xff]
  %v953 = vld [vmem:[%s925 + $0x140] sm:$0xff]
  %v954 = vld [vmem:[%s925 + $0x150] sm:$0xff]
  %v955 = vld [vmem:[%s925 + $0x158] sm:$0xff]
  %v956 = vld [vmem:[%s925 + $0x168] sm:$0xff]
  %v957 = vld [vmem:[%s925 + $0x170] sm:$0xff]
  %v958 = vld [vmem:[%s925 + $0x1b0] sm:$0xff]
  %v959 = vld [vmem:[%s925 + $0x1b8] sm:$0xff]
  %v960 = vld [vmem:[%s925 + $0x1c8] sm:$0xff]
  %v961 = vld [vmem:[%s925 + $0x1d0] sm:$0xff]
  %v962 = vld [vmem:[%s925 + $0x1e0] sm:$0xff]
  %v963 = vld [vmem:[%s925 + $0x1e8] sm:$0xff]
  %v964 = vld [vmem:[%s925 + $0x1f8] sm:$0xff]
  %v965 = vld [vmem:[%s925 + $0x200] sm:$0xff]
  %v966 = vld [vmem:[%s925 + $0x210] sm:$0xff]
  %v967 = vld [vmem:[%s925 + $0x218] sm:$0xff]
  %v968 = vld [vmem:[%s925 + $0x228] sm:$0xff]
  %v969 = vld [vmem:[%s925 + $0x230] sm:$0xff]
  %v970 = vld [vmem:[%s925 + $0x240] sm:$0xff]
  %v971 = vld [vmem:[%s925 + $0x248] sm:$0xff]
  %v972 = vld [vmem:[%s925 + $0x258] sm:$0xff]
  %v973 = vld [vmem:[%s925 + $0x260] sm:$0xff]
  %v974 = vld [vmem:[%s925 + $0x270] sm:$0xff]
  %v975 = vld [vmem:[%s925 + $0x278] sm:$0xff]
  %v976 = vld [vmem:[%s925 + $0x288] sm:$0xff]
  %v977 = vld [vmem:[%s925 + $0x290] sm:$0xff]
  %v978 = vld [vmem:[%s925 + $0x2a0] sm:$0xff]
  %v979 = vld [vmem:[%s925 + $0x2a8] sm:$0xff]
  %v980 = vld [vmem:[%s925 + $0x2b8] sm:$0xff]
  %v981 = vld [vmem:[%s925 + $0x2c0] sm:$0xff]
  %v982 = vld [vmem:[%s925 + $0x2d0] sm:$0xff]
  %v983 = vld [vmem:[%s925 + $0x2d8] sm:$0xff]
  %v984 = vld [vmem:[%s925 + $0x2e8] sm:$0xff]
  %v985 = vld [vmem:[%s925 + $0x2f0] sm:$0xff]
  %v986 = vld [vmem:[%s925 + $0x300] sm:$0xff]
  %v987 = vld [vmem:[%s925 + $0x308] sm:$0xff]
  %v988 = vld [vmem:[%s925 + $0x318] sm:$0xff]
  %v989 = vld [vmem:[%s925 + $0x320] sm:$0xff]
  %1054 = vrot.lane.b32.xlu0 %v926, 12
  %v1055 = vpop.permute.xlu0 %1054
  %1056 = vrot.lane.b32.xlu0 %v927, 12
  %v1057 = vpop.permute.xlu0 %1056
  %1058 = vrot.lane.b32.xlu0 %v928, 12
  %v1059 = vpop.permute.xlu0 %1058
  %1060 = vrot.lane.b32.xlu0 %v929, 12
  %v1061 = vpop.permute.xlu0 %1060
  %1062 = vrot.lane.b32.xlu0 %v930, 12
  %v1063 = vpop.permute.xlu0 %1062
  %1064 = vrot.lane.b32.xlu0 %v931, 12
  %v1065 = vpop.permute.xlu0 %1064
  %1066 = vrot.lane.b32.xlu0 %v932, 12
  %v1067 = vpop.permute.xlu0 %1066
  %1068 = vrot.lane.b32.xlu0 %v933, 12
  %v1069 = vpop.permute.xlu0 %1068
  %1070 = vrot.lane.b32.xlu0 %v934, 12
  %v1071 = vpop.permute.xlu0 %1070
  %1072 = vrot.lane.b32.xlu0 %v935, 12
  %v1073 = vpop.permute.xlu0 %1072
  %1074 = vrot.lane.b32.xlu0 %v936, 12
  %v1075 = vpop.permute.xlu0 %1074
  %1076 = vrot.lane.b32.xlu0 %v937, 12
  %v1077 = vpop.permute.xlu0 %1076
  %1078 = vrot.lane.b32.xlu0 %v938, 12
  %v1079 = vpop.permute.xlu0 %1078
  %1080 = vrot.lane.b32.xlu0 %v939, 12
  %v1081 = vpop.permute.xlu0 %1080
  %1082 = vrot.lane.b32.xlu0 %v940, 12
  %v1083 = vpop.permute.xlu0 %1082
  %1084 = vrot.lane.b32.xlu0 %v941, 12
  %v1085 = vpop.permute.xlu0 %1084
  %1086 = vrot.lane.b32.xlu0 %v942, 12
  %v1087 = vpop.permute.xlu0 %1086
  %1088 = vrot.lane.b32.xlu0 %v943, 12
  %v1089 = vpop.permute.xlu0 %1088
  %1090 = vrot.lane.b32.xlu0 %v944, 12
  %v1091 = vpop.permute.xlu0 %1090
  %1092 = vrot.lane.b32.xlu0 %v945, 12
  %v1093 = vpop.permute.xlu0 %1092
  %1094 = vrot.lane.b32.xlu0 %v946, 12
  %v1095 = vpop.permute.xlu0 %1094
  %1096 = vrot.lane.b32.xlu0 %v947, 12
  %v1097 = vpop.permute.xlu0 %1096
  %1098 = vrot.lane.b32.xlu0 %v948, 12
  %v1099 = vpop.permute.xlu0 %1098
  %1100 = vrot.lane.b32.xlu0 %v949, 12
  %v1101 = vpop.permute.xlu0 %1100
  %1102 = vrot.lane.b32.xlu0 %v950, 12
  %v1103 = vpop.permute.xlu0 %1102
  %1104 = vrot.lane.b32.xlu0 %v951, 12
  %v1105 = vpop.permute.xlu0 %1104
  %1106 = vrot.lane.b32.xlu0 %v952, 12
  %v1107 = vpop.permute.xlu0 %1106
  %1108 = vrot.lane.b32.xlu0 %v953, 12
  %v1109 = vpop.permute.xlu0 %1108
  %1110 = vrot.lane.b32.xlu0 %v954, 12
  %v1111 = vpop.permute.xlu0 %1110
  %1112 = vrot.lane.b32.xlu0 %v955, 12
  %v1113 = vpop.permute.xlu0 %1112
  %1114 = vrot.lane.b32.xlu0 %v956, 12
  %v1115 = vpop.permute.xlu0 %1114
  %1116 = vrot.lane.b32.xlu0 %v957, 12
  %v1117 = vpop.permute.xlu0 %1116
  %1118 = vrot.lane.b32.xlu0 %v958, 12
  %v1119 = vpop.permute.xlu0 %1118
  %1120 = vrot.lane.b32.xlu0 %v959, 12
  %v1121 = vpop.permute.xlu0 %1120
  %1122 = vrot.lane.b32.xlu0 %v960, 12
  %v1123 = vpop.permute.xlu0 %1122
  %1124 = vrot.lane.b32.xlu0 %v961, 12
  %v1125 = vpop.permute.xlu0 %1124
  %1126 = vrot.lane.b32.xlu0 %v962, 12
  %v1127 = vpop.permute.xlu0 %1126
  %1128 = vrot.lane.b32.xlu0 %v963, 12
  %v1129 = vpop.permute.xlu0 %1128
  %1130 = vrot.lane.b32.xlu0 %v964, 12
  %v1131 = vpop.permute.xlu0 %1130
  %1132 = vrot.lane.b32.xlu0 %v965, 12
  %v1133 = vpop.permute.xlu0 %1132
  %1134 = vrot.lane.b32.xlu0 %v966, 12
  %v1135 = vpop.permute.xlu0 %1134
  %1136 = vrot.lane.b32.xlu0 %v967, 12
  %v1137 = vpop.permute.xlu0 %1136
  %1138 = vrot.lane.b32.xlu0 %v968, 12
  %v1139 = vpop.permute.xlu0 %1138
  %1140 = vrot.lane.b32.xlu0 %v969, 12
  %v1141 = vpop.permute.xlu0 %1140
  %1142 = vrot.lane.b32.xlu0 %v970, 12
  %v1143 = vpop.permute.xlu0 %1142
  %1144 = vrot.lane.b32.xlu0 %v971, 12
  %v1145 = vpop.permute.xlu0 %1144
  %1146 = vrot.lane.b32.xlu0 %v972, 12
  %v1147 = vpop.permute.xlu0 %1146
  %1148 = vrot.lane.b32.xlu0 %v973, 12
  %v1149 = vpop.permute.xlu0 %1148
  %1150 = vrot.lane.b32.xlu0 %v974, 12
  %v1151 = vpop.permute.xlu0 %1150
  %1152 = vrot.lane.b32.xlu0 %v975, 12
  %v1153 = vpop.permute.xlu0 %1152
  %1154 = vrot.lane.b32.xlu0 %v976, 12
  %v1155 = vpop.permute.xlu0 %1154
  %1156 = vrot.lane.b32.xlu0 %v977, 12
  %v1157 = vpop.permute.xlu0 %1156
  %1158 = vrot.lane.b32.xlu0 %v978, 12
  %v1159 = vpop.permute.xlu0 %1158
  %1160 = vrot.lane.b32.xlu0 %v979, 12
  %v1161 = vpop.permute.xlu0 %1160
  %1162 = vrot.lane.b32.xlu0 %v980, 12
  %v1163 = vpop.permute.xlu0 %1162
  %1164 = vrot.lane.b32.xlu0 %v981, 12
  %v1165 = vpop.permute.xlu0 %1164
  %1166 = vrot.lane.b32.xlu0 %v982, 12
  %v1167 = vpop.permute.xlu0 %1166
  %1168 = vrot.lane.b32.xlu0 %v983, 12
  %v1169 = vpop.permute.xlu0 %1168
  %1170 = vrot.lane.b32.xlu0 %v984, 12
  %v1171 = vpop.permute.xlu0 %1170
  %1172 = vrot.lane.b32.xlu0 %v985, 12
  %v1173 = vpop.permute.xlu0 %1172
  %1174 = vrot.lane.b32.xlu0 %v986, 12
  %v1175 = vpop.permute.xlu0 %1174
  %1176 = vrot.lane.b32.xlu0 %v987, 12
  %v1177 = vpop.permute.xlu0 %1176
  %1178 = vrot.lane.b32.xlu0 %v988, 12
  %v1179 = vpop.permute.xlu0 %1178
  %1180 = vrot.lane.b32.xlu0 %v989, 12
  %v1181 = vpop.permute.xlu0 %1180
  %vm1246 = vcmask 130144
  %1247 = vst.msk [vmem:[#allocation2] sm:$0xff] %vm1246, %v1055
  %1248 = vst.msk [vmem:[#allocation2 + $0x8] sm:$0xff] %vm1246, %v1057
  %1249 = vst.msk [vmem:[#allocation2 + $0x10] sm:$0xff] %vm1246, %v1059
  %1250 = vst.msk [vmem:[#allocation2 + $0x18] sm:$0xff] %vm1246, %v1061
  %1251 = vst.msk [vmem:[#allocation2 + $0x20] sm:$0xff] %vm1246, %v1063
  %1252 = vst.msk [vmem:[#allocation2 + $0x28] sm:$0xff] %vm1246, %v1065
  %1253 = vst.msk [vmem:[#allocation2 + $0x30] sm:$0xff] %vm1246, %v1067
  %1254 = vst.msk [vmem:[#allocation2 + $0x38] sm:$0xff] %vm1246, %v1069
  %1255 = vst.msk [vmem:[#allocation2 + $0x40] sm:$0xff] %vm1246, %v1071
  %1256 = vst.msk [vmem:[#allocation2 + $0x48] sm:$0xff] %vm1246, %v1073
  %1257 = vst.msk [vmem:[#allocation2 + $0x50] sm:$0xff] %vm1246, %v1075
  %1258 = vst.msk [vmem:[#allocation2 + $0x58] sm:$0xff] %vm1246, %v1077
  %1259 = vst.msk [vmem:[#allocation2 + $0x60] sm:$0xff] %vm1246, %v1079
  %1260 = vst.msk [vmem:[#allocation2 + $0x68] sm:$0xff] %vm1246, %v1081
  %1261 = vst.msk [vmem:[#allocation2 + $0x70] sm:$0xff] %vm1246, %v1083
  %1262 = vst.msk [vmem:[#allocation2 + $0x78] sm:$0xff] %vm1246, %v1085
  %1263 = vst.msk [vmem:[#allocation2 + $0x80] sm:$0xff] %vm1246, %v1087
  %1264 = vst.msk [vmem:[#allocation2 + $0x88] sm:$0xff] %vm1246, %v1089
  %1265 = vst.msk [vmem:[#allocation2 + $0x90] sm:$0xff] %vm1246, %v1091
  %1266 = vst.msk [vmem:[#allocation2 + $0x98] sm:$0xff] %vm1246, %v1093
  %1267 = vst.msk [vmem:[#allocation2 + $0xa0] sm:$0xff] %vm1246, %v1095
  %1268 = vst.msk [vmem:[#allocation2 + $0xa8] sm:$0xff] %vm1246, %v1097
  %1269 = vst.msk [vmem:[#allocation2 + $0xb0] sm:$0xff] %vm1246, %v1099
  %1270 = vst.msk [vmem:[#allocation2 + $0xb8] sm:$0xff] %vm1246, %v1101
  %1271 = vst.msk [vmem:[#allocation2 + $0xc0] sm:$0xff] %vm1246, %v1103
  %1272 = vst.msk [vmem:[#allocation2 + $0xc8] sm:$0xff] %vm1246, %v1105
  %1273 = vst.msk [vmem:[#allocation2 + $0xd0] sm:$0xff] %vm1246, %v1107
  %1274 = vst.msk [vmem:[#allocation2 + $0xd8] sm:$0xff] %vm1246, %v1109
  %1275 = vst.msk [vmem:[#allocation2 + $0xe0] sm:$0xff] %vm1246, %v1111
  %1276 = vst.msk [vmem:[#allocation2 + $0xe8] sm:$0xff] %vm1246, %v1113
  %1277 = vst.msk [vmem:[#allocation2 + $0xf0] sm:$0xff] %vm1246, %v1115
  %1278 = vst.msk [vmem:[#allocation2 + $0xf8] sm:$0xff] %vm1246, %v1117
  %1279 = vst.msk [vmem:[#allocation2 + $0x100] sm:$0xff] %vm1246, %v1119
  %1280 = vst.msk [vmem:[#allocation2 + $0x108] sm:$0xff] %vm1246, %v1121
  %1281 = vst.msk [vmem:[#allocation2 + $0x110] sm:$0xff] %vm1246, %v1123
  %1282 = vst.msk [vmem:[#allocation2 + $0x118] sm:$0xff] %vm1246, %v1125
  %1283 = vst.msk [vmem:[#allocation2 + $0x120] sm:$0xff] %vm1246, %v1127
  %1284 = vst.msk [vmem:[#allocation2 + $0x128] sm:$0xff] %vm1246, %v1129
  %1285 = vst.msk [vmem:[#allocation2 + $0x130] sm:$0xff] %vm1246, %v1131
  %1286 = vst.msk [vmem:[#allocation2 + $0x138] sm:$0xff] %vm1246, %v1133
  %1287 = vst.msk [vmem:[#allocation2 + $0x140] sm:$0xff] %vm1246, %v1135
  %1288 = vst.msk [vmem:[#allocation2 + $0x148] sm:$0xff] %vm1246, %v1137
  %1289 = vst.msk [vmem:[#allocation2 + $0x150] sm:$0xff] %vm1246, %v1139
  %1290 = vst.msk [vmem:[#allocation2 + $0x158] sm:$0xff] %vm1246, %v1141
  %1291 = vst.msk [vmem:[#allocation2 + $0x160] sm:$0xff] %vm1246, %v1143
  %1292 = vst.msk [vmem:[#allocation2 + $0x168] sm:$0xff] %vm1246, %v1145
  %1293 = vst.msk [vmem:[#allocation2 + $0x170] sm:$0xff] %vm1246, %v1147
  %1294 = vst.msk [vmem:[#allocation2 + $0x178] sm:$0xff] %vm1246, %v1149
  %1295 = vst.msk [vmem:[#allocation2 + $0x180] sm:$0xff] %vm1246, %v1151
  %1296 = vst.msk [vmem:[#allocation2 + $0x188] sm:$0xff] %vm1246, %v1153
  %1297 = vst.msk [vmem:[#allocation2 + $0x190] sm:$0xff] %vm1246, %v1155
  %1298 = vst.msk [vmem:[#allocation2 + $0x198] sm:$0xff] %vm1246, %v1157
  %1299 = vst.msk [vmem:[#allocation2 + $0x1a0] sm:$0xff] %vm1246, %v1159
  %1300 = vst.msk [vmem:[#allocation2 + $0x1a8] sm:$0xff] %vm1246, %v1161
  %1301 = vst.msk [vmem:[#allocation2 + $0x1b0] sm:$0xff] %vm1246, %v1163
  %1302 = vst.msk [vmem:[#allocation2 + $0x1b8] sm:$0xff] %vm1246, %v1165
  %1303 = vst.msk [vmem:[#allocation2 + $0x1c0] sm:$0xff] %vm1246, %v1167
  %1304 = vst.msk [vmem:[#allocation2 + $0x1c8] sm:$0xff] %vm1246, %v1169
  %1305 = vst.msk [vmem:[#allocation2 + $0x1d0] sm:$0xff] %vm1246, %v1171
  %1306 = vst.msk [vmem:[#allocation2 + $0x1d8] sm:$0xff] %vm1246, %v1173
  %1307 = vst.msk [vmem:[#allocation2 + $0x1e0] sm:$0xff] %vm1246, %v1175
  %1308 = vst.msk [vmem:[#allocation2 + $0x1e8] sm:$0xff] %vm1246, %v1177
  %1309 = vst.msk [vmem:[#allocation2 + $0x1f0] sm:$0xff] %vm1246, %v1179
  %1310 = vst.msk [vmem:[#allocation2 + $0x1f8] sm:$0xff] %vm1246, %v1181
  %v1311 = vld [vmem:[%s925 + $0x1] sm:$0xff]
  %v1312 = vld [vmem:[%s925 + $0x9] sm:$0xff]
  %v1313 = vld [vmem:[%s925 + $0x19] sm:$0xff]
  %v1314 = vld [vmem:[%s925 + $0x21] sm:$0xff]
  %v1315 = vld [vmem:[%s925 + $0x31] sm:$0xff]
  %v1316 = vld [vmem:[%s925 + $0x39] sm:$0xff]
  %v1317 = vld [vmem:[%s925 + $0x49] sm:$0xff]
  %v1318 = vld [vmem:[%s925 + $0x51] sm:$0xff]
  %v1319 = vld [vmem:[%s925 + $0x61] sm:$0xff]
  %v1320 = vld [vmem:[%s925 + $0x69] sm:$0xff]
  %v1321 = vld [vmem:[%s925 + $0x79] sm:$0xff]
  %v1322 = vld [vmem:[%s925 + $0x81] sm:$0xff]
  %v1323 = vld [vmem:[%s925 + $0x91] sm:$0xff]
  %v1324 = vld [vmem:[%s925 + $0x99] sm:$0xff]
  %v1325 = vld [vmem:[%s925 + $0xa9] sm:$0xff]
  %v1326 = vld [vmem:[%s925 + $0xb1] sm:$0xff]
  %v1327 = vld [vmem:[%s925 + $0xc1] sm:$0xff]
  %v1328 = vld [vmem:[%s925 + $0xc9] sm:$0xff]
  %v1329 = vld [vmem:[%s925 + $0xd9] sm:$0xff]
  %v1330 = vld [vmem:[%s925 + $0xe1] sm:$0xff]
  %v1331 = vld [vmem:[%s925 + $0xf1] sm:$0xff]
  %v1332 = vld [vmem:[%s925 + $0xf9] sm:$0xff]
  %v1333 = vld [vmem:[%s925 + $0x109] sm:$0xff]
  %v1334 = vld [vmem:[%s925 + $0x111] sm:$0xff]
  %v1335 = vld [vmem:[%s925 + $0x121] sm:$0xff]
  %v1336 = vld [vmem:[%s925 + $0x129] sm:$0xff]
  %v1337 = vld [vmem:[%s925 + $0x139] sm:$0xff]
  %v1338 = vld [vmem:[%s925 + $0x141] sm:$0xff]
  %v1339 = vld [vmem:[%s925 + $0x151] sm:$0xff]
  %v1340 = vld [vmem:[%s925 + $0x159] sm:$0xff]
  %v1341 = vld [vmem:[%s925 + $0x169] sm:$0xff]
  %v1342 = vld [vmem:[%s925 + $0x171] sm:$0xff]
  %v1343 = vld [vmem:[%s925 + $0x1b1] sm:$0xff]
  %v1344 = vld [vmem:[%s925 + $0x1b9] sm:$0xff]
  %v1345 = vld [vmem:[%s925 + $0x1c9] sm:$0xff]
  %v1346 = vld [vmem:[%s925 + $0x1d1] sm:$0xff]
  %v1347 = vld [vmem:[%s925 + $0x1e1] sm:$0xff]
  %v1348 = vld [vmem:[%s925 + $0x1e9] sm:$0xff]
  %v1349 = vld [vmem:[%s925 + $0x1f9] sm:$0xff]
  %v1350 = vld [vmem:[%s925 + $0x201] sm:$0xff]
  %v1351 = vld [vmem:[%s925 + $0x211] sm:$0xff]
  %v1352 = vld [vmem:[%s925 + $0x219] sm:$0xff]
  %v1353 = vld [vmem:[%s925 + $0x229] sm:$0xff]
  %v1354 = vld [vmem:[%s925 + $0x231] sm:$0xff]
  %v1355 = vld [vmem:[%s925 + $0x241] sm:$0xff]
  %v1356 = vld [vmem:[%s925 + $0x249] sm:$0xff]
  %v1357 = vld [vmem:[%s925 + $0x259] sm:$0xff]
  %v1358 = vld [vmem:[%s925 + $0x261] sm:$0xff]
  %v1359 = vld [vmem:[%s925 + $0x271] sm:$0xff]
  %v1360 = vld [vmem:[%s925 + $0x279] sm:$0xff]
  %v1361 = vld [vmem:[%s925 + $0x289] sm:$0xff]
  %v1362 = vld [vmem:[%s925 + $0x291] sm:$0xff]
  %v1363 = vld [vmem:[%s925 + $0x2a1] sm:$0xff]
  %v1364 = vld [vmem:[%s925 + $0x2a9] sm:$0xff]
  %v1365 = vld [vmem:[%s925 + $0x2b9] sm:$0xff]
  %v1366 = vld [vmem:[%s925 + $0x2c1] sm:$0xff]
  %v1367 = vld [vmem:[%s925 + $0x2d1] sm:$0xff]
  %v1368 = vld [vmem:[%s925 + $0x2d9] sm:$0xff]
  %v1369 = vld [vmem:[%s925 + $0x2e9] sm:$0xff]
  %v1370 = vld [vmem:[%s925 + $0x2f1] sm:$0xff]
  %v1371 = vld [vmem:[%s925 + $0x301] sm:$0xff]
  %v1372 = vld [vmem:[%s925 + $0x309] sm:$0xff]
  %v1373 = vld [vmem:[%s925 + $0x319] sm:$0xff]
  %v1374 = vld [vmem:[%s925 + $0x321] sm:$0xff]
  %1439 = vrot.lane.b32.xlu0 %v1311, 16
  %v1440 = vpop.permute.xlu0 %1439
  %1441 = vrot.lane.b32.xlu0 %v1312, 16
  %v1442 = vpop.permute.xlu0 %1441
  %1443 = vrot.lane.b32.xlu0 %v1313, 16
  %v1444 = vpop.permute.xlu0 %1443
  %1445 = vrot.lane.b32.xlu0 %v1314, 16
  %v1446 = vpop.permute.xlu0 %1445
  %1447 = vrot.lane.b32.xlu0 %v1315, 16
  %v1448 = vpop.permute.xlu0 %1447
  %1449 = vrot.lane.b32.xlu0 %v1316, 16
  %v1450 = vpop.permute.xlu0 %1449
  %1451 = vrot.lane.b32.xlu0 %v1317, 16
  %v1452 = vpop.permute.xlu0 %1451
  %1453 = vrot.lane.b32.xlu0 %v1318, 16
  %v1454 = vpop.permute.xlu0 %1453
  %1455 = vrot.lane.b32.xlu0 %v1319, 16
  %v1456 = vpop.permute.xlu0 %1455
  %1457 = vrot.lane.b32.xlu0 %v1320, 16
  %v1458 = vpop.permute.xlu0 %1457
  %1459 = vrot.lane.b32.xlu0 %v1321, 16
  %v1460 = vpop.permute.xlu0 %1459
  %1461 = vrot.lane.b32.xlu0 %v1322, 16
  %v1462 = vpop.permute.xlu0 %1461
  %1463 = vrot.lane.b32.xlu0 %v1323, 16
  %v1464 = vpop.permute.xlu0 %1463
  %1465 = vrot.lane.b32.xlu0 %v1324, 16
  %v1466 = vpop.permute.xlu0 %1465
  %1467 = vrot.lane.b32.xlu0 %v1325, 16
  %v1468 = vpop.permute.xlu0 %1467
  %1469 = vrot.lane.b32.xlu0 %v1326, 16
  %v1470 = vpop.permute.xlu0 %1469
  %1471 = vrot.lane.b32.xlu0 %v1327, 16
  %v1472 = vpop.permute.xlu0 %1471
  %1473 = vrot.lane.b32.xlu0 %v1328, 16
  %v1474 = vpop.permute.xlu0 %1473
  %1475 = vrot.lane.b32.xlu0 %v1329, 16
  %v1476 = vpop.permute.xlu0 %1475
  %1477 = vrot.lane.b32.xlu0 %v1330, 16
  %v1478 = vpop.permute.xlu0 %1477
  %1479 = vrot.lane.b32.xlu0 %v1331, 16
  %v1480 = vpop.permute.xlu0 %1479
  %1481 = vrot.lane.b32.xlu0 %v1332, 16
  %v1482 = vpop.permute.xlu0 %1481
  %1483 = vrot.lane.b32.xlu0 %v1333, 16
  %v1484 = vpop.permute.xlu0 %1483
  %1485 = vrot.lane.b32.xlu0 %v1334, 16
  %v1486 = vpop.permute.xlu0 %1485
  %1487 = vrot.lane.b32.xlu0 %v1335, 16
  %v1488 = vpop.permute.xlu0 %1487
  %1489 = vrot.lane.b32.xlu0 %v1336, 16
  %v1490 = vpop.permute.xlu0 %1489
  %1491 = vrot.lane.b32.xlu0 %v1337, 16
  %v1492 = vpop.permute.xlu0 %1491
  %1493 = vrot.lane.b32.xlu0 %v1338, 16
  %v1494 = vpop.permute.xlu0 %1493
  %1495 = vrot.lane.b32.xlu0 %v1339, 16
  %v1496 = vpop.permute.xlu0 %1495
  %1497 = vrot.lane.b32.xlu0 %v1340, 16
  %v1498 = vpop.permute.xlu0 %1497
  %1499 = vrot.lane.b32.xlu0 %v1341, 16
  %v1500 = vpop.permute.xlu0 %1499
  %1501 = vrot.lane.b32.xlu0 %v1342, 16
  %v1502 = vpop.permute.xlu0 %1501
  %1503 = vrot.lane.b32.xlu0 %v1343, 16
  %v1504 = vpop.permute.xlu0 %1503
  %1505 = vrot.lane.b32.xlu0 %v1344, 16
  %v1506 = vpop.permute.xlu0 %1505
  %1507 = vrot.lane.b32.xlu0 %v1345, 16
  %v1508 = vpop.permute.xlu0 %1507
  %1509 = vrot.lane.b32.xlu0 %v1346, 16
  %v1510 = vpop.permute.xlu0 %1509
  %1511 = vrot.lane.b32.xlu0 %v1347, 16
  %v1512 = vpop.permute.xlu0 %1511
  %1513 = vrot.lane.b32.xlu0 %v1348, 16
  %v1514 = vpop.permute.xlu0 %1513
  %1515 = vrot.lane.b32.xlu0 %v1349, 16
  %v1516 = vpop.permute.xlu0 %1515
  %1517 = vrot.lane.b32.xlu0 %v1350, 16
  %v1518 = vpop.permute.xlu0 %1517
  %1519 = vrot.lane.b32.xlu0 %v1351, 16
  %v1520 = vpop.permute.xlu0 %1519
  %1521 = vrot.lane.b32.xlu0 %v1352, 16
  %v1522 = vpop.permute.xlu0 %1521
  %1523 = vrot.lane.b32.xlu0 %v1353, 16
  %v1524 = vpop.permute.xlu0 %1523
  %1525 = vrot.lane.b32.xlu0 %v1354, 16
  %v1526 = vpop.permute.xlu0 %1525
  %1527 = vrot.lane.b32.xlu0 %v1355, 16
  %v1528 = vpop.permute.xlu0 %1527
  %1529 = vrot.lane.b32.xlu0 %v1356, 16
  %v1530 = vpop.permute.xlu0 %1529
  %1531 = vrot.lane.b32.xlu0 %v1357, 16
  %v1532 = vpop.permute.xlu0 %1531
  %1533 = vrot.lane.b32.xlu0 %v1358, 16
  %v1534 = vpop.permute.xlu0 %1533
  %1535 = vrot.lane.b32.xlu0 %v1359, 16
  %v1536 = vpop.permute.xlu0 %1535
  %1537 = vrot.lane.b32.xlu0 %v1360, 16
  %v1538 = vpop.permute.xlu0 %1537
  %1539 = vrot.lane.b32.xlu0 %v1361, 16
  %v1540 = vpop.permute.xlu0 %1539
  %1541 = vrot.lane.b32.xlu0 %v1362, 16
  %v1542 = vpop.permute.xlu0 %1541
  %1543 = vrot.lane.b32.xlu0 %v1363, 16
  %v1544 = vpop.permute.xlu0 %1543
  %1545 = vrot.lane.b32.xlu0 %v1364, 16
  %v1546 = vpop.permute.xlu0 %1545
  %1547 = vrot.lane.b32.xlu0 %v1365, 16
  %v1548 = vpop.permute.xlu0 %1547
  %1549 = vrot.lane.b32.xlu0 %v1366, 16
  %v1550 = vpop.permute.xlu0 %1549
  %1551 = vrot.lane.b32.xlu0 %v1367, 16
  %v1552 = vpop.permute.xlu0 %1551
  %1553 = vrot.lane.b32.xlu0 %v1368, 16
  %v1554 = vpop.permute.xlu0 %1553
  %1555 = vrot.lane.b32.xlu0 %v1369, 16
  %v1556 = vpop.permute.xlu0 %1555
  %1557 = vrot.lane.b32.xlu0 %v1370, 16
  %v1558 = vpop.permute.xlu0 %1557
  %1559 = vrot.lane.b32.xlu0 %v1371, 16
  %v1560 = vpop.permute.xlu0 %1559
  %1561 = vrot.lane.b32.xlu0 %v1372, 16
  %v1562 = vpop.permute.xlu0 %1561
  %1563 = vrot.lane.b32.xlu0 %v1373, 16
  %v1564 = vpop.permute.xlu0 %1563
  %1565 = vrot.lane.b32.xlu0 %v1374, 16
  %v1566 = vpop.permute.xlu0 %1565
  %vm1631 = vcmask 162944
  %1632 = vst.msk [vmem:[#allocation2] sm:$0xff] %vm1631, %v1440
  %1633 = vst.msk [vmem:[#allocation2 + $0x8] sm:$0xff] %vm1631, %v1442
  %1634 = vst.msk [vmem:[#allocation2 + $0x10] sm:$0xff] %vm1631, %v1444
  %1635 = vst.msk [vmem:[#allocation2 + $0x18] sm:$0xff] %vm1631, %v1446
  %1636 = vst.msk [vmem:[#allocation2 + $0x20] sm:$0xff] %vm1631, %v1448
  %1637 = vst.msk [vmem:[#allocation2 + $0x28] sm:$0xff] %vm1631, %v1450
  %1638 = vst.msk [vmem:[#allocation2 + $0x30] sm:$0xff] %vm1631, %v1452
  %1639 = vst.msk [vmem:[#allocation2 + $0x38] sm:$0xff] %vm1631, %v1454
  %1640 = vst.msk [vmem:[#allocation2 + $0x40] sm:$0xff] %vm1631, %v1456
  %1641 = vst.msk [vmem:[#allocation2 + $0x48] sm:$0xff] %vm1631, %v1458
  %1642 = vst.msk [vmem:[#allocation2 + $0x50] sm:$0xff] %vm1631, %v1460
  %1643 = vst.msk [vmem:[#allocation2 + $0x58] sm:$0xff] %vm1631, %v1462
  %1644 = vst.msk [vmem:[#allocation2 + $0x60] sm:$0xff] %vm1631, %v1464
  %1645 = vst.msk [vmem:[#allocation2 + $0x68] sm:$0xff] %vm1631, %v1466
  %1646 = vst.msk [vmem:[#allocation2 + $0x70] sm:$0xff] %vm1631, %v1468
  %1647 = vst.msk [vmem:[#allocation2 + $0x78] sm:$0xff] %vm1631, %v1470
  %1648 = vst.msk [vmem:[#allocation2 + $0x80] sm:$0xff] %vm1631, %v1472
  %1649 = vst.msk [vmem:[#allocation2 + $0x88] sm:$0xff] %vm1631, %v1474
  %1650 = vst.msk [vmem:[#allocation2 + $0x90] sm:$0xff] %vm1631, %v1476
  %1651 = vst.msk [vmem:[#allocation2 + $0x98] sm:$0xff] %vm1631, %v1478
  %1652 = vst.msk [vmem:[#allocation2 + $0xa0] sm:$0xff] %vm1631, %v1480
  %1653 = vst.msk [vmem:[#allocation2 + $0xa8] sm:$0xff] %vm1631, %v1482
  %1654 = vst.msk [vmem:[#allocation2 + $0xb0] sm:$0xff] %vm1631, %v1484
  %1655 = vst.msk [vmem:[#allocation2 + $0xb8] sm:$0xff] %vm1631, %v1486
  %1656 = vst.msk [vmem:[#allocation2 + $0xc0] sm:$0xff] %vm1631, %v1488
  %1657 = vst.msk [vmem:[#allocation2 + $0xc8] sm:$0xff] %vm1631, %v1490
  %1658 = vst.msk [vmem:[#allocation2 + $0xd0] sm:$0xff] %vm1631, %v1492
  %1659 = vst.msk [vmem:[#allocation2 + $0xd8] sm:$0xff] %vm1631, %v1494
  %1660 = vst.msk [vmem:[#allocation2 + $0xe0] sm:$0xff] %vm1631, %v1496
  %1661 = vst.msk [vmem:[#allocation2 + $0xe8] sm:$0xff] %vm1631, %v1498
  %1662 = vst.msk [vmem:[#allocation2 + $0xf0] sm:$0xff] %vm1631, %v1500
  %1663 = vst.msk [vmem:[#allocation2 + $0xf8] sm:$0xff] %vm1631, %v1502
  %1664 = vst.msk [vmem:[#allocation2 + $0x100] sm:$0xff] %vm1631, %v1504
  %1665 = vst.msk [vmem:[#allocation2 + $0x108] sm:$0xff] %vm1631, %v1506
  %1666 = vst.msk [vmem:[#allocation2 + $0x110] sm:$0xff] %vm1631, %v1508
  %1667 = vst.msk [vmem:[#allocation2 + $0x118] sm:$0xff] %vm1631, %v1510
  %1668 = vst.msk [vmem:[#allocation2 + $0x120] sm:$0xff] %vm1631, %v1512
  %1669 = vst.msk [vmem:[#allocation2 + $0x128] sm:$0xff] %vm1631, %v1514
  %1670 = vst.msk [vmem:[#allocation2 + $0x130] sm:$0xff] %vm1631, %v1516
  %1671 = vst.msk [vmem:[#allocation2 + $0x138] sm:$0xff] %vm1631, %v1518
  %1672 = vst.msk [vmem:[#allocation2 + $0x140] sm:$0xff] %vm1631, %v1520
  %1673 = vst.msk [vmem:[#allocation2 + $0x148] sm:$0xff] %vm1631, %v1522
  %1674 = vst.msk [vmem:[#allocation2 + $0x150] sm:$0xff] %vm1631, %v1524
  %1675 = vst.msk [vmem:[#allocation2 + $0x158] sm:$0xff] %vm1631, %v1526
  %1676 = vst.msk [vmem:[#allocation2 + $0x160] sm:$0xff] %vm1631, %v1528
  %1677 = vst.msk [vmem:[#allocation2 + $0x168] sm:$0xff] %vm1631, %v1530
  %1678 = vst.msk [vmem:[#allocation2 + $0x170] sm:$0xff] %vm1631, %v1532
  %1679 = vst.msk [vmem:[#allocation2 + $0x178] sm:$0xff] %vm1631, %v1534
  %1680 = vst.msk [vmem:[#allocation2 + $0x180] sm:$0xff] %vm1631, %v1536
  %1681 = vst.msk [vmem:[#allocation2 + $0x188] sm:$0xff] %vm1631, %v1538
  %1682 = vst.msk [vmem:[#allocation2 + $0x190] sm:$0xff] %vm1631, %v1540
  %1683 = vst.msk [vmem:[#allocation2 + $0x198] sm:$0xff] %vm1631, %v1542
  %1684 = vst.msk [vmem:[#allocation2 + $0x1a0] sm:$0xff] %vm1631, %v1544
  %1685 = vst.msk [vmem:[#allocation2 + $0x1a8] sm:$0xff] %vm1631, %v1546
  %1686 = vst.msk [vmem:[#allocation2 + $0x1b0] sm:$0xff] %vm1631, %v1548
  %1687 = vst.msk [vmem:[#allocation2 + $0x1b8] sm:$0xff] %vm1631, %v1550
  %1688 = vst.msk [vmem:[#allocation2 + $0x1c0] sm:$0xff] %vm1631, %v1552
  %1689 = vst.msk [vmem:[#allocation2 + $0x1c8] sm:$0xff] %vm1631, %v1554
  %1690 = vst.msk [vmem:[#allocation2 + $0x1d0] sm:$0xff] %vm1631, %v1556
  %1691 = vst.msk [vmem:[#allocation2 + $0x1d8] sm:$0xff] %vm1631, %v1558
  %1692 = vst.msk [vmem:[#allocation2 + $0x1e0] sm:$0xff] %vm1631, %v1560
  %1693 = vst.msk [vmem:[#allocation2 + $0x1e8] sm:$0xff] %vm1631, %v1562
  %1694 = vst.msk [vmem:[#allocation2 + $0x1f0] sm:$0xff] %vm1631, %v1564
  %1695 = vst.msk [vmem:[#allocation2 + $0x1f8] sm:$0xff] %vm1631, %v1566
  %v1696 = vld [vmem:[%s925 + $0x2] sm:$0xff]
  %v1697 = vld [vmem:[%s925 + $0xa] sm:$0xff]
  %v1698 = vld [vmem:[%s925 + $0x1a] sm:$0xff]
  %v1699 = vld [vmem:[%s925 + $0x22] sm:$0xff]
  %v1700 = vld [vmem:[%s925 + $0x32] sm:$0xff]
  %v1701 = vld [vmem:[%s925 + $0x3a] sm:$0xff]
  %v1702 = vld [vmem:[%s925 + $0x4a] sm:$0xff]
  %v1703 = vld [vmem:[%s925 + $0x52] sm:$0xff]
  %v1704 = vld [vmem:[%s925 + $0x62] sm:$0xff]
  %v1705 = vld [vmem:[%s925 + $0x6a] sm:$0xff]
  %v1706 = vld [vmem:[%s925 + $0x7a] sm:$0xff]
  %v1707 = vld [vmem:[%s925 + $0x82] sm:$0xff]
  %v1708 = vld [vmem:[%s925 + $0x92] sm:$0xff]
  %v1709 = vld [vmem:[%s925 + $0x9a] sm:$0xff]
  %v1710 = vld [vmem:[%s925 + $0xaa] sm:$0xff]
  %v1711 = vld [vmem:[%s925 + $0xb2] sm:$0xff]
  %v1712 = vld [vmem:[%s925 + $0xc2] sm:$0xff]
  %v1713 = vld [vmem:[%s925 + $0xca] sm:$0xff]
  %v1714 = vld [vmem:[%s925 + $0xda] sm:$0xff]
  %v1715 = vld [vmem:[%s925 + $0xe2] sm:$0xff]
  %v1716 = vld [vmem:[%s925 + $0xf2] sm:$0xff]
  %v1717 = vld [vmem:[%s925 + $0xfa] sm:$0xff]
  %v1718 = vld [vmem:[%s925 + $0x10a] sm:$0xff]
  %v1719 = vld [vmem:[%s925 + $0x112] sm:$0xff]
  %v1720 = vld [vmem:[%s925 + $0x122] sm:$0xff]
  %v1721 = vld [vmem:[%s925 + $0x12a] sm:$0xff]
  %v1722 = vld [vmem:[%s925 + $0x13a] sm:$0xff]
  %v1723 = vld [vmem:[%s925 + $0x142] sm:$0xff]
  %v1724 = vld [vmem:[%s925 + $0x152] sm:$0xff]
  %v1725 = vld [vmem:[%s925 + $0x15a] sm:$0xff]
  %v1726 = vld [vmem:[%s925 + $0x16a] sm:$0xff]
  %v1727 = vld [vmem:[%s925 + $0x172] sm:$0xff]
  %v1728 = vld [vmem:[%s925 + $0x1b2] sm:$0xff]
  %v1729 = vld [vmem:[%s925 + $0x1ba] sm:$0xff]
  %v1730 = vld [vmem:[%s925 + $0x1ca] sm:$0xff]
  %v1731 = vld [vmem:[%s925 + $0x1d2] sm:$0xff]
  %v1732 = vld [vmem:[%s925 + $0x1e2] sm:$0xff]
  %v1733 = vld [vmem:[%s925 + $0x1ea] sm:$0xff]
  %v1734 = vld [vmem:[%s925 + $0x1fa] sm:$0xff]
  %v1735 = vld [vmem:[%s925 + $0x202] sm:$0xff]
  %v1736 = vld [vmem:[%s925 + $0x212] sm:$0xff]
  %v1737 = vld [vmem:[%s925 + $0x21a] sm:$0xff]
  %v1738 = vld [vmem:[%s925 + $0x22a] sm:$0xff]
  %v1739 = vld [vmem:[%s925 + $0x232] sm:$0xff]
  %v1740 = vld [vmem:[%s925 + $0x242] sm:$0xff]
  %v1741 = vld [vmem:[%s925 + $0x24a] sm:$0xff]
  %v1742 = vld [vmem:[%s925 + $0x25a] sm:$0xff]
  %v1743 = vld [vmem:[%s925 + $0x262] sm:$0xff]
  %v1744 = vld [vmem:[%s925 + $0x272] sm:$0xff]
  %v1745 = vld [vmem:[%s925 + $0x27a] sm:$0xff]
  %v1746 = vld [vmem:[%s925 + $0x28a] sm:$0xff]
  %v1747 = vld [vmem:[%s925 + $0x292] sm:$0xff]
  %v1748 = vld [vmem:[%s925 + $0x2a2] sm:$0xff]
  %v1749 = vld [vmem:[%s925 + $0x2aa] sm:$0xff]
  %v1750 = vld [vmem:[%s925 + $0x2ba] sm:$0xff]
  %v1751 = vld [vmem:[%s925 + $0x2c2] sm:$0xff]
  %v1752 = vld [vmem:[%s925 + $0x2d2] sm:$0xff]
  %v1753 = vld [vmem:[%s925 + $0x2da] sm:$0xff]
  %v1754 = vld [vmem:[%s925 + $0x2ea] sm:$0xff]
  %v1755 = vld [vmem:[%s925 + $0x2f2] sm:$0xff]
  %v1756 = vld [vmem:[%s925 + $0x302] sm:$0xff]
  %v1757 = vld [vmem:[%s925 + $0x30a] sm:$0xff]
  %v1758 = vld [vmem:[%s925 + $0x31a] sm:$0xff]
  %v1759 = vld [vmem:[%s925 + $0x322] sm:$0xff]
  %1824 = vrot.lane.b32.xlu0 %v1696, 20
  %v1825 = vpop.permute.xlu0 %1824
  %1826 = vrot.lane.b32.xlu0 %v1697, 20
  %v1827 = vpop.permute.xlu0 %1826
  %1828 = vrot.lane.b32.xlu0 %v1698, 20
  %v1829 = vpop.permute.xlu0 %1828
  %1830 = vrot.lane.b32.xlu0 %v1699, 20
  %v1831 = vpop.permute.xlu0 %1830
  %1832 = vrot.lane.b32.xlu0 %v1700, 20
  %v1833 = vpop.permute.xlu0 %1832
  %1834 = vrot.lane.b32.xlu0 %v1701, 20
  %v1835 = vpop.permute.xlu0 %1834
  %1836 = vrot.lane.b32.xlu0 %v1702, 20
  %v1837 = vpop.permute.xlu0 %1836
  %1838 = vrot.lane.b32.xlu0 %v1703, 20
  %v1839 = vpop.permute.xlu0 %1838
  %1840 = vrot.lane.b32.xlu0 %v1704, 20
  %v1841 = vpop.permute.xlu0 %1840
  %1842 = vrot.lane.b32.xlu0 %v1705, 20
  %v1843 = vpop.permute.xlu0 %1842
  %1844 = vrot.lane.b32.xlu0 %v1706, 20
  %v1845 = vpop.permute.xlu0 %1844
  %1846 = vrot.lane.b32.xlu0 %v1707, 20
  %v1847 = vpop.permute.xlu0 %1846
  %1848 = vrot.lane.b32.xlu0 %v1708, 20
  %v1849 = vpop.permute.xlu0 %1848
  %1850 = vrot.lane.b32.xlu0 %v1709, 20
  %v1851 = vpop.permute.xlu0 %1850
  %1852 = vrot.lane.b32.xlu0 %v1710, 20
  %v1853 = vpop.permute.xlu0 %1852
  %1854 = vrot.lane.b32.xlu0 %v1711, 20
  %v1855 = vpop.permute.xlu0 %1854
  %1856 = vrot.lane.b32.xlu0 %v1712, 20
  %v1857 = vpop.permute.xlu0 %1856
  %1858 = vrot.lane.b32.xlu0 %v1713, 20
  %v1859 = vpop.permute.xlu0 %1858
  %1860 = vrot.lane.b32.xlu0 %v1714, 20
  %v1861 = vpop.permute.xlu0 %1860
  %1862 = vrot.lane.b32.xlu0 %v1715, 20
  %v1863 = vpop.permute.xlu0 %1862
  %1864 = vrot.lane.b32.xlu0 %v1716, 20
  %v1865 = vpop.permute.xlu0 %1864
  %1866 = vrot.lane.b32.xlu0 %v1717, 20
  %v1867 = vpop.permute.xlu0 %1866
  %1868 = vrot.lane.b32.xlu0 %v1718, 20
  %v1869 = vpop.permute.xlu0 %1868
  %1870 = vrot.lane.b32.xlu0 %v1719, 20
  %v1871 = vpop.permute.xlu0 %1870
  %1872 = vrot.lane.b32.xlu0 %v1720, 20
  %v1873 = vpop.permute.xlu0 %1872
  %1874 = vrot.lane.b32.xlu0 %v1721, 20
  %v1875 = vpop.permute.xlu0 %1874
  %1876 = vrot.lane.b32.xlu0 %v1722, 20
  %v1877 = vpop.permute.xlu0 %1876
  %1878 = vrot.lane.b32.xlu0 %v1723, 20
  %v1879 = vpop.permute.xlu0 %1878
  %1880 = vrot.lane.b32.xlu0 %v1724, 20
  %v1881 = vpop.permute.xlu0 %1880
  %1882 = vrot.lane.b32.xlu0 %v1725, 20
  %v1883 = vpop.permute.xlu0 %1882
  %1884 = vrot.lane.b32.xlu0 %v1726, 20
  %v1885 = vpop.permute.xlu0 %1884
  %1886 = vrot.lane.b32.xlu0 %v1727, 20
  %v1887 = vpop.permute.xlu0 %1886
  %1888 = vrot.lane.b32.xlu0 %v1728, 20
  %v1889 = vpop.permute.xlu0 %1888
  %1890 = vrot.lane.b32.xlu0 %v1729, 20
  %v1891 = vpop.permute.xlu0 %1890
  %1892 = vrot.lane.b32.xlu0 %v1730, 20
  %v1893 = vpop.permute.xlu0 %1892
  %1894 = vrot.lane.b32.xlu0 %v1731, 20
  %v1895 = vpop.permute.xlu0 %1894
  %1896 = vrot.lane.b32.xlu0 %v1732, 20
  %v1897 = vpop.permute.xlu0 %1896
  %1898 = vrot.lane.b32.xlu0 %v1733, 20
  %v1899 = vpop.permute.xlu0 %1898
  %1900 = vrot.lane.b32.xlu0 %v1734, 20
  %v1901 = vpop.permute.xlu0 %1900
  %1902 = vrot.lane.b32.xlu0 %v1735, 20
  %v1903 = vpop.permute.xlu0 %1902
  %1904 = vrot.lane.b32.xlu0 %v1736, 20
  %v1905 = vpop.permute.xlu0 %1904
  %1906 = vrot.lane.b32.xlu0 %v1737, 20
  %v1907 = vpop.permute.xlu0 %1906
  %1908 = vrot.lane.b32.xlu0 %v1738, 20
  %v1909 = vpop.permute.xlu0 %1908
  %1910 = vrot.lane.b32.xlu0 %v1739, 20
  %v1911 = vpop.permute.xlu0 %1910
  %1912 = vrot.lane.b32.xlu0 %v1740, 20
  %v1913 = vpop.permute.xlu0 %1912
  %1914 = vrot.lane.b32.xlu0 %v1741, 20
  %v1915 = vpop.permute.xlu0 %1914
  %1916 = vrot.lane.b32.xlu0 %v1742, 20
  %v1917 = vpop.permute.xlu0 %1916
  %1918 = vrot.lane.b32.xlu0 %v1743, 20
  %v1919 = vpop.permute.xlu0 %1918
  %1920 = vrot.lane.b32.xlu0 %v1744, 20
  %v1921 = vpop.permute.xlu0 %1920
  %1922 = vrot.lane.b32.xlu0 %v1745, 20
  %v1923 = vpop.permute.xlu0 %1922
  %1924 = vrot.lane.b32.xlu0 %v1746, 20
  %v1925 = vpop.permute.xlu0 %1924
  %1926 = vrot.lane.b32.xlu0 %v1747, 20
  %v1927 = vpop.permute.xlu0 %1926
  %1928 = vrot.lane.b32.xlu0 %v1748, 20
  %v1929 = vpop.permute.xlu0 %1928
  %1930 = vrot.lane.b32.xlu0 %v1749, 20
  %v1931 = vpop.permute.xlu0 %1930
  %1932 = vrot.lane.b32.xlu0 %v1750, 20
  %v1933 = vpop.permute.xlu0 %1932
  %1934 = vrot.lane.b32.xlu0 %v1751, 20
  %v1935 = vpop.permute.xlu0 %1934
  %1936 = vrot.lane.b32.xlu0 %v1752, 20
  %v1937 = vpop.permute.xlu0 %1936
  %1938 = vrot.lane.b32.xlu0 %v1753, 20
  %v1939 = vpop.permute.xlu0 %1938
  %1940 = vrot.lane.b32.xlu0 %v1754, 20
  %v1941 = vpop.permute.xlu0 %1940
  %1942 = vrot.lane.b32.xlu0 %v1755, 20
  %v1943 = vpop.permute.xlu0 %1942
  %1944 = vrot.lane.b32.xlu0 %v1756, 20
  %v1945 = vpop.permute.xlu0 %1944
  %1946 = vrot.lane.b32.xlu0 %v1757, 20
  %v1947 = vpop.permute.xlu0 %1946
  %1948 = vrot.lane.b32.xlu0 %v1758, 20
  %v1949 = vpop.permute.xlu0 %1948
  %1950 = vrot.lane.b32.xlu0 %v1759, 20
  %v1951 = vpop.permute.xlu0 %1950
  %vm2016 = vcmask 195744
  %2017 = vst.msk [vmem:[#allocation2] sm:$0xff] %vm2016, %v1825
  %2018 = vst.msk [vmem:[#allocation2 + $0x8] sm:$0xff] %vm2016, %v1827
  %2019 = vst.msk [vmem:[#allocation2 + $0x10] sm:$0xff] %vm2016, %v1829
  %2020 = vst.msk [vmem:[#allocation2 + $0x18] sm:$0xff] %vm2016, %v1831
  %2021 = vst.msk [vmem:[#allocation2 + $0x20] sm:$0xff] %vm2016, %v1833
  %2022 = vst.msk [vmem:[#allocation2 + $0x28] sm:$0xff] %vm2016, %v1835
  %2023 = vst.msk [vmem:[#allocation2 + $0x30] sm:$0xff] %vm2016, %v1837
  %2024 = vst.msk [vmem:[#allocation2 + $0x38] sm:$0xff] %vm2016, %v1839
  %2025 = vst.msk [vmem:[#allocation2 + $0x40] sm:$0xff] %vm2016, %v1841
  %2026 = vst.msk [vmem:[#allocation2 + $0x48] sm:$0xff] %vm2016, %v1843
  %2027 = vst.msk [vmem:[#allocation2 + $0x50] sm:$0xff] %vm2016, %v1845
  %2028 = vst.msk [vmem:[#allocation2 + $0x58] sm:$0xff] %vm2016, %v1847
  %2029 = vst.msk [vmem:[#allocation2 + $0x60] sm:$0xff] %vm2016, %v1849
  %2030 = vst.msk [vmem:[#allocation2 + $0x68] sm:$0xff] %vm2016, %v1851
  %2031 = vst.msk [vmem:[#allocation2 + $0x70] sm:$0xff] %vm2016, %v1853
  %2032 = vst.msk [vmem:[#allocation2 + $0x78] sm:$0xff] %vm2016, %v1855
  %2033 = vst.msk [vmem:[#allocation2 + $0x80] sm:$0xff] %vm2016, %v1857
  %2034 = vst.msk [vmem:[#allocation2 + $0x88] sm:$0xff] %vm2016, %v1859
  %2035 = vst.msk [vmem:[#allocation2 + $0x90] sm:$0xff] %vm2016, %v1861
  %2036 = vst.msk [vmem:[#allocation2 + $0x98] sm:$0xff] %vm2016, %v1863
  %2037 = vst.msk [vmem:[#allocation2 + $0xa0] sm:$0xff] %vm2016, %v1865
  %2038 = vst.msk [vmem:[#allocation2 + $0xa8] sm:$0xff] %vm2016, %v1867
  %2039 = vst.msk [vmem:[#allocation2 + $0xb0] sm:$0xff] %vm2016, %v1869
  %2040 = vst.msk [vmem:[#allocation2 + $0xb8] sm:$0xff] %vm2016, %v1871
  %2041 = vst.msk [vmem:[#allocation2 + $0xc0] sm:$0xff] %vm2016, %v1873
  %2042 = vst.msk [vmem:[#allocation2 + $0xc8] sm:$0xff] %vm2016, %v1875
  %2043 = vst.msk [vmem:[#allocation2 + $0xd0] sm:$0xff] %vm2016, %v1877
  %2044 = vst.msk [vmem:[#allocation2 + $0xd8] sm:$0xff] %vm2016, %v1879
  %2045 = vst.msk [vmem:[#allocation2 + $0xe0] sm:$0xff] %vm2016, %v1881
  %2046 = vst.msk [vmem:[#allocation2 + $0xe8] sm:$0xff] %vm2016, %v1883
  %2047 = vst.msk [vmem:[#allocation2 + $0xf0] sm:$0xff] %vm2016, %v1885
  %2048 = vst.msk [vmem:[#allocation2 + $0xf8] sm:$0xff] %vm2016, %v1887
  %2049 = vst.msk [vmem:[#allocation2 + $0x100] sm:$0xff] %vm2016, %v1889
  %2050 = vst.msk [vmem:[#allocation2 + $0x108] sm:$0xff] %vm2016, %v1891
  %2051 = vst.msk [vmem:[#allocation2 + $0x110] sm:$0xff] %vm2016, %v1893
  %2052 = vst.msk [vmem:[#allocation2 + $0x118] sm:$0xff] %vm2016, %v1895
  %2053 = vst.msk [vmem:[#allocation2 + $0x120] sm:$0xff] %vm2016, %v1897
  %2054 = vst.msk [vmem:[#allocation2 + $0x128] sm:$0xff] %vm2016, %v1899
  %2055 = vst.msk [vmem:[#allocation2 + $0x130] sm:$0xff] %vm2016, %v1901
  %2056 = vst.msk [vmem:[#allocation2 + $0x138] sm:$0xff] %vm2016, %v1903
  %2057 = vst.msk [vmem:[#allocation2 + $0x140] sm:$0xff] %vm2016, %v1905
  %2058 = vst.msk [vmem:[#allocation2 + $0x148] sm:$0xff] %vm2016, %v1907
  %2059 = vst.msk [vmem:[#allocation2 + $0x150] sm:$0xff] %vm2016, %v1909
  %2060 = vst.msk [vmem:[#allocation2 + $0x158] sm:$0xff] %vm2016, %v1911
  %2061 = vst.msk [vmem:[#allocation2 + $0x160] sm:$0xff] %vm2016, %v1913
  %2062 = vst.msk [vmem:[#allocation2 + $0x168] sm:$0xff] %vm2016, %v1915
  %2063 = vst.msk [vmem:[#allocation2 + $0x170] sm:$0xff] %vm2016, %v1917
  %2064 = vst.msk [vmem:[#allocation2 + $0x178] sm:$0xff] %vm2016, %v1919
  %2065 = vst.msk [vmem:[#allocation2 + $0x180] sm:$0xff] %vm2016, %v1921
  %2066 = vst.msk [vmem:[#allocation2 + $0x188] sm:$0xff] %vm2016, %v1923
  %2067 = vst.msk [vmem:[#allocation2 + $0x190] sm:$0xff] %vm2016, %v1925
  %2068 = vst.msk [vmem:[#allocation2 + $0x198] sm:$0xff] %vm2016, %v1927
  %2069 = vst.msk [vmem:[#allocation2 + $0x1a0] sm:$0xff] %vm2016, %v1929
  %2070 = vst.msk [vmem:[#allocation2 + $0x1a8] sm:$0xff] %vm2016, %v1931
  %2071 = vst.msk [vmem:[#allocation2 + $0x1b0] sm:$0xff] %vm2016, %v1933
  %2072 = vst.msk [vmem:[#allocation2 + $0x1b8] sm:$0xff] %vm2016, %v1935
  %2073 = vst.msk [vmem:[#allocation2 + $0x1c0] sm:$0xff] %vm2016, %v1937
  %2074 = vst.msk [vmem:[#allocation2 + $0x1c8] sm:$0xff] %vm2016, %v1939
  %2075 = vst.msk [vmem:[#allocation2 + $0x1d0] sm:$0xff] %vm2016, %v1941
  %2076 = vst.msk [vmem:[#allocation2 + $0x1d8] sm:$0xff] %vm2016, %v1943
  %2077 = vst.msk [vmem:[#allocation2 + $0x1e0] sm:$0xff] %vm2016, %v1945
  %2078 = vst.msk [vmem:[#allocation2 + $0x1e8] sm:$0xff] %vm2016, %v1947
  %2079 = vst.msk [vmem:[#allocation2 + $0x1f0] sm:$0xff] %vm2016, %v1949
  %2080 = vst.msk [vmem:[#allocation2 + $0x1f8] sm:$0xff] %vm2016, %v1951
  %s2081 = scalar_lea.vmem %s0, 48
  %v2082 = vld [vmem:[%s2081] sm:$0xff]
  %v2083 = vld [vmem:[%s2081 + $0x8] sm:$0xff]
  %v2084 = vld [vmem:[%s2081 + $0x18] sm:$0xff]
  %v2085 = vld [vmem:[%s2081 + $0x20] sm:$0xff]
  %v2086 = vld [vmem:[%s2081 + $0x30] sm:$0xff]
  %v2087 = vld [vmem:[%s2081 + $0x38] sm:$0xff]
  %v2088 = vld [vmem:[%s2081 + $0x48] sm:$0xff]
  %v2089 = vld [vmem:[%s2081 + $0x50] sm:$0xff]
  %v2090 = vld [vmem:[%s2081 + $0x60] sm:$0xff]
  %v2091 = vld [vmem:[%s2081 + $0x68] sm:$0xff]
  %v2092 = vld [vmem:[%s2081 + $0x78] sm:$0xff]
  %v2093 = vld [vmem:[%s2081 + $0x80] sm:$0xff]
  %v2094 = vld [vmem:[%s2081 + $0x90] sm:$0xff]
  %v2095 = vld [vmem:[%s2081 + $0x98] sm:$0xff]
  %v2096 = vld [vmem:[%s2081 + $0xa8] sm:$0xff]
  %v2097 = vld [vmem:[%s2081 + $0xb0] sm:$0xff]
  %v2098 = vld [vmem:[%s2081 + $0xc0] sm:$0xff]
  %v2099 = vld [vmem:[%s2081 + $0xc8] sm:$0xff]
  %v2100 = vld [vmem:[%s2081 + $0xd8] sm:$0xff]
  %v2101 = vld [vmem:[%s2081 + $0xe0] sm:$0xff]
  %v2102 = vld [vmem:[%s2081 + $0xf0] sm:$0xff]
  %v2103 = vld [vmem:[%s2081 + $0xf8] sm:$0xff]
  %v2104 = vld [vmem:[%s2081 + $0x108] sm:$0xff]
  %v2105 = vld [vmem:[%s2081 + $0x110] sm:$0xff]
  %v2106 = vld [vmem:[%s2081 + $0x120] sm:$0xff]
  %v2107 = vld [vmem:[%s2081 + $0x128] sm:$0xff]
  %v2108 = vld [vmem:[%s2081 + $0x138] sm:$0xff]
  %v2109 = vld [vmem:[%s2081 + $0x140] sm:$0xff]
  %v2110 = vld [vmem:[%s2081 + $0x150] sm:$0xff]
  %v2111 = vld [vmem:[%s2081 + $0x158] sm:$0xff]
  %v2112 = vld [vmem:[%s2081 + $0x168] sm:$0xff]
  %v2113 = vld [vmem:[%s2081 + $0x170] sm:$0xff]
  %v2114 = vld [vmem:[%s2081 + $0x1b0] sm:$0xff]
  %v2115 = vld [vmem:[%s2081 + $0x1b8] sm:$0xff]
  %v2116 = vld [vmem:[%s2081 + $0x1c8] sm:$0xff]
  %v2117 = vld [vmem:[%s2081 + $0x1d0] sm:$0xff]
  %v2118 = vld [vmem:[%s2081 + $0x1e0] sm:$0xff]
  %v2119 = vld [vmem:[%s2081 + $0x1e8] sm:$0xff]
  %v2120 = vld [vmem:[%s2081 + $0x1f8] sm:$0xff]
  %v2121 = vld [vmem:[%s2081 + $0x200] sm:$0xff]
  %v2122 = vld [vmem:[%s2081 + $0x210] sm:$0xff]
  %v2123 = vld [vmem:[%s2081 + $0x218] sm:$0xff]
  %v2124 = vld [vmem:[%s2081 + $0x228] sm:$0xff]
  %v2125 = vld [vmem:[%s2081 + $0x230] sm:$0xff]
  %v2126 = vld [vmem:[%s2081 + $0x240] sm:$0xff]
  %v2127 = vld [vmem:[%s2081 + $0x248] sm:$0xff]
  %v2128 = vld [vmem:[%s2081 + $0x258] sm:$0xff]
  %v2129 = vld [vmem:[%s2081 + $0x260] sm:$0xff]
  %v2130 = vld [vmem:[%s2081 + $0x270] sm:$0xff]
  %v2131 = vld [vmem:[%s2081 + $0x278] sm:$0xff]
  %v2132 = vld [vmem:[%s2081 + $0x288] sm:$0xff]
  %v2133 = vld [vmem:[%s2081 + $0x290] sm:$0xff]
  %v2134 = vld [vmem:[%s2081 + $0x2a0] sm:$0xff]
  %v2135 = vld [vmem:[%s2081 + $0x2a8] sm:$0xff]
  %v2136 = vld [vmem:[%s2081 + $0x2b8] sm:$0xff]
  %v2137 = vld [vmem:[%s2081 + $0x2c0] sm:$0xff]
  %v2138 = vld [vmem:[%s2081 + $0x2d0] sm:$0xff]
  %v2139 = vld [vmem:[%s2081 + $0x2d8] sm:$0xff]
  %v2140 = vld [vmem:[%s2081 + $0x2e8] sm:$0xff]
  %v2141 = vld [vmem:[%s2081 + $0x2f0] sm:$0xff]
  %v2142 = vld [vmem:[%s2081 + $0x300] sm:$0xff]
  %v2143 = vld [vmem:[%s2081 + $0x308] sm:$0xff]
  %v2144 = vld [vmem:[%s2081 + $0x318] sm:$0xff]
  %v2145 = vld [vmem:[%s2081 + $0x320] sm:$0xff]
  %2210 = vrot.lane.b32.xlu0 %v2082, 24
  %v2211 = vpop.permute.xlu0 %2210
  %2212 = vrot.lane.b32.xlu0 %v2083, 24
  %v2213 = vpop.permute.xlu0 %2212
  %2214 = vrot.lane.b32.xlu0 %v2084, 24
  %v2215 = vpop.permute.xlu0 %2214
  %2216 = vrot.lane.b32.xlu0 %v2085, 24
  %v2217 = vpop.permute.xlu0 %2216
  %2218 = vrot.lane.b32.xlu0 %v2086, 24
  %v2219 = vpop.permute.xlu0 %2218
  %2220 = vrot.lane.b32.xlu0 %v2087, 24
  %v2221 = vpop.permute.xlu0 %2220
  %2222 = vrot.lane.b32.xlu0 %v2088, 24
  %v2223 = vpop.permute.xlu0 %2222
  %2224 = vrot.lane.b32.xlu0 %v2089, 24
  %v2225 = vpop.permute.xlu0 %2224
  %2226 = vrot.lane.b32.xlu0 %v2090, 24
  %v2227 = vpop.permute.xlu0 %2226
  %2228 = vrot.lane.b32.xlu0 %v2091, 24
  %v2229 = vpop.permute.xlu0 %2228
  %2230 = vrot.lane.b32.xlu0 %v2092, 24
  %v2231 = vpop.permute.xlu0 %2230
  %2232 = vrot.lane.b32.xlu0 %v2093, 24
  %v2233 = vpop.permute.xlu0 %2232
  %2234 = vrot.lane.b32.xlu0 %v2094, 24
  %v2235 = vpop.permute.xlu0 %2234
  %2236 = vrot.lane.b32.xlu0 %v2095, 24
  %v2237 = vpop.permute.xlu0 %2236
  %2238 = vrot.lane.b32.xlu0 %v2096, 24
  %v2239 = vpop.permute.xlu0 %2238
  %2240 = vrot.lane.b32.xlu0 %v2097, 24
  %v2241 = vpop.permute.xlu0 %2240
  %2242 = vrot.lane.b32.xlu0 %v2098, 24
  %v2243 = vpop.permute.xlu0 %2242
  %2244 = vrot.lane.b32.xlu0 %v2099, 24
  %v2245 = vpop.permute.xlu0 %2244
  %2246 = vrot.lane.b32.xlu0 %v2100, 24
  %v2247 = vpop.permute.xlu0 %2246
  %2248 = vrot.lane.b32.xlu0 %v2101, 24
  %v2249 = vpop.permute.xlu0 %2248
  %2250 = vrot.lane.b32.xlu0 %v2102, 24
  %v2251 = vpop.permute.xlu0 %2250
  %2252 = vrot.lane.b32.xlu0 %v2103, 24
  %v2253 = vpop.permute.xlu0 %2252
  %2254 = vrot.lane.b32.xlu0 %v2104, 24
  %v2255 = vpop.permute.xlu0 %2254
  %2256 = vrot.lane.b32.xlu0 %v2105, 24
  %v2257 = vpop.permute.xlu0 %2256
  %2258 = vrot.lane.b32.xlu0 %v2106, 24
  %v2259 = vpop.permute.xlu0 %2258
  %2260 = vrot.lane.b32.xlu0 %v2107, 24
  %v2261 = vpop.permute.xlu0 %2260
  %2262 = vrot.lane.b32.xlu0 %v2108, 24
  %v2263 = vpop.permute.xlu0 %2262
  %2264 = vrot.lane.b32.xlu0 %v2109, 24
  %v2265 = vpop.permute.xlu0 %2264
  %2266 = vrot.lane.b32.xlu0 %v2110, 24
  %v2267 = vpop.permute.xlu0 %2266
  %2268 = vrot.lane.b32.xlu0 %v2111, 24
  %v2269 = vpop.permute.xlu0 %2268
  %2270 = vrot.lane.b32.xlu0 %v2112, 24
  %v2271 = vpop.permute.xlu0 %2270
  %2272 = vrot.lane.b32.xlu0 %v2113, 24
  %v2273 = vpop.permute.xlu0 %2272
  %2274 = vrot.lane.b32.xlu0 %v2114, 24
  %v2275 = vpop.permute.xlu0 %2274
  %2276 = vrot.lane.b32.xlu0 %v2115, 24
  %v2277 = vpop.permute.xlu0 %2276
  %2278 = vrot.lane.b32.xlu0 %v2116, 24
  %v2279 = vpop.permute.xlu0 %2278
  %2280 = vrot.lane.b32.xlu0 %v2117, 24
  %v2281 = vpop.permute.xlu0 %2280
  %2282 = vrot.lane.b32.xlu0 %v2118, 24
  %v2283 = vpop.permute.xlu0 %2282
  %2284 = vrot.lane.b32.xlu0 %v2119, 24
  %v2285 = vpop.permute.xlu0 %2284
  %2286 = vrot.lane.b32.xlu0 %v2120, 24
  %v2287 = vpop.permute.xlu0 %2286
  %2288 = vrot.lane.b32.xlu0 %v2121, 24
  %v2289 = vpop.permute.xlu0 %2288
  %2290 = vrot.lane.b32.xlu0 %v2122, 24
  %v2291 = vpop.permute.xlu0 %2290
  %2292 = vrot.lane.b32.xlu0 %v2123, 24
  %v2293 = vpop.permute.xlu0 %2292
  %2294 = vrot.lane.b32.xlu0 %v2124, 24
  %v2295 = vpop.permute.xlu0 %2294
  %2296 = vrot.lane.b32.xlu0 %v2125, 24
  %v2297 = vpop.permute.xlu0 %2296
  %2298 = vrot.lane.b32.xlu0 %v2126, 24
  %v2299 = vpop.permute.xlu0 %2298
  %2300 = vrot.lane.b32.xlu0 %v2127, 24
  %v2301 = vpop.permute.xlu0 %2300
  %2302 = vrot.lane.b32.xlu0 %v2128, 24
  %v2303 = vpop.permute.xlu0 %2302
  %2304 = vrot.lane.b32.xlu0 %v2129, 24
  %v2305 = vpop.permute.xlu0 %2304
  %2306 = vrot.lane.b32.xlu0 %v2130, 24
  %v2307 = vpop.permute.xlu0 %2306
  %2308 = vrot.lane.b32.xlu0 %v2131, 24
  %v2309 = vpop.permute.xlu0 %2308
  %2310 = vrot.lane.b32.xlu0 %v2132, 24
  %v2311 = vpop.permute.xlu0 %2310
  %2312 = vrot.lane.b32.xlu0 %v2133, 24
  %v2313 = vpop.permute.xlu0 %2312
  %2314 = vrot.lane.b32.xlu0 %v2134, 24
  %v2315 = vpop.permute.xlu0 %2314
  %2316 = vrot.lane.b32.xlu0 %v2135, 24
  %v2317 = vpop.permute.xlu0 %2316
  %2318 = vrot.lane.b32.xlu0 %v2136, 24
  %v2319 = vpop.permute.xlu0 %2318
  %2320 = vrot.lane.b32.xlu0 %v2137, 24
  %v2321 = vpop.permute.xlu0 %2320
  %2322 = vrot.lane.b32.xlu0 %v2138, 24
  %v2323 = vpop.permute.xlu0 %2322
  %2324 = vrot.lane.b32.xlu0 %v2139, 24
  %v2325 = vpop.permute.xlu0 %2324
  %2326 = vrot.lane.b32.xlu0 %v2140, 24
  %v2327 = vpop.permute.xlu0 %2326
  %2328 = vrot.lane.b32.xlu0 %v2141, 24
  %v2329 = vpop.permute.xlu0 %2328
  %2330 = vrot.lane.b32.xlu0 %v2142, 24
  %v2331 = vpop.permute.xlu0 %2330
  %2332 = vrot.lane.b32.xlu0 %v2143, 24
  %v2333 = vpop.permute.xlu0 %2332
  %2334 = vrot.lane.b32.xlu0 %v2144, 24
  %v2335 = vpop.permute.xlu0 %2334
  %2336 = vrot.lane.b32.xlu0 %v2145, 24
  %v2337 = vpop.permute.xlu0 %2336
  %vm2402 = vcmask 228544
  %2403 = vst.msk [vmem:[#allocation2] sm:$0xff] %vm2402, %v2211
  %2404 = vst.msk [vmem:[#allocation2 + $0x8] sm:$0xff] %vm2402, %v2213
  %2405 = vst.msk [vmem:[#allocation2 + $0x10] sm:$0xff] %vm2402, %v2215
  %2406 = vst.msk [vmem:[#allocation2 + $0x18] sm:$0xff] %vm2402, %v2217
  %2407 = vst.msk [vmem:[#allocation2 + $0x20] sm:$0xff] %vm2402, %v2219
  %2408 = vst.msk [vmem:[#allocation2 + $0x28] sm:$0xff] %vm2402, %v2221
  %2409 = vst.msk [vmem:[#allocation2 + $0x30] sm:$0xff] %vm2402, %v2223
  %2410 = vst.msk [vmem:[#allocation2 + $0x38] sm:$0xff] %vm2402, %v2225
  %2411 = vst.msk [vmem:[#allocation2 + $0x40] sm:$0xff] %vm2402, %v2227
  %2412 = vst.msk [vmem:[#allocation2 + $0x48] sm:$0xff] %vm2402, %v2229
  %2413 = vst.msk [vmem:[#allocation2 + $0x50] sm:$0xff] %vm2402, %v2231
  %2414 = vst.msk [vmem:[#allocation2 + $0x58] sm:$0xff] %vm2402, %v2233
  %2415 = vst.msk [vmem:[#allocation2 + $0x60] sm:$0xff] %vm2402, %v2235
  %2416 = vst.msk [vmem:[#allocation2 + $0x68] sm:$0xff] %vm2402, %v2237
  %2417 = vst.msk [vmem:[#allocation2 + $0x70] sm:$0xff] %vm2402, %v2239
  %2418 = vst.msk [vmem:[#allocation2 + $0x78] sm:$0xff] %vm2402, %v2241
  %2419 = vst.msk [vmem:[#allocation2 + $0x80] sm:$0xff] %vm2402, %v2243
  %2420 = vst.msk [vmem:[#allocation2 + $0x88] sm:$0xff] %vm2402, %v2245
  %2421 = vst.msk [vmem:[#allocation2 + $0x90] sm:$0xff] %vm2402, %v2247
  %2422 = vst.msk [vmem:[#allocation2 + $0x98] sm:$0xff] %vm2402, %v2249
  %2423 = vst.msk [vmem:[#allocation2 + $0xa0] sm:$0xff] %vm2402, %v2251
  %2424 = vst.msk [vmem:[#allocation2 + $0xa8] sm:$0xff] %vm2402, %v2253
  %2425 = vst.msk [vmem:[#allocation2 + $0xb0] sm:$0xff] %vm2402, %v2255
  %2426 = vst.msk [vmem:[#allocation2 + $0xb8] sm:$0xff] %vm2402, %v2257
  %2427 = vst.msk [vmem:[#allocation2 + $0xc0] sm:$0xff] %vm2402, %v2259
  %2428 = vst.msk [vmem:[#allocation2 + $0xc8] sm:$0xff] %vm2402, %v2261
  %2429 = vst.msk [vmem:[#allocation2 + $0xd0] sm:$0xff] %vm2402, %v2263
  %2430 = vst.msk [vmem:[#allocation2 + $0xd8] sm:$0xff] %vm2402, %v2265
  %2431 = vst.msk [vmem:[#allocation2 + $0xe0] sm:$0xff] %vm2402, %v2267
  %2432 = vst.msk [vmem:[#allocation2 + $0xe8] sm:$0xff] %vm2402, %v2269
  %2433 = vst.msk [vmem:[#allocation2 + $0xf0] sm:$0xff] %vm2402, %v2271
  %2434 = vst.msk [vmem:[#allocation2 + $0xf8] sm:$0xff] %vm2402, %v2273
  %2435 = vst.msk [vmem:[#allocation2 + $0x100] sm:$0xff] %vm2402, %v2275
  %2436 = vst.msk [vmem:[#allocation2 + $0x108] sm:$0xff] %vm2402, %v2277
  %2437 = vst.msk [vmem:[#allocation2 + $0x110] sm:$0xff] %vm2402, %v2279
  %2438 = vst.msk [vmem:[#allocation2 + $0x118] sm:$0xff] %vm2402, %v2281
  %2439 = vst.msk [vmem:[#allocation2 + $0x120] sm:$0xff] %vm2402, %v2283
  %2440 = vst.msk [vmem:[#allocation2 + $0x128] sm:$0xff] %vm2402, %v2285
  %2441 = vst.msk [vmem:[#allocation2 + $0x130] sm:$0xff] %vm2402, %v2287
  %2442 = vst.msk [vmem:[#allocation2 + $0x138] sm:$0xff] %vm2402, %v2289
  %2443 = vst.msk [vmem:[#allocation2 + $0x140] sm:$0xff] %vm2402, %v2291
  %2444 = vst.msk [vmem:[#allocation2 + $0x148] sm:$0xff] %vm2402, %v2293
  %2445 = vst.msk [vmem:[#allocation2 + $0x150] sm:$0xff] %vm2402, %v2295
  %2446 = vst.msk [vmem:[#allocation2 + $0x158] sm:$0xff] %vm2402, %v2297
  %2447 = vst.msk [vmem:[#allocation2 + $0x160] sm:$0xff] %vm2402, %v2299
  %2448 = vst.msk [vmem:[#allocation2 + $0x168] sm:$0xff] %vm2402, %v2301
  %2449 = vst.msk [vmem:[#allocation2 + $0x170] sm:$0xff] %vm2402, %v2303
  %2450 = vst.msk [vmem:[#allocation2 + $0x178] sm:$0xff] %vm2402, %v2305
  %2451 = vst.msk [vmem:[#allocation2 + $0x180] sm:$0xff] %vm2402, %v2307
  %2452 = vst.msk [vmem:[#allocation2 + $0x188] sm:$0xff] %vm2402, %v2309
  %2453 = vst.msk [vmem:[#allocation2 + $0x190] sm:$0xff] %vm2402, %v2311
  %2454 = vst.msk [vmem:[#allocation2 + $0x198] sm:$0xff] %vm2402, %v2313
  %2455 = vst.msk [vmem:[#allocation2 + $0x1a0] sm:$0xff] %vm2402, %v2315
  %2456 = vst.msk [vmem:[#allocation2 + $0x1a8] sm:$0xff] %vm2402, %v2317
  %2457 = vst.msk [vmem:[#allocation2 + $0x1b0] sm:$0xff] %vm2402, %v2319
  %2458 = vst.msk [vmem:[#allocation2 + $0x1b8] sm:$0xff] %vm2402, %v2321
  %2459 = vst.msk [vmem:[#allocation2 + $0x1c0] sm:$0xff] %vm2402, %v2323
  %2460 = vst.msk [vmem:[#allocation2 + $0x1c8] sm:$0xff] %vm2402, %v2325
  %2461 = vst.msk [vmem:[#allocation2 + $0x1d0] sm:$0xff] %vm2402, %v2327
  %2462 = vst.msk [vmem:[#allocation2 + $0x1d8] sm:$0xff] %vm2402, %v2329
  %2463 = vst.msk [vmem:[#allocation2 + $0x1e0] sm:$0xff] %vm2402, %v2331
  %2464 = vst.msk [vmem:[#allocation2 + $0x1e8] sm:$0xff] %vm2402, %v2333
  %2465 = vst.msk [vmem:[#allocation2 + $0x1f0] sm:$0xff] %vm2402, %v2335
  %2466 = vst.msk [vmem:[#allocation2 + $0x1f8] sm:$0xff] %vm2402, %v2337
  %v2467 = vld [vmem:[%s2081 + $0x1] sm:$0xff]
  %v2468 = vld [vmem:[%s2081 + $0x9] sm:$0xff]
  %v2469 = vld [vmem:[%s2081 + $0x19] sm:$0xff]
  %v2470 = vld [vmem:[%s2081 + $0x21] sm:$0xff]
  %v2471 = vld [vmem:[%s2081 + $0x31] sm:$0xff]
  %v2472 = vld [vmem:[%s2081 + $0x39] sm:$0xff]
  %v2473 = vld [vmem:[%s2081 + $0x49] sm:$0xff]
  %v2474 = vld [vmem:[%s2081 + $0x51] sm:$0xff]
  %v2475 = vld [vmem:[%s2081 + $0x61] sm:$0xff]
  %v2476 = vld [vmem:[%s2081 + $0x69] sm:$0xff]
  %v2477 = vld [vmem:[%s2081 + $0x79] sm:$0xff]
  %v2478 = vld [vmem:[%s2081 + $0x81] sm:$0xff]
  %v2479 = vld [vmem:[%s2081 + $0x91] sm:$0xff]
  %v2480 = vld [vmem:[%s2081 + $0x99] sm:$0xff]
  %v2481 = vld [vmem:[%s2081 + $0xa9] sm:$0xff]
  %v2482 = vld [vmem:[%s2081 + $0xb1] sm:$0xff]
  %v2483 = vld [vmem:[%s2081 + $0xc1] sm:$0xff]
  %v2484 = vld [vmem:[%s2081 + $0xc9] sm:$0xff]
  %v2485 = vld [vmem:[%s2081 + $0xd9] sm:$0xff]
  %v2486 = vld [vmem:[%s2081 + $0xe1] sm:$0xff]
  %v2487 = vld [vmem:[%s2081 + $0xf1] sm:$0xff]
  %v2488 = vld [vmem:[%s2081 + $0xf9] sm:$0xff]
  %v2489 = vld [vmem:[%s2081 + $0x109] sm:$0xff]
  %v2490 = vld [vmem:[%s2081 + $0x111] sm:$0xff]
  %v2491 = vld [vmem:[%s2081 + $0x121] sm:$0xff]
  %v2492 = vld [vmem:[%s2081 + $0x129] sm:$0xff]
  %v2493 = vld [vmem:[%s2081 + $0x139] sm:$0xff]
  %v2494 = vld [vmem:[%s2081 + $0x141] sm:$0xff]
  %v2495 = vld [vmem:[%s2081 + $0x151] sm:$0xff]
  %v2496 = vld [vmem:[%s2081 + $0x159] sm:$0xff]
  %v2497 = vld [vmem:[%s2081 + $0x169] sm:$0xff]
  %v2498 = vld [vmem:[%s2081 + $0x171] sm:$0xff]
  %v2499 = vld [vmem:[%s2081 + $0x1b1] sm:$0xff]
  %v2500 = vld [vmem:[%s2081 + $0x1b9] sm:$0xff]
  %v2501 = vld [vmem:[%s2081 + $0x1c9] sm:$0xff]
  %v2502 = vld [vmem:[%s2081 + $0x1d1] sm:$0xff]
  %v2503 = vld [vmem:[%s2081 + $0x1e1] sm:$0xff]
  %v2504 = vld [vmem:[%s2081 + $0x1e9] sm:$0xff]
  %v2505 = vld [vmem:[%s2081 + $0x1f9] sm:$0xff]
  %v2506 = vld [vmem:[%s2081 + $0x201] sm:$0xff]
  %v2507 = vld [vmem:[%s2081 + $0x211] sm:$0xff]
  %v2508 = vld [vmem:[%s2081 + $0x219] sm:$0xff]
  %v2509 = vld [vmem:[%s2081 + $0x229] sm:$0xff]
  %v2510 = vld [vmem:[%s2081 + $0x231] sm:$0xff]
  %v2511 = vld [vmem:[%s2081 + $0x241] sm:$0xff]
  %v2512 = vld [vmem:[%s2081 + $0x249] sm:$0xff]
  %v2513 = vld [vmem:[%s2081 + $0x259] sm:$0xff]
  %v2514 = vld [vmem:[%s2081 + $0x261] sm:$0xff]
  %v2515 = vld [vmem:[%s2081 + $0x271] sm:$0xff]
  %v2516 = vld [vmem:[%s2081 + $0x279] sm:$0xff]
  %v2517 = vld [vmem:[%s2081 + $0x289] sm:$0xff]
  %v2518 = vld [vmem:[%s2081 + $0x291] sm:$0xff]
  %v2519 = vld [vmem:[%s2081 + $0x2a1] sm:$0xff]
  %v2520 = vld [vmem:[%s2081 + $0x2a9] sm:$0xff]
  %v2521 = vld [vmem:[%s2081 + $0x2b9] sm:$0xff]
  %v2522 = vld [vmem:[%s2081 + $0x2c1] sm:$0xff]
  %v2523 = vld [vmem:[%s2081 + $0x2d1] sm:$0xff]
  %v2524 = vld [vmem:[%s2081 + $0x2d9] sm:$0xff]
  %v2525 = vld [vmem:[%s2081 + $0x2e9] sm:$0xff]
  %v2526 = vld [vmem:[%s2081 + $0x2f1] sm:$0xff]
  %v2527 = vld [vmem:[%s2081 + $0x301] sm:$0xff]
  %v2528 = vld [vmem:[%s2081 + $0x309] sm:$0xff]
  %v2529 = vld [vmem:[%s2081 + $0x319] sm:$0xff]
  %v2530 = vld [vmem:[%s2081 + $0x321] sm:$0xff]
  %2595 = vrot.lane.b32.xlu0 %v2467, 28
  %v2596 = vpop.permute.xlu0 %2595
  %2597 = vrot.lane.b32.xlu0 %v2468, 28
  %v2598 = vpop.permute.xlu0 %2597
  %2599 = vrot.lane.b32.xlu0 %v2469, 28
  %v2600 = vpop.permute.xlu0 %2599
  %2601 = vrot.lane.b32.xlu0 %v2470, 28
  %v2602 = vpop.permute.xlu0 %2601
  %2603 = vrot.lane.b32.xlu0 %v2471, 28
  %v2604 = vpop.permute.xlu0 %2603
  %2605 = vrot.lane.b32.xlu0 %v2472, 28
  %v2606 = vpop.permute.xlu0 %2605
  %2607 = vrot.lane.b32.xlu0 %v2473, 28
  %v2608 = vpop.permute.xlu0 %2607
  %2609 = vrot.lane.b32.xlu0 %v2474, 28
  %v2610 = vpop.permute.xlu0 %2609
  %2611 = vrot.lane.b32.xlu0 %v2475, 28
  %v2612 = vpop.permute.xlu0 %2611
  %2613 = vrot.lane.b32.xlu0 %v2476, 28
  %v2614 = vpop.permute.xlu0 %2613
  %2615 = vrot.lane.b32.xlu0 %v2477, 28
  %v2616 = vpop.permute.xlu0 %2615
  %2617 = vrot.lane.b32.xlu0 %v2478, 28
  %v2618 = vpop.permute.xlu0 %2617
  %2619 = vrot.lane.b32.xlu0 %v2479, 28
  %v2620 = vpop.permute.xlu0 %2619
  %2621 = vrot.lane.b32.xlu0 %v2480, 28
  %v2622 = vpop.permute.xlu0 %2621
  %2623 = vrot.lane.b32.xlu0 %v2481, 28
  %v2624 = vpop.permute.xlu0 %2623
  %2625 = vrot.lane.b32.xlu0 %v2482, 28
  %v2626 = vpop.permute.xlu0 %2625
  %2627 = vrot.lane.b32.xlu0 %v2483, 28
  %v2628 = vpop.permute.xlu0 %2627
  %2629 = vrot.lane.b32.xlu0 %v2484, 28
  %v2630 = vpop.permute.xlu0 %2629
  %2631 = vrot.lane.b32.xlu0 %v2485, 28
  %v2632 = vpop.permute.xlu0 %2631
  %2633 = vrot.lane.b32.xlu0 %v2486, 28
  %v2634 = vpop.permute.xlu0 %2633
  %2635 = vrot.lane.b32.xlu0 %v2487, 28
  %v2636 = vpop.permute.xlu0 %2635
  %2637 = vrot.lane.b32.xlu0 %v2488, 28
  %v2638 = vpop.permute.xlu0 %2637
  %2639 = vrot.lane.b32.xlu0 %v2489, 28
  %v2640 = vpop.permute.xlu0 %2639
  %2641 = vrot.lane.b32.xlu0 %v2490, 28
  %v2642 = vpop.permute.xlu0 %2641
  %2643 = vrot.lane.b32.xlu0 %v2491, 28
  %v2644 = vpop.permute.xlu0 %2643
  %2645 = vrot.lane.b32.xlu0 %v2492, 28
  %v2646 = vpop.permute.xlu0 %2645
  %2647 = vrot.lane.b32.xlu0 %v2493, 28
  %v2648 = vpop.permute.xlu0 %2647
  %2649 = vrot.lane.b32.xlu0 %v2494, 28
  %v2650 = vpop.permute.xlu0 %2649
  %2651 = vrot.lane.b32.xlu0 %v2495, 28
  %v2652 = vpop.permute.xlu0 %2651
  %2653 = vrot.lane.b32.xlu0 %v2496, 28
  %v2654 = vpop.permute.xlu0 %2653
  %2655 = vrot.lane.b32.xlu0 %v2497, 28
  %v2656 = vpop.permute.xlu0 %2655
  %2657 = vrot.lane.b32.xlu0 %v2498, 28
  %v2658 = vpop.permute.xlu0 %2657
  %2659 = vrot.lane.b32.xlu0 %v2499, 28
  %v2660 = vpop.permute.xlu0 %2659
  %2661 = vrot.lane.b32.xlu0 %v2500, 28
  %v2662 = vpop.permute.xlu0 %2661
  %2663 = vrot.lane.b32.xlu0 %v2501, 28
  %v2664 = vpop.permute.xlu0 %2663
  %2665 = vrot.lane.b32.xlu0 %v2502, 28
  %v2666 = vpop.permute.xlu0 %2665
  %2667 = vrot.lane.b32.xlu0 %v2503, 28
  %v2668 = vpop.permute.xlu0 %2667
  %2669 = vrot.lane.b32.xlu0 %v2504, 28
  %v2670 = vpop.permute.xlu0 %2669
  %2671 = vrot.lane.b32.xlu0 %v2505, 28
  %v2672 = vpop.permute.xlu0 %2671
  %2673 = vrot.lane.b32.xlu0 %v2506, 28
  %v2674 = vpop.permute.xlu0 %2673
  %2675 = vrot.lane.b32.xlu0 %v2507, 28
  %v2676 = vpop.permute.xlu0 %2675
  %2677 = vrot.lane.b32.xlu0 %v2508, 28
  %v2678 = vpop.permute.xlu0 %2677
  %2679 = vrot.lane.b32.xlu0 %v2509, 28
  %v2680 = vpop.permute.xlu0 %2679
  %2681 = vrot.lane.b32.xlu0 %v2510, 28
  %v2682 = vpop.permute.xlu0 %2681
  %2683 = vrot.lane.b32.xlu0 %v2511, 28
  %v2684 = vpop.permute.xlu0 %2683
  %2685 = vrot.lane.b32.xlu0 %v2512, 28
  %v2686 = vpop.permute.xlu0 %2685
  %2687 = vrot.lane.b32.xlu0 %v2513, 28
  %v2688 = vpop.permute.xlu0 %2687
  %2689 = vrot.lane.b32.xlu0 %v2514, 28
  %v2690 = vpop.permute.xlu0 %2689
  %2691 = vrot.lane.b32.xlu0 %v2515, 28
  %v2692 = vpop.permute.xlu0 %2691
  %2693 = vrot.lane.b32.xlu0 %v2516, 28
  %v2694 = vpop.permute.xlu0 %2693
  %2695 = vrot.lane.b32.xlu0 %v2517, 28
  %v2696 = vpop.permute.xlu0 %2695
  %2697 = vrot.lane.b32.xlu0 %v2518, 28
  %v2698 = vpop.permute.xlu0 %2697
  %2699 = vrot.lane.b32.xlu0 %v2519, 28
  %v2700 = vpop.permute.xlu0 %2699
  %2701 = vrot.lane.b32.xlu0 %v2520, 28
  %v2702 = vpop.permute.xlu0 %2701
  %2703 = vrot.lane.b32.xlu0 %v2521, 28
  %v2704 = vpop.permute.xlu0 %2703
  %2705 = vrot.lane.b32.xlu0 %v2522, 28
  %v2706 = vpop.permute.xlu0 %2705
  %2707 = vrot.lane.b32.xlu0 %v2523, 28
  %v2708 = vpop.permute.xlu0 %2707
  %2709 = vrot.lane.b32.xlu0 %v2524, 28
  %v2710 = vpop.permute.xlu0 %2709
  %2711 = vrot.lane.b32.xlu0 %v2525, 28
  %v2712 = vpop.permute.xlu0 %2711
  %2713 = vrot.lane.b32.xlu0 %v2526, 28
  %v2714 = vpop.permute.xlu0 %2713
  %2715 = vrot.lane.b32.xlu0 %v2527, 28
  %v2716 = vpop.permute.xlu0 %2715
  %2717 = vrot.lane.b32.xlu0 %v2528, 28
  %v2718 = vpop.permute.xlu0 %2717
  %2719 = vrot.lane.b32.xlu0 %v2529, 28
  %v2720 = vpop.permute.xlu0 %2719
  %2721 = vrot.lane.b32.xlu0 %v2530, 28
  %v2722 = vpop.permute.xlu0 %2721
  %vm2787 = vcmask 261344
  %2788 = vst.msk [vmem:[#allocation2] sm:$0xff] %vm2787, %v2596
  %2789 = vst.msk [vmem:[#allocation2 + $0x8] sm:$0xff] %vm2787, %v2598
  %2790 = vst.msk [vmem:[#allocation2 + $0x10] sm:$0xff] %vm2787, %v2600
  %2791 = vst.msk [vmem:[#allocation2 + $0x18] sm:$0xff] %vm2787, %v2602
  %2792 = vst.msk [vmem:[#allocation2 + $0x20] sm:$0xff] %vm2787, %v2604
  %2793 = vst.msk [vmem:[#allocation2 + $0x28] sm:$0xff] %vm2787, %v2606
  %2794 = vst.msk [vmem:[#allocation2 + $0x30] sm:$0xff] %vm2787, %v2608
  %2795 = vst.msk [vmem:[#allocation2 + $0x38] sm:$0xff] %vm2787, %v2610
  %2796 = vst.msk [vmem:[#allocation2 + $0x40] sm:$0xff] %vm2787, %v2612
  %2797 = vst.msk [vmem:[#allocation2 + $0x48] sm:$0xff] %vm2787, %v2614
  %2798 = vst.msk [vmem:[#allocation2 + $0x50] sm:$0xff] %vm2787, %v2616
  %2799 = vst.msk [vmem:[#allocation2 + $0x58] sm:$0xff] %vm2787, %v2618
  %2800 = vst.msk [vmem:[#allocation2 + $0x60] sm:$0xff] %vm2787, %v2620
  %2801 = vst.msk [vmem:[#allocation2 + $0x68] sm:$0xff] %vm2787, %v2622
  %2802 = vst.msk [vmem:[#allocation2 + $0x70] sm:$0xff] %vm2787, %v2624
  %2803 = vst.msk [vmem:[#allocation2 + $0x78] sm:$0xff] %vm2787, %v2626
  %2804 = vst.msk [vmem:[#allocation2 + $0x80] sm:$0xff] %vm2787, %v2628
  %2805 = vst.msk [vmem:[#allocation2 + $0x88] sm:$0xff] %vm2787, %v2630
  %2806 = vst.msk [vmem:[#allocation2 + $0x90] sm:$0xff] %vm2787, %v2632
  %2807 = vst.msk [vmem:[#allocation2 + $0x98] sm:$0xff] %vm2787, %v2634
  %2808 = vst.msk [vmem:[#allocation2 + $0xa0] sm:$0xff] %vm2787, %v2636
  %2809 = vst.msk [vmem:[#allocation2 + $0xa8] sm:$0xff] %vm2787, %v2638
  %2810 = vst.msk [vmem:[#allocation2 + $0xb0] sm:$0xff] %vm2787, %v2640
  %2811 = vst.msk [vmem:[#allocation2 + $0xb8] sm:$0xff] %vm2787, %v2642
  %2812 = vst.msk [vmem:[#allocation2 + $0xc0] sm:$0xff] %vm2787, %v2644
  %2813 = vst.msk [vmem:[#allocation2 + $0xc8] sm:$0xff] %vm2787, %v2646
  %2814 = vst.msk [vmem:[#allocation2 + $0xd0] sm:$0xff] %vm2787, %v2648
  %2815 = vst.msk [vmem:[#allocation2 + $0xd8] sm:$0xff] %vm2787, %v2650
  %2816 = vst.msk [vmem:[#allocation2 + $0xe0] sm:$0xff] %vm2787, %v2652
  %2817 = vst.msk [vmem:[#allocation2 + $0xe8] sm:$0xff] %vm2787, %v2654
  %2818 = vst.msk [vmem:[#allocation2 + $0xf0] sm:$0xff] %vm2787, %v2656
  %2819 = vst.msk [vmem:[#allocation2 + $0xf8] sm:$0xff] %vm2787, %v2658
  %2820 = vst.msk [vmem:[#allocation2 + $0x100] sm:$0xff] %vm2787, %v2660
  %2821 = vst.msk [vmem:[#allocation2 + $0x108] sm:$0xff] %vm2787, %v2662
  %2822 = vst.msk [vmem:[#allocation2 + $0x110] sm:$0xff] %vm2787, %v2664
  %2823 = vst.msk [vmem:[#allocation2 + $0x118] sm:$0xff] %vm2787, %v2666
  %2824 = vst.msk [vmem:[#allocation2 + $0x120] sm:$0xff] %vm2787, %v2668
  %2825 = vst.msk [vmem:[#allocation2 + $0x128] sm:$0xff] %vm2787, %v2670
  %2826 = vst.msk [vmem:[#allocation2 + $0x130] sm:$0xff] %vm2787, %v2672
  %2827 = vst.msk [vmem:[#allocation2 + $0x138] sm:$0xff] %vm2787, %v2674
  %2828 = vst.msk [vmem:[#allocation2 + $0x140] sm:$0xff] %vm2787, %v2676
  %2829 = vst.msk [vmem:[#allocation2 + $0x148] sm:$0xff] %vm2787, %v2678
  %2830 = vst.msk [vmem:[#allocation2 + $0x150] sm:$0xff] %vm2787, %v2680
  %2831 = vst.msk [vmem:[#allocation2 + $0x158] sm:$0xff] %vm2787, %v2682
  %2832 = vst.msk [vmem:[#allocation2 + $0x160] sm:$0xff] %vm2787, %v2684
  %2833 = vst.msk [vmem:[#allocation2 + $0x168] sm:$0xff] %vm2787, %v2686
  %2834 = vst.msk [vmem:[#allocation2 + $0x170] sm:$0xff] %vm2787, %v2688
  %2835 = vst.msk [vmem:[#allocation2 + $0x178] sm:$0xff] %vm2787, %v2690
  %2836 = vst.msk [vmem:[#allocation2 + $0x180] sm:$0xff] %vm2787, %v2692
  %2837 = vst.msk [vmem:[#allocation2 + $0x188] sm:$0xff] %vm2787, %v2694
  %2838 = vst.msk [vmem:[#allocation2 + $0x190] sm:$0xff] %vm2787, %v2696
  %2839 = vst.msk [vmem:[#allocation2 + $0x198] sm:$0xff] %vm2787, %v2698
  %2840 = vst.msk [vmem:[#allocation2 + $0x1a0] sm:$0xff] %vm2787, %v2700
  %2841 = vst.msk [vmem:[#allocation2 + $0x1a8] sm:$0xff] %vm2787, %v2702
  %2842 = vst.msk [vmem:[#allocation2 + $0x1b0] sm:$0xff] %vm2787, %v2704
  %2843 = vst.msk [vmem:[#allocation2 + $0x1b8] sm:$0xff] %vm2787, %v2706
  %2844 = vst.msk [vmem:[#allocation2 + $0x1c0] sm:$0xff] %vm2787, %v2708
  %2845 = vst.msk [vmem:[#allocation2 + $0x1c8] sm:$0xff] %vm2787, %v2710
  %2846 = vst.msk [vmem:[#allocation2 + $0x1d0] sm:$0xff] %vm2787, %v2712
  %2847 = vst.msk [vmem:[#allocation2 + $0x1d8] sm:$0xff] %vm2787, %v2714
  %2848 = vst.msk [vmem:[#allocation2 + $0x1e0] sm:$0xff] %vm2787, %v2716
  %2849 = vst.msk [vmem:[#allocation2 + $0x1e8] sm:$0xff] %vm2787, %v2718
  %2850 = vst.msk [vmem:[#allocation2 + $0x1f0] sm:$0xff] %vm2787, %v2720
  %2851 = vst.msk [vmem:[#allocation2 + $0x1f8] sm:$0xff] %vm2787, %v2722
  %v2852 = vld [vmem:[%s2081 + $0x2] sm:$0xff]
  %v2853 = vld [vmem:[%s2081 + $0xa] sm:$0xff]
  %v2854 = vld [vmem:[%s2081 + $0x1a] sm:$0xff]
  %v2855 = vld [vmem:[%s2081 + $0x22] sm:$0xff]
  %v2856 = vld [vmem:[%s2081 + $0x32] sm:$0xff]
  %v2857 = vld [vmem:[%s2081 + $0x3a] sm:$0xff]
  %v2858 = vld [vmem:[%s2081 + $0x4a] sm:$0xff]
  %v2859 = vld [vmem:[%s2081 + $0x52] sm:$0xff]
  %v2860 = vld [vmem:[%s2081 + $0x62] sm:$0xff]
  %v2861 = vld [vmem:[%s2081 + $0x6a] sm:$0xff]
  %v2862 = vld [vmem:[%s2081 + $0x7a] sm:$0xff]
  %v2863 = vld [vmem:[%s2081 + $0x82] sm:$0xff]
  %v2864 = vld [vmem:[%s2081 + $0x92] sm:$0xff]
  %v2865 = vld [vmem:[%s2081 + $0x9a] sm:$0xff]
  %v2866 = vld [vmem:[%s2081 + $0xaa] sm:$0xff]
  %v2867 = vld [vmem:[%s2081 + $0xb2] sm:$0xff]
  %v2868 = vld [vmem:[%s2081 + $0xc2] sm:$0xff]
  %v2869 = vld [vmem:[%s2081 + $0xca] sm:$0xff]
  %v2870 = vld [vmem:[%s2081 + $0xda] sm:$0xff]
  %v2871 = vld [vmem:[%s2081 + $0xe2] sm:$0xff]
  %v2872 = vld [vmem:[%s2081 + $0xf2] sm:$0xff]
  %v2873 = vld [vmem:[%s2081 + $0xfa] sm:$0xff]
  %v2874 = vld [vmem:[%s2081 + $0x10a] sm:$0xff]
  %v2875 = vld [vmem:[%s2081 + $0x112] sm:$0xff]
  %v2876 = vld [vmem:[%s2081 + $0x122] sm:$0xff]
  %v2877 = vld [vmem:[%s2081 + $0x12a] sm:$0xff]
  %v2878 = vld [vmem:[%s2081 + $0x13a] sm:$0xff]
  %v2879 = vld [vmem:[%s2081 + $0x142] sm:$0xff]
  %v2880 = vld [vmem:[%s2081 + $0x152] sm:$0xff]
  %v2881 = vld [vmem:[%s2081 + $0x15a] sm:$0xff]
  %v2882 = vld [vmem:[%s2081 + $0x16a] sm:$0xff]
  %v2883 = vld [vmem:[%s2081 + $0x172] sm:$0xff]
  %v2884 = vld [vmem:[%s2081 + $0x1b2] sm:$0xff]
  %v2885 = vld [vmem:[%s2081 + $0x1ba] sm:$0xff]
  %v2886 = vld [vmem:[%s2081 + $0x1ca] sm:$0xff]
  %v2887 = vld [vmem:[%s2081 + $0x1d2] sm:$0xff]
  %v2888 = vld [vmem:[%s2081 + $0x1e2] sm:$0xff]
  %v2889 = vld [vmem:[%s2081 + $0x1ea] sm:$0xff]
  %v2890 = vld [vmem:[%s2081 + $0x1fa] sm:$0xff]
  %v2891 = vld [vmem:[%s2081 + $0x202] sm:$0xff]
  %v2892 = vld [vmem:[%s2081 + $0x212] sm:$0xff]
  %v2893 = vld [vmem:[%s2081 + $0x21a] sm:$0xff]
  %v2894 = vld [vmem:[%s2081 + $0x22a] sm:$0xff]
  %v2895 = vld [vmem:[%s2081 + $0x232] sm:$0xff]
  %v2896 = vld [vmem:[%s2081 + $0x242] sm:$0xff]
  %v2897 = vld [vmem:[%s2081 + $0x24a] sm:$0xff]
  %v2898 = vld [vmem:[%s2081 + $0x25a] sm:$0xff]
  %v2899 = vld [vmem:[%s2081 + $0x262] sm:$0xff]
  %v2900 = vld [vmem:[%s2081 + $0x272] sm:$0xff]
  %v2901 = vld [vmem:[%s2081 + $0x27a] sm:$0xff]
  %v2902 = vld [vmem:[%s2081 + $0x28a] sm:$0xff]
  %v2903 = vld [vmem:[%s2081 + $0x292] sm:$0xff]
  %v2904 = vld [vmem:[%s2081 + $0x2a2] sm:$0xff]
  %v2905 = vld [vmem:[%s2081 + $0x2aa] sm:$0xff]
  %v2906 = vld [vmem:[%s2081 + $0x2ba] sm:$0xff]
  %v2907 = vld [vmem:[%s2081 + $0x2c2] sm:$0xff]
  %v2908 = vld [vmem:[%s2081 + $0x2d2] sm:$0xff]
  %v2909 = vld [vmem:[%s2081 + $0x2da] sm:$0xff]
  %v2910 = vld [vmem:[%s2081 + $0x2ea] sm:$0xff]
  %v2911 = vld [vmem:[%s2081 + $0x2f2] sm:$0xff]
  %v2912 = vld [vmem:[%s2081 + $0x302] sm:$0xff]
  %v2913 = vld [vmem:[%s2081 + $0x30a] sm:$0xff]
  %v2914 = vld [vmem:[%s2081 + $0x31a] sm:$0xff]
  %v2915 = vld [vmem:[%s2081 + $0x322] sm:$0xff]
  %2980 = vrot.lane.b32.xlu0 %v2852, 32
  %v2981 = vpop.permute.xlu0 %2980
  %2982 = vrot.lane.b32.xlu0 %v2853, 32
  %v2983 = vpop.permute.xlu0 %2982
  %2984 = vrot.lane.b32.xlu0 %v2854, 32
  %v2985 = vpop.permute.xlu0 %2984
  %2986 = vrot.lane.b32.xlu0 %v2855, 32
  %v2987 = vpop.permute.xlu0 %2986
  %2988 = vrot.lane.b32.xlu0 %v2856, 32
  %v2989 = vpop.permute.xlu0 %2988
  %2990 = vrot.lane.b32.xlu0 %v2857, 32
  %v2991 = vpop.permute.xlu0 %2990
  %2992 = vrot.lane.b32.xlu0 %v2858, 32
  %v2993 = vpop.permute.xlu0 %2992
  %2994 = vrot.lane.b32.xlu0 %v2859, 32
  %v2995 = vpop.permute.xlu0 %2994
  %2996 = vrot.lane.b32.xlu0 %v2860, 32
  %v2997 = vpop.permute.xlu0 %2996
  %2998 = vrot.lane.b32.xlu0 %v2861, 32
  %v2999 = vpop.permute.xlu0 %2998
  %3000 = vrot.lane.b32.xlu0 %v2862, 32
  %v3001 = vpop.permute.xlu0 %3000
  %3002 = vrot.lane.b32.xlu0 %v2863, 32
  %v3003 = vpop.permute.xlu0 %3002
  %3004 = vrot.lane.b32.xlu0 %v2864, 32
  %v3005 = vpop.permute.xlu0 %3004
  %3006 = vrot.lane.b32.xlu0 %v2865, 32
  %v3007 = vpop.permute.xlu0 %3006
  %3008 = vrot.lane.b32.xlu0 %v2866, 32
  %v3009 = vpop.permute.xlu0 %3008
  %3010 = vrot.lane.b32.xlu0 %v2867, 32
  %v3011 = vpop.permute.xlu0 %3010
  %3012 = vrot.lane.b32.xlu0 %v2868, 32
  %v3013 = vpop.permute.xlu0 %3012
  %3014 = vrot.lane.b32.xlu0 %v2869, 32
  %v3015 = vpop.permute.xlu0 %3014
  %3016 = vrot.lane.b32.xlu0 %v2870, 32
  %v3017 = vpop.permute.xlu0 %3016
  %3018 = vrot.lane.b32.xlu0 %v2871, 32
  %v3019 = vpop.permute.xlu0 %3018
  %3020 = vrot.lane.b32.xlu0 %v2872, 32
  %v3021 = vpop.permute.xlu0 %3020
  %3022 = vrot.lane.b32.xlu0 %v2873, 32
  %v3023 = vpop.permute.xlu0 %3022
  %3024 = vrot.lane.b32.xlu0 %v2874, 32
  %v3025 = vpop.permute.xlu0 %3024
  %3026 = vrot.lane.b32.xlu0 %v2875, 32
  %v3027 = vpop.permute.xlu0 %3026
  %3028 = vrot.lane.b32.xlu0 %v2876, 32
  %v3029 = vpop.permute.xlu0 %3028
  %3030 = vrot.lane.b32.xlu0 %v2877, 32
  %v3031 = vpop.permute.xlu0 %3030
  %3032 = vrot.lane.b32.xlu0 %v2878, 32
  %v3033 = vpop.permute.xlu0 %3032
  %3034 = vrot.lane.b32.xlu0 %v2879, 32
  %v3035 = vpop.permute.xlu0 %3034
  %3036 = vrot.lane.b32.xlu0 %v2880, 32
  %v3037 = vpop.permute.xlu0 %3036
  %3038 = vrot.lane.b32.xlu0 %v2881, 32
  %v3039 = vpop.permute.xlu0 %3038
  %3040 = vrot.lane.b32.xlu0 %v2882, 32
  %v3041 = vpop.permute.xlu0 %3040
  %3042 = vrot.lane.b32.xlu0 %v2883, 32
  %v3043 = vpop.permute.xlu0 %3042
  %3044 = vrot.lane.b32.xlu0 %v2884, 32
  %v3045 = vpop.permute.xlu0 %3044
  %3046 = vrot.lane.b32.xlu0 %v2885, 32
  %v3047 = vpop.permute.xlu0 %3046
  %3048 = vrot.lane.b32.xlu0 %v2886, 32
  %v3049 = vpop.permute.xlu0 %3048
  %3050 = vrot.lane.b32.xlu0 %v2887, 32
  %v3051 = vpop.permute.xlu0 %3050
  %3052 = vrot.lane.b32.xlu0 %v2888, 32
  %v3053 = vpop.permute.xlu0 %3052
  %3054 = vrot.lane.b32.xlu0 %v2889, 32
  %v3055 = vpop.permute.xlu0 %3054
  %3056 = vrot.lane.b32.xlu0 %v2890, 32
  %v3057 = vpop.permute.xlu0 %3056
  %3058 = vrot.lane.b32.xlu0 %v2891, 32
  %v3059 = vpop.permute.xlu0 %3058
  %3060 = vrot.lane.b32.xlu0 %v2892, 32
  %v3061 = vpop.permute.xlu0 %3060
  %3062 = vrot.lane.b32.xlu0 %v2893, 32
  %v3063 = vpop.permute.xlu0 %3062
  %3064 = vrot.lane.b32.xlu0 %v2894, 32
  %v3065 = vpop.permute.xlu0 %3064
  %3066 = vrot.lane.b32.xlu0 %v2895, 32
  %v3067 = vpop.permute.xlu0 %3066
  %3068 = vrot.lane.b32.xlu0 %v2896, 32
  %v3069 = vpop.permute.xlu0 %3068
  %3070 = vrot.lane.b32.xlu0 %v2897, 32
  %v3071 = vpop.permute.xlu0 %3070
  %3072 = vrot.lane.b32.xlu0 %v2898, 32
  %v3073 = vpop.permute.xlu0 %3072
  %3074 = vrot.lane.b32.xlu0 %v2899, 32
  %v3075 = vpop.permute.xlu0 %3074
  %3076 = vrot.lane.b32.xlu0 %v2900, 32
  %v3077 = vpop.permute.xlu0 %3076
  %3078 = vrot.lane.b32.xlu0 %v2901, 32
  %v3079 = vpop.permute.xlu0 %3078
  %3080 = vrot.lane.b32.xlu0 %v2902, 32
  %v3081 = vpop.permute.xlu0 %3080
  %3082 = vrot.lane.b32.xlu0 %v2903, 32
  %v3083 = vpop.permute.xlu0 %3082
  %3084 = vrot.lane.b32.xlu0 %v2904, 32
  %v3085 = vpop.permute.xlu0 %3084
  %3086 = vrot.lane.b32.xlu0 %v2905, 32
  %v3087 = vpop.permute.xlu0 %3086
  %3088 = vrot.lane.b32.xlu0 %v2906, 32
  %v3089 = vpop.permute.xlu0 %3088
  %3090 = vrot.lane.b32.xlu0 %v2907, 32
  %v3091 = vpop.permute.xlu0 %3090
  %3092 = vrot.lane.b32.xlu0 %v2908, 32
  %v3093 = vpop.permute.xlu0 %3092
  %3094 = vrot.lane.b32.xlu0 %v2909, 32
  %v3095 = vpop.permute.xlu0 %3094
  %3096 = vrot.lane.b32.xlu0 %v2910, 32
  %v3097 = vpop.permute.xlu0 %3096
  %3098 = vrot.lane.b32.xlu0 %v2911, 32
  %v3099 = vpop.permute.xlu0 %3098
  %3100 = vrot.lane.b32.xlu0 %v2912, 32
  %v3101 = vpop.permute.xlu0 %3100
  %3102 = vrot.lane.b32.xlu0 %v2913, 32
  %v3103 = vpop.permute.xlu0 %3102
  %3104 = vrot.lane.b32.xlu0 %v2914, 32
  %v3105 = vpop.permute.xlu0 %3104
  %3106 = vrot.lane.b32.xlu0 %v2915, 32
  %v3107 = vpop.permute.xlu0 %3106
  %vm3172 = vcmask 294144
  %3173 = vst.msk [vmem:[#allocation2] sm:$0xff] %vm3172, %v2981
  %3174 = vst.msk [vmem:[#allocation2 + $0x8] sm:$0xff] %vm3172, %v2983
  %3175 = vst.msk [vmem:[#allocation2 + $0x10] sm:$0xff] %vm3172, %v2985
  %3176 = vst.msk [vmem:[#allocation2 + $0x18] sm:$0xff] %vm3172, %v2987
  %3177 = vst.msk [vmem:[#allocation2 + $0x20] sm:$0xff] %vm3172, %v2989
  %3178 = vst.msk [vmem:[#allocation2 + $0x28] sm:$0xff] %vm3172, %v2991
  %3179 = vst.msk [vmem:[#allocation2 + $0x30] sm:$0xff] %vm3172, %v2993
  %3180 = vst.msk [vmem:[#allocation2 + $0x38] sm:$0xff] %vm3172, %v2995
  %3181 = vst.msk [vmem:[#allocation2 + $0x40] sm:$0xff] %vm3172, %v2997
  %3182 = vst.msk [vmem:[#allocation2 + $0x48] sm:$0xff] %vm3172, %v2999
  %3183 = vst.msk [vmem:[#allocation2 + $0x50] sm:$0xff] %vm3172, %v3001
  %3184 = vst.msk [vmem:[#allocation2 + $0x58] sm:$0xff] %vm3172, %v3003
  %3185 = vst.msk [vmem:[#allocation2 + $0x60] sm:$0xff] %vm3172, %v3005
  %3186 = vst.msk [vmem:[#allocation2 + $0x68] sm:$0xff] %vm3172, %v3007
  %3187 = vst.msk [vmem:[#allocation2 + $0x70] sm:$0xff] %vm3172, %v3009
  %3188 = vst.msk [vmem:[#allocation2 + $0x78] sm:$0xff] %vm3172, %v3011
  %3189 = vst.msk [vmem:[#allocation2 + $0x80] sm:$0xff] %vm3172, %v3013
  %3190 = vst.msk [vmem:[#allocation2 + $0x88] sm:$0xff] %vm3172, %v3015
  %3191 = vst.msk [vmem:[#allocation2 + $0x90] sm:$0xff] %vm3172, %v3017
  %3192 = vst.msk [vmem:[#allocation2 + $0x98] sm:$0xff] %vm3172, %v3019
  %3193 = vst.msk [vmem:[#allocation2 + $0xa0] sm:$0xff] %vm3172, %v3021
  %3194 = vst.msk [vmem:[#allocation2 + $0xa8] sm:$0xff] %vm3172, %v3023
  %3195 = vst.msk [vmem:[#allocation2 + $0xb0] sm:$0xff] %vm3172, %v3025
  %3196 = vst.msk [vmem:[#allocation2 + $0xb8] sm:$0xff] %vm3172, %v3027
  %3197 = vst.msk [vmem:[#allocation2 + $0xc0] sm:$0xff] %vm3172, %v3029
  %3198 = vst.msk [vmem:[#allocation2 + $0xc8] sm:$0xff] %vm3172, %v3031
  %3199 = vst.msk [vmem:[#allocation2 + $0xd0] sm:$0xff] %vm3172, %v3033
  %3200 = vst.msk [vmem:[#allocation2 + $0xd8] sm:$0xff] %vm3172, %v3035
  %3201 = vst.msk [vmem:[#allocation2 + $0xe0] sm:$0xff] %vm3172, %v3037
  %3202 = vst.msk [vmem:[#allocation2 + $0xe8] sm:$0xff] %vm3172, %v3039
  %3203 = vst.msk [vmem:[#allocation2 + $0xf0] sm:$0xff] %vm3172, %v3041
  %3204 = vst.msk [vmem:[#allocation2 + $0xf8] sm:$0xff] %vm3172, %v3043
  %3205 = vst.msk [vmem:[#allocation2 + $0x100] sm:$0xff] %vm3172, %v3045
  %3206 = vst.msk [vmem:[#allocation2 + $0x108] sm:$0xff] %vm3172, %v3047
  %3207 = vst.msk [vmem:[#allocation2 + $0x110] sm:$0xff] %vm3172, %v3049
  %3208 = vst.msk [vmem:[#allocation2 + $0x118] sm:$0xff] %vm3172, %v3051
  %3209 = vst.msk [vmem:[#allocation2 + $0x120] sm:$0xff] %vm3172, %v3053
  %3210 = vst.msk [vmem:[#allocation2 + $0x128] sm:$0xff] %vm3172, %v3055
  %3211 = vst.msk [vmem:[#allocation2 + $0x130] sm:$0xff] %vm3172, %v3057
  %3212 = vst.msk [vmem:[#allocation2 + $0x138] sm:$0xff] %vm3172, %v3059
  %3213 = vst.msk [vmem:[#allocation2 + $0x140] sm:$0xff] %vm3172, %v3061
  %3214 = vst.msk [vmem:[#allocation2 + $0x148] sm:$0xff] %vm3172, %v3063
  %3215 = vst.msk [vmem:[#allocation2 + $0x150] sm:$0xff] %vm3172, %v3065
  %3216 = vst.msk [vmem:[#allocation2 + $0x158] sm:$0xff] %vm3172, %v3067
  %3217 = vst.msk [vmem:[#allocation2 + $0x160] sm:$0xff] %vm3172, %v3069
  %3218 = vst.msk [vmem:[#allocation2 + $0x168] sm:$0xff] %vm3172, %v3071
  %3219 = vst.msk [vmem:[#allocation2 + $0x170] sm:$0xff] %vm3172, %v3073
  %3220 = vst.msk [vmem:[#allocation2 + $0x178] sm:$0xff] %vm3172, %v3075
  %3221 = vst.msk [vmem:[#allocation2 + $0x180] sm:$0xff] %vm3172, %v3077
  %3222 = vst.msk [vmem:[#allocation2 + $0x188] sm:$0xff] %vm3172, %v3079
  %3223 = vst.msk [vmem:[#allocation2 + $0x190] sm:$0xff] %vm3172, %v3081
  %3224 = vst.msk [vmem:[#allocation2 + $0x198] sm:$0xff] %vm3172, %v3083
  %3225 = vst.msk [vmem:[#allocation2 + $0x1a0] sm:$0xff] %vm3172, %v3085
  %3226 = vst.msk [vmem:[#allocation2 + $0x1a8] sm:$0xff] %vm3172, %v3087
  %3227 = vst.msk [vmem:[#allocation2 + $0x1b0] sm:$0xff] %vm3172, %v3089
  %3228 = vst.msk [vmem:[#allocation2 + $0x1b8] sm:$0xff] %vm3172, %v3091
  %3229 = vst.msk [vmem:[#allocation2 + $0x1c0] sm:$0xff] %vm3172, %v3093
  %3230 = vst.msk [vmem:[#allocation2 + $0x1c8] sm:$0xff] %vm3172, %v3095
  %3231 = vst.msk [vmem:[#allocation2 + $0x1d0] sm:$0xff] %vm3172, %v3097
  %3232 = vst.msk [vmem:[#allocation2 + $0x1d8] sm:$0xff] %vm3172, %v3099
  %3233 = vst.msk [vmem:[#allocation2 + $0x1e0] sm:$0xff] %vm3172, %v3101
  %3234 = vst.msk [vmem:[#allocation2 + $0x1e8] sm:$0xff] %vm3172, %v3103
  %3235 = vst.msk [vmem:[#allocation2 + $0x1f0] sm:$0xff] %vm3172, %v3105
  %3236 = vst.msk [vmem:[#allocation2 + $0x1f8] sm:$0xff] %vm3172, %v3107
  %v3237 = vld [vmem:[#allocation2] sm:$0xff]
  %v3238 = vld [vmem:[#allocation2 + $0x8] sm:$0xff]
  %v3239 = vld [vmem:[#allocation2 + $0x10] sm:$0xff]
  %v3240 = vld [vmem:[#allocation2 + $0x18] sm:$0xff]
  %v3241 = vld [vmem:[#allocation2 + $0x20] sm:$0xff]
  %v3242 = vld [vmem:[#allocation2 + $0x28] sm:$0xff]
  %v3243 = vld [vmem:[#allocation2 + $0x30] sm:$0xff]
  %v3244 = vld [vmem:[#allocation2 + $0x38] sm:$0xff]
  %v3245 = vld [vmem:[#allocation2 + $0x40] sm:$0xff]
  %v3246 = vld [vmem:[#allocation2 + $0x48] sm:$0xff]
  %v3247 = vld [vmem:[#allocation2 + $0x50] sm:$0xff]
  %v3248 = vld [vmem:[#allocation2 + $0x58] sm:$0xff]
  %v3249 = vld [vmem:[#allocation2 + $0x60] sm:$0xff]
  %v3250 = vld [vmem:[#allocation2 + $0x68] sm:$0xff]
  %v3251 = vld [vmem:[#allocation2 + $0x70] sm:$0xff]
  %v3252 = vld [vmem:[#allocation2 + $0x78] sm:$0xff]
  %v3253 = vld [vmem:[#allocation2 + $0x80] sm:$0xff]
  %v3254 = vld [vmem:[#allocation2 + $0x88] sm:$0xff]
  %v3255 = vld [vmem:[#allocation2 + $0x90] sm:$0xff]
  %v3256 = vld [vmem:[#allocation2 + $0x98] sm:$0xff]
  %v3257 = vld [vmem:[#allocation2 + $0xa0] sm:$0xff]
  %v3258 = vld [vmem:[#allocation2 + $0xa8] sm:$0xff]
  %v3259 = vld [vmem:[#allocation2 + $0xb0] sm:$0xff]
  %v3260 = vld [vmem:[#allocation2 + $0xb8] sm:$0xff]
  %v3261 = vld [vmem:[#allocation2 + $0xc0] sm:$0xff]
  %v3262 = vld [vmem:[#allocation2 + $0xc8] sm:$0xff]
  %v3263 = vld [vmem:[#allocation2 + $0xd0] sm:$0xff]
  %v3264 = vld [vmem:[#allocation2 + $0xd8] sm:$0xff]
  %v3265 = vld [vmem:[#allocation2 + $0xe0] sm:$0xff]
  %v3266 = vld [vmem:[#allocation2 + $0xe8] sm:$0xff]
  %v3267 = vld [vmem:[#allocation2 + $0xf0] sm:$0xff]
  %v3268 = vld [vmem:[#allocation2 + $0xf8] sm:$0xff]
  %v3269 = vld [vmem:[#allocation2 + $0x100] sm:$0xff]
  %v3270 = vld [vmem:[#allocation2 + $0x108] sm:$0xff]
  %v3271 = vld [vmem:[#allocation2 + $0x110] sm:$0xff]
  %v3272 = vld [vmem:[#allocation2 + $0x118] sm:$0xff]
  %v3273 = vld [vmem:[#allocation2 + $0x120] sm:$0xff]
  %v3274 = vld [vmem:[#allocation2 + $0x128] sm:$0xff]
  %v3275 = vld [vmem:[#allocation2 + $0x130] sm:$0xff]
  %v3276 = vld [vmem:[#allocation2 + $0x138] sm:$0xff]
  %v3277 = vld [vmem:[#allocation2 + $0x140] sm:$0xff]
  %v3278 = vld [vmem:[#allocation2 + $0x148] sm:$0xff]
  %v3279 = vld [vmem:[#allocation2 + $0x150] sm:$0xff]
  %v3280 = vld [vmem:[#allocation2 + $0x158] sm:$0xff]
  %v3281 = vld [vmem:[#allocation2 + $0x160] sm:$0xff]
  %v3282 = vld [vmem:[#allocation2 + $0x168] sm:$0xff]
  %v3283 = vld [vmem:[#allocation2 + $0x170] sm:$0xff]
  %v3284 = vld [vmem:[#allocation2 + $0x178] sm:$0xff]
  %v3285 = vld [vmem:[#allocation2 + $0x180] sm:$0xff]
  %v3286 = vld [vmem:[#allocation2 + $0x188] sm:$0xff]
  %v3287 = vld [vmem:[#allocation2 + $0x190] sm:$0xff]
  %v3288 = vld [vmem:[#allocation2 + $0x198] sm:$0xff]
  %v3289 = vld [vmem:[#allocation2 + $0x1a0] sm:$0xff]
  %v3290 = vld [vmem:[#allocation2 + $0x1a8] sm:$0xff]
  %v3291 = vld [vmem:[#allocation2 + $0x1b0] sm:$0xff]
  %v3292 = vld [vmem:[#allocation2 + $0x1b8] sm:$0xff]
  %v3293 = vld [vmem:[#allocation2 + $0x1c0] sm:$0xff]
  %v3294 = vld [vmem:[#allocation2 + $0x1c8] sm:$0xff]
  %v3295 = vld [vmem:[#allocation2 + $0x1d0] sm:$0xff]
  %v3296 = vld [vmem:[#allocation2 + $0x1d8] sm:$0xff]
  %v3297 = vld [vmem:[#allocation2 + $0x1e0] sm:$0xff]
  %v3298 = vld [vmem:[#allocation2 + $0x1e8] sm:$0xff]
  %v3299 = vld [vmem:[#allocation2 + $0x1f0] sm:$0xff]
  %v3300 = vld [vmem:[#allocation2 + $0x1f8] sm:$0xff]
  %v3301 = vld [vmem:[%s1] sm:$0xff]
  %v3302 = vld [vmem:[%s1 + $0x8] sm:$0xff]
  %v3303 = vld [vmem:[%s1 + $0x10] sm:$0xff]
  %v3304 = vld [vmem:[%s1 + $0x18] sm:$0xff]
  %v3305 = vld [vmem:[%s1 + $0x20] sm:$0xf]
  %vm3306 = vcmask 293888
  %v3308 = vsel %vm3306, %v3237, 0
  %v3311 = vsel %vm3306, %v3238, 0
  %v3314 = vsel %vm3306, %v3239, 0
  %v3317 = vsel %vm3306, %v3240, 0
  %v3320 = vsel %vm3306, %v3241, 0
  %v3323 = vsel %vm3306, %v3242, 0
  %v3326 = vsel %vm3306, %v3243, 0
  %v3329 = vsel %vm3306, %v3244, 0
  %v3332 = vsel %vm3306, %v3245, 0
  %v3335 = vsel %vm3306, %v3246, 0
  %v3338 = vsel %vm3306, %v3247, 0
  %v3341 = vsel %vm3306, %v3248, 0
  %v3344 = vsel %vm3306, %v3249, 0
  %v3347 = vsel %vm3306, %v3250, 0
  %v3350 = vsel %vm3306, %v3251, 0
  %v3353 = vsel %vm3306, %v3252, 0
  %v3356 = vsel %vm3306, %v3253, 0
  %v3359 = vsel %vm3306, %v3254, 0
  %v3362 = vsel %vm3306, %v3255, 0
  %v3365 = vsel %vm3306, %v3256, 0
  %v3368 = vsel %vm3306, %v3257, 0
  %v3371 = vsel %vm3306, %v3258, 0
  %v3374 = vsel %vm3306, %v3259, 0
  %v3377 = vsel %vm3306, %v3260, 0
  %v3380 = vsel %vm3306, %v3261, 0
  %v3383 = vsel %vm3306, %v3262, 0
  %v3386 = vsel %vm3306, %v3263, 0
  %v3389 = vsel %vm3306, %v3264, 0
  %v3392 = vsel %vm3306, %v3265, 0
  %v3395 = vsel %vm3306, %v3266, 0
  %v3398 = vsel %vm3306, %v3267, 0
  %v3401 = vsel %vm3306, %v3268, 0
  %v3404 = vsel %vm3306, %v3269, 0
  %v3407 = vsel %vm3306, %v3270, 0
  %v3410 = vsel %vm3306, %v3271, 0
  %v3413 = vsel %vm3306, %v3272, 0
  %v3416 = vsel %vm3306, %v3273, 0
  %v3419 = vsel %vm3306, %v3274, 0
  %v3422 = vsel %vm3306, %v3275, 0
  %v3425 = vsel %vm3306, %v3276, 0
  %v3428 = vsel %vm3306, %v3277, 0
  %v3431 = vsel %vm3306, %v3278, 0
  %v3434 = vsel %vm3306, %v3279, 0
  %v3437 = vsel %vm3306, %v3280, 0
  %v3440 = vsel %vm3306, %v3281, 0
  %v3443 = vsel %vm3306, %v3282, 0
  %v3446 = vsel %vm3306, %v3283, 0
  %v3449 = vsel %vm3306, %v3284, 0
  %v3452 = vsel %vm3306, %v3285, 0
  %v3455 = vsel %vm3306, %v3286, 0
  %v3458 = vsel %vm3306, %v3287, 0
  %v3461 = vsel %vm3306, %v3288, 0
  %v3464 = vsel %vm3306, %v3289, 0
  %v3467 = vsel %vm3306, %v3290, 0
  %v3470 = vsel %vm3306, %v3291, 0
  %v3473 = vsel %vm3306, %v3292, 0
  %v3476 = vsel %vm3306, %v3293, 0
  %v3479 = vsel %vm3306, %v3294, 0
  %v3482 = vsel %vm3306, %v3295, 0
  %v3485 = vsel %vm3306, %v3296, 0
  %v3488 = vsel %vm3306, %v3297, 0
  %v3491 = vsel %vm3306, %v3298, 0
  %v3494 = vsel %vm3306, %v3299, 0
  %v3497 = vsel %vm3306, %v3300, 0
  %vm3499 = vcmask 1043456
  %v3501 = vsel %vm3499, %v3305, 0
  %3503 = vmatprep.subr.mxu0 0.0
  %3504 = vmatpush1.msra.mxu0 %v3301
  %3505 = vmatprep.subr.mxu0 0.0
  %3506 = vmatpush1.msra.mxu0 %v3302
  %3507 = vmatprep.subr.mxu0 0.0
  %3508 = vmatpush1.msra.mxu0 %v3303
  %3509 = vmatprep.subr.mxu0 0.0
  %3510 = vmatpush1.msra.mxu0 %v3304
  %3511 = vmatprep.subr.mxu0 0.0
  %3512 = vmatpush1.msra.mxu0 %v3501
  %3513 = vmatprep.subr.mxu0 0.0
  %3514 = vmatpush1.msra.mxu0 0.0
  %3515 = vmatprep.subr.mxu0 0.0
  %3516 = vmatpush1.msra.mxu0 0.0
  %3517 = vmatprep.subr.mxu0 0.0
  %3518 = vmatpush1.msra.mxu0 0.0
  %3519 = vmatprep.subr.mxu0 0.0
  %3520 = vmatpush1.msra.mxu0 0.0
  %3521 = vmatprep.subr.mxu0 0.0
  %3522 = vmatpush1.msra.mxu0 0.0
  %3523 = vmatprep.subr.mxu0 0.0
  %3524 = vmatpush1.msra.mxu0 0.0
  %3525 = vmatprep.subr.mxu0 0.0
  %3526 = vmatpush1.msra.mxu0 0.0
  %3527 = vmatprep.subr.mxu0 0.0
  %3528 = vmatpush1.msra.mxu0 0.0
  %3529 = vmatprep.subr.mxu0 0.0
  %3530 = vmatpush1.msra.mxu0 0.0
  %3531 = vmatprep.subr.mxu0 0.0
  %3532 = vmatpush1.msra.mxu0 0.0
  %3533 = vmatprep.subr.mxu0 0.0
  %3534 = vmatpush1.msra.mxu0 0.0
  %3535 = vmatprep.subr.mxu0 0.0
  %3536 = vmatpush1.msra.mxu0 0.0
  %3537 = vmatprep.subr.mxu0 0.0
  %3538 = vmatpush1.msra.mxu0 0.0
  %3539 = vmatprep.subr.mxu0 0.0
  %3540 = vmatpush1.msra.mxu0 0.0
  %3541 = vmatprep.subr.mxu0 0.0
  %3542 = vmatpush1.msra.mxu0 0.0
  %3543 = vmatprep.subr.mxu0 0.0
  %3544 = vmatpush1.msra.mxu0 0.0
  %3545 = vmatprep.subr.mxu0 0.0
  %3546 = vmatpush1.msra.mxu0 0.0
  %3547 = vmatprep.subr.mxu0 0.0
  %3548 = vmatpush1.msra.mxu0 0.0
  %3549 = vmatprep.subr.mxu0 0.0
  %3550 = vmatpush1.msra.mxu0 0.0
  %3551 = vmatprep.subr.mxu0 0.0
  %3552 = vmatpush1.msra.mxu0 0.0
  %3553 = vmatprep.subr.mxu0 0.0
  %3554 = vmatpush1.msra.mxu0 0.0
  %3555 = vmatprep.subr.mxu0 0.0
  %3556 = vmatpush1.msra.mxu0 0.0
  %3557 = vmatprep.subr.mxu0 0.0
  %3558 = vmatpush1.msra.mxu0 0.0
  %3559 = vmatprep.subr.mxu0 0.0
  %3560 = vmatpush1.msra.mxu0 0.0
  %3561 = vmatprep.subr.mxu0 0.0
  %3562 = vmatpush1.msra.mxu0 0.0
  %3563 = vmatprep.subr.mxu0 0.0
  %3564 = vmatpush1.msra.mxu0 0.0
  %3565 = vmatprep.subr.mxu0 0.0
  %3566 = vmatpush1.msra.mxu0 0.0
  %3567 = vmatprep.mubr.f32.mxu0 0.0
  %3568 = vmatmul.mubr.f32.gmra.mrb[0].mxu0 %v3308
  %v3569 = vpop.f32.mrb[0].mxu0
  %v3570 = vadd.f32 0.0, %v3569
  %v3571 = vpop.f32.mrb[0].mxu0
  %3572 = vmatprep.mubr.f32.mxu0 0.0
  %3573 = vmatmul.mubr.f32.gmra.mrb[0].mxu0 %v3311
  %v3574 = vpop.f32.mrb[0].mxu0
  %v3575 = vadd.f32 0.0, %v3574
  %v3576 = vpop.f32.mrb[0].mxu0
  %3577 = vmatprep.mubr.f32.mxu0 0.0
  %3578 = vmatmul.mubr.f32.gmra.mrb[0].mxu0 %v3314
  %v3579 = vpop.f32.mrb[0].mxu0
  %v3580 = vadd.f32 0.0, %v3579
  %v3581 = vpop.f32.mrb[0].mxu0
  %3582 = vmatprep.mubr.f32.mxu0 0.0
  %3583 = vmatmul.mubr.f32.gmra.mrb[0].mxu0 %v3317
  %v3584 = vpop.f32.mrb[0].mxu0
  %v3585 = vadd.f32 0.0, %v3584
  %v3586 = vpop.f32.mrb[0].mxu0
  %3587 = vmatprep.mubr.f32.mxu0 0.0
  %3588 = vmatmul.mubr.f32.gmra.mrb[0].mxu0 %v3320
  %v3589 = vpop.f32.mrb[0].mxu0
  %v3590 = vadd.f32 0.0, %v3589
  %v3591 = vpop.f32.mrb[0].mxu0
  %3592 = vmatprep.mubr.f32.mxu0 0.0
  %3593 = vmatmul.mubr.f32.gmra.mrb[0].mxu0 %v3323
  %v3594 = vpop.f32.mrb[0].mxu0
  %v3595 = vadd.f32 0.0, %v3594
  %v3596 = vpop.f32.mrb[0].mxu0
  %3597 = vmatprep.mubr.f32.mxu0 0.0
  %3598 = vmatmul.mubr.f32.gmra.mrb[0].mxu0 %v3326
  %v3599 = vpop.f32.mrb[0].mxu0
  %v3600 = vadd.f32 0.0, %v3599
  %v3601 = vpop.f32.mrb[0].mxu0
  %3602 = vmatprep.mubr.f32.mxu0 0.0
  %3603 = vmatmul.mubr.f32.gmra.mrb[0].mxu0 %v3329
  %v3604 = vpop.f32.mrb[0].mxu0
  %v3605 = vadd.f32 0.0, %v3604
  %v3606 = vpop.f32.mrb[0].mxu0
  %3607 = vmatprep.mubr.f32.mxu0 0.0
  %3608 = vmatmul.mubr.f32.gmra.mrb[0].mxu0 %v3332
  %v3609 = vpop.f32.mrb[0].mxu0
  %v3610 = vadd.f32 0.0, %v3609
  %v3611 = vpop.f32.mrb[0].mxu0
  %3612 = vmatprep.mubr.f32.mxu0 0.0
  %3613 = vmatmul.mubr.f32.gmra.mrb[0].mxu0 %v3335
  %v3614 = vpop.f32.mrb[0].mxu0
  %v3615 = vadd.f32 0.0, %v3614
  %v3616 = vpop.f32.mrb[0].mxu0
  %3617 = vmatprep.mubr.f32.mxu0 0.0
  %3618 = vmatmul.mubr.f32.gmra.mrb[0].mxu0 %v3338
  %v3619 = vpop.f32.mrb[0].mxu0
  %v3620 = vadd.f32 0.0, %v3619
  %v3621 = vpop.f32.mrb[0].mxu0
  %3622 = vmatprep.mubr.f32.mxu0 0.0
  %3623 = vmatmul.mubr.f32.gmra.mrb[0].mxu0 %v3341
  %v3624 = vpop.f32.mrb[0].mxu0
  %v3625 = vadd.f32 0.0, %v3624
  %v3626 = vpop.f32.mrb[0].mxu0
  %3627 = vmatprep.mubr.f32.mxu0 0.0
  %3628 = vmatmul.mubr.f32.gmra.mrb[0].mxu0 %v3344
  %v3629 = vpop.f32.mrb[0].mxu0
  %v3630 = vadd.f32 0.0, %v3629
  %v3631 = vpop.f32.mrb[0].mxu0
  %3632 = vmatprep.mubr.f32.mxu0 0.0
  %3633 = vmatmul.mubr.f32.gmra.mrb[0].mxu0 %v3347
  %v3634 = vpop.f32.mrb[0].mxu0
  %v3635 = vadd.f32 0.0, %v3634
  %v3636 = vpop.f32.mrb[0].mxu0
  %3637 = vmatprep.mubr.f32.mxu0 0.0
  %3638 = vmatmul.mubr.f32.gmra.mrb[0].mxu0 %v3350
  %v3639 = vpop.f32.mrb[0].mxu0
  %v3640 = vadd.f32 0.0, %v3639
  %v3641 = vpop.f32.mrb[0].mxu0
  %3642 = vmatprep.mubr.f32.mxu0 0.0
  %3643 = vmatmul.mubr.f32.gmra.mrb[0].mxu0 %v3353
  %v3644 = vpop.f32.mrb[0].mxu0
  %v3645 = vadd.f32 0.0, %v3644
  %v3646 = vpop.f32.mrb[0].mxu0
  %3647 = vmatprep.mubr.f32.mxu0 0.0
  %3648 = vmatmul.mubr.f32.gmra.mrb[0].mxu0 %v3356
  %v3649 = vpop.f32.mrb[0].mxu0
  %v3650 = vadd.f32 0.0, %v3649
  %v3651 = vpop.f32.mrb[0].mxu0
  %3652 = vmatprep.mubr.f32.mxu0 0.0
  %3653 = vmatmul.mubr.f32.gmra.mrb[0].mxu0 %v3359
  %v3654 = vpop.f32.mrb[0].mxu0
  %v3655 = vadd.f32 0.0, %v3654
  %v3656 = vpop.f32.mrb[0].mxu0
  %3657 = vmatprep.mubr.f32.mxu0 0.0
  %3658 = vmatmul.mubr.f32.gmra.mrb[0].mxu0 %v3362
  %v3659 = vpop.f32.mrb[0].mxu0
  %v3660 = vadd.f32 0.0, %v3659
  %v3661 = vpop.f32.mrb[0].mxu0
  %3662 = vmatprep.mubr.f32.mxu0 0.0
  %3663 = vmatmul.mubr.f32.gmra.mrb[0].mxu0 %v3365
  %v3664 = vpop.f32.mrb[0].mxu0
  %v3665 = vadd.f32 0.0, %v3664
  %v3666 = vpop.f32.mrb[0].mxu0
  %3667 = vmatprep.mubr.f32.mxu0 0.0
  %3668 = vmatmul.mubr.f32.gmra.mrb[0].mxu0 %v3368
  %v3669 = vpop.f32.mrb[0].mxu0
  %v3670 = vadd.f32 0.0, %v3669
  %v3671 = vpop.f32.mrb[0].mxu0
  %3672 = vmatprep.mubr.f32.mxu0 0.0
  %3673 = vmatmul.mubr.f32.gmra.mrb[0].mxu0 %v3371
  %v3674 = vpop.f32.mrb[0].mxu0
  %v3675 = vadd.f32 0.0, %v3674
  %v3676 = vpop.f32.mrb[0].mxu0
  %3677 = vmatprep.mubr.f32.mxu0 0.0
  %3678 = vmatmul.mubr.f32.gmra.mrb[0].mxu0 %v3374
  %v3679 = vpop.f32.mrb[0].mxu0
  %v3680 = vadd.f32 0.0, %v3679
  %v3681 = vpop.f32.mrb[0].mxu0
  %3682 = vmatprep.mubr.f32.mxu0 0.0
  %3683 = vmatmul.mubr.f32.gmra.mrb[0].mxu0 %v3377
  %v3684 = vpop.f32.mrb[0].mxu0
  %v3685 = vadd.f32 0.0, %v3684
  %v3686 = vpop.f32.mrb[0].mxu0
  %3687 = vmatprep.mubr.f32.mxu0 0.0
  %3688 = vmatmul.mubr.f32.gmra.mrb[0].mxu0 %v3380
  %v3689 = vpop.f32.mrb[0].mxu0
  %v3690 = vadd.f32 0.0, %v3689
  %v3691 = vpop.f32.mrb[0].mxu0
  %3692 = vmatprep.mubr.f32.mxu0 0.0
  %3693 = vmatmul.mubr.f32.gmra.mrb[0].mxu0 %v3383
  %v3694 = vpop.f32.mrb[0].mxu0
  %v3695 = vadd.f32 0.0, %v3694
  %v3696 = vpop.f32.mrb[0].mxu0
  %3697 = vmatprep.mubr.f32.mxu0 0.0
  %3698 = vmatmul.mubr.f32.gmra.mrb[0].mxu0 %v3386
  %v3699 = vpop.f32.mrb[0].mxu0
  %v3700 = vadd.f32 0.0, %v3699
  %v3701 = vpop.f32.mrb[0].mxu0
  %3702 = vmatprep.mubr.f32.mxu0 0.0
  %3703 = vmatmul.mubr.f32.gmra.mrb[0].mxu0 %v3389
  %v3704 = vpop.f32.mrb[0].mxu0
  %v3705 = vadd.f32 0.0, %v3704
  %v3706 = vpop.f32.mrb[0].mxu0
  %3707 = vmatprep.mubr.f32.mxu0 0.0
  %3708 = vmatmul.mubr.f32.gmra.mrb[0].mxu0 %v3392
  %v3709 = vpop.f32.mrb[0].mxu0
  %v3710 = vadd.f32 0.0, %v3709
  %v3711 = vpop.f32.mrb[0].mxu0
  %3712 = vmatprep.mubr.f32.mxu0 0.0
  %3713 = vmatmul.mubr.f32.gmra.mrb[0].mxu0 %v3395
  %v3714 = vpop.f32.mrb[0].mxu0
  %v3715 = vadd.f32 0.0, %v3714
  %v3716 = vpop.f32.mrb[0].mxu0
  %3717 = vmatprep.mubr.f32.mxu0 0.0
  %3718 = vmatmul.mubr.f32.gmra.mrb[0].mxu0 %v3398
  %v3719 = vpop.f32.mrb[0].mxu0
  %v3720 = vadd.f32 0.0, %v3719
  %v3721 = vpop.f32.mrb[0].mxu0
  %3722 = vmatprep.mubr.f32.mxu0 0.0
  %3723 = vmatmul.mubr.f32.gmra.mrb[0].mxu0 %v3401
  %v3724 = vpop.f32.mrb[0].mxu0
  %v3725 = vadd.f32 0.0, %v3724
  %v3726 = vpop.f32.mrb[0].mxu0
  %3727 = vmatprep.mubr.f32.mxu0 0.0
  %3728 = vmatmul.mubr.f32.gmra.mrb[0].mxu0 %v3404
  %v3729 = vpop.f32.mrb[0].mxu0
  %v3730 = vadd.f32 0.0, %v3729
  %v3731 = vpop.f32.mrb[0].mxu0
  %3732 = vmatprep.mubr.f32.mxu0 0.0
  %3733 = vmatmul.mubr.f32.gmra.mrb[0].mxu0 %v3407
  %v3734 = vpop.f32.mrb[0].mxu0
  %v3735 = vadd.f32 0.0, %v3734
  %v3736 = vpop.f32.mrb[0].mxu0
  %3737 = vmatprep.mubr.f32.mxu0 0.0
  %3738 = vmatmul.mubr.f32.gmra.mrb[0].mxu0 %v3410
  %v3739 = vpop.f32.mrb[0].mxu0
  %v3740 = vadd.f32 0.0, %v3739
  %v3741 = vpop.f32.mrb[0].mxu0
  %3742 = vmatprep.mubr.f32.mxu0 0.0
  %3743 = vmatmul.mubr.f32.gmra.mrb[0].mxu0 %v3413
  %v3744 = vpop.f32.mrb[0].mxu0
  %v3745 = vadd.f32 0.0, %v3744
  %v3746 = vpop.f32.mrb[0].mxu0
  %3747 = vmatprep.mubr.f32.mxu0 0.0
  %3748 = vmatmul.mubr.f32.gmra.mrb[0].mxu0 %v3416
  %v3749 = vpop.f32.mrb[0].mxu0
  %v3750 = vadd.f32 0.0, %v3749
  %v3751 = vpop.f32.mrb[0].mxu0
  %3752 = vmatprep.mubr.f32.mxu0 0.0
  %3753 = vmatmul.mubr.f32.gmra.mrb[0].mxu0 %v3419
  %v3754 = vpop.f32.mrb[0].mxu0
  %v3755 = vadd.f32 0.0, %v3754
  %v3756 = vpop.f32.mrb[0].mxu0
  %3757 = vmatprep.mubr.f32.mxu0 0.0
  %3758 = vmatmul.mubr.f32.gmra.mrb[0].mxu0 %v3422
  %v3759 = vpop.f32.mrb[0].mxu0
  %v3760 = vadd.f32 0.0, %v3759
  %v3761 = vpop.f32.mrb[0].mxu0
  %3762 = vmatprep.mubr.f32.mxu0 0.0
  %3763 = vmatmul.mubr.f32.gmra.mrb[0].mxu0 %v3425
  %v3764 = vpop.f32.mrb[0].mxu0
  %v3765 = vadd.f32 0.0, %v3764
  %v3766 = vpop.f32.mrb[0].mxu0
  %3767 = vmatprep.mubr.f32.mxu0 0.0
  %3768 = vmatmul.mubr.f32.gmra.mrb[0].mxu0 %v3428
  %v3769 = vpop.f32.mrb[0].mxu0
  %v3770 = vadd.f32 0.0, %v3769
  %v3771 = vpop.f32.mrb[0].mxu0
  %3772 = vmatprep.mubr.f32.mxu0 0.0
  %3773 = vmatmul.mubr.f32.gmra.mrb[0].mxu0 %v3431
  %v3774 = vpop.f32.mrb[0].mxu0
  %v3775 = vadd.f32 0.0, %v3774
  %v3776 = vpop.f32.mrb[0].mxu0
  %3777 = vmatprep.mubr.f32.mxu0 0.0
  %3778 = vmatmul.mubr.f32.gmra.mrb[0].mxu0 %v3434
  %v3779 = vpop.f32.mrb[0].mxu0
  %v3780 = vadd.f32 0.0, %v3779
  %v3781 = vpop.f32.mrb[0].mxu0
  %3782 = vmatprep.mubr.f32.mxu0 0.0
  %3783 = vmatmul.mubr.f32.gmra.mrb[0].mxu0 %v3437
  %v3784 = vpop.f32.mrb[0].mxu0
  %v3785 = vadd.f32 0.0, %v3784
  %v3786 = vpop.f32.mrb[0].mxu0
  %3787 = vmatprep.mubr.f32.mxu0 0.0
  %3788 = vmatmul.mubr.f32.gmra.mrb[0].mxu0 %v3440
  %v3789 = vpop.f32.mrb[0].mxu0
  %v3790 = vadd.f32 0.0, %v3789
  %v3791 = vpop.f32.mrb[0].mxu0
  %3792 = vmatprep.mubr.f32.mxu0 0.0
  %3793 = vmatmul.mubr.f32.gmra.mrb[0].mxu0 %v3443
  %v3794 = vpop.f32.mrb[0].mxu0
  %v3795 = vadd.f32 0.0, %v3794
  %v3796 = vpop.f32.mrb[0].mxu0
  %3797 = vmatprep.mubr.f32.mxu0 0.0
  %3798 = vmatmul.mubr.f32.gmra.mrb[0].mxu0 %v3446
  %v3799 = vpop.f32.mrb[0].mxu0
  %v3800 = vadd.f32 0.0, %v3799
  %v3801 = vpop.f32.mrb[0].mxu0
  %3802 = vmatprep.mubr.f32.mxu0 0.0
  %3803 = vmatmul.mubr.f32.gmra.mrb[0].mxu0 %v3449
  %v3804 = vpop.f32.mrb[0].mxu0
  %v3805 = vadd.f32 0.0, %v3804
  %v3806 = vpop.f32.mrb[0].mxu0
  %3807 = vmatprep.mubr.f32.mxu0 0.0
  %3808 = vmatmul.mubr.f32.gmra.mrb[0].mxu0 %v3452
  %v3809 = vpop.f32.mrb[0].mxu0
  %v3810 = vadd.f32 0.0, %v3809
  %v3811 = vpop.f32.mrb[0].mxu0
  %3812 = vmatprep.mubr.f32.mxu0 0.0
  %3813 = vmatmul.mubr.f32.gmra.mrb[0].mxu0 %v3455
  %v3814 = vpop.f32.mrb[0].mxu0
  %v3815 = vadd.f32 0.0, %v3814
  %v3816 = vpop.f32.mrb[0].mxu0
  %3817 = vmatprep.mubr.f32.mxu0 0.0
  %3818 = vmatmul.mubr.f32.gmra.mrb[0].mxu0 %v3458
  %v3819 = vpop.f32.mrb[0].mxu0
  %v3820 = vadd.f32 0.0, %v3819
  %v3821 = vpop.f32.mrb[0].mxu0
  %3822 = vmatprep.mubr.f32.mxu0 0.0
  %3823 = vmatmul.mubr.f32.gmra.mrb[0].mxu0 %v3461
  %v3824 = vpop.f32.mrb[0].mxu0
  %v3825 = vadd.f32 0.0, %v3824
  %v3826 = vpop.f32.mrb[0].mxu0
  %3827 = vmatprep.mubr.f32.mxu0 0.0
  %3828 = vmatmul.mubr.f32.gmra.mrb[0].mxu0 %v3464
  %v3829 = vpop.f32.mrb[0].mxu0
  %v3830 = vadd.f32 0.0, %v3829
  %v3831 = vpop.f32.mrb[0].mxu0
  %3832 = vmatprep.mubr.f32.mxu0 0.0
  %3833 = vmatmul.mubr.f32.gmra.mrb[0].mxu0 %v3467
  %v3834 = vpop.f32.mrb[0].mxu0
  %v3835 = vadd.f32 0.0, %v3834
  %v3836 = vpop.f32.mrb[0].mxu0
  %3837 = vmatprep.mubr.f32.mxu0 0.0
  %3838 = vmatmul.mubr.f32.gmra.mrb[0].mxu0 %v3470
  %v3839 = vpop.f32.mrb[0].mxu0
  %v3840 = vadd.f32 0.0, %v3839
  %v3841 = vpop.f32.mrb[0].mxu0
  %3842 = vmatprep.mubr.f32.mxu0 0.0
  %3843 = vmatmul.mubr.f32.gmra.mrb[0].mxu0 %v3473
  %v3844 = vpop.f32.mrb[0].mxu0
  %v3845 = vadd.f32 0.0, %v3844
  %v3846 = vpop.f32.mrb[0].mxu0
  %3847 = vmatprep.mubr.f32.mxu0 0.0
  %3848 = vmatmul.mubr.f32.gmra.mrb[0].mxu0 %v3476
  %v3849 = vpop.f32.mrb[0].mxu0
  %v3850 = vadd.f32 0.0, %v3849
  %v3851 = vpop.f32.mrb[0].mxu0
  %3852 = vmatprep.mubr.f32.mxu0 0.0
  %3853 = vmatmul.mubr.f32.gmra.mrb[0].mxu0 %v3479
  %v3854 = vpop.f32.mrb[0].mxu0
  %v3855 = vadd.f32 0.0, %v3854
  %v3856 = vpop.f32.mrb[0].mxu0
  %3857 = vmatprep.mubr.f32.mxu0 0.0
  %3858 = vmatmul.mubr.f32.gmra.mrb[0].mxu0 %v3482
  %v3859 = vpop.f32.mrb[0].mxu0
  %v3860 = vadd.f32 0.0, %v3859
  %v3861 = vpop.f32.mrb[0].mxu0
  %3862 = vmatprep.mubr.f32.mxu0 0.0
  %3863 = vmatmul.mubr.f32.gmra.mrb[0].mxu0 %v3485
  %v3864 = vpop.f32.mrb[0].mxu0
  %v3865 = vadd.f32 0.0, %v3864
  %v3866 = vpop.f32.mrb[0].mxu0
  %3867 = vmatprep.mubr.f32.mxu0 0.0
  %3868 = vmatmul.mubr.f32.gmra.mrb[0].mxu0 %v3488
  %v3869 = vpop.f32.mrb[0].mxu0
  %v3870 = vadd.f32 0.0, %v3869
  %v3871 = vpop.f32.mrb[0].mxu0
  %3872 = vmatprep.mubr.f32.mxu0 0.0
  %3873 = vmatmul.mubr.f32.gmra.mrb[0].mxu0 %v3491
  %v3874 = vpop.f32.mrb[0].mxu0
  %v3875 = vadd.f32 0.0, %v3874
  %v3876 = vpop.f32.mrb[0].mxu0
  %3877 = vmatprep.mubr.f32.mxu0 0.0
  %3878 = vmatmul.mubr.f32.gmra.mrb[0].mxu0 %v3494
  %v3879 = vpop.f32.mrb[0].mxu0
  %v3880 = vadd.f32 0.0, %v3879
  %v3881 = vpop.f32.mrb[0].mxu0
  %3882 = vmatprep.mubr.f32.mxu0 0.0
  %3883 = vmatmul.mubr.f32.gmra.mrb[0].mxu0 %v3497
  %v3884 = vpop.f32.mrb[0].mxu0
  %v3885 = vadd.f32 0.0, %v3884
  %v3886 = vpop.f32.mrb[0].mxu0
  %3887 = vdwg.mxu0
  %vm3888 = vcmask 64512
  %v3889 = vsel %vm3888, %v3570, 0.0
  %v3890 = vsel %vm3888, %v3575, 0.0
  %v3891 = vadd.f32 %v3889, %v3890
  %v3892 = vsel %vm3888, %v3580, 0.0
  %v3893 = vadd.f32 %v3891, %v3892
  %v3894 = vsel %vm3888, %v3585, 0.0
  %v3895 = vadd.f32 %v3893, %v3894
  %v3896 = vsel %vm3888, %v3590, 0.0
  %v3897 = vadd.f32 %v3895, %v3896
  %v3898 = vsel %vm3888, %v3595, 0.0
  %v3899 = vadd.f32 %v3897, %v3898
  %v3900 = vsel %vm3888, %v3600, 0.0
  %v3901 = vadd.f32 %v3899, %v3900
  %v3902 = vsel %vm3888, %v3605, 0.0
  %v3903 = vadd.f32 %v3901, %v3902
  %v3904 = vsel %vm3888, %v3610, 0.0
  %v3905 = vadd.f32 %v3903, %v3904
  %v3906 = vsel %vm3888, %v3615, 0.0
  %v3907 = vadd.f32 %v3905, %v3906
  %v3908 = vsel %vm3888, %v3620, 0.0
  %v3909 = vadd.f32 %v3907, %v3908
  %v3910 = vsel %vm3888, %v3625, 0.0
  %v3911 = vadd.f32 %v3909, %v3910
  %v3912 = vsel %vm3888, %v3630, 0.0
  %v3913 = vadd.f32 %v3911, %v3912
  %v3914 = vsel %vm3888, %v3635, 0.0
  %v3915 = vadd.f32 %v3913, %v3914
  %v3916 = vsel %vm3888, %v3640, 0.0
  %v3917 = vadd.f32 %v3915, %v3916
  %v3918 = vsel %vm3888, %v3645, 0.0
  %v3919 = vadd.f32 %v3917, %v3918
  %v3920 = vsel %vm3888, %v3650, 0.0
  %v3921 = vadd.f32 %v3919, %v3920
  %v3922 = vsel %vm3888, %v3655, 0.0
  %v3923 = vadd.f32 %v3921, %v3922
  %v3924 = vsel %vm3888, %v3660, 0.0
  %v3925 = vadd.f32 %v3923, %v3924
  %v3926 = vsel %vm3888, %v3665, 0.0
  %v3927 = vadd.f32 %v3925, %v3926
  %v3928 = vsel %vm3888, %v3670, 0.0
  %v3929 = vadd.f32 %v3927, %v3928
  %v3930 = vsel %vm3888, %v3675, 0.0
  %v3931 = vadd.f32 %v3929, %v3930
  %v3932 = vsel %vm3888, %v3680, 0.0
  %v3933 = vadd.f32 %v3931, %v3932
  %v3934 = vsel %vm3888, %v3685, 0.0
  %v3935 = vadd.f32 %v3933, %v3934
  %v3936 = vsel %vm3888, %v3690, 0.0
  %v3937 = vadd.f32 %v3935, %v3936
  %v3938 = vsel %vm3888, %v3695, 0.0
  %v3939 = vadd.f32 %v3937, %v3938
  %v3940 = vsel %vm3888, %v3700, 0.0
  %v3941 = vadd.f32 %v3939, %v3940
  %v3942 = vsel %vm3888, %v3705, 0.0
  %v3943 = vadd.f32 %v3941, %v3942
  %v3944 = vsel %vm3888, %v3710, 0.0
  %v3945 = vadd.f32 %v3943, %v3944
  %v3946 = vsel %vm3888, %v3715, 0.0
  %v3947 = vadd.f32 %v3945, %v3946
  %v3948 = vsel %vm3888, %v3720, 0.0
  %v3949 = vadd.f32 %v3947, %v3948
  %v3950 = vsel %vm3888, %v3725, 0.0
  %v3951 = vadd.f32 %v3949, %v3950
  %v3952 = vsel %vm3888, %v3730, 0.0
  %v3953 = vadd.f32 %v3951, %v3952
  %v3954 = vsel %vm3888, %v3735, 0.0
  %v3955 = vadd.f32 %v3953, %v3954
  %v3956 = vsel %vm3888, %v3740, 0.0
  %v3957 = vadd.f32 %v3955, %v3956
  %v3958 = vsel %vm3888, %v3745, 0.0
  %v3959 = vadd.f32 %v3957, %v3958
  %v3960 = vsel %vm3888, %v3750, 0.0
  %v3961 = vadd.f32 %v3959, %v3960
  %v3962 = vsel %vm3888, %v3755, 0.0
  %v3963 = vadd.f32 %v3961, %v3962
  %v3964 = vsel %vm3888, %v3760, 0.0
  %v3965 = vadd.f32 %v3963, %v3964
  %v3966 = vsel %vm3888, %v3765, 0.0
  %v3967 = vadd.f32 %v3965, %v3966
  %v3968 = vsel %vm3888, %v3770, 0.0
  %v3969 = vadd.f32 %v3967, %v3968
  %v3970 = vsel %vm3888, %v3775, 0.0
  %v3971 = vadd.f32 %v3969, %v3970
  %v3972 = vsel %vm3888, %v3780, 0.0
  %v3973 = vadd.f32 %v3971, %v3972
  %v3974 = vsel %vm3888, %v3785, 0.0
  %v3975 = vadd.f32 %v3973, %v3974
  %v3976 = vsel %vm3888, %v3790, 0.0
  %v3977 = vadd.f32 %v3975, %v3976
  %v3978 = vsel %vm3888, %v3795, 0.0
  %v3979 = vadd.f32 %v3977, %v3978
  %v3980 = vsel %vm3888, %v3800, 0.0
  %v3981 = vadd.f32 %v3979, %v3980
  %v3982 = vsel %vm3888, %v3805, 0.0
  %v3983 = vadd.f32 %v3981, %v3982
  %v3984 = vsel %vm3888, %v3810, 0.0
  %v3985 = vadd.f32 %v3983, %v3984
  %v3986 = vsel %vm3888, %v3815, 0.0
  %v3987 = vadd.f32 %v3985, %v3986
  %v3988 = vsel %vm3888, %v3820, 0.0
  %v3989 = vadd.f32 %v3987, %v3988
  %v3990 = vsel %vm3888, %v3825, 0.0
  %v3991 = vadd.f32 %v3989, %v3990
  %v3992 = vsel %vm3888, %v3830, 0.0
  %v3993 = vadd.f32 %v3991, %v3992
  %v3994 = vsel %vm3888, %v3835, 0.0
  %v3995 = vadd.f32 %v3993, %v3994
  %v3996 = vsel %vm3888, %v3840, 0.0
  %v3997 = vadd.f32 %v3995, %v3996
  %v3998 = vsel %vm3888, %v3845, 0.0
  %v3999 = vadd.f32 %v3997, %v3998
  %v4000 = vsel %vm3888, %v3850, 0.0
  %v4001 = vadd.f32 %v3999, %v4000
  %v4002 = vsel %vm3888, %v3855, 0.0
  %v4003 = vadd.f32 %v4001, %v4002
  %v4004 = vsel %vm3888, %v3860, 0.0
  %v4005 = vadd.f32 %v4003, %v4004
  %v4006 = vsel %vm3888, %v3865, 0.0
  %v4007 = vadd.f32 %v4005, %v4006
  %v4008 = vsel %vm3888, %v3870, 0.0
  %v4009 = vadd.f32 %v4007, %v4008
  %v4010 = vsel %vm3888, %v3875, 0.0
  %v4011 = vadd.f32 %v4009, %v4010
  %v4012 = vsel %vm3888, %v3880, 0.0
  %v4013 = vadd.f32 %v4011, %v4012
  %v4014 = vsel %vm3888, %v3885, 0.0
  %v4015 = vadd.f32 %v4013, %v4014
  %v4016 = vrot.slane %v4015, 4
  %v4017 = vadd.f32 %v4015, %v4016
  %v4018 = vrot.slane %v4017, 2
  %v4019 = vadd.f32 %v4017, %v4018
  %v4020 = vrot.slane %v4019, 1
  %v4021 = vadd.f32 %v4019, %v4020
  %v4022 = vmul.f32 %v3570, %v3570
  %v4023 = vmul.f32 %v3575, %v3575
  %v4024 = vmul.f32 %v3580, %v3580
  %v4025 = vmul.f32 %v3585, %v3585
  %v4026 = vmul.f32 %v3590, %v3590
  %v4027 = vmul.f32 %v3595, %v3595
  %v4028 = vmul.f32 %v3600, %v3600
  %v4029 = vmul.f32 %v3605, %v3605
  %v4030 = vmul.f32 %v3610, %v3610
  %v4031 = vmul.f32 %v3615, %v3615
  %v4032 = vmul.f32 %v3620, %v3620
  %v4033 = vmul.f32 %v3625, %v3625
  %v4034 = vmul.f32 %v3630, %v3630
  %v4035 = vmul.f32 %v3635, %v3635
  %v4036 = vmul.f32 %v3640, %v3640
  %v4037 = vmul.f32 %v3645, %v3645
  %v4038 = vmul.f32 %v3650, %v3650
  %v4039 = vmul.f32 %v3655, %v3655
  %v4040 = vmul.f32 %v3660, %v3660
  %v4041 = vmul.f32 %v3665, %v3665
  %v4042 = vmul.f32 %v3670, %v3670
  %v4043 = vmul.f32 %v3675, %v3675
  %v4044 = vmul.f32 %v3680, %v3680
  %v4045 = vmul.f32 %v3685, %v3685
  %v4046 = vmul.f32 %v3690, %v3690
  %v4047 = vmul.f32 %v3695, %v3695
  %v4048 = vmul.f32 %v3700, %v3700
  %v4049 = vmul.f32 %v3705, %v3705
  %v4050 = vmul.f32 %v3710, %v3710
  %v4051 = vmul.f32 %v3715, %v3715
  %v4052 = vmul.f32 %v3720, %v3720
  %v4053 = vmul.f32 %v3725, %v3725
  %v4054 = vmul.f32 %v3730, %v3730
  %v4055 = vmul.f32 %v3735, %v3735
  %v4056 = vmul.f32 %v3740, %v3740
  %v4057 = vmul.f32 %v3745, %v3745
  %v4058 = vmul.f32 %v3750, %v3750
  %v4059 = vmul.f32 %v3755, %v3755
  %v4060 = vmul.f32 %v3760, %v3760
  %v4061 = vmul.f32 %v3765, %v3765
  %v4062 = vmul.f32 %v3770, %v3770
  %v4063 = vmul.f32 %v3775, %v3775
  %v4064 = vmul.f32 %v3780, %v3780
  %v4065 = vmul.f32 %v3785, %v3785
  %v4066 = vmul.f32 %v3790, %v3790
  %v4067 = vmul.f32 %v3795, %v3795
  %v4068 = vmul.f32 %v3800, %v3800
  %v4069 = vmul.f32 %v3805, %v3805
  %v4070 = vmul.f32 %v3810, %v3810
  %v4071 = vmul.f32 %v3815, %v3815
  %v4072 = vmul.f32 %v3820, %v3820
  %v4073 = vmul.f32 %v3825, %v3825
  %v4074 = vmul.f32 %v3830, %v3830
  %v4075 = vmul.f32 %v3835, %v3835
  %v4076 = vmul.f32 %v3840, %v3840
  %v4077 = vmul.f32 %v3845, %v3845
  %v4078 = vmul.f32 %v3850, %v3850
  %v4079 = vmul.f32 %v3855, %v3855
  %v4080 = vmul.f32 %v3860, %v3860
  %v4081 = vmul.f32 %v3865, %v3865
  %v4082 = vmul.f32 %v3870, %v3870
  %v4083 = vmul.f32 %v3875, %v3875
  %v4084 = vmul.f32 %v3880, %v3880
  %v4085 = vmul.f32 %v3885, %v3885
  %v4086 = vsel %vm3888, %v4022, 0.0
  %v4087 = vsel %vm3888, %v4023, 0.0
  %v4088 = vadd.f32 %v4086, %v4087
  %v4089 = vsel %vm3888, %v4024, 0.0
  %v4090 = vadd.f32 %v4088, %v4089
  %v4091 = vsel %vm3888, %v4025, 0.0
  %v4092 = vadd.f32 %v4090, %v4091
  %v4093 = vsel %vm3888, %v4026, 0.0
  %v4094 = vadd.f32 %v4092, %v4093
  %v4095 = vsel %vm3888, %v4027, 0.0
  %v4096 = vadd.f32 %v4094, %v4095
  %v4097 = vsel %vm3888, %v4028, 0.0
  %v4098 = vadd.f32 %v4096, %v4097
  %v4099 = vsel %vm3888, %v4029, 0.0
  %v4100 = vadd.f32 %v4098, %v4099
  %v4101 = vsel %vm3888, %v4030, 0.0
  %v4102 = vadd.f32 %v4100, %v4101
  %v4103 = vsel %vm3888, %v4031, 0.0
  %v4104 = vadd.f32 %v4102, %v4103
  %v4105 = vsel %vm3888, %v4032, 0.0
  %v4106 = vadd.f32 %v4104, %v4105
  %v4107 = vsel %vm3888, %v4033, 0.0
  %v4108 = vadd.f32 %v4106, %v4107
  %v4109 = vsel %vm3888, %v4034, 0.0
  %v4110 = vadd.f32 %v4108, %v4109
  %v4111 = vsel %vm3888, %v4035, 0.0
  %v4112 = vadd.f32 %v4110, %v4111
  %v4113 = vsel %vm3888, %v4036, 0.0
  %v4114 = vadd.f32 %v4112, %v4113
  %v4115 = vsel %vm3888, %v4037, 0.0
  %v4116 = vadd.f32 %v4114, %v4115
  %v4117 = vsel %vm3888, %v4038, 0.0
  %v4118 = vadd.f32 %v4116, %v4117
  %v4119 = vsel %vm3888, %v4039, 0.0
  %v4120 = vadd.f32 %v4118, %v4119
  %v4121 = vsel %vm3888, %v4040, 0.0
  %v4122 = vadd.f32 %v4120, %v4121
  %v4123 = vsel %vm3888, %v4041, 0.0
  %v4124 = vadd.f32 %v4122, %v4123
  %v4125 = vsel %vm3888, %v4042, 0.0
  %v4126 = vadd.f32 %v4124, %v4125
  %v4127 = vsel %vm3888, %v4043, 0.0
  %v4128 = vadd.f32 %v4126, %v4127
  %v4129 = vsel %vm3888, %v4044, 0.0
  %v4130 = vadd.f32 %v4128, %v4129
  %v4131 = vsel %vm3888, %v4045, 0.0
  %v4132 = vadd.f32 %v4130, %v4131
  %v4133 = vsel %vm3888, %v4046, 0.0
  %v4134 = vadd.f32 %v4132, %v4133
  %v4135 = vsel %vm3888, %v4047, 0.0
  %v4136 = vadd.f32 %v4134, %v4135
  %v4137 = vsel %vm3888, %v4048, 0.0
  %v4138 = vadd.f32 %v4136, %v4137
  %v4139 = vsel %vm3888, %v4049, 0.0
  %v4140 = vadd.f32 %v4138, %v4139
  %v4141 = vsel %vm3888, %v4050, 0.0
  %v4142 = vadd.f32 %v4140, %v4141
  %v4143 = vsel %vm3888, %v4051, 0.0
  %v4144 = vadd.f32 %v4142, %v4143
  %v4145 = vsel %vm3888, %v4052, 0.0
  %v4146 = vadd.f32 %v4144, %v4145
  %v4147 = vsel %vm3888, %v4053, 0.0
  %v4148 = vadd.f32 %v4146, %v4147
  %v4149 = vsel %vm3888, %v4054, 0.0
  %v4150 = vadd.f32 %v4148, %v4149
  %v4151 = vsel %vm3888, %v4055, 0.0
  %v4152 = vadd.f32 %v4150, %v4151
  %v4153 = vsel %vm3888, %v4056, 0.0
  %v4154 = vadd.f32 %v4152, %v4153
  %v4155 = vsel %vm3888, %v4057, 0.0
  %v4156 = vadd.f32 %v4154, %v4155
  %v4157 = vsel %vm3888, %v4058, 0.0
  %v4158 = vadd.f32 %v4156, %v4157
  %v4159 = vsel %vm3888, %v4059, 0.0
  %v4160 = vadd.f32 %v4158, %v4159
  %v4161 = vsel %vm3888, %v4060, 0.0
  %v4162 = vadd.f32 %v4160, %v4161
  %v4163 = vsel %vm3888, %v4061, 0.0
  %v4164 = vadd.f32 %v4162, %v4163
  %v4165 = vsel %vm3888, %v4062, 0.0
  %v4166 = vadd.f32 %v4164, %v4165
  %v4167 = vsel %vm3888, %v4063, 0.0
  %v4168 = vadd.f32 %v4166, %v4167
  %v4169 = vsel %vm3888, %v4064, 0.0
  %v4170 = vadd.f32 %v4168, %v4169
  %v4171 = vsel %vm3888, %v4065, 0.0
  %v4172 = vadd.f32 %v4170, %v4171
  %v4173 = vsel %vm3888, %v4066, 0.0
  %v4174 = vadd.f32 %v4172, %v4173
  %v4175 = vsel %vm3888, %v4067, 0.0
  %v4176 = vadd.f32 %v4174, %v4175
  %v4177 = vsel %vm3888, %v4068, 0.0
  %v4178 = vadd.f32 %v4176, %v4177
  %v4179 = vsel %vm3888, %v4069, 0.0
  %v4180 = vadd.f32 %v4178, %v4179
  %v4181 = vsel %vm3888, %v4070, 0.0
  %v4182 = vadd.f32 %v4180, %v4181
  %v4183 = vsel %vm3888, %v4071, 0.0
  %v4184 = vadd.f32 %v4182, %v4183
  %v4185 = vsel %vm3888, %v4072, 0.0
  %v4186 = vadd.f32 %v4184, %v4185
  %v4187 = vsel %vm3888, %v4073, 0.0
  %v4188 = vadd.f32 %v4186, %v4187
  %v4189 = vsel %vm3888, %v4074, 0.0
  %v4190 = vadd.f32 %v4188, %v4189
  %v4191 = vsel %vm3888, %v4075, 0.0
  %v4192 = vadd.f32 %v4190, %v4191
  %v4193 = vsel %vm3888, %v4076, 0.0
  %v4194 = vadd.f32 %v4192, %v4193
  %v4195 = vsel %vm3888, %v4077, 0.0
  %v4196 = vadd.f32 %v4194, %v4195
  %v4197 = vsel %vm3888, %v4078, 0.0
  %v4198 = vadd.f32 %v4196, %v4197
  %v4199 = vsel %vm3888, %v4079, 0.0
  %v4200 = vadd.f32 %v4198, %v4199
  %v4201 = vsel %vm3888, %v4080, 0.0
  %v4202 = vadd.f32 %v4200, %v4201
  %v4203 = vsel %vm3888, %v4081, 0.0
  %v4204 = vadd.f32 %v4202, %v4203
  %v4205 = vsel %vm3888, %v4082, 0.0
  %v4206 = vadd.f32 %v4204, %v4205
  %v4207 = vsel %vm3888, %v4083, 0.0
  %v4208 = vadd.f32 %v4206, %v4207
  %v4209 = vsel %vm3888, %v4084, 0.0
  %v4210 = vadd.f32 %v4208, %v4209
  %v4211 = vsel %vm3888, %v4085, 0.0
  %v4212 = vadd.f32 %v4210, %v4211
  %v4213 = vrot.slane %v4212, 4
  %v4214 = vadd.f32 %v4212, %v4213
  %v4215 = vrot.slane %v4214, 2
  %v4216 = vadd.f32 %v4214, %v4215
  %v4217 = vrot.slane %v4216, 1
  %v4218 = vadd.f32 %v4216, %v4217
  %v4219 = vmul.f32 %v4021, 0.001953125
  %v4220 = vmul.f32 %v4218, 0.001953125
  %v4221 = vmul.f32 %v4219, %v4219
  %v4222 = vsub.f32 %v4220, %v4221
  %v4223 = vld [vmem:[%s2] sm:$0x1]
  %v4224 = vadd.f32 %v4222, 1e-05
  %v4225 = vrsqrt.pop %v4224
  %v4226 = vmul.f32 %v4223, %v4225
  %v4227 = vld [vmem:[%s3] sm:$0x1]
  %v4228 = vmul.f32 %v4219, %v4226
  %v4229 = vsub.f32 %v4227, %v4228
  %v4231 = vlaneseq
  %v4232 = vshrl.u32 %v4231, 7
  %v4233 = vsub.s32 0, %v4232
  %v4234 = vrot.slane %v4226, %v4233
  %v4236 = vmul.f32 %v3570, %v4234
  %v4237 = vmul.f32 %v3575, %v4234
  %v4238 = vmul.f32 %v3580, %v4234
  %v4239 = vmul.f32 %v3585, %v4234
  %v4240 = vmul.f32 %v3590, %v4234
  %v4241 = vmul.f32 %v3595, %v4234
  %v4242 = vmul.f32 %v3600, %v4234
  %v4243 = vmul.f32 %v3605, %v4234
  %v4244 = vmul.f32 %v3610, %v4234
  %v4245 = vmul.f32 %v3615, %v4234
  %v4246 = vmul.f32 %v3620, %v4234
  %v4247 = vmul.f32 %v3625, %v4234
  %v4248 = vmul.f32 %v3630, %v4234
  %v4249 = vmul.f32 %v3635, %v4234
  %v4250 = vmul.f32 %v3640, %v4234
  %v4251 = vmul.f32 %v3645, %v4234
  %v4252 = vmul.f32 %v3650, %v4234
  %v4253 = vmul.f32 %v3655, %v4234
  %v4254 = vmul.f32 %v3660, %v4234
  %v4255 = vmul.f32 %v3665, %v4234
  %v4256 = vmul.f32 %v3670, %v4234
  %v4257 = vmul.f32 %v3675, %v4234
  %v4258 = vmul.f32 %v3680, %v4234
  %v4259 = vmul.f32 %v3685, %v4234
  %v4260 = vmul.f32 %v3690, %v4234
  %v4261 = vmul.f32 %v3695, %v4234
  %v4262 = vmul.f32 %v3700, %v4234
  %v4263 = vmul.f32 %v3705, %v4234
  %v4264 = vmul.f32 %v3710, %v4234
  %v4265 = vmul.f32 %v3715, %v4234
  %v4266 = vmul.f32 %v3720, %v4234
  %v4267 = vmul.f32 %v3725, %v4234
  %v4268 = vmul.f32 %v3730, %v4234
  %v4269 = vmul.f32 %v3735, %v4234
  %v4270 = vmul.f32 %v3740, %v4234
  %v4271 = vmul.f32 %v3745, %v4234
  %v4272 = vmul.f32 %v3750, %v4234
  %v4273 = vmul.f32 %v3755, %v4234
  %v4274 = vmul.f32 %v3760, %v4234
  %v4275 = vmul.f32 %v3765, %v4234
  %v4276 = vmul.f32 %v3770, %v4234
  %v4277 = vmul.f32 %v3775, %v4234
  %v4278 = vmul.f32 %v3780, %v4234
  %v4279 = vmul.f32 %v3785, %v4234
  %v4280 = vmul.f32 %v3790, %v4234
  %v4281 = vmul.f32 %v3795, %v4234
  %v4282 = vmul.f32 %v3800, %v4234
  %v4283 = vmul.f32 %v3805, %v4234
  %v4284 = vmul.f32 %v3810, %v4234
  %v4285 = vmul.f32 %v3815, %v4234
  %v4286 = vmul.f32 %v3820, %v4234
  %v4287 = vmul.f32 %v3825, %v4234
  %v4288 = vmul.f32 %v3830, %v4234
  %v4289 = vmul.f32 %v3835, %v4234
  %v4290 = vmul.f32 %v3840, %v4234
  %v4291 = vmul.f32 %v3845, %v4234
  %v4292 = vmul.f32 %v3850, %v4234
  %v4293 = vmul.f32 %v3855, %v4234
  %v4294 = vmul.f32 %v3860, %v4234
  %v4295 = vmul.f32 %v3865, %v4234
  %v4296 = vmul.f32 %v3870, %v4234
  %v4297 = vmul.f32 %v3875, %v4234
  %v4298 = vmul.f32 %v3880, %v4234
  %v4299 = vmul.f32 %v3885, %v4234
  %v4301 = vlaneseq
  %v4302 = vshrl.u32 %v4301, 7
  %v4303 = vsub.s32 0, %v4302
  %v4304 = vrot.slane %v4229, %v4303
  %v4306 = vadd.f32 %v4236, %v4304
  %v4307 = vadd.f32 %v4237, %v4304
  %v4308 = vadd.f32 %v4238, %v4304
  %v4309 = vadd.f32 %v4239, %v4304
  %v4310 = vadd.f32 %v4240, %v4304
  %v4311 = vadd.f32 %v4241, %v4304
  %v4312 = vadd.f32 %v4242, %v4304
  %v4313 = vadd.f32 %v4243, %v4304
  %v4314 = vadd.f32 %v4244, %v4304
  %v4315 = vadd.f32 %v4245, %v4304
  %v4316 = vadd.f32 %v4246, %v4304
  %v4317 = vadd.f32 %v4247, %v4304
  %v4318 = vadd.f32 %v4248, %v4304
  %v4319 = vadd.f32 %v4249, %v4304
  %v4320 = vadd.f32 %v4250, %v4304
  %v4321 = vadd.f32 %v4251, %v4304
  %v4322 = vadd.f32 %v4252, %v4304
  %v4323 = vadd.f32 %v4253, %v4304
  %v4324 = vadd.f32 %v4254, %v4304
  %v4325 = vadd.f32 %v4255, %v4304
  %v4326 = vadd.f32 %v4256, %v4304
  %v4327 = vadd.f32 %v4257, %v4304
  %v4328 = vadd.f32 %v4258, %v4304
  %v4329 = vadd.f32 %v4259, %v4304
  %v4330 = vadd.f32 %v4260, %v4304
  %v4331 = vadd.f32 %v4261, %v4304
  %v4332 = vadd.f32 %v4262, %v4304
  %v4333 = vadd.f32 %v4263, %v4304
  %v4334 = vadd.f32 %v4264, %v4304
  %v4335 = vadd.f32 %v4265, %v4304
  %v4336 = vadd.f32 %v4266, %v4304
  %v4337 = vadd.f32 %v4267, %v4304
  %v4338 = vadd.f32 %v4268, %v4304
  %v4339 = vadd.f32 %v4269, %v4304
  %v4340 = vadd.f32 %v4270, %v4304
  %v4341 = vadd.f32 %v4271, %v4304
  %v4342 = vadd.f32 %v4272, %v4304
  %v4343 = vadd.f32 %v4273, %v4304
  %v4344 = vadd.f32 %v4274, %v4304
  %v4345 = vadd.f32 %v4275, %v4304
  %v4346 = vadd.f32 %v4276, %v4304
  %v4347 = vadd.f32 %v4277, %v4304
  %v4348 = vadd.f32 %v4278, %v4304
  %v4349 = vadd.f32 %v4279, %v4304
  %v4350 = vadd.f32 %v4280, %v4304
  %v4351 = vadd.f32 %v4281, %v4304
  %v4352 = vadd.f32 %v4282, %v4304
  %v4353 = vadd.f32 %v4283, %v4304
  %v4354 = vadd.f32 %v4284, %v4304
  %v4355 = vadd.f32 %v4285, %v4304
  %v4356 = vadd.f32 %v4286, %v4304
  %v4357 = vadd.f32 %v4287, %v4304
  %v4358 = vadd.f32 %v4288, %v4304
  %v4359 = vadd.f32 %v4289, %v4304
  %v4360 = vadd.f32 %v4290, %v4304
  %v4361 = vadd.f32 %v4291, %v4304
  %v4362 = vadd.f32 %v4292, %v4304
  %v4363 = vadd.f32 %v4293, %v4304
  %v4364 = vadd.f32 %v4294, %v4304
  %v4365 = vadd.f32 %v4295, %v4304
  %v4366 = vadd.f32 %v4296, %v4304
  %v4367 = vadd.f32 %v4297, %v4304
  %v4368 = vadd.f32 %v4298, %v4304
  %v4369 = vadd.f32 %v4299, %v4304
  %v4370 = vmax.f32 %v4306, 0.0
  %v4371 = vmax.f32 %v4307, 0.0
  %v4372 = vmax.f32 %v4308, 0.0
  %v4373 = vmax.f32 %v4309, 0.0
  %v4374 = vmax.f32 %v4310, 0.0
  %v4375 = vmax.f32 %v4311, 0.0
  %v4376 = vmax.f32 %v4312, 0.0
  %v4377 = vmax.f32 %v4313, 0.0
  %v4378 = vmax.f32 %v4314, 0.0
  %v4379 = vmax.f32 %v4315, 0.0
  %v4380 = vmax.f32 %v4316, 0.0
  %v4381 = vmax.f32 %v4317, 0.0
  %v4382 = vmax.f32 %v4318, 0.0
  %v4383 = vmax.f32 %v4319, 0.0
  %v4384 = vmax.f32 %v4320, 0.0
  %v4385 = vmax.f32 %v4321, 0.0
  %v4386 = vmax.f32 %v4322, 0.0
  %v4387 = vmax.f32 %v4323, 0.0
  %v4388 = vmax.f32 %v4324, 0.0
  %v4389 = vmax.f32 %v4325, 0.0
  %v4390 = vmax.f32 %v4326, 0.0
  %v4391 = vmax.f32 %v4327, 0.0
  %v4392 = vmax.f32 %v4328, 0.0
  %v4393 = vmax.f32 %v4329, 0.0
  %v4394 = vmax.f32 %v4330, 0.0
  %v4395 = vmax.f32 %v4331, 0.0
  %v4396 = vmax.f32 %v4332, 0.0
  %v4397 = vmax.f32 %v4333, 0.0
  %v4398 = vmax.f32 %v4334, 0.0
  %v4399 = vmax.f32 %v4335, 0.0
  %v4400 = vmax.f32 %v4336, 0.0
  %v4401 = vmax.f32 %v4337, 0.0
  %v4402 = vmax.f32 %v4338, 0.0
  %v4403 = vmax.f32 %v4339, 0.0
  %v4404 = vmax.f32 %v4340, 0.0
  %v4405 = vmax.f32 %v4341, 0.0
  %v4406 = vmax.f32 %v4342, 0.0
  %v4407 = vmax.f32 %v4343, 0.0
  %v4408 = vmax.f32 %v4344, 0.0
  %v4409 = vmax.f32 %v4345, 0.0
  %v4410 = vmax.f32 %v4346, 0.0
  %v4411 = vmax.f32 %v4347, 0.0
  %v4412 = vmax.f32 %v4348, 0.0
  %v4413 = vmax.f32 %v4349, 0.0
  %v4414 = vmax.f32 %v4350, 0.0
  %v4415 = vmax.f32 %v4351, 0.0
  %v4416 = vmax.f32 %v4352, 0.0
  %v4417 = vmax.f32 %v4353, 0.0
  %v4418 = vmax.f32 %v4354, 0.0
  %v4419 = vmax.f32 %v4355, 0.0
  %v4420 = vmax.f32 %v4356, 0.0
  %v4421 = vmax.f32 %v4357, 0.0
  %v4422 = vmax.f32 %v4358, 0.0
  %v4423 = vmax.f32 %v4359, 0.0
  %v4424 = vmax.f32 %v4360, 0.0
  %v4425 = vmax.f32 %v4361, 0.0
  %v4426 = vmax.f32 %v4362, 0.0
  %v4427 = vmax.f32 %v4363, 0.0
  %v4428 = vmax.f32 %v4364, 0.0
  %v4429 = vmax.f32 %v4365, 0.0
  %v4430 = vmax.f32 %v4366, 0.0
  %v4431 = vmax.f32 %v4367, 0.0
  %v4432 = vmax.f32 %v4368, 0.0
  %v4433 = vmax.f32 %v4369, 0.0
  %4434 = vst.msk [vmem:[#allocation3] sm:$0xff] %vm3888, 0.0
  %4435 = vst.msk [vmem:[#allocation3 + $0x8] sm:$0xff] %vm3888, 0.0
  %vm4436 = vcmask 58368
  %4437 = vst.msk [vmem:[#allocation3 + $0x10] sm:$0x3] %vm4436, 0.0
  %4438 = vst.msk [vmem:[#allocation3 + $0x1b0] sm:$0xff] %vm3888, 0.0
  %4439 = vst.msk [vmem:[#allocation3 + $0x1b8] sm:$0xff] %vm3888, 0.0
  %4440 = vst.msk [vmem:[#allocation3 + $0x1c0] sm:$0x3] %vm4436, 0.0
  %s4441 = scalar_lea.vmem [#allocation3], 408
  %4442 = vst.msk [vmem:[%s4441] sm:$0xff] %vm3888, 0.0
  %4443 = vst.msk [vmem:[%s4441 + $0x8] sm:$0xff] %vm3888, 0.0
  %4444 = vst.msk [vmem:[%s4441 + $0x10] sm:$0x3] %vm4436, 0.0
  %4445 = vst.msk [vmem:[%s4441 + $0x1b0] sm:$0xff] %vm3888, 0.0
  %4446 = vst.msk [vmem:[%s4441 + $0x1b8] sm:$0xff] %vm3888, 0.0
  %4447 = vst.msk [vmem:[%s4441 + $0x1c0] sm:$0x3] %vm4436, 0.0
  %s4448 = scalar_lea.vmem [#allocation3], 24
  %vm4449 = vcmask 57344
  %4450 = vst.msk [vmem:[%s4448] sm:$0x1] %vm4449, 0.0
  %4451 = vst.msk [vmem:[%s4448 + $0x18] sm:$0x1] %vm4449, 0.0
  %4452 = vst.msk [vmem:[%s4448 + $0x30] sm:$0x1] %vm4449, 0.0
  %4453 = vst.msk [vmem:[%s4448 + $0x48] sm:$0x1] %vm4449, 0.0
  %4454 = vst.msk [vmem:[%s4448 + $0x60] sm:$0x1] %vm4449, 0.0
  %4455 = vst.msk [vmem:[%s4448 + $0x78] sm:$0x1] %vm4449, 0.0
  %4456 = vst.msk [vmem:[%s4448 + $0x90] sm:$0x1] %vm4449, 0.0
  %4457 = vst.msk [vmem:[%s4448 + $0xa8] sm:$0x1] %vm4449, 0.0
  %4458 = vst.msk [vmem:[%s4448 + $0xc0] sm:$0x1] %vm4449, 0.0
  %4459 = vst.msk [vmem:[%s4448 + $0xd8] sm:$0x1] %vm4449, 0.0
  %4460 = vst.msk [vmem:[%s4448 + $0xf0] sm:$0x1] %vm4449, 0.0
  %4461 = vst.msk [vmem:[%s4448 + $0x108] sm:$0x1] %vm4449, 0.0
  %4462 = vst.msk [vmem:[%s4448 + $0x120] sm:$0x1] %vm4449, 0.0
  %4463 = vst.msk [vmem:[%s4448 + $0x138] sm:$0x1] %vm4449, 0.0
  %4464 = vst.msk [vmem:[%s4448 + $0x150] sm:$0x1] %vm4449, 0.0
  %4465 = vst.msk [vmem:[%s4448 + $0x168] sm:$0x1] %vm4449, 0.0
  %4466 = vst.msk [vmem:[%s4448 + $0x1b0] sm:$0x1] %vm4449, 0.0
  %4467 = vst.msk [vmem:[%s4448 + $0x1c8] sm:$0x1] %vm4449, 0.0
  %4468 = vst.msk [vmem:[%s4448 + $0x1e0] sm:$0x1] %vm4449, 0.0
  %4469 = vst.msk [vmem:[%s4448 + $0x1f8] sm:$0x1] %vm4449, 0.0
  %4470 = vst.msk [vmem:[%s4448 + $0x210] sm:$0x1] %vm4449, 0.0
  %4471 = vst.msk [vmem:[%s4448 + $0x228] sm:$0x1] %vm4449, 0.0
  %4472 = vst.msk [vmem:[%s4448 + $0x240] sm:$0x1] %vm4449, 0.0
  %4473 = vst.msk [vmem:[%s4448 + $0x258] sm:$0x1] %vm4449, 0.0
  %4474 = vst.msk [vmem:[%s4448 + $0x270] sm:$0x1] %vm4449, 0.0
  %4475 = vst.msk [vmem:[%s4448 + $0x288] sm:$0x1] %vm4449, 0.0
  %4476 = vst.msk [vmem:[%s4448 + $0x2a0] sm:$0x1] %vm4449, 0.0
  %4477 = vst.msk [vmem:[%s4448 + $0x2b8] sm:$0x1] %vm4449, 0.0
  %4478 = vst.msk [vmem:[%s4448 + $0x2d0] sm:$0x1] %vm4449, 0.0
  %4479 = vst.msk [vmem:[%s4448 + $0x2e8] sm:$0x1] %vm4449, 0.0
  %4480 = vst.msk [vmem:[%s4448 + $0x300] sm:$0x1] %vm4449, 0.0
  %4481 = vst.msk [vmem:[%s4448 + $0x318] sm:$0x1] %vm4449, 0.0
  %4482 = vst.msk [vmem:[%s4448 + $0x11] sm:$0x1] %vm4449, 0.0
  %4483 = vst.msk [vmem:[%s4448 + $0x29] sm:$0x1] %vm4449, 0.0
  %4484 = vst.msk [vmem:[%s4448 + $0x41] sm:$0x1] %vm4449, 0.0
  %4485 = vst.msk [vmem:[%s4448 + $0x59] sm:$0x1] %vm4449, 0.0
  %4486 = vst.msk [vmem:[%s4448 + $0x71] sm:$0x1] %vm4449, 0.0
  %4487 = vst.msk [vmem:[%s4448 + $0x89] sm:$0x1] %vm4449, 0.0
  %4488 = vst.msk [vmem:[%s4448 + $0xa1] sm:$0x1] %vm4449, 0.0
  %4489 = vst.msk [vmem:[%s4448 + $0xb9] sm:$0x1] %vm4449, 0.0
  %4490 = vst.msk [vmem:[%s4448 + $0xd1] sm:$0x1] %vm4449, 0.0
  %4491 = vst.msk [vmem:[%s4448 + $0xe9] sm:$0x1] %vm4449, 0.0
  %4492 = vst.msk [vmem:[%s4448 + $0x101] sm:$0x1] %vm4449, 0.0
  %4493 = vst.msk [vmem:[%s4448 + $0x119] sm:$0x1] %vm4449, 0.0
  %4494 = vst.msk [vmem:[%s4448 + $0x131] sm:$0x1] %vm4449, 0.0
  %4495 = vst.msk [vmem:[%s4448 + $0x149] sm:$0x1] %vm4449, 0.0
  %4496 = vst.msk [vmem:[%s4448 + $0x161] sm:$0x1] %vm4449, 0.0
  %4497 = vst.msk [vmem:[%s4448 + $0x179] sm:$0x1] %vm4449, 0.0
  %4498 = vst.msk [vmem:[%s4448 + $0x1c1] sm:$0x1] %vm4449, 0.0
  %4499 = vst.msk [vmem:[%s4448 + $0x1d9] sm:$0x1] %vm4449, 0.0
  %4500 = vst.msk [vmem:[%s4448 + $0x1f1] sm:$0x1] %vm4449, 0.0
  %4501 = vst.msk [vmem:[%s4448 + $0x209] sm:$0x1] %vm4449, 0.0
  %4502 = vst.msk [vmem:[%s4448 + $0x221] sm:$0x1] %vm4449, 0.0
  %4503 = vst.msk [vmem:[%s4448 + $0x239] sm:$0x1] %vm4449, 0.0
  %4504 = vst.msk [vmem:[%s4448 + $0x251] sm:$0x1] %vm4449, 0.0
  %4505 = vst.msk [vmem:[%s4448 + $0x269] sm:$0x1] %vm4449, 0.0
  %4506 = vst.msk [vmem:[%s4448 + $0x281] sm:$0x1] %vm4449, 0.0
  %4507 = vst.msk [vmem:[%s4448 + $0x299] sm:$0x1] %vm4449, 0.0
  %4508 = vst.msk [vmem:[%s4448 + $0x2b1] sm:$0x1] %vm4449, 0.0
  %4509 = vst.msk [vmem:[%s4448 + $0x2c9] sm:$0x1] %vm4449, 0.0
  %4510 = vst.msk [vmem:[%s4448 + $0x2e1] sm:$0x1] %vm4449, 0.0
  %4511 = vst.msk [vmem:[%s4448 + $0x2f9] sm:$0x1] %vm4449, 0.0
  %4512 = vst.msk [vmem:[%s4448 + $0x311] sm:$0x1] %vm4449, 0.0
  %4513 = vst.msk [vmem:[%s4448 + $0x329] sm:$0x1] %vm4449, 0.0
  %4514 = vst.msk [vmem:[%s4448 + $0x1] sm:$0xff] %vm3888, %v4370
  %4515 = vst.msk [vmem:[%s4448 + $0x9] sm:$0xff] %vm3888, %v4371
  %4516 = vst.msk [vmem:[%s4448 + $0x19] sm:$0xff] %vm3888, %v4372
  %4517 = vst.msk [vmem:[%s4448 + $0x21] sm:$0xff] %vm3888, %v4373
  %4518 = vst.msk [vmem:[%s4448 + $0x31] sm:$0xff] %vm3888, %v4374
  %4519 = vst.msk [vmem:[%s4448 + $0x39] sm:$0xff] %vm3888, %v4375
  %4520 = vst.msk [vmem:[%s4448 + $0x49] sm:$0xff] %vm3888, %v4376
  %4521 = vst.msk [vmem:[%s4448 + $0x51] sm:$0xff] %vm3888, %v4377
  %4522 = vst.msk [vmem:[%s4448 + $0x61] sm:$0xff] %vm3888, %v4378
  %4523 = vst.msk [vmem:[%s4448 + $0x69] sm:$0xff] %vm3888, %v4379
  %4524 = vst.msk [vmem:[%s4448 + $0x79] sm:$0xff] %vm3888, %v4380
  %4525 = vst.msk [vmem:[%s4448 + $0x81] sm:$0xff] %vm3888, %v4381
  %4526 = vst.msk [vmem:[%s4448 + $0x91] sm:$0xff] %vm3888, %v4382
  %4527 = vst.msk [vmem:[%s4448 + $0x99] sm:$0xff] %vm3888, %v4383
  %4528 = vst.msk [vmem:[%s4448 + $0xa9] sm:$0xff] %vm3888, %v4384
  %4529 = vst.msk [vmem:[%s4448 + $0xb1] sm:$0xff] %vm3888, %v4385
  %4530 = vst.msk [vmem:[%s4448 + $0xc1] sm:$0xff] %vm3888, %v4386
  %4531 = vst.msk [vmem:[%s4448 + $0xc9] sm:$0xff] %vm3888, %v4387
  %4532 = vst.msk [vmem:[%s4448 + $0xd9] sm:$0xff] %vm3888, %v4388
  %4533 = vst.msk [vmem:[%s4448 + $0xe1] sm:$0xff] %vm3888, %v4389
  %4534 = vst.msk [vmem:[%s4448 + $0xf1] sm:$0xff] %vm3888, %v4390
  %4535 = vst.msk [vmem:[%s4448 + $0xf9] sm:$0xff] %vm3888, %v4391
  %4536 = vst.msk [vmem:[%s4448 + $0x109] sm:$0xff] %vm3888, %v4392
  %4537 = vst.msk [vmem:[%s4448 + $0x111] sm:$0xff] %vm3888, %v4393
  %4538 = vst.msk [vmem:[%s4448 + $0x121] sm:$0xff] %vm3888, %v4394
  %4539 = vst.msk [vmem:[%s4448 + $0x129] sm:$0xff] %vm3888, %v4395
  %4540 = vst.msk [vmem:[%s4448 + $0x139] sm:$0xff] %vm3888, %v4396
  %4541 = vst.msk [vmem:[%s4448 + $0x141] sm:$0xff] %vm3888, %v4397
  %4542 = vst.msk [vmem:[%s4448 + $0x151] sm:$0xff] %vm3888, %v4398
  %4543 = vst.msk [vmem:[%s4448 + $0x159] sm:$0xff] %vm3888, %v4399
  %4544 = vst.msk [vmem:[%s4448 + $0x169] sm:$0xff] %vm3888, %v4400
  %4545 = vst.msk [vmem:[%s4448 + $0x171] sm:$0xff] %vm3888, %v4401
  %4546 = vst.msk [vmem:[%s4448 + $0x1b1] sm:$0xff] %vm3888, %v4402
  %4547 = vst.msk [vmem:[%s4448 + $0x1b9] sm:$0xff] %vm3888, %v4403
  %4548 = vst.msk [vmem:[%s4448 + $0x1c9] sm:$0xff] %vm3888, %v4404
  %4549 = vst.msk [vmem:[%s4448 + $0x1d1] sm:$0xff] %vm3888, %v4405
  %4550 = vst.msk [vmem:[%s4448 + $0x1e1] sm:$0xff] %vm3888, %v4406
  %4551 = vst.msk [vmem:[%s4448 + $0x1e9] sm:$0xff] %vm3888, %v4407
  %4552 = vst.msk [vmem:[%s4448 + $0x1f9] sm:$0xff] %vm3888, %v4408
  %4553 = vst.msk [vmem:[%s4448 + $0x201] sm:$0xff] %vm3888, %v4409
  %4554 = vst.msk [vmem:[%s4448 + $0x211] sm:$0xff] %vm3888, %v4410
  %4555 = vst.msk [vmem:[%s4448 + $0x219] sm:$0xff] %vm3888, %v4411
  %4556 = vst.msk [vmem:[%s4448 + $0x229] sm:$0xff] %vm3888, %v4412
  %4557 = vst.msk [vmem:[%s4448 + $0x231] sm:$0xff] %vm3888, %v4413
  %4558 = vst.msk [vmem:[%s4448 + $0x241] sm:$0xff] %vm3888, %v4414
  %4559 = vst.msk [vmem:[%s4448 + $0x249] sm:$0xff] %vm3888, %v4415
  %4560 = vst.msk [vmem:[%s4448 + $0x259] sm:$0xff] %vm3888, %v4416
  %4561 = vst.msk [vmem:[%s4448 + $0x261] sm:$0xff] %vm3888, %v4417
  %4562 = vst.msk [vmem:[%s4448 + $0x271] sm:$0xff] %vm3888, %v4418
  %4563 = vst.msk [vmem:[%s4448 + $0x279] sm:$0xff] %vm3888, %v4419
  %4564 = vst.msk [vmem:[%s4448 + $0x289] sm:$0xff] %vm3888, %v4420
  %4565 = vst.msk [vmem:[%s4448 + $0x291] sm:$0xff] %vm3888, %v4421
  %4566 = vst.msk [vmem:[%s4448 + $0x2a1] sm:$0xff] %vm3888, %v4422
  %4567 = vst.msk [vmem:[%s4448 + $0x2a9] sm:$0xff] %vm3888, %v4423
  %4568 = vst.msk [vmem:[%s4448 + $0x2b9] sm:$0xff] %vm3888, %v4424
  %4569 = vst.msk [vmem:[%s4448 + $0x2c1] sm:$0xff] %vm3888, %v4425
  %4570 = vst.msk [vmem:[%s4448 + $0x2d1] sm:$0xff] %vm3888, %v4426
  %4571 = vst.msk [vmem:[%s4448 + $0x2d9] sm:$0xff] %vm3888, %v4427
  %4572 = vst.msk [vmem:[%s4448 + $0x2e9] sm:$0xff] %vm3888, %v4428
  %4573 = vst.msk [vmem:[%s4448 + $0x2f1] sm:$0xff] %vm3888, %v4429
  %4574 = vst.msk [vmem:[%s4448 + $0x301] sm:$0xff] %vm3888, %v4430
  %4575 = vst.msk [vmem:[%s4448 + $0x309] sm:$0xff] %vm3888, %v4431
  %4576 = vst.msk [vmem:[%s4448 + $0x319] sm:$0xff] %vm3888, %v4432
  %4577 = vst.msk [vmem:[%s4448 + $0x321] sm:$0xff] %vm3888, %v4433
  %v4578 = vld [vmem:[#allocation3] sm:$0xff]
  %v4579 = vld [vmem:[#allocation3 + $0x8] sm:$0xff]
  %v4580 = vld [vmem:[#allocation3 + $0x18] sm:$0xff]
  %v4581 = vld [vmem:[#allocation3 + $0x20] sm:$0xff]
  %v4582 = vld [vmem:[#allocation3 + $0x30] sm:$0xff]
  %v4583 = vld [vmem:[#allocation3 + $0x38] sm:$0xff]
  %v4584 = vld [vmem:[#allocation3 + $0x48] sm:$0xff]
  %v4585 = vld [vmem:[#allocation3 + $0x50] sm:$0xff]
  %v4586 = vld [vmem:[#allocation3 + $0x60] sm:$0xff]
  %v4587 = vld [vmem:[#allocation3 + $0x68] sm:$0xff]
  %v4588 = vld [vmem:[#allocation3 + $0x78] sm:$0xff]
  %v4589 = vld [vmem:[#allocation3 + $0x80] sm:$0xff]
  %v4590 = vld [vmem:[#allocation3 + $0x90] sm:$0xff]
  %v4591 = vld [vmem:[#allocation3 + $0x98] sm:$0xff]
  %v4592 = vld [vmem:[#allocation3 + $0xa8] sm:$0xff]
  %v4593 = vld [vmem:[#allocation3 + $0xb0] sm:$0xff]
  %v4594 = vld [vmem:[#allocation3 + $0xc0] sm:$0xff]
  %v4595 = vld [vmem:[#allocation3 + $0xc8] sm:$0xff]
  %v4596 = vld [vmem:[#allocation3 + $0xd8] sm:$0xff]
  %v4597 = vld [vmem:[#allocation3 + $0xe0] sm:$0xff]
  %v4598 = vld [vmem:[#allocation3 + $0xf0] sm:$0xff]
  %v4599 = vld [vmem:[#allocation3 + $0xf8] sm:$0xff]
  %v4600 = vld [vmem:[#allocation3 + $0x108] sm:$0xff]
  %v4601 = vld [vmem:[#allocation3 + $0x110] sm:$0xff]
  %v4602 = vld [vmem:[#allocation3 + $0x120] sm:$0xff]
  %v4603 = vld [vmem:[#allocation3 + $0x128] sm:$0xff]
  %v4604 = vld [vmem:[#allocation3 + $0x138] sm:$0xff]
  %v4605 = vld [vmem:[#allocation3 + $0x140] sm:$0xff]
  %v4606 = vld [vmem:[#allocation3 + $0x150] sm:$0xff]
  %v4607 = vld [vmem:[#allocation3 + $0x158] sm:$0xff]
  %v4608 = vld [vmem:[#allocation3 + $0x168] sm:$0xff]
  %v4609 = vld [vmem:[#allocation3 + $0x170] sm:$0xff]
  %v4610 = vld [vmem:[#allocation3 + $0x1b0] sm:$0xff]
  %v4611 = vld [vmem:[#allocation3 + $0x1b8] sm:$0xff]
  %v4612 = vld [vmem:[#allocation3 + $0x1c8] sm:$0xff]
  %v4613 = vld [vmem:[#allocation3 + $0x1d0] sm:$0xff]
  %v4614 = vld [vmem:[#allocation3 + $0x1e0] sm:$0xff]
  %v4615 = vld [vmem:[#allocation3 + $0x1e8] sm:$0xff]
  %v4616 = vld [vmem:[#allocation3 + $0x1f8] sm:$0xff]
  %v4617 = vld [vmem:[#allocation3 + $0x200] sm:$0xff]
  %v4618 = vld [vmem:[#allocation3 + $0x210] sm:$0xff]
  %v4619 = vld [vmem:[#allocation3 + $0x218] sm:$0xff]
  %v4620 = vld [vmem:[#allocation3 + $0x228] sm:$0xff]
  %v4621 = vld [vmem:[#allocation3 + $0x230] sm:$0xff]
  %v4622 = vld [vmem:[#allocation3 + $0x240] sm:$0xff]
  %v4623 = vld [vmem:[#allocation3 + $0x248] sm:$0xff]
  %v4624 = vld [vmem:[#allocation3 + $0x258] sm:$0xff]
  %v4625 = vld [vmem:[#allocation3 + $0x260] sm:$0xff]
  %v4626 = vld [vmem:[#allocation3 + $0x270] sm:$0xff]
  %v4627 = vld [vmem:[#allocation3 + $0x278] sm:$0xff]
  %v4628 = vld [vmem:[#allocation3 + $0x288] sm:$0xff]
  %v4629 = vld [vmem:[#allocation3 + $0x290] sm:$0xff]
  %v4630 = vld [vmem:[#allocation3 + $0x2a0] sm:$0xff]
  %v4631 = vld [vmem:[#allocation3 + $0x2a8] sm:$0xff]
  %v4632 = vld [vmem:[#allocation3 + $0x2b8] sm:$0xff]
  %v4633 = vld [vmem:[#allocation3 + $0x2c0] sm:$0xff]
  %v4634 = vld [vmem:[#allocation3 + $0x2d0] sm:$0xff]
  %v4635 = vld [vmem:[#allocation3 + $0x2d8] sm:$0xff]
  %v4636 = vld [vmem:[#allocation3 + $0x2e8] sm:$0xff]
  %v4637 = vld [vmem:[#allocation3 + $0x2f0] sm:$0xff]
  %v4638 = vld [vmem:[#allocation3 + $0x300] sm:$0xff]
  %v4639 = vld [vmem:[#allocation3 + $0x308] sm:$0xff]
  %v4640 = vld [vmem:[#allocation3 + $0x318] sm:$0xff]
  %v4641 = vld [vmem:[#allocation3 + $0x320] sm:$0xff]
  %4642 = vst.msk [vmem:[#allocation4] sm:$0xff] %vm3888, %v4578
  %4643 = vst.msk [vmem:[#allocation4 + $0x8] sm:$0xff] %vm3888, %v4579
  %4644 = vst.msk [vmem:[#allocation4 + $0x10] sm:$0xff] %vm3888, %v4580
  %4645 = vst.msk [vmem:[#allocation4 + $0x18] sm:$0xff] %vm3888, %v4581
  %4646 = vst.msk [vmem:[#allocation4 + $0x20] sm:$0xff] %vm3888, %v4582
  %4647 = vst.msk [vmem:[#allocation4 + $0x28] sm:$0xff] %vm3888, %v4583
  %4648 = vst.msk [vmem:[#allocation4 + $0x30] sm:$0xff] %vm3888, %v4584
  %4649 = vst.msk [vmem:[#allocation4 + $0x38] sm:$0xff] %vm3888, %v4585
  %4650 = vst.msk [vmem:[#allocation4 + $0x40] sm:$0xff] %vm3888, %v4586
  %4651 = vst.msk [vmem:[#allocation4 + $0x48] sm:$0xff] %vm3888, %v4587
  %4652 = vst.msk [vmem:[#allocation4 + $0x50] sm:$0xff] %vm3888, %v4588
  %4653 = vst.msk [vmem:[#allocation4 + $0x58] sm:$0xff] %vm3888, %v4589
  %4654 = vst.msk [vmem:[#allocation4 + $0x60] sm:$0xff] %vm3888, %v4590
  %4655 = vst.msk [vmem:[#allocation4 + $0x68] sm:$0xff] %vm3888, %v4591
  %4656 = vst.msk [vmem:[#allocation4 + $0x70] sm:$0xff] %vm3888, %v4592
  %4657 = vst.msk [vmem:[#allocation4 + $0x78] sm:$0xff] %vm3888, %v4593
  %4658 = vst.msk [vmem:[#allocation4 + $0x80] sm:$0xff] %vm3888, %v4594
  %4659 = vst.msk [vmem:[#allocation4 + $0x88] sm:$0xff] %vm3888, %v4595
  %4660 = vst.msk [vmem:[#allocation4 + $0x90] sm:$0xff] %vm3888, %v4596
  %4661 = vst.msk [vmem:[#allocation4 + $0x98] sm:$0xff] %vm3888, %v4597
  %4662 = vst.msk [vmem:[#allocation4 + $0xa0] sm:$0xff] %vm3888, %v4598
  %4663 = vst.msk [vmem:[#allocation4 + $0xa8] sm:$0xff] %vm3888, %v4599
  %4664 = vst.msk [vmem:[#allocation4 + $0xb0] sm:$0xff] %vm3888, %v4600
  %4665 = vst.msk [vmem:[#allocation4 + $0xb8] sm:$0xff] %vm3888, %v4601
  %4666 = vst.msk [vmem:[#allocation4 + $0xc0] sm:$0xff] %vm3888, %v4602
  %4667 = vst.msk [vmem:[#allocation4 + $0xc8] sm:$0xff] %vm3888, %v4603
  %4668 = vst.msk [vmem:[#allocation4 + $0xd0] sm:$0xff] %vm3888, %v4604
  %4669 = vst.msk [vmem:[#allocation4 + $0xd8] sm:$0xff] %vm3888, %v4605
  %4670 = vst.msk [vmem:[#allocation4 + $0xe0] sm:$0xff] %vm3888, %v4606
  %4671 = vst.msk [vmem:[#allocation4 + $0xe8] sm:$0xff] %vm3888, %v4607
  %4672 = vst.msk [vmem:[#allocation4 + $0xf0] sm:$0xff] %vm3888, %v4608
  %4673 = vst.msk [vmem:[#allocation4 + $0xf8] sm:$0xff] %vm3888, %v4609
  %4674 = vst.msk [vmem:[#allocation4 + $0x100] sm:$0xff] %vm3888, %v4610
  %4675 = vst.msk [vmem:[#allocation4 + $0x108] sm:$0xff] %vm3888, %v4611
  %4676 = vst.msk [vmem:[#allocation4 + $0x110] sm:$0xff] %vm3888, %v4612
  %4677 = vst.msk [vmem:[#allocation4 + $0x118] sm:$0xff] %vm3888, %v4613
  %4678 = vst.msk [vmem:[#allocation4 + $0x120] sm:$0xff] %vm3888, %v4614
  %4679 = vst.msk [vmem:[#allocation4 + $0x128] sm:$0xff] %vm3888, %v4615
  %4680 = vst.msk [vmem:[#allocation4 + $0x130] sm:$0xff] %vm3888, %v4616
  %4681 = vst.msk [vmem:[#allocation4 + $0x138] sm:$0xff] %vm3888, %v4617
  %4682 = vst.msk [vmem:[#allocation4 + $0x140] sm:$0xff] %vm3888, %v4618
  %4683 = vst.msk [vmem:[#allocation4 + $0x148] sm:$0xff] %vm3888, %v4619
  %4684 = vst.msk [vmem:[#allocation4 + $0x150] sm:$0xff] %vm3888, %v4620
  %4685 = vst.msk [vmem:[#allocation4 + $0x158] sm:$0xff] %vm3888, %v4621
  %4686 = vst.msk [vmem:[#allocation4 + $0x160] sm:$0xff] %vm3888, %v4622
  %4687 = vst.msk [vmem:[#allocation4 + $0x168] sm:$0xff] %vm3888, %v4623
  %4688 = vst.msk [vmem:[#allocation4 + $0x170] sm:$0xff] %vm3888, %v4624
  %4689 = vst.msk [vmem:[#allocation4 + $0x178] sm:$0xff] %vm3888, %v4625
  %4690 = vst.msk [vmem:[#allocation4 + $0x180] sm:$0xff] %vm3888, %v4626
  %4691 = vst.msk [vmem:[#allocation4 + $0x188] sm:$0xff] %vm3888, %v4627
  %4692 = vst.msk [vmem:[#allocation4 + $0x190] sm:$0xff] %vm3888, %v4628
  %4693 = vst.msk [vmem:[#allocation4 + $0x198] sm:$0xff] %vm3888, %v4629
  %4694 = vst.msk [vmem:[#allocation4 + $0x1a0] sm:$0xff] %vm3888, %v4630
  %4695 = vst.msk [vmem:[#allocation4 + $0x1a8] sm:$0xff] %vm3888, %v4631
  %4696 = vst.msk [vmem:[#allocation4 + $0x1b0] sm:$0xff] %vm3888, %v4632
  %4697 = vst.msk [vmem:[#allocation4 + $0x1b8] sm:$0xff] %vm3888, %v4633
  %4698 = vst.msk [vmem:[#allocation4 + $0x1c0] sm:$0xff] %vm3888, %v4634
  %4699 = vst.msk [vmem:[#allocation4 + $0x1c8] sm:$0xff] %vm3888, %v4635
  %4700 = vst.msk [vmem:[#allocation4 + $0x1d0] sm:$0xff] %vm3888, %v4636
  %4701 = vst.msk [vmem:[#allocation4 + $0x1d8] sm:$0xff] %vm3888, %v4637
  %4702 = vst.msk [vmem:[#allocation4 + $0x1e0] sm:$0xff] %vm3888, %v4638
  %4703 = vst.msk [vmem:[#allocation4 + $0x1e8] sm:$0xff] %vm3888, %v4639
  %4704 = vst.msk [vmem:[#allocation4 + $0x1f0] sm:$0xff] %vm3888, %v4640
  %4705 = vst.msk [vmem:[#allocation4 + $0x1f8] sm:$0xff] %vm3888, %v4641
  %v4706 = vld [vmem:[#allocation3 + $0x1] sm:$0xff]
  %v4707 = vld [vmem:[#allocation3 + $0x9] sm:$0xff]
  %v4708 = vld [vmem:[#allocation3 + $0x19] sm:$0xff]
  %v4709 = vld [vmem:[#allocation3 + $0x21] sm:$0xff]
  %v4710 = vld [vmem:[#allocation3 + $0x31] sm:$0xff]
  %v4711 = vld [vmem:[#allocation3 + $0x39] sm:$0xff]
  %v4712 = vld [vmem:[#allocation3 + $0x49] sm:$0xff]
  %v4713 = vld [vmem:[#allocation3 + $0x51] sm:$0xff]
  %v4714 = vld [vmem:[#allocation3 + $0x61] sm:$0xff]
  %v4715 = vld [vmem:[#allocation3 + $0x69] sm:$0xff]
  %v4716 = vld [vmem:[#allocation3 + $0x79] sm:$0xff]
  %v4717 = vld [vmem:[#allocation3 + $0x81] sm:$0xff]
  %v4718 = vld [vmem:[#allocation3 + $0x91] sm:$0xff]
  %v4719 = vld [vmem:[#allocation3 + $0x99] sm:$0xff]
  %v4720 = vld [vmem:[#allocation3 + $0xa9] sm:$0xff]
  %v4721 = vld [vmem:[#allocation3 + $0xb1] sm:$0xff]
  %v4722 = vld [vmem:[#allocation3 + $0xc1] sm:$0xff]
  %v4723 = vld [vmem:[#allocation3 + $0xc9] sm:$0xff]
  %v4724 = vld [vmem:[#allocation3 + $0xd9] sm:$0xff]
  %v4725 = vld [vmem:[#allocation3 + $0xe1] sm:$0xff]
  %v4726 = vld [vmem:[#allocation3 + $0xf1] sm:$0xff]
  %v4727 = vld [vmem:[#allocation3 + $0xf9] sm:$0xff]
  %v4728 = vld [vmem:[#allocation3 + $0x109] sm:$0xff]
  %v4729 = vld [vmem:[#allocation3 + $0x111] sm:$0xff]
  %v4730 = vld [vmem:[#allocation3 + $0x121] sm:$0xff]
  %v4731 = vld [vmem:[#allocation3 + $0x129] sm:$0xff]
  %v4732 = vld [vmem:[#allocation3 + $0x139] sm:$0xff]
  %v4733 = vld [vmem:[#allocation3 + $0x141] sm:$0xff]
  %v4734 = vld [vmem:[#allocation3 + $0x151] sm:$0xff]
  %v4735 = vld [vmem:[#allocation3 + $0x159] sm:$0xff]
  %v4736 = vld [vmem:[#allocation3 + $0x169] sm:$0xff]
  %v4737 = vld [vmem:[#allocation3 + $0x171] sm:$0xff]
  %v4738 = vld [vmem:[#allocation3 + $0x1b1] sm:$0xff]
  %v4739 = vld [vmem:[#allocation3 + $0x1b9] sm:$0xff]
  %v4740 = vld [vmem:[#allocation3 + $0x1c9] sm:$0xff]
  %v4741 = vld [vmem:[#allocation3 + $0x1d1] sm:$0xff]
  %v4742 = vld [vmem:[#allocation3 + $0x1e1] sm:$0xff]
  %v4743 = vld [vmem:[#allocation3 + $0x1e9] sm:$0xff]
  %v4744 = vld [vmem:[#allocation3 + $0x1f9] sm:$0xff]
  %v4745 = vld [vmem:[#allocation3 + $0x201] sm:$0xff]
  %v4746 = vld [vmem:[#allocation3 + $0x211] sm:$0xff]
  %v4747 = vld [vmem:[#allocation3 + $0x219] sm:$0xff]
  %v4748 = vld [vmem:[#allocation3 + $0x229] sm:$0xff]
  %v4749 = vld [vmem:[#allocation3 + $0x231] sm:$0xff]
  %v4750 = vld [vmem:[#allocation3 + $0x241] sm:$0xff]
  %v4751 = vld [vmem:[#allocation3 + $0x249] sm:$0xff]
  %v4752 = vld [vmem:[#allocation3 + $0x259] sm:$0xff]
  %v4753 = vld [vmem:[#allocation3 + $0x261] sm:$0xff]
  %v4754 = vld [vmem:[#allocation3 + $0x271] sm:$0xff]
  %v4755 = vld [vmem:[#allocation3 + $0x279] sm:$0xff]
  %v4756 = vld [vmem:[#allocation3 + $0x289] sm:$0xff]
  %v4757 = vld [vmem:[#allocation3 + $0x291] sm:$0xff]
  %v4758 = vld [vmem:[#allocation3 + $0x2a1] sm:$0xff]
  %v4759 = vld [vmem:[#allocation3 + $0x2a9] sm:$0xff]
  %v4760 = vld [vmem:[#allocation3 + $0x2b9] sm:$0xff]
  %v4761 = vld [vmem:[#allocation3 + $0x2c1] sm:$0xff]
  %v4762 = vld [vmem:[#allocation3 + $0x2d1] sm:$0xff]
  %v4763 = vld [vmem:[#allocation3 + $0x2d9] sm:$0xff]
  %v4764 = vld [vmem:[#allocation3 + $0x2e9] sm:$0xff]
  %v4765 = vld [vmem:[#allocation3 + $0x2f1] sm:$0xff]
  %v4766 = vld [vmem:[#allocation3 + $0x301] sm:$0xff]
  %v4767 = vld [vmem:[#allocation3 + $0x309] sm:$0xff]
  %v4768 = vld [vmem:[#allocation3 + $0x319] sm:$0xff]
  %v4769 = vld [vmem:[#allocation3 + $0x321] sm:$0xff]
  %4834 = vrot.lane.b32.xlu0 %v4706, 8
  %v4835 = vpop.permute.xlu0 %4834
  %4836 = vrot.lane.b32.xlu0 %v4707, 8
  %v4837 = vpop.permute.xlu0 %4836
  %4838 = vrot.lane.b32.xlu0 %v4708, 8
  %v4839 = vpop.permute.xlu0 %4838
  %4840 = vrot.lane.b32.xlu0 %v4709, 8
  %v4841 = vpop.permute.xlu0 %4840
  %4842 = vrot.lane.b32.xlu0 %v4710, 8
  %v4843 = vpop.permute.xlu0 %4842
  %4844 = vrot.lane.b32.xlu0 %v4711, 8
  %v4845 = vpop.permute.xlu0 %4844
  %4846 = vrot.lane.b32.xlu0 %v4712, 8
  %v4847 = vpop.permute.xlu0 %4846
  %4848 = vrot.lane.b32.xlu0 %v4713, 8
  %v4849 = vpop.permute.xlu0 %4848
  %4850 = vrot.lane.b32.xlu0 %v4714, 8
  %v4851 = vpop.permute.xlu0 %4850
  %4852 = vrot.lane.b32.xlu0 %v4715, 8
  %v4853 = vpop.permute.xlu0 %4852
  %4854 = vrot.lane.b32.xlu0 %v4716, 8
  %v4855 = vpop.permute.xlu0 %4854
  %4856 = vrot.lane.b32.xlu0 %v4717, 8
  %v4857 = vpop.permute.xlu0 %4856
  %4858 = vrot.lane.b32.xlu0 %v4718, 8
  %v4859 = vpop.permute.xlu0 %4858
  %4860 = vrot.lane.b32.xlu0 %v4719, 8
  %v4861 = vpop.permute.xlu0 %4860
  %4862 = vrot.lane.b32.xlu0 %v4720, 8
  %v4863 = vpop.permute.xlu0 %4862
  %4864 = vrot.lane.b32.xlu0 %v4721, 8
  %v4865 = vpop.permute.xlu0 %4864
  %4866 = vrot.lane.b32.xlu0 %v4722, 8
  %v4867 = vpop.permute.xlu0 %4866
  %4868 = vrot.lane.b32.xlu0 %v4723, 8
  %v4869 = vpop.permute.xlu0 %4868
  %4870 = vrot.lane.b32.xlu0 %v4724, 8
  %v4871 = vpop.permute.xlu0 %4870
  %4872 = vrot.lane.b32.xlu0 %v4725, 8
  %v4873 = vpop.permute.xlu0 %4872
  %4874 = vrot.lane.b32.xlu0 %v4726, 8
  %v4875 = vpop.permute.xlu0 %4874
  %4876 = vrot.lane.b32.xlu0 %v4727, 8
  %v4877 = vpop.permute.xlu0 %4876
  %4878 = vrot.lane.b32.xlu0 %v4728, 8
  %v4879 = vpop.permute.xlu0 %4878
  %4880 = vrot.lane.b32.xlu0 %v4729, 8
  %v4881 = vpop.permute.xlu0 %4880
  %4882 = vrot.lane.b32.xlu0 %v4730, 8
  %v4883 = vpop.permute.xlu0 %4882
  %4884 = vrot.lane.b32.xlu0 %v4731, 8
  %v4885 = vpop.permute.xlu0 %4884
  %4886 = vrot.lane.b32.xlu0 %v4732, 8
  %v4887 = vpop.permute.xlu0 %4886
  %4888 = vrot.lane.b32.xlu0 %v4733, 8
  %v4889 = vpop.permute.xlu0 %4888
  %4890 = vrot.lane.b32.xlu0 %v4734, 8
  %v4891 = vpop.permute.xlu0 %4890
  %4892 = vrot.lane.b32.xlu0 %v4735, 8
  %v4893 = vpop.permute.xlu0 %4892
  %4894 = vrot.lane.b32.xlu0 %v4736, 8
  %v4895 = vpop.permute.xlu0 %4894
  %4896 = vrot.lane.b32.xlu0 %v4737, 8
  %v4897 = vpop.permute.xlu0 %4896
  %4898 = vrot.lane.b32.xlu0 %v4738, 8
  %v4899 = vpop.permute.xlu0 %4898
  %4900 = vrot.lane.b32.xlu0 %v4739, 8
  %v4901 = vpop.permute.xlu0 %4900
  %4902 = vrot.lane.b32.xlu0 %v4740, 8
  %v4903 = vpop.permute.xlu0 %4902
  %4904 = vrot.lane.b32.xlu0 %v4741, 8
  %v4905 = vpop.permute.xlu0 %4904
  %4906 = vrot.lane.b32.xlu0 %v4742, 8
  %v4907 = vpop.permute.xlu0 %4906
  %4908 = vrot.lane.b32.xlu0 %v4743, 8
  %v4909 = vpop.permute.xlu0 %4908
  %4910 = vrot.lane.b32.xlu0 %v4744, 8
  %v4911 = vpop.permute.xlu0 %4910
  %4912 = vrot.lane.b32.xlu0 %v4745, 8
  %v4913 = vpop.permute.xlu0 %4912
  %4914 = vrot.lane.b32.xlu0 %v4746, 8
  %v4915 = vpop.permute.xlu0 %4914
  %4916 = vrot.lane.b32.xlu0 %v4747, 8
  %v4917 = vpop.permute.xlu0 %4916
  %4918 = vrot.lane.b32.xlu0 %v4748, 8
  %v4919 = vpop.permute.xlu0 %4918
  %4920 = vrot.lane.b32.xlu0 %v4749, 8
  %v4921 = vpop.permute.xlu0 %4920
  %4922 = vrot.lane.b32.xlu0 %v4750, 8
  %v4923 = vpop.permute.xlu0 %4922
  %4924 = vrot.lane.b32.xlu0 %v4751, 8
  %v4925 = vpop.permute.xlu0 %4924
  %4926 = vrot.lane.b32.xlu0 %v4752, 8
  %v4927 = vpop.permute.xlu0 %4926
  %4928 = vrot.lane.b32.xlu0 %v4753, 8
  %v4929 = vpop.permute.xlu0 %4928
  %4930 = vrot.lane.b32.xlu0 %v4754, 8
  %v4931 = vpop.permute.xlu0 %4930
  %4932 = vrot.lane.b32.xlu0 %v4755, 8
  %v4933 = vpop.permute.xlu0 %4932
  %4934 = vrot.lane.b32.xlu0 %v4756, 8
  %v4935 = vpop.permute.xlu0 %4934
  %4936 = vrot.lane.b32.xlu0 %v4757, 8
  %v4937 = vpop.permute.xlu0 %4936
  %4938 = vrot.lane.b32.xlu0 %v4758, 8
  %v4939 = vpop.permute.xlu0 %4938
  %4940 = vrot.lane.b32.xlu0 %v4759, 8
  %v4941 = vpop.permute.xlu0 %4940
  %4942 = vrot.lane.b32.xlu0 %v4760, 8
  %v4943 = vpop.permute.xlu0 %4942
  %4944 = vrot.lane.b32.xlu0 %v4761, 8
  %v4945 = vpop.permute.xlu0 %4944
  %4946 = vrot.lane.b32.xlu0 %v4762, 8
  %v4947 = vpop.permute.xlu0 %4946
  %4948 = vrot.lane.b32.xlu0 %v4763, 8
  %v4949 = vpop.permute.xlu0 %4948
  %4950 = vrot.lane.b32.xlu0 %v4764, 8
  %v4951 = vpop.permute.xlu0 %4950
  %4952 = vrot.lane.b32.xlu0 %v4765, 8
  %v4953 = vpop.permute.xlu0 %4952
  %4954 = vrot.lane.b32.xlu0 %v4766, 8
  %v4955 = vpop.permute.xlu0 %4954
  %4956 = vrot.lane.b32.xlu0 %v4767, 8
  %v4957 = vpop.permute.xlu0 %4956
  %4958 = vrot.lane.b32.xlu0 %v4768, 8
  %v4959 = vpop.permute.xlu0 %4958
  %4960 = vrot.lane.b32.xlu0 %v4769, 8
  %v4961 = vpop.permute.xlu0 %4960
  %vm5026 = vcmask 130112
  %5027 = vst.msk [vmem:[#allocation4] sm:$0xff] %vm5026, %v4835
  %5028 = vst.msk [vmem:[#allocation4 + $0x8] sm:$0xff] %vm5026, %v4837
  %5029 = vst.msk [vmem:[#allocation4 + $0x10] sm:$0xff] %vm5026, %v4839
  %5030 = vst.msk [vmem:[#allocation4 + $0x18] sm:$0xff] %vm5026, %v4841
  %5031 = vst.msk [vmem:[#allocation4 + $0x20] sm:$0xff] %vm5026, %v4843
  %5032 = vst.msk [vmem:[#allocation4 + $0x28] sm:$0xff] %vm5026, %v4845
  %5033 = vst.msk [vmem:[#allocation4 + $0x30] sm:$0xff] %vm5026, %v4847
  %5034 = vst.msk [vmem:[#allocation4 + $0x38] sm:$0xff] %vm5026, %v4849
  %5035 = vst.msk [vmem:[#allocation4 + $0x40] sm:$0xff] %vm5026, %v4851
  %5036 = vst.msk [vmem:[#allocation4 + $0x48] sm:$0xff] %vm5026, %v4853
  %5037 = vst.msk [vmem:[#allocation4 + $0x50] sm:$0xff] %vm5026, %v4855
  %5038 = vst.msk [vmem:[#allocation4 + $0x58] sm:$0xff] %vm5026, %v4857
  %5039 = vst.msk [vmem:[#allocation4 + $0x60] sm:$0xff] %vm5026, %v4859
  %5040 = vst.msk [vmem:[#allocation4 + $0x68] sm:$0xff] %vm5026, %v4861
  %5041 = vst.msk [vmem:[#allocation4 + $0x70] sm:$0xff] %vm5026, %v4863
  %5042 = vst.msk [vmem:[#allocation4 + $0x78] sm:$0xff] %vm5026, %v4865
  %5043 = vst.msk [vmem:[#allocation4 + $0x80] sm:$0xff] %vm5026, %v4867
  %5044 = vst.msk [vmem:[#allocation4 + $0x88] sm:$0xff] %vm5026, %v4869
  %5045 = vst.msk [vmem:[#allocation4 + $0x90] sm:$0xff] %vm5026, %v4871
  %5046 = vst.msk [vmem:[#allocation4 + $0x98] sm:$0xff] %vm5026, %v4873
  %5047 = vst.msk [vmem:[#allocation4 + $0xa0] sm:$0xff] %vm5026, %v4875
  %5048 = vst.msk [vmem:[#allocation4 + $0xa8] sm:$0xff] %vm5026, %v4877
  %5049 = vst.msk [vmem:[#allocation4 + $0xb0] sm:$0xff] %vm5026, %v4879
  %5050 = vst.msk [vmem:[#allocation4 + $0xb8] sm:$0xff] %vm5026, %v4881
  %5051 = vst.msk [vmem:[#allocation4 + $0xc0] sm:$0xff] %vm5026, %v4883
  %5052 = vst.msk [vmem:[#allocation4 + $0xc8] sm:$0xff] %vm5026, %v4885
  %5053 = vst.msk [vmem:[#allocation4 + $0xd0] sm:$0xff] %vm5026, %v4887
  %5054 = vst.msk [vmem:[#allocation4 + $0xd8] sm:$0xff] %vm5026, %v4889
  %5055 = vst.msk [vmem:[#allocation4 + $0xe0] sm:$0xff] %vm5026, %v4891
  %5056 = vst.msk [vmem:[#allocation4 + $0xe8] sm:$0xff] %vm5026, %v4893
  %5057 = vst.msk [vmem:[#allocation4 + $0xf0] sm:$0xff] %vm5026, %v4895
  %5058 = vst.msk [vmem:[#allocation4 + $0xf8] sm:$0xff] %vm5026, %v4897
  %5059 = vst.msk [vmem:[#allocation4 + $0x100] sm:$0xff] %vm5026, %v4899
  %5060 = vst.msk [vmem:[#allocation4 + $0x108] sm:$0xff] %vm5026, %v4901
  %5061 = vst.msk [vmem:[#allocation4 + $0x110] sm:$0xff] %vm5026, %v4903
  %5062 = vst.msk [vmem:[#allocation4 + $0x118] sm:$0xff] %vm5026, %v4905
  %5063 = vst.msk [vmem:[#allocation4 + $0x120] sm:$0xff] %vm5026, %v4907
  %5064 = vst.msk [vmem:[#allocation4 + $0x128] sm:$0xff] %vm5026, %v4909
  %5065 = vst.msk [vmem:[#allocation4 + $0x130] sm:$0xff] %vm5026, %v4911
  %5066 = vst.msk [vmem:[#allocation4 + $0x138] sm:$0xff] %vm5026, %v4913
  %5067 = vst.msk [vmem:[#allocation4 + $0x140] sm:$0xff] %vm5026, %v4915
  %5068 = vst.msk [vmem:[#allocation4 + $0x148] sm:$0xff] %vm5026, %v4917
  %5069 = vst.msk [vmem:[#allocation4 + $0x150] sm:$0xff] %vm5026, %v4919
  %5070 = vst.msk [vmem:[#allocation4 + $0x158] sm:$0xff] %vm5026, %v4921
  %5071 = vst.msk [vmem:[#allocation4 + $0x160] sm:$0xff] %vm5026, %v4923
  %5072 = vst.msk [vmem:[#allocation4 + $0x168] sm:$0xff] %vm5026, %v4925
  %5073 = vst.msk [vmem:[#allocation4 + $0x170] sm:$0xff] %vm5026, %v4927
  %5074 = vst.msk [vmem:[#allocation4 + $0x178] sm:$0xff] %vm5026, %v4929
  %5075 = vst.msk [vmem:[#allocation4 + $0x180] sm:$0xff] %vm5026, %v4931
  %5076 = vst.msk [vmem:[#allocation4 + $0x188] sm:$0xff] %vm5026, %v4933
  %5077 = vst.msk [vmem:[#allocation4 + $0x190] sm:$0xff] %vm5026, %v4935
  %5078 = vst.msk [vmem:[#allocation4 + $0x198] sm:$0xff] %vm5026, %v4937
  %5079 = vst.msk [vmem:[#allocation4 + $0x1a0] sm:$0xff] %vm5026, %v4939
  %5080 = vst.msk [vmem:[#allocation4 + $0x1a8] sm:$0xff] %vm5026, %v4941
  %5081 = vst.msk [vmem:[#allocation4 + $0x1b0] sm:$0xff] %vm5026, %v4943
  %5082 = vst.msk [vmem:[#allocation4 + $0x1b8] sm:$0xff] %vm5026, %v4945
  %5083 = vst.msk [vmem:[#allocation4 + $0x1c0] sm:$0xff] %vm5026, %v4947
  %5084 = vst.msk [vmem:[#allocation4 + $0x1c8] sm:$0xff] %vm5026, %v4949
  %5085 = vst.msk [vmem:[#allocation4 + $0x1d0] sm:$0xff] %vm5026, %v4951
  %5086 = vst.msk [vmem:[#allocation4 + $0x1d8] sm:$0xff] %vm5026, %v4953
  %5087 = vst.msk [vmem:[#allocation4 + $0x1e0] sm:$0xff] %vm5026, %v4955
  %5088 = vst.msk [vmem:[#allocation4 + $0x1e8] sm:$0xff] %vm5026, %v4957
  %5089 = vst.msk [vmem:[#allocation4 + $0x1f0] sm:$0xff] %vm5026, %v4959
  %5090 = vst.msk [vmem:[#allocation4 + $0x1f8] sm:$0xff] %vm5026, %v4961
  %v5091 = vld [vmem:[#allocation3 + $0x2] sm:$0xff]
  %v5092 = vld [vmem:[#allocation3 + $0xa] sm:$0xff]
  %v5093 = vld [vmem:[#allocation3 + $0x1a] sm:$0xff]
  %v5094 = vld [vmem:[#allocation3 + $0x22] sm:$0xff]
  %v5095 = vld [vmem:[#allocation3 + $0x32] sm:$0xff]
  %v5096 = vld [vmem:[#allocation3 + $0x3a] sm:$0xff]
  %v5097 = vld [vmem:[#allocation3 + $0x4a] sm:$0xff]
  %v5098 = vld [vmem:[#allocation3 + $0x52] sm:$0xff]
  %v5099 = vld [vmem:[#allocation3 + $0x62] sm:$0xff]
  %v5100 = vld [vmem:[#allocation3 + $0x6a] sm:$0xff]
  %v5101 = vld [vmem:[#allocation3 + $0x7a] sm:$0xff]
  %v5102 = vld [vmem:[#allocation3 + $0x82] sm:$0xff]
  %v5103 = vld [vmem:[#allocation3 + $0x92] sm:$0xff]
  %v5104 = vld [vmem:[#allocation3 + $0x9a] sm:$0xff]
  %v5105 = vld [vmem:[#allocation3 + $0xaa] sm:$0xff]
  %v5106 = vld [vmem:[#allocation3 + $0xb2] sm:$0xff]
  %v5107 = vld [vmem:[#allocation3 + $0xc2] sm:$0xff]
  %v5108 = vld [vmem:[#allocation3 + $0xca] sm:$0xff]
  %v5109 = vld [vmem:[#allocation3 + $0xda] sm:$0xff]
  %v5110 = vld [vmem:[#allocation3 + $0xe2] sm:$0xff]
  %v5111 = vld [vmem:[#allocation3 + $0xf2] sm:$0xff]
  %v5112 = vld [vmem:[#allocation3 + $0xfa] sm:$0xff]
  %v5113 = vld [vmem:[#allocation3 + $0x10a] sm:$0xff]
  %v5114 = vld [vmem:[#allocation3 + $0x112] sm:$0xff]
  %v5115 = vld [vmem:[#allocation3 + $0x122] sm:$0xff]
  %v5116 = vld [vmem:[#allocation3 + $0x12a] sm:$0xff]
  %v5117 = vld [vmem:[#allocation3 + $0x13a] sm:$0xff]
  %v5118 = vld [vmem:[#allocation3 + $0x142] sm:$0xff]
  %v5119 = vld [vmem:[#allocation3 + $0x152] sm:$0xff]
  %v5120 = vld [vmem:[#allocation3 + $0x15a] sm:$0xff]
  %v5121 = vld [vmem:[#allocation3 + $0x16a] sm:$0xff]
  %v5122 = vld [vmem:[#allocation3 + $0x172] sm:$0xff]
  %v5123 = vld [vmem:[#allocation3 + $0x1b2] sm:$0xff]
  %v5124 = vld [vmem:[#allocation3 + $0x1ba] sm:$0xff]
  %v5125 = vld [vmem:[#allocation3 + $0x1ca] sm:$0xff]
  %v5126 = vld [vmem:[#allocation3 + $0x1d2] sm:$0xff]
  %v5127 = vld [vmem:[#allocation3 + $0x1e2] sm:$0xff]
  %v5128 = vld [vmem:[#allocation3 + $0x1ea] sm:$0xff]
  %v5129 = vld [vmem:[#allocation3 + $0x1fa] sm:$0xff]
  %v5130 = vld [vmem:[#allocation3 + $0x202] sm:$0xff]
  %v5131 = vld [vmem:[#allocation3 + $0x212] sm:$0xff]
  %v5132 = vld [vmem:[#allocation3 + $0x21a] sm:$0xff]
  %v5133 = vld [vmem:[#allocation3 + $0x22a] sm:$0xff]
  %v5134 = vld [vmem:[#allocation3 + $0x232] sm:$0xff]
  %v5135 = vld [vmem:[#allocation3 + $0x242] sm:$0xff]
  %v5136 = vld [vmem:[#allocation3 + $0x24a] sm:$0xff]
  %v5137 = vld [vmem:[#allocation3 + $0x25a] sm:$0xff]
  %v5138 = vld [vmem:[#allocation3 + $0x262] sm:$0xff]
  %v5139 = vld [vmem:[#allocation3 + $0x272] sm:$0xff]
  %v5140 = vld [vmem:[#allocation3 + $0x27a] sm:$0xff]
  %v5141 = vld [vmem:[#allocation3 + $0x28a] sm:$0xff]
  %v5142 = vld [vmem:[#allocation3 + $0x292] sm:$0xff]
  %v5143 = vld [vmem:[#allocation3 + $0x2a2] sm:$0xff]
  %v5144 = vld [vmem:[#allocation3 + $0x2aa] sm:$0xff]
  %v5145 = vld [vmem:[#allocation3 + $0x2ba] sm:$0xff]
  %v5146 = vld [vmem:[#allocation3 + $0x2c2] sm:$0xff]
  %v5147 = vld [vmem:[#allocation3 + $0x2d2] sm:$0xff]
  %v5148 = vld [vmem:[#allocation3 + $0x2da] sm:$0xff]
  %v5149 = vld [vmem:[#allocation3 + $0x2ea] sm:$0xff]
  %v5150 = vld [vmem:[#allocation3 + $0x2f2] sm:$0xff]
  %v5151 = vld [vmem:[#allocation3 + $0x302] sm:$0xff]
  %v5152 = vld [vmem:[#allocation3 + $0x30a] sm:$0xff]
  %v5153 = vld [vmem:[#allocation3 + $0x31a] sm:$0xff]
  %v5154 = vld [vmem:[#allocation3 + $0x322] sm:$0xff]
  %5219 = vrot.lane.b32.xlu0 %v5091, 16
  %v5220 = vpop.permute.xlu0 %5219
  %5221 = vrot.lane.b32.xlu0 %v5092, 16
  %v5222 = vpop.permute.xlu0 %5221
  %5223 = vrot.lane.b32.xlu0 %v5093, 16
  %v5224 = vpop.permute.xlu0 %5223
  %5225 = vrot.lane.b32.xlu0 %v5094, 16
  %v5226 = vpop.permute.xlu0 %5225
  %5227 = vrot.lane.b32.xlu0 %v5095, 16
  %v5228 = vpop.permute.xlu0 %5227
  %5229 = vrot.lane.b32.xlu0 %v5096, 16
  %v5230 = vpop.permute.xlu0 %5229
  %5231 = vrot.lane.b32.xlu0 %v5097, 16
  %v5232 = vpop.permute.xlu0 %5231
  %5233 = vrot.lane.b32.xlu0 %v5098, 16
  %v5234 = vpop.permute.xlu0 %5233
  %5235 = vrot.lane.b32.xlu0 %v5099, 16
  %v5236 = vpop.permute.xlu0 %5235
  %5237 = vrot.lane.b32.xlu0 %v5100, 16
  %v5238 = vpop.permute.xlu0 %5237
  %5239 = vrot.lane.b32.xlu0 %v5101, 16
  %v5240 = vpop.permute.xlu0 %5239
  %5241 = vrot.lane.b32.xlu0 %v5102, 16
  %v5242 = vpop.permute.xlu0 %5241
  %5243 = vrot.lane.b32.xlu0 %v5103, 16
  %v5244 = vpop.permute.xlu0 %5243
  %5245 = vrot.lane.b32.xlu0 %v5104, 16
  %v5246 = vpop.permute.xlu0 %5245
  %5247 = vrot.lane.b32.xlu0 %v5105, 16
  %v5248 = vpop.permute.xlu0 %5247
  %5249 = vrot.lane.b32.xlu0 %v5106, 16
  %v5250 = vpop.permute.xlu0 %5249
  %5251 = vrot.lane.b32.xlu0 %v5107, 16
  %v5252 = vpop.permute.xlu0 %5251
  %5253 = vrot.lane.b32.xlu0 %v5108, 16
  %v5254 = vpop.permute.xlu0 %5253
  %5255 = vrot.lane.b32.xlu0 %v5109, 16
  %v5256 = vpop.permute.xlu0 %5255
  %5257 = vrot.lane.b32.xlu0 %v5110, 16
  %v5258 = vpop.permute.xlu0 %5257
  %5259 = vrot.lane.b32.xlu0 %v5111, 16
  %v5260 = vpop.permute.xlu0 %5259
  %5261 = vrot.lane.b32.xlu0 %v5112, 16
  %v5262 = vpop.permute.xlu0 %5261
  %5263 = vrot.lane.b32.xlu0 %v5113, 16
  %v5264 = vpop.permute.xlu0 %5263
  %5265 = vrot.lane.b32.xlu0 %v5114, 16
  %v5266 = vpop.permute.xlu0 %5265
  %5267 = vrot.lane.b32.xlu0 %v5115, 16
  %v5268 = vpop.permute.xlu0 %5267
  %5269 = vrot.lane.b32.xlu0 %v5116, 16
  %v5270 = vpop.permute.xlu0 %5269
  %5271 = vrot.lane.b32.xlu0 %v5117, 16
  %v5272 = vpop.permute.xlu0 %5271
  %5273 = vrot.lane.b32.xlu0 %v5118, 16
  %v5274 = vpop.permute.xlu0 %5273
  %5275 = vrot.lane.b32.xlu0 %v5119, 16
  %v5276 = vpop.permute.xlu0 %5275
  %5277 = vrot.lane.b32.xlu0 %v5120, 16
  %v5278 = vpop.permute.xlu0 %5277
  %5279 = vrot.lane.b32.xlu0 %v5121, 16
  %v5280 = vpop.permute.xlu0 %5279
  %5281 = vrot.lane.b32.xlu0 %v5122, 16
  %v5282 = vpop.permute.xlu0 %5281
  %5283 = vrot.lane.b32.xlu0 %v5123, 16
  %v5284 = vpop.permute.xlu0 %5283
  %5285 = vrot.lane.b32.xlu0 %v5124, 16
  %v5286 = vpop.permute.xlu0 %5285
  %5287 = vrot.lane.b32.xlu0 %v5125, 16
  %v5288 = vpop.permute.xlu0 %5287
  %5289 = vrot.lane.b32.xlu0 %v5126, 16
  %v5290 = vpop.permute.xlu0 %5289
  %5291 = vrot.lane.b32.xlu0 %v5127, 16
  %v5292 = vpop.permute.xlu0 %5291
  %5293 = vrot.lane.b32.xlu0 %v5128, 16
  %v5294 = vpop.permute.xlu0 %5293
  %5295 = vrot.lane.b32.xlu0 %v5129, 16
  %v5296 = vpop.permute.xlu0 %5295
  %5297 = vrot.lane.b32.xlu0 %v5130, 16
  %v5298 = vpop.permute.xlu0 %5297
  %5299 = vrot.lane.b32.xlu0 %v5131, 16
  %v5300 = vpop.permute.xlu0 %5299
  %5301 = vrot.lane.b32.xlu0 %v5132, 16
  %v5302 = vpop.permute.xlu0 %5301
  %5303 = vrot.lane.b32.xlu0 %v5133, 16
  %v5304 = vpop.permute.xlu0 %5303
  %5305 = vrot.lane.b32.xlu0 %v5134, 16
  %v5306 = vpop.permute.xlu0 %5305
  %5307 = vrot.lane.b32.xlu0 %v5135, 16
  %v5308 = vpop.permute.xlu0 %5307
  %5309 = vrot.lane.b32.xlu0 %v5136, 16
  %v5310 = vpop.permute.xlu0 %5309
  %5311 = vrot.lane.b32.xlu0 %v5137, 16
  %v5312 = vpop.permute.xlu0 %5311
  %5313 = vrot.lane.b32.xlu0 %v5138, 16
  %v5314 = vpop.permute.xlu0 %5313
  %5315 = vrot.lane.b32.xlu0 %v5139, 16
  %v5316 = vpop.permute.xlu0 %5315
  %5317 = vrot.lane.b32.xlu0 %v5140, 16
  %v5318 = vpop.permute.xlu0 %5317
  %5319 = vrot.lane.b32.xlu0 %v5141, 16
  %v5320 = vpop.permute.xlu0 %5319
  %5321 = vrot.lane.b32.xlu0 %v5142, 16
  %v5322 = vpop.permute.xlu0 %5321
  %5323 = vrot.lane.b32.xlu0 %v5143, 16
  %v5324 = vpop.permute.xlu0 %5323
  %5325 = vrot.lane.b32.xlu0 %v5144, 16
  %v5326 = vpop.permute.xlu0 %5325
  %5327 = vrot.lane.b32.xlu0 %v5145, 16
  %v5328 = vpop.permute.xlu0 %5327
  %5329 = vrot.lane.b32.xlu0 %v5146, 16
  %v5330 = vpop.permute.xlu0 %5329
  %5331 = vrot.lane.b32.xlu0 %v5147, 16
  %v5332 = vpop.permute.xlu0 %5331
  %5333 = vrot.lane.b32.xlu0 %v5148, 16
  %v5334 = vpop.permute.xlu0 %5333
  %5335 = vrot.lane.b32.xlu0 %v5149, 16
  %v5336 = vpop.permute.xlu0 %5335
  %5337 = vrot.lane.b32.xlu0 %v5150, 16
  %v5338 = vpop.permute.xlu0 %5337
  %5339 = vrot.lane.b32.xlu0 %v5151, 16
  %v5340 = vpop.permute.xlu0 %5339
  %5341 = vrot.lane.b32.xlu0 %v5152, 16
  %v5342 = vpop.permute.xlu0 %5341
  %5343 = vrot.lane.b32.xlu0 %v5153, 16
  %v5344 = vpop.permute.xlu0 %5343
  %5345 = vrot.lane.b32.xlu0 %v5154, 16
  %v5346 = vpop.permute.xlu0 %5345
  %vm5411 = vcmask 195712
  %5412 = vst.msk [vmem:[#allocation4] sm:$0xff] %vm5411, %v5220
  %5413 = vst.msk [vmem:[#allocation4 + $0x8] sm:$0xff] %vm5411, %v5222
  %5414 = vst.msk [vmem:[#allocation4 + $0x10] sm:$0xff] %vm5411, %v5224
  %5415 = vst.msk [vmem:[#allocation4 + $0x18] sm:$0xff] %vm5411, %v5226
  %5416 = vst.msk [vmem:[#allocation4 + $0x20] sm:$0xff] %vm5411, %v5228
  %5417 = vst.msk [vmem:[#allocation4 + $0x28] sm:$0xff] %vm5411, %v5230
  %5418 = vst.msk [vmem:[#allocation4 + $0x30] sm:$0xff] %vm5411, %v5232
  %5419 = vst.msk [vmem:[#allocation4 + $0x38] sm:$0xff] %vm5411, %v5234
  %5420 = vst.msk [vmem:[#allocation4 + $0x40] sm:$0xff] %vm5411, %v5236
  %5421 = vst.msk [vmem:[#allocation4 + $0x48] sm:$0xff] %vm5411, %v5238
  %5422 = vst.msk [vmem:[#allocation4 + $0x50] sm:$0xff] %vm5411, %v5240
  %5423 = vst.msk [vmem:[#allocation4 + $0x58] sm:$0xff] %vm5411, %v5242
  %5424 = vst.msk [vmem:[#allocation4 + $0x60] sm:$0xff] %vm5411, %v5244
  %5425 = vst.msk [vmem:[#allocation4 + $0x68] sm:$0xff] %vm5411, %v5246
  %5426 = vst.msk [vmem:[#allocation4 + $0x70] sm:$0xff] %vm5411, %v5248
  %5427 = vst.msk [vmem:[#allocation4 + $0x78] sm:$0xff] %vm5411, %v5250
  %5428 = vst.msk [vmem:[#allocation4 + $0x80] sm:$0xff] %vm5411, %v5252
  %5429 = vst.msk [vmem:[#allocation4 + $0x88] sm:$0xff] %vm5411, %v5254
  %5430 = vst.msk [vmem:[#allocation4 + $0x90] sm:$0xff] %vm5411, %v5256
  %5431 = vst.msk [vmem:[#allocation4 + $0x98] sm:$0xff] %vm5411, %v5258
  %5432 = vst.msk [vmem:[#allocation4 + $0xa0] sm:$0xff] %vm5411, %v5260
  %5433 = vst.msk [vmem:[#allocation4 + $0xa8] sm:$0xff] %vm5411, %v5262
  %5434 = vst.msk [vmem:[#allocation4 + $0xb0] sm:$0xff] %vm5411, %v5264
  %5435 = vst.msk [vmem:[#allocation4 + $0xb8] sm:$0xff] %vm5411, %v5266
  %5436 = vst.msk [vmem:[#allocation4 + $0xc0] sm:$0xff] %vm5411, %v5268
  %5437 = vst.msk [vmem:[#allocation4 + $0xc8] sm:$0xff] %vm5411, %v5270
  %5438 = vst.msk [vmem:[#allocation4 + $0xd0] sm:$0xff] %vm5411, %v5272
  %5439 = vst.msk [vmem:[#allocation4 + $0xd8] sm:$0xff] %vm5411, %v5274
  %5440 = vst.msk [vmem:[#allocation4 + $0xe0] sm:$0xff] %vm5411, %v5276
  %5441 = vst.msk [vmem:[#allocation4 + $0xe8] sm:$0xff] %vm5411, %v5278
  %5442 = vst.msk [vmem:[#allocation4 + $0xf0] sm:$0xff] %vm5411, %v5280
  %5443 = vst.msk [vmem:[#allocation4 + $0xf8] sm:$0xff] %vm5411, %v5282
  %5444 = vst.msk [vmem:[#allocation4 + $0x100] sm:$0xff] %vm5411, %v5284
  %5445 = vst.msk [vmem:[#allocation4 + $0x108] sm:$0xff] %vm5411, %v5286
  %5446 = vst.msk [vmem:[#allocation4 + $0x110] sm:$0xff] %vm5411, %v5288
  %5447 = vst.msk [vmem:[#allocation4 + $0x118] sm:$0xff] %vm5411, %v5290
  %5448 = vst.msk [vmem:[#allocation4 + $0x120] sm:$0xff] %vm5411, %v5292
  %5449 = vst.msk [vmem:[#allocation4 + $0x128] sm:$0xff] %vm5411, %v5294
  %5450 = vst.msk [vmem:[#allocation4 + $0x130] sm:$0xff] %vm5411, %v5296
  %5451 = vst.msk [vmem:[#allocation4 + $0x138] sm:$0xff] %vm5411, %v5298
  %5452 = vst.msk [vmem:[#allocation4 + $0x140] sm:$0xff] %vm5411, %v5300
  %5453 = vst.msk [vmem:[#allocation4 + $0x148] sm:$0xff] %vm5411, %v5302
  %5454 = vst.msk [vmem:[#allocation4 + $0x150] sm:$0xff] %vm5411, %v5304
  %5455 = vst.msk [vmem:[#allocation4 + $0x158] sm:$0xff] %vm5411, %v5306
  %5456 = vst.msk [vmem:[#allocation4 + $0x160] sm:$0xff] %vm5411, %v5308
  %5457 = vst.msk [vmem:[#allocation4 + $0x168] sm:$0xff] %vm5411, %v5310
  %5458 = vst.msk [vmem:[#allocation4 + $0x170] sm:$0xff] %vm5411, %v5312
  %5459 = vst.msk [vmem:[#allocation4 + $0x178] sm:$0xff] %vm5411, %v5314
  %5460 = vst.msk [vmem:[#allocation4 + $0x180] sm:$0xff] %vm5411, %v5316
  %5461 = vst.msk [vmem:[#allocation4 + $0x188] sm:$0xff] %vm5411, %v5318
  %5462 = vst.msk [vmem:[#allocation4 + $0x190] sm:$0xff] %vm5411, %v5320
  %5463 = vst.msk [vmem:[#allocation4 + $0x198] sm:$0xff] %vm5411, %v5322
  %5464 = vst.msk [vmem:[#allocation4 + $0x1a0] sm:$0xff] %vm5411, %v5324
  %5465 = vst.msk [vmem:[#allocation4 + $0x1a8] sm:$0xff] %vm5411, %v5326
  %5466 = vst.msk [vmem:[#allocation4 + $0x1b0] sm:$0xff] %vm5411, %v5328
  %5467 = vst.msk [vmem:[#allocation4 + $0x1b8] sm:$0xff] %vm5411, %v5330
  %5468 = vst.msk [vmem:[#allocation4 + $0x1c0] sm:$0xff] %vm5411, %v5332
  %5469 = vst.msk [vmem:[#allocation4 + $0x1c8] sm:$0xff] %vm5411, %v5334
  %5470 = vst.msk [vmem:[#allocation4 + $0x1d0] sm:$0xff] %vm5411, %v5336
  %5471 = vst.msk [vmem:[#allocation4 + $0x1d8] sm:$0xff] %vm5411, %v5338
  %5472 = vst.msk [vmem:[#allocation4 + $0x1e0] sm:$0xff] %vm5411, %v5340
  %5473 = vst.msk [vmem:[#allocation4 + $0x1e8] sm:$0xff] %vm5411, %v5342
  %5474 = vst.msk [vmem:[#allocation4 + $0x1f0] sm:$0xff] %vm5411, %v5344
  %5475 = vst.msk [vmem:[#allocation4 + $0x1f8] sm:$0xff] %vm5411, %v5346
  %v5476 = vld [vmem:[%s4448] sm:$0xff]
  %v5477 = vld [vmem:[%s4448 + $0x8] sm:$0xff]
  %v5478 = vld [vmem:[%s4448 + $0x18] sm:$0xff]
  %v5479 = vld [vmem:[%s4448 + $0x20] sm:$0xff]
  %v5480 = vld [vmem:[%s4448 + $0x30] sm:$0xff]
  %v5481 = vld [vmem:[%s4448 + $0x38] sm:$0xff]
  %v5482 = vld [vmem:[%s4448 + $0x48] sm:$0xff]
  %v5483 = vld [vmem:[%s4448 + $0x50] sm:$0xff]
  %v5484 = vld [vmem:[%s4448 + $0x60] sm:$0xff]
  %v5485 = vld [vmem:[%s4448 + $0x68] sm:$0xff]
  %v5486 = vld [vmem:[%s4448 + $0x78] sm:$0xff]
  %v5487 = vld [vmem:[%s4448 + $0x80] sm:$0xff]
  %v5488 = vld [vmem:[%s4448 + $0x90] sm:$0xff]
  %v5489 = vld [vmem:[%s4448 + $0x98] sm:$0xff]
  %v5490 = vld [vmem:[%s4448 + $0xa8] sm:$0xff]
  %v5491 = vld [vmem:[%s4448 + $0xb0] sm:$0xff]
  %v5492 = vld [vmem:[%s4448 + $0xc0] sm:$0xff]
  %v5493 = vld [vmem:[%s4448 + $0xc8] sm:$0xff]
  %v5494 = vld [vmem:[%s4448 + $0xd8] sm:$0xff]
  %v5495 = vld [vmem:[%s4448 + $0xe0] sm:$0xff]
  %v5496 = vld [vmem:[%s4448 + $0xf0] sm:$0xff]
  %v5497 = vld [vmem:[%s4448 + $0xf8] sm:$0xff]
  %v5498 = vld [vmem:[%s4448 + $0x108] sm:$0xff]
  %v5499 = vld [vmem:[%s4448 + $0x110] sm:$0xff]
  %v5500 = vld [vmem:[%s4448 + $0x120] sm:$0xff]
  %v5501 = vld [vmem:[%s4448 + $0x128] sm:$0xff]
  %v5502 = vld [vmem:[%s4448 + $0x138] sm:$0xff]
  %v5503 = vld [vmem:[%s4448 + $0x140] sm:$0xff]
  %v5504 = vld [vmem:[%s4448 + $0x150] sm:$0xff]
  %v5505 = vld [vmem:[%s4448 + $0x158] sm:$0xff]
  %v5506 = vld [vmem:[%s4448 + $0x168] sm:$0xff]
  %v5507 = vld [vmem:[%s4448 + $0x170] sm:$0xff]
  %v5508 = vld [vmem:[%s4448 + $0x1b0] sm:$0xff]
  %v5509 = vld [vmem:[%s4448 + $0x1b8] sm:$0xff]
  %v5510 = vld [vmem:[%s4448 + $0x1c8] sm:$0xff]
  %v5511 = vld [vmem:[%s4448 + $0x1d0] sm:$0xff]
  %v5512 = vld [vmem:[%s4448 + $0x1e0] sm:$0xff]
  %v5513 = vld [vmem:[%s4448 + $0x1e8] sm:$0xff]
  %v5514 = vld [vmem:[%s4448 + $0x1f8] sm:$0xff]
  %v5515 = vld [vmem:[%s4448 + $0x200] sm:$0xff]
  %v5516 = vld [vmem:[%s4448 + $0x210] sm:$0xff]
  %v5517 = vld [vmem:[%s4448 + $0x218] sm:$0xff]
  %v5518 = vld [vmem:[%s4448 + $0x228] sm:$0xff]
  %v5519 = vld [vmem:[%s4448 + $0x230] sm:$0xff]
  %v5520 = vld [vmem:[%s4448 + $0x240] sm:$0xff]
  %v5521 = vld [vmem:[%s4448 + $0x248] sm:$0xff]
  %v5522 = vld [vmem:[%s4448 + $0x258] sm:$0xff]
  %v5523 = vld [vmem:[%s4448 + $0x260] sm:$0xff]
  %v5524 = vld [vmem:[%s4448 + $0x270] sm:$0xff]
  %v5525 = vld [vmem:[%s4448 + $0x278] sm:$0xff]
  %v5526 = vld [vmem:[%s4448 + $0x288] sm:$0xff]
  %v5527 = vld [vmem:[%s4448 + $0x290] sm:$0xff]
  %v5528 = vld [vmem:[%s4448 + $0x2a0] sm:$0xff]
  %v5529 = vld [vmem:[%s4448 + $0x2a8] sm:$0xff]
  %v5530 = vld [vmem:[%s4448 + $0x2b8] sm:$0xff]
  %v5531 = vld [vmem:[%s4448 + $0x2c0] sm:$0xff]
  %v5532 = vld [vmem:[%s4448 + $0x2d0] sm:$0xff]
  %v5533 = vld [vmem:[%s4448 + $0x2d8] sm:$0xff]
  %v5534 = vld [vmem:[%s4448 + $0x2e8] sm:$0xff]
  %v5535 = vld [vmem:[%s4448 + $0x2f0] sm:$0xff]
  %v5536 = vld [vmem:[%s4448 + $0x300] sm:$0xff]
  %v5537 = vld [vmem:[%s4448 + $0x308] sm:$0xff]
  %v5538 = vld [vmem:[%s4448 + $0x318] sm:$0xff]
  %v5539 = vld [vmem:[%s4448 + $0x320] sm:$0xff]
  %5604 = vrot.lane.b32.xlu0 %v5476, 24
  %v5605 = vpop.permute.xlu0 %5604
  %5606 = vrot.lane.b32.xlu0 %v5477, 24
  %v5607 = vpop.permute.xlu0 %5606
  %5608 = vrot.lane.b32.xlu0 %v5478, 24
  %v5609 = vpop.permute.xlu0 %5608
  %5610 = vrot.lane.b32.xlu0 %v5479, 24
  %v5611 = vpop.permute.xlu0 %5610
  %5612 = vrot.lane.b32.xlu0 %v5480, 24
  %v5613 = vpop.permute.xlu0 %5612
  %5614 = vrot.lane.b32.xlu0 %v5481, 24
  %v5615 = vpop.permute.xlu0 %5614
  %5616 = vrot.lane.b32.xlu0 %v5482, 24
  %v5617 = vpop.permute.xlu0 %5616
  %5618 = vrot.lane.b32.xlu0 %v5483, 24
  %v5619 = vpop.permute.xlu0 %5618
  %5620 = vrot.lane.b32.xlu0 %v5484, 24
  %v5621 = vpop.permute.xlu0 %5620
  %5622 = vrot.lane.b32.xlu0 %v5485, 24
  %v5623 = vpop.permute.xlu0 %5622
  %5624 = vrot.lane.b32.xlu0 %v5486, 24
  %v5625 = vpop.permute.xlu0 %5624
  %5626 = vrot.lane.b32.xlu0 %v5487, 24
  %v5627 = vpop.permute.xlu0 %5626
  %5628 = vrot.lane.b32.xlu0 %v5488, 24
  %v5629 = vpop.permute.xlu0 %5628
  %5630 = vrot.lane.b32.xlu0 %v5489, 24
  %v5631 = vpop.permute.xlu0 %5630
  %5632 = vrot.lane.b32.xlu0 %v5490, 24
  %v5633 = vpop.permute.xlu0 %5632
  %5634 = vrot.lane.b32.xlu0 %v5491, 24
  %v5635 = vpop.permute.xlu0 %5634
  %5636 = vrot.lane.b32.xlu0 %v5492, 24
  %v5637 = vpop.permute.xlu0 %5636
  %5638 = vrot.lane.b32.xlu0 %v5493, 24
  %v5639 = vpop.permute.xlu0 %5638
  %5640 = vrot.lane.b32.xlu0 %v5494, 24
  %v5641 = vpop.permute.xlu0 %5640
  %5642 = vrot.lane.b32.xlu0 %v5495, 24
  %v5643 = vpop.permute.xlu0 %5642
  %5644 = vrot.lane.b32.xlu0 %v5496, 24
  %v5645 = vpop.permute.xlu0 %5644
  %5646 = vrot.lane.b32.xlu0 %v5497, 24
  %v5647 = vpop.permute.xlu0 %5646
  %5648 = vrot.lane.b32.xlu0 %v5498, 24
  %v5649 = vpop.permute.xlu0 %5648
  %5650 = vrot.lane.b32.xlu0 %v5499, 24
  %v5651 = vpop.permute.xlu0 %5650
  %5652 = vrot.lane.b32.xlu0 %v5500, 24
  %v5653 = vpop.permute.xlu0 %5652
  %5654 = vrot.lane.b32.xlu0 %v5501, 24
  %v5655 = vpop.permute.xlu0 %5654
  %5656 = vrot.lane.b32.xlu0 %v5502, 24
  %v5657 = vpop.permute.xlu0 %5656
  %5658 = vrot.lane.b32.xlu0 %v5503, 24
  %v5659 = vpop.permute.xlu0 %5658
  %5660 = vrot.lane.b32.xlu0 %v5504, 24
  %v5661 = vpop.permute.xlu0 %5660
  %5662 = vrot.lane.b32.xlu0 %v5505, 24
  %v5663 = vpop.permute.xlu0 %5662
  %5664 = vrot.lane.b32.xlu0 %v5506, 24
  %v5665 = vpop.permute.xlu0 %5664
  %5666 = vrot.lane.b32.xlu0 %v5507, 24
  %v5667 = vpop.permute.xlu0 %5666
  %5668 = vrot.lane.b32.xlu0 %v5508, 24
  %v5669 = vpop.permute.xlu0 %5668
  %5670 = vrot.lane.b32.xlu0 %v5509, 24
  %v5671 = vpop.permute.xlu0 %5670
  %5672 = vrot.lane.b32.xlu0 %v5510, 24
  %v5673 = vpop.permute.xlu0 %5672
  %5674 = vrot.lane.b32.xlu0 %v5511, 24
  %v5675 = vpop.permute.xlu0 %5674
  %5676 = vrot.lane.b32.xlu0 %v5512, 24
  %v5677 = vpop.permute.xlu0 %5676
  %5678 = vrot.lane.b32.xlu0 %v5513, 24
  %v5679 = vpop.permute.xlu0 %5678
  %5680 = vrot.lane.b32.xlu0 %v5514, 24
  %v5681 = vpop.permute.xlu0 %5680
  %5682 = vrot.lane.b32.xlu0 %v5515, 24
  %v5683 = vpop.permute.xlu0 %5682
  %5684 = vrot.lane.b32.xlu0 %v5516, 24
  %v5685 = vpop.permute.xlu0 %5684
  %5686 = vrot.lane.b32.xlu0 %v5517, 24
  %v5687 = vpop.permute.xlu0 %5686
  %5688 = vrot.lane.b32.xlu0 %v5518, 24
  %v5689 = vpop.permute.xlu0 %5688
  %5690 = vrot.lane.b32.xlu0 %v5519, 24
  %v5691 = vpop.permute.xlu0 %5690
  %5692 = vrot.lane.b32.xlu0 %v5520, 24
  %v5693 = vpop.permute.xlu0 %5692
  %5694 = vrot.lane.b32.xlu0 %v5521, 24
  %v5695 = vpop.permute.xlu0 %5694
  %5696 = vrot.lane.b32.xlu0 %v5522, 24
  %v5697 = vpop.permute.xlu0 %5696
  %5698 = vrot.lane.b32.xlu0 %v5523, 24
  %v5699 = vpop.permute.xlu0 %5698
  %5700 = vrot.lane.b32.xlu0 %v5524, 24
  %v5701 = vpop.permute.xlu0 %5700
  %5702 = vrot.lane.b32.xlu0 %v5525, 24
  %v5703 = vpop.permute.xlu0 %5702
  %5704 = vrot.lane.b32.xlu0 %v5526, 24
  %v5705 = vpop.permute.xlu0 %5704
  %5706 = vrot.lane.b32.xlu0 %v5527, 24
  %v5707 = vpop.permute.xlu0 %5706
  %5708 = vrot.lane.b32.xlu0 %v5528, 24
  %v5709 = vpop.permute.xlu0 %5708
  %5710 = vrot.lane.b32.xlu0 %v5529, 24
  %v5711 = vpop.permute.xlu0 %5710
  %5712 = vrot.lane.b32.xlu0 %v5530, 24
  %v5713 = vpop.permute.xlu0 %5712
  %5714 = vrot.lane.b32.xlu0 %v5531, 24
  %v5715 = vpop.permute.xlu0 %5714
  %5716 = vrot.lane.b32.xlu0 %v5532, 24
  %v5717 = vpop.permute.xlu0 %5716
  %5718 = vrot.lane.b32.xlu0 %v5533, 24
  %v5719 = vpop.permute.xlu0 %5718
  %5720 = vrot.lane.b32.xlu0 %v5534, 24
  %v5721 = vpop.permute.xlu0 %5720
  %5722 = vrot.lane.b32.xlu0 %v5535, 24
  %v5723 = vpop.permute.xlu0 %5722
  %5724 = vrot.lane.b32.xlu0 %v5536, 24
  %v5725 = vpop.permute.xlu0 %5724
  %5726 = vrot.lane.b32.xlu0 %v5537, 24
  %v5727 = vpop.permute.xlu0 %5726
  %5728 = vrot.lane.b32.xlu0 %v5538, 24
  %v5729 = vpop.permute.xlu0 %5728
  %5730 = vrot.lane.b32.xlu0 %v5539, 24
  %v5731 = vpop.permute.xlu0 %5730
  %vm5796 = vcmask 261312
  %5797 = vst.msk [vmem:[#allocation4] sm:$0xff] %vm5796, %v5605
  %5798 = vst.msk [vmem:[#allocation4 + $0x8] sm:$0xff] %vm5796, %v5607
  %5799 = vst.msk [vmem:[#allocation4 + $0x10] sm:$0xff] %vm5796, %v5609
  %5800 = vst.msk [vmem:[#allocation4 + $0x18] sm:$0xff] %vm5796, %v5611
  %5801 = vst.msk [vmem:[#allocation4 + $0x20] sm:$0xff] %vm5796, %v5613
  %5802 = vst.msk [vmem:[#allocation4 + $0x28] sm:$0xff] %vm5796, %v5615
  %5803 = vst.msk [vmem:[#allocation4 + $0x30] sm:$0xff] %vm5796, %v5617
  %5804 = vst.msk [vmem:[#allocation4 + $0x38] sm:$0xff] %vm5796, %v5619
  %5805 = vst.msk [vmem:[#allocation4 + $0x40] sm:$0xff] %vm5796, %v5621
  %5806 = vst.msk [vmem:[#allocation4 + $0x48] sm:$0xff] %vm5796, %v5623
  %5807 = vst.msk [vmem:[#allocation4 + $0x50] sm:$0xff] %vm5796, %v5625
  %5808 = vst.msk [vmem:[#allocation4 + $0x58] sm:$0xff] %vm5796, %v5627
  %5809 = vst.msk [vmem:[#allocation4 + $0x60] sm:$0xff] %vm5796, %v5629
  %5810 = vst.msk [vmem:[#allocation4 + $0x68] sm:$0xff] %vm5796, %v5631
  %5811 = vst.msk [vmem:[#allocation4 + $0x70] sm:$0xff] %vm5796, %v5633
  %5812 = vst.msk [vmem:[#allocation4 + $0x78] sm:$0xff] %vm5796, %v5635
  %5813 = vst.msk [vmem:[#allocation4 + $0x80] sm:$0xff] %vm5796, %v5637
  %5814 = vst.msk [vmem:[#allocation4 + $0x88] sm:$0xff] %vm5796, %v5639
  %5815 = vst.msk [vmem:[#allocation4 + $0x90] sm:$0xff] %vm5796, %v5641
  %5816 = vst.msk [vmem:[#allocation4 + $0x98] sm:$0xff] %vm5796, %v5643
  %5817 = vst.msk [vmem:[#allocation4 + $0xa0] sm:$0xff] %vm5796, %v5645
  %5818 = vst.msk [vmem:[#allocation4 + $0xa8] sm:$0xff] %vm5796, %v5647
  %5819 = vst.msk [vmem:[#allocation4 + $0xb0] sm:$0xff] %vm5796, %v5649
  %5820 = vst.msk [vmem:[#allocation4 + $0xb8] sm:$0xff] %vm5796, %v5651
  %5821 = vst.msk [vmem:[#allocation4 + $0xc0] sm:$0xff] %vm5796, %v5653
  %5822 = vst.msk [vmem:[#allocation4 + $0xc8] sm:$0xff] %vm5796, %v5655
  %5823 = vst.msk [vmem:[#allocation4 + $0xd0] sm:$0xff] %vm5796, %v5657
  %5824 = vst.msk [vmem:[#allocation4 + $0xd8] sm:$0xff] %vm5796, %v5659
  %5825 = vst.msk [vmem:[#allocation4 + $0xe0] sm:$0xff] %vm5796, %v5661
  %5826 = vst.msk [vmem:[#allocation4 + $0xe8] sm:$0xff] %vm5796, %v5663
  %5827 = vst.msk [vmem:[#allocation4 + $0xf0] sm:$0xff] %vm5796, %v5665
  %5828 = vst.msk [vmem:[#allocation4 + $0xf8] sm:$0xff] %vm5796, %v5667
  %5829 = vst.msk [vmem:[#allocation4 + $0x100] sm:$0xff] %vm5796, %v5669
  %5830 = vst.msk [vmem:[#allocation4 + $0x108] sm:$0xff] %vm5796, %v5671
  %5831 = vst.msk [vmem:[#allocation4 + $0x110] sm:$0xff] %vm5796, %v5673
  %5832 = vst.msk [vmem:[#allocation4 + $0x118] sm:$0xff] %vm5796, %v5675
  %5833 = vst.msk [vmem:[#allocation4 + $0x120] sm:$0xff] %vm5796, %v5677
  %5834 = vst.msk [vmem:[#allocation4 + $0x128] sm:$0xff] %vm5796, %v5679
  %5835 = vst.msk [vmem:[#allocation4 + $0x130] sm:$0xff] %vm5796, %v5681
  %5836 = vst.msk [vmem:[#allocation4 + $0x138] sm:$0xff] %vm5796, %v5683
  %5837 = vst.msk [vmem:[#allocation4 + $0x140] sm:$0xff] %vm5796, %v5685
  %5838 = vst.msk [vmem:[#allocation4 + $0x148] sm:$0xff] %vm5796, %v5687
  %5839 = vst.msk [vmem:[#allocation4 + $0x150] sm:$0xff] %vm5796, %v5689
  %5840 = vst.msk [vmem:[#allocation4 + $0x158] sm:$0xff] %vm5796, %v5691
  %5841 = vst.msk [vmem:[#allocation4 + $0x160] sm:$0xff] %vm5796, %v5693
  %5842 = vst.msk [vmem:[#allocation4 + $0x168] sm:$0xff] %vm5796, %v5695
  %5843 = vst.msk [vmem:[#allocation4 + $0x170] sm:$0xff] %vm5796, %v5697
  %5844 = vst.msk [vmem:[#allocation4 + $0x178] sm:$0xff] %vm5796, %v5699
  %5845 = vst.msk [vmem:[#allocation4 + $0x180] sm:$0xff] %vm5796, %v5701
  %5846 = vst.msk [vmem:[#allocation4 + $0x188] sm:$0xff] %vm5796, %v5703
  %5847 = vst.msk [vmem:[#allocation4 + $0x190] sm:$0xff] %vm5796, %v5705
  %5848 = vst.msk [vmem:[#allocation4 + $0x198] sm:$0xff] %vm5796, %v5707
  %5849 = vst.msk [vmem:[#allocation4 + $0x1a0] sm:$0xff] %vm5796, %v5709
  %5850 = vst.msk [vmem:[#allocation4 + $0x1a8] sm:$0xff] %vm5796, %v5711
  %5851 = vst.msk [vmem:[#allocation4 + $0x1b0] sm:$0xff] %vm5796, %v5713
  %5852 = vst.msk [vmem:[#allocation4 + $0x1b8] sm:$0xff] %vm5796, %v5715
  %5853 = vst.msk [vmem:[#allocation4 + $0x1c0] sm:$0xff] %vm5796, %v5717
  %5854 = vst.msk [vmem:[#allocation4 + $0x1c8] sm:$0xff] %vm5796, %v5719
  %5855 = vst.msk [vmem:[#allocation4 + $0x1d0] sm:$0xff] %vm5796, %v5721
  %5856 = vst.msk [vmem:[#allocation4 + $0x1d8] sm:$0xff] %vm5796, %v5723
  %5857 = vst.msk [vmem:[#allocation4 + $0x1e0] sm:$0xff] %vm5796, %v5725
  %5858 = vst.msk [vmem:[#allocation4 + $0x1e8] sm:$0xff] %vm5796, %v5727
  %5859 = vst.msk [vmem:[#allocation4 + $0x1f0] sm:$0xff] %vm5796, %v5729
  %5860 = vst.msk [vmem:[#allocation4 + $0x1f8] sm:$0xff] %vm5796, %v5731
  %v5861 = vld [vmem:[%s4448 + $0x1] sm:$0xff]
  %v5862 = vld [vmem:[%s4448 + $0x9] sm:$0xff]
  %v5863 = vld [vmem:[%s4448 + $0x19] sm:$0xff]
  %v5864 = vld [vmem:[%s4448 + $0x21] sm:$0xff]
  %v5865 = vld [vmem:[%s4448 + $0x31] sm:$0xff]
  %v5866 = vld [vmem:[%s4448 + $0x39] sm:$0xff]
  %v5867 = vld [vmem:[%s4448 + $0x49] sm:$0xff]
  %v5868 = vld [vmem:[%s4448 + $0x51] sm:$0xff]
  %v5869 = vld [vmem:[%s4448 + $0x61] sm:$0xff]
  %v5870 = vld [vmem:[%s4448 + $0x69] sm:$0xff]
  %v5871 = vld [vmem:[%s4448 + $0x79] sm:$0xff]
  %v5872 = vld [vmem:[%s4448 + $0x81] sm:$0xff]
  %v5873 = vld [vmem:[%s4448 + $0x91] sm:$0xff]
  %v5874 = vld [vmem:[%s4448 + $0x99] sm:$0xff]
  %v5875 = vld [vmem:[%s4448 + $0xa9] sm:$0xff]
  %v5876 = vld [vmem:[%s4448 + $0xb1] sm:$0xff]
  %v5877 = vld [vmem:[%s4448 + $0xc1] sm:$0xff]
  %v5878 = vld [vmem:[%s4448 + $0xc9] sm:$0xff]
  %v5879 = vld [vmem:[%s4448 + $0xd9] sm:$0xff]
  %v5880 = vld [vmem:[%s4448 + $0xe1] sm:$0xff]
  %v5881 = vld [vmem:[%s4448 + $0xf1] sm:$0xff]
  %v5882 = vld [vmem:[%s4448 + $0xf9] sm:$0xff]
  %v5883 = vld [vmem:[%s4448 + $0x109] sm:$0xff]
  %v5884 = vld [vmem:[%s4448 + $0x111] sm:$0xff]
  %v5885 = vld [vmem:[%s4448 + $0x121] sm:$0xff]
  %v5886 = vld [vmem:[%s4448 + $0x129] sm:$0xff]
  %v5887 = vld [vmem:[%s4448 + $0x139] sm:$0xff]
  %v5888 = vld [vmem:[%s4448 + $0x141] sm:$0xff]
  %v5889 = vld [vmem:[%s4448 + $0x151] sm:$0xff]
  %v5890 = vld [vmem:[%s4448 + $0x159] sm:$0xff]
  %v5891 = vld [vmem:[%s4448 + $0x169] sm:$0xff]
  %v5892 = vld [vmem:[%s4448 + $0x171] sm:$0xff]
  %v5893 = vld [vmem:[%s4448 + $0x1b1] sm:$0xff]
  %v5894 = vld [vmem:[%s4448 + $0x1b9] sm:$0xff]
  %v5895 = vld [vmem:[%s4448 + $0x1c9] sm:$0xff]
  %v5896 = vld [vmem:[%s4448 + $0x1d1] sm:$0xff]
  %v5897 = vld [vmem:[%s4448 + $0x1e1] sm:$0xff]
  %v5898 = vld [vmem:[%s4448 + $0x1e9] sm:$0xff]
  %v5899 = vld [vmem:[%s4448 + $0x1f9] sm:$0xff]
  %v5900 = vld [vmem:[%s4448 + $0x201] sm:$0xff]
  %v5901 = vld [vmem:[%s4448 + $0x211] sm:$0xff]
  %v5902 = vld [vmem:[%s4448 + $0x219] sm:$0xff]
  %v5903 = vld [vmem:[%s4448 + $0x229] sm:$0xff]
  %v5904 = vld [vmem:[%s4448 + $0x231] sm:$0xff]
  %v5905 = vld [vmem:[%s4448 + $0x241] sm:$0xff]
  %v5906 = vld [vmem:[%s4448 + $0x249] sm:$0xff]
  %v5907 = vld [vmem:[%s4448 + $0x259] sm:$0xff]
  %v5908 = vld [vmem:[%s4448 + $0x261] sm:$0xff]
  %v5909 = vld [vmem:[%s4448 + $0x271] sm:$0xff]
  %v5910 = vld [vmem:[%s4448 + $0x279] sm:$0xff]
  %v5911 = vld [vmem:[%s4448 + $0x289] sm:$0xff]
  %v5912 = vld [vmem:[%s4448 + $0x291] sm:$0xff]
  %v5913 = vld [vmem:[%s4448 + $0x2a1] sm:$0xff]
  %v5914 = vld [vmem:[%s4448 + $0x2a9] sm:$0xff]
  %v5915 = vld [vmem:[%s4448 + $0x2b9] sm:$0xff]
  %v5916 = vld [vmem:[%s4448 + $0x2c1] sm:$0xff]
  %v5917 = vld [vmem:[%s4448 + $0x2d1] sm:$0xff]
  %v5918 = vld [vmem:[%s4448 + $0x2d9] sm:$0xff]
  %v5919 = vld [vmem:[%s4448 + $0x2e9] sm:$0xff]
  %v5920 = vld [vmem:[%s4448 + $0x2f1] sm:$0xff]
  %v5921 = vld [vmem:[%s4448 + $0x301] sm:$0xff]
  %v5922 = vld [vmem:[%s4448 + $0x309] sm:$0xff]
  %v5923 = vld [vmem:[%s4448 + $0x319] sm:$0xff]
  %v5924 = vld [vmem:[%s4448 + $0x321] sm:$0xff]
  %5989 = vrot.lane.b32.xlu0 %v5861, 32
  %v5990 = vpop.permute.xlu0 %5989
  %5991 = vrot.lane.b32.xlu0 %v5862, 32
  %v5992 = vpop.permute.xlu0 %5991
  %5993 = vrot.lane.b32.xlu0 %v5863, 32
  %v5994 = vpop.permute.xlu0 %5993
  %5995 = vrot.lane.b32.xlu0 %v5864, 32
  %v5996 = vpop.permute.xlu0 %5995
  %5997 = vrot.lane.b32.xlu0 %v5865, 32
  %v5998 = vpop.permute.xlu0 %5997
  %5999 = vrot.lane.b32.xlu0 %v5866, 32
  %v6000 = vpop.permute.xlu0 %5999
  %6001 = vrot.lane.b32.xlu0 %v5867, 32
  %v6002 = vpop.permute.xlu0 %6001
  %6003 = vrot.lane.b32.xlu0 %v5868, 32
  %v6004 = vpop.permute.xlu0 %6003
  %6005 = vrot.lane.b32.xlu0 %v5869, 32
  %v6006 = vpop.permute.xlu0 %6005
  %6007 = vrot.lane.b32.xlu0 %v5870, 32
  %v6008 = vpop.permute.xlu0 %6007
  %6009 = vrot.lane.b32.xlu0 %v5871, 32
  %v6010 = vpop.permute.xlu0 %6009
  %6011 = vrot.lane.b32.xlu0 %v5872, 32
  %v6012 = vpop.permute.xlu0 %6011
  %6013 = vrot.lane.b32.xlu0 %v5873, 32
  %v6014 = vpop.permute.xlu0 %6013
  %6015 = vrot.lane.b32.xlu0 %v5874, 32
  %v6016 = vpop.permute.xlu0 %6015
  %6017 = vrot.lane.b32.xlu0 %v5875, 32
  %v6018 = vpop.permute.xlu0 %6017
  %6019 = vrot.lane.b32.xlu0 %v5876, 32
  %v6020 = vpop.permute.xlu0 %6019
  %6021 = vrot.lane.b32.xlu0 %v5877, 32
  %v6022 = vpop.permute.xlu0 %6021
  %6023 = vrot.lane.b32.xlu0 %v5878, 32
  %v6024 = vpop.permute.xlu0 %6023
  %6025 = vrot.lane.b32.xlu0 %v5879, 32
  %v6026 = vpop.permute.xlu0 %6025
  %6027 = vrot.lane.b32.xlu0 %v5880, 32
  %v6028 = vpop.permute.xlu0 %6027
  %6029 = vrot.lane.b32.xlu0 %v5881, 32
  %v6030 = vpop.permute.xlu0 %6029
  %6031 = vrot.lane.b32.xlu0 %v5882, 32
  %v6032 = vpop.permute.xlu0 %6031
  %6033 = vrot.lane.b32.xlu0 %v5883, 32
  %v6034 = vpop.permute.xlu0 %6033
  %6035 = vrot.lane.b32.xlu0 %v5884, 32
  %v6036 = vpop.permute.xlu0 %6035
  %6037 = vrot.lane.b32.xlu0 %v5885, 32
  %v6038 = vpop.permute.xlu0 %6037
  %6039 = vrot.lane.b32.xlu0 %v5886, 32
  %v6040 = vpop.permute.xlu0 %6039
  %6041 = vrot.lane.b32.xlu0 %v5887, 32
  %v6042 = vpop.permute.xlu0 %6041
  %6043 = vrot.lane.b32.xlu0 %v5888, 32
  %v6044 = vpop.permute.xlu0 %6043
  %6045 = vrot.lane.b32.xlu0 %v5889, 32
  %v6046 = vpop.permute.xlu0 %6045
  %6047 = vrot.lane.b32.xlu0 %v5890, 32
  %v6048 = vpop.permute.xlu0 %6047
  %6049 = vrot.lane.b32.xlu0 %v5891, 32
  %v6050 = vpop.permute.xlu0 %6049
  %6051 = vrot.lane.b32.xlu0 %v5892, 32
  %v6052 = vpop.permute.xlu0 %6051
  %6053 = vrot.lane.b32.xlu0 %v5893, 32
  %v6054 = vpop.permute.xlu0 %6053
  %6055 = vrot.lane.b32.xlu0 %v5894, 32
  %v6056 = vpop.permute.xlu0 %6055
  %6057 = vrot.lane.b32.xlu0 %v5895, 32
  %v6058 = vpop.permute.xlu0 %6057
  %6059 = vrot.lane.b32.xlu0 %v5896, 32
  %v6060 = vpop.permute.xlu0 %6059
  %6061 = vrot.lane.b32.xlu0 %v5897, 32
  %v6062 = vpop.permute.xlu0 %6061
  %6063 = vrot.lane.b32.xlu0 %v5898, 32
  %v6064 = vpop.permute.xlu0 %6063
  %6065 = vrot.lane.b32.xlu0 %v5899, 32
  %v6066 = vpop.permute.xlu0 %6065
  %6067 = vrot.lane.b32.xlu0 %v5900, 32
  %v6068 = vpop.permute.xlu0 %6067
  %6069 = vrot.lane.b32.xlu0 %v5901, 32
  %v6070 = vpop.permute.xlu0 %6069
  %6071 = vrot.lane.b32.xlu0 %v5902, 32
  %v6072 = vpop.permute.xlu0 %6071
  %6073 = vrot.lane.b32.xlu0 %v5903, 32
  %v6074 = vpop.permute.xlu0 %6073
  %6075 = vrot.lane.b32.xlu0 %v5904, 32
  %v6076 = vpop.permute.xlu0 %6075
  %6077 = vrot.lane.b32.xlu0 %v5905, 32
  %v6078 = vpop.permute.xlu0 %6077
  %6079 = vrot.lane.b32.xlu0 %v5906, 32
  %v6080 = vpop.permute.xlu0 %6079
  %6081 = vrot.lane.b32.xlu0 %v5907, 32
  %v6082 = vpop.permute.xlu0 %6081
  %6083 = vrot.lane.b32.xlu0 %v5908, 32
  %v6084 = vpop.permute.xlu0 %6083
  %6085 = vrot.lane.b32.xlu0 %v5909, 32
  %v6086 = vpop.permute.xlu0 %6085
  %6087 = vrot.lane.b32.xlu0 %v5910, 32
  %v6088 = vpop.permute.xlu0 %6087
  %6089 = vrot.lane.b32.xlu0 %v5911, 32
  %v6090 = vpop.permute.xlu0 %6089
  %6091 = vrot.lane.b32.xlu0 %v5912, 32
  %v6092 = vpop.permute.xlu0 %6091
  %6093 = vrot.lane.b32.xlu0 %v5913, 32
  %v6094 = vpop.permute.xlu0 %6093
  %6095 = vrot.lane.b32.xlu0 %v5914, 32
  %v6096 = vpop.permute.xlu0 %6095
  %6097 = vrot.lane.b32.xlu0 %v5915, 32
  %v6098 = vpop.permute.xlu0 %6097
  %6099 = vrot.lane.b32.xlu0 %v5916, 32
  %v6100 = vpop.permute.xlu0 %6099
  %6101 = vrot.lane.b32.xlu0 %v5917, 32
  %v6102 = vpop.permute.xlu0 %6101
  %6103 = vrot.lane.b32.xlu0 %v5918, 32
  %v6104 = vpop.permute.xlu0 %6103
  %6105 = vrot.lane.b32.xlu0 %v5919, 32
  %v6106 = vpop.permute.xlu0 %6105
  %6107 = vrot.lane.b32.xlu0 %v5920, 32
  %v6108 = vpop.permute.xlu0 %6107
  %6109 = vrot.lane.b32.xlu0 %v5921, 32
  %v6110 = vpop.permute.xlu0 %6109
  %6111 = vrot.lane.b32.xlu0 %v5922, 32
  %v6112 = vpop.permute.xlu0 %6111
  %6113 = vrot.lane.b32.xlu0 %v5923, 32
  %v6114 = vpop.permute.xlu0 %6113
  %6115 = vrot.lane.b32.xlu0 %v5924, 32
  %v6116 = vpop.permute.xlu0 %6115
  %vm6181 = vcmask 326912
  %6182 = vst.msk [vmem:[#allocation4] sm:$0xff] %vm6181, %v5990
  %6183 = vst.msk [vmem:[#allocation4 + $0x8] sm:$0xff] %vm6181, %v5992
  %6184 = vst.msk [vmem:[#allocation4 + $0x10] sm:$0xff] %vm6181, %v5994
  %6185 = vst.msk [vmem:[#allocation4 + $0x18] sm:$0xff] %vm6181, %v5996
  %6186 = vst.msk [vmem:[#allocation4 + $0x20] sm:$0xff] %vm6181, %v5998
  %6187 = vst.msk [vmem:[#allocation4 + $0x28] sm:$0xff] %vm6181, %v6000
  %6188 = vst.msk [vmem:[#allocation4 + $0x30] sm:$0xff] %vm6181, %v6002
  %6189 = vst.msk [vmem:[#allocation4 + $0x38] sm:$0xff] %vm6181, %v6004
  %6190 = vst.msk [vmem:[#allocation4 + $0x40] sm:$0xff] %vm6181, %v6006
  %6191 = vst.msk [vmem:[#allocation4 + $0x48] sm:$0xff] %vm6181, %v6008
  %6192 = vst.msk [vmem:[#allocation4 + $0x50] sm:$0xff] %vm6181, %v6010
  %6193 = vst.msk [vmem:[#allocation4 + $0x58] sm:$0xff] %vm6181, %v6012
  %6194 = vst.msk [vmem:[#allocation4 + $0x60] sm:$0xff] %vm6181, %v6014
  %6195 = vst.msk [vmem:[#allocation4 + $0x68] sm:$0xff] %vm6181, %v6016
  %6196 = vst.msk [vmem:[#allocation4 + $0x70] sm:$0xff] %vm6181, %v6018
  %6197 = vst.msk [vmem:[#allocation4 + $0x78] sm:$0xff] %vm6181, %v6020
  %6198 = vst.msk [vmem:[#allocation4 + $0x80] sm:$0xff] %vm6181, %v6022
  %6199 = vst.msk [vmem:[#allocation4 + $0x88] sm:$0xff] %vm6181, %v6024
  %6200 = vst.msk [vmem:[#allocation4 + $0x90] sm:$0xff] %vm6181, %v6026
  %6201 = vst.msk [vmem:[#allocation4 + $0x98] sm:$0xff] %vm6181, %v6028
  %6202 = vst.msk [vmem:[#allocation4 + $0xa0] sm:$0xff] %vm6181, %v6030
  %6203 = vst.msk [vmem:[#allocation4 + $0xa8] sm:$0xff] %vm6181, %v6032
  %6204 = vst.msk [vmem:[#allocation4 + $0xb0] sm:$0xff] %vm6181, %v6034
  %6205 = vst.msk [vmem:[#allocation4 + $0xb8] sm:$0xff] %vm6181, %v6036
  %6206 = vst.msk [vmem:[#allocation4 + $0xc0] sm:$0xff] %vm6181, %v6038
  %6207 = vst.msk [vmem:[#allocation4 + $0xc8] sm:$0xff] %vm6181, %v6040
  %6208 = vst.msk [vmem:[#allocation4 + $0xd0] sm:$0xff] %vm6181, %v6042
  %6209 = vst.msk [vmem:[#allocation4 + $0xd8] sm:$0xff] %vm6181, %v6044
  %6210 = vst.msk [vmem:[#allocation4 + $0xe0] sm:$0xff] %vm6181, %v6046
  %6211 = vst.msk [vmem:[#allocation4 + $0xe8] sm:$0xff] %vm6181, %v6048
  %6212 = vst.msk [vmem:[#allocation4 + $0xf0] sm:$0xff] %vm6181, %v6050
  %6213 = vst.msk [vmem:[#allocation4 + $0xf8] sm:$0xff] %vm6181, %v6052
  %6214 = vst.msk [vmem:[#allocation4 + $0x100] sm:$0xff] %vm6181, %v6054
  %6215 = vst.msk [vmem:[#allocation4 + $0x108] sm:$0xff] %vm6181, %v6056
  %6216 = vst.msk [vmem:[#allocation4 + $0x110] sm:$0xff] %vm6181, %v6058
  %6217 = vst.msk [vmem:[#allocation4 + $0x118] sm:$0xff] %vm6181, %v6060
  %6218 = vst.msk [vmem:[#allocation4 + $0x120] sm:$0xff] %vm6181, %v6062
  %6219 = vst.msk [vmem:[#allocation4 + $0x128] sm:$0xff] %vm6181, %v6064
  %6220 = vst.msk [vmem:[#allocation4 + $0x130] sm:$0xff] %vm6181, %v6066
  %6221 = vst.msk [vmem:[#allocation4 + $0x138] sm:$0xff] %vm6181, %v6068
  %6222 = vst.msk [vmem:[#allocation4 + $0x140] sm:$0xff] %vm6181, %v6070
  %6223 = vst.msk [vmem:[#allocation4 + $0x148] sm:$0xff] %vm6181, %v6072
  %6224 = vst.msk [vmem:[#allocation4 + $0x150] sm:$0xff] %vm6181, %v6074
  %6225 = vst.msk [vmem:[#allocation4 + $0x158] sm:$0xff] %vm6181, %v6076
  %6226 = vst.msk [vmem:[#allocation4 + $0x160] sm:$0xff] %vm6181, %v6078
  %6227 = vst.msk [vmem:[#allocation4 + $0x168] sm:$0xff] %vm6181, %v6080
  %6228 = vst.msk [vmem:[#allocation4 + $0x170] sm:$0xff] %vm6181, %v6082
  %6229 = vst.msk [vmem:[#allocation4 + $0x178] sm:$0xff] %vm6181, %v6084
  %6230 = vst.msk [vmem:[#allocation4 + $0x180] sm:$0xff] %vm6181, %v6086
  %6231 = vst.msk [vmem:[#allocation4 + $0x188] sm:$0xff] %vm6181, %v6088
  %6232 = vst.msk [vmem:[#allocation4 + $0x190] sm:$0xff] %vm6181, %v6090
  %6233 = vst.msk [vmem:[#allocation4 + $0x198] sm:$0xff] %vm6181, %v6092
  %6234 = vst.msk [vmem:[#allocation4 + $0x1a0] sm:$0xff] %vm6181, %v6094
  %6235 = vst.msk [vmem:[#allocation4 + $0x1a8] sm:$0xff] %vm6181, %v6096
  %6236 = vst.msk [vmem:[#allocation4 + $0x1b0] sm:$0xff] %vm6181, %v6098
  %6237 = vst.msk [vmem:[#allocation4 + $0x1b8] sm:$0xff] %vm6181, %v6100
  %6238 = vst.msk [vmem:[#allocation4 + $0x1c0] sm:$0xff] %vm6181, %v6102
  %6239 = vst.msk [vmem:[#allocation4 + $0x1c8] sm:$0xff] %vm6181, %v6104
  %6240 = vst.msk [vmem:[#allocation4 + $0x1d0] sm:$0xff] %vm6181, %v6106
  %6241 = vst.msk [vmem:[#allocation4 + $0x1d8] sm:$0xff] %vm6181, %v6108
  %6242 = vst.msk [vmem:[#allocation4 + $0x1e0] sm:$0xff] %vm6181, %v6110
  %6243 = vst.msk [vmem:[#allocation4 + $0x1e8] sm:$0xff] %vm6181, %v6112
  %6244 = vst.msk [vmem:[#allocation4 + $0x1f0] sm:$0xff] %vm6181, %v6114
  %6245 = vst.msk [vmem:[#allocation4 + $0x1f8] sm:$0xff] %vm6181, %v6116
  %v6246 = vld [vmem:[%s4448 + $0x2] sm:$0xff]
  %v6247 = vld [vmem:[%s4448 + $0xa] sm:$0xff]
  %v6248 = vld [vmem:[%s4448 + $0x1a] sm:$0xff]
  %v6249 = vld [vmem:[%s4448 + $0x22] sm:$0xff]
  %v6250 = vld [vmem:[%s4448 + $0x32] sm:$0xff]
  %v6251 = vld [vmem:[%s4448 + $0x3a] sm:$0xff]
  %v6252 = vld [vmem:[%s4448 + $0x4a] sm:$0xff]
  %v6253 = vld [vmem:[%s4448 + $0x52] sm:$0xff]
  %v6254 = vld [vmem:[%s4448 + $0x62] sm:$0xff]
  %v6255 = vld [vmem:[%s4448 + $0x6a] sm:$0xff]
  %v6256 = vld [vmem:[%s4448 + $0x7a] sm:$0xff]
  %v6257 = vld [vmem:[%s4448 + $0x82] sm:$0xff]
  %v6258 = vld [vmem:[%s4448 + $0x92] sm:$0xff]
  %v6259 = vld [vmem:[%s4448 + $0x9a] sm:$0xff]
  %v6260 = vld [vmem:[%s4448 + $0xaa] sm:$0xff]
  %v6261 = vld [vmem:[%s4448 + $0xb2] sm:$0xff]
  %v6262 = vld [vmem:[%s4448 + $0xc2] sm:$0xff]
  %v6263 = vld [vmem:[%s4448 + $0xca] sm:$0xff]
  %v6264 = vld [vmem:[%s4448 + $0xda] sm:$0xff]
  %v6265 = vld [vmem:[%s4448 + $0xe2] sm:$0xff]
  %v6266 = vld [vmem:[%s4448 + $0xf2] sm:$0xff]
  %v6267 = vld [vmem:[%s4448 + $0xfa] sm:$0xff]
  %v6268 = vld [vmem:[%s4448 + $0x10a] sm:$0xff]
  %v6269 = vld [vmem:[%s4448 + $0x112] sm:$0xff]
  %v6270 = vld [vmem:[%s4448 + $0x122] sm:$0xff]
  %v6271 = vld [vmem:[%s4448 + $0x12a] sm:$0xff]
  %v6272 = vld [vmem:[%s4448 + $0x13a] sm:$0xff]
  %v6273 = vld [vmem:[%s4448 + $0x142] sm:$0xff]
  %v6274 = vld [vmem:[%s4448 + $0x152] sm:$0xff]
  %v6275 = vld [vmem:[%s4448 + $0x15a] sm:$0xff]
  %v6276 = vld [vmem:[%s4448 + $0x16a] sm:$0xff]
  %v6277 = vld [vmem:[%s4448 + $0x172] sm:$0xff]
  %v6278 = vld [vmem:[%s4448 + $0x1b2] sm:$0xff]
  %v6279 = vld [vmem:[%s4448 + $0x1ba] sm:$0xff]
  %v6280 = vld [vmem:[%s4448 + $0x1ca] sm:$0xff]
  %v6281 = vld [vmem:[%s4448 + $0x1d2] sm:$0xff]
  %v6282 = vld [vmem:[%s4448 + $0x1e2] sm:$0xff]
  %v6283 = vld [vmem:[%s4448 + $0x1ea] sm:$0xff]
  %v6284 = vld [vmem:[%s4448 + $0x1fa] sm:$0xff]
  %v6285 = vld [vmem:[%s4448 + $0x202] sm:$0xff]
  %v6286 = vld [vmem:[%s4448 + $0x212] sm:$0xff]
  %v6287 = vld [vmem:[%s4448 + $0x21a] sm:$0xff]
  %v6288 = vld [vmem:[%s4448 + $0x22a] sm:$0xff]
  %v6289 = vld [vmem:[%s4448 + $0x232] sm:$0xff]
  %v6290 = vld [vmem:[%s4448 + $0x242] sm:$0xff]
  %v6291 = vld [vmem:[%s4448 + $0x24a] sm:$0xff]
  %v6292 = vld [vmem:[%s4448 + $0x25a] sm:$0xff]
  %v6293 = vld [vmem:[%s4448 + $0x262] sm:$0xff]
  %v6294 = vld [vmem:[%s4448 + $0x272] sm:$0xff]
  %v6295 = vld [vmem:[%s4448 + $0x27a] sm:$0xff]
  %v6296 = vld [vmem:[%s4448 + $0x28a] sm:$0xff]
  %v6297 = vld [vmem:[%s4448 + $0x292] sm:$0xff]
  %v6298 = vld [vmem:[%s4448 + $0x2a2] sm:$0xff]
  %v6299 = vld [vmem:[%s4448 + $0x2aa] sm:$0xff]
  %v6300 = vld [vmem:[%s4448 + $0x2ba] sm:$0xff]
  %v6301 = vld [vmem:[%s4448 + $0x2c2] sm:$0xff]
  %v6302 = vld [vmem:[%s4448 + $0x2d2] sm:$0xff]
  %v6303 = vld [vmem:[%s4448 + $0x2da] sm:$0xff]
  %v6304 = vld [vmem:[%s4448 + $0x2ea] sm:$0xff]
  %v6305 = vld [vmem:[%s4448 + $0x2f2] sm:$0xff]
  %v6306 = vld [vmem:[%s4448 + $0x302] sm:$0xff]
  %v6307 = vld [vmem:[%s4448 + $0x30a] sm:$0xff]
  %v6308 = vld [vmem:[%s4448 + $0x31a] sm:$0xff]
  %v6309 = vld [vmem:[%s4448 + $0x322] sm:$0xff]
  %6374 = vrot.lane.b32.xlu0 %v6246, 40
  %v6375 = vpop.permute.xlu0 %6374
  %6376 = vrot.lane.b32.xlu0 %v6247, 40
  %v6377 = vpop.permute.xlu0 %6376
  %6378 = vrot.lane.b32.xlu0 %v6248, 40
  %v6379 = vpop.permute.xlu0 %6378
  %6380 = vrot.lane.b32.xlu0 %v6249, 40
  %v6381 = vpop.permute.xlu0 %6380
  %6382 = vrot.lane.b32.xlu0 %v6250, 40
  %v6383 = vpop.permute.xlu0 %6382
  %6384 = vrot.lane.b32.xlu0 %v6251, 40
  %v6385 = vpop.permute.xlu0 %6384
  %6386 = vrot.lane.b32.xlu0 %v6252, 40
  %v6387 = vpop.permute.xlu0 %6386
  %6388 = vrot.lane.b32.xlu0 %v6253, 40
  %v6389 = vpop.permute.xlu0 %6388
  %6390 = vrot.lane.b32.xlu0 %v6254, 40
  %v6391 = vpop.permute.xlu0 %6390
  %6392 = vrot.lane.b32.xlu0 %v6255, 40
  %v6393 = vpop.permute.xlu0 %6392
  %6394 = vrot.lane.b32.xlu0 %v6256, 40
  %v6395 = vpop.permute.xlu0 %6394
  %6396 = vrot.lane.b32.xlu0 %v6257, 40
  %v6397 = vpop.permute.xlu0 %6396
  %6398 = vrot.lane.b32.xlu0 %v6258, 40
  %v6399 = vpop.permute.xlu0 %6398
  %6400 = vrot.lane.b32.xlu0 %v6259, 40
  %v6401 = vpop.permute.xlu0 %6400
  %6402 = vrot.lane.b32.xlu0 %v6260, 40
  %v6403 = vpop.permute.xlu0 %6402
  %6404 = vrot.lane.b32.xlu0 %v6261, 40
  %v6405 = vpop.permute.xlu0 %6404
  %6406 = vrot.lane.b32.xlu0 %v6262, 40
  %v6407 = vpop.permute.xlu0 %6406
  %6408 = vrot.lane.b32.xlu0 %v6263, 40
  %v6409 = vpop.permute.xlu0 %6408
  %6410 = vrot.lane.b32.xlu0 %v6264, 40
  %v6411 = vpop.permute.xlu0 %6410
  %6412 = vrot.lane.b32.xlu0 %v6265, 40
  %v6413 = vpop.permute.xlu0 %6412
  %6414 = vrot.lane.b32.xlu0 %v6266, 40
  %v6415 = vpop.permute.xlu0 %6414
  %6416 = vrot.lane.b32.xlu0 %v6267, 40
  %v6417 = vpop.permute.xlu0 %6416
  %6418 = vrot.lane.b32.xlu0 %v6268, 40
  %v6419 = vpop.permute.xlu0 %6418
  %6420 = vrot.lane.b32.xlu0 %v6269, 40
  %v6421 = vpop.permute.xlu0 %6420
  %6422 = vrot.lane.b32.xlu0 %v6270, 40
  %v6423 = vpop.permute.xlu0 %6422
  %6424 = vrot.lane.b32.xlu0 %v6271, 40
  %v6425 = vpop.permute.xlu0 %6424
  %6426 = vrot.lane.b32.xlu0 %v6272, 40
  %v6427 = vpop.permute.xlu0 %6426
  %6428 = vrot.lane.b32.xlu0 %v6273, 40
  %v6429 = vpop.permute.xlu0 %6428
  %6430 = vrot.lane.b32.xlu0 %v6274, 40
  %v6431 = vpop.permute.xlu0 %6430
  %6432 = vrot.lane.b32.xlu0 %v6275, 40
  %v6433 = vpop.permute.xlu0 %6432
  %6434 = vrot.lane.b32.xlu0 %v6276, 40
  %v6435 = vpop.permute.xlu0 %6434
  %6436 = vrot.lane.b32.xlu0 %v6277, 40
  %v6437 = vpop.permute.xlu0 %6436
  %6438 = vrot.lane.b32.xlu0 %v6278, 40
  %v6439 = vpop.permute.xlu0 %6438
  %6440 = vrot.lane.b32.xlu0 %v6279, 40
  %v6441 = vpop.permute.xlu0 %6440
  %6442 = vrot.lane.b32.xlu0 %v6280, 40
  %v6443 = vpop.permute.xlu0 %6442
  %6444 = vrot.lane.b32.xlu0 %v6281, 40
  %v6445 = vpop.permute.xlu0 %6444
  %6446 = vrot.lane.b32.xlu0 %v6282, 40
  %v6447 = vpop.permute.xlu0 %6446
  %6448 = vrot.lane.b32.xlu0 %v6283, 40
  %v6449 = vpop.permute.xlu0 %6448
  %6450 = vrot.lane.b32.xlu0 %v6284, 40
  %v6451 = vpop.permute.xlu0 %6450
  %6452 = vrot.lane.b32.xlu0 %v6285, 40
  %v6453 = vpop.permute.xlu0 %6452
  %6454 = vrot.lane.b32.xlu0 %v6286, 40
  %v6455 = vpop.permute.xlu0 %6454
  %6456 = vrot.lane.b32.xlu0 %v6287, 40
  %v6457 = vpop.permute.xlu0 %6456
  %6458 = vrot.lane.b32.xlu0 %v6288, 40
  %v6459 = vpop.permute.xlu0 %6458
  %6460 = vrot.lane.b32.xlu0 %v6289, 40
  %v6461 = vpop.permute.xlu0 %6460
  %6462 = vrot.lane.b32.xlu0 %v6290, 40
  %v6463 = vpop.permute.xlu0 %6462
  %6464 = vrot.lane.b32.xlu0 %v6291, 40
  %v6465 = vpop.permute.xlu0 %6464
  %6466 = vrot.lane.b32.xlu0 %v6292, 40
  %v6467 = vpop.permute.xlu0 %6466
  %6468 = vrot.lane.b32.xlu0 %v6293, 40
  %v6469 = vpop.permute.xlu0 %6468
  %6470 = vrot.lane.b32.xlu0 %v6294, 40
  %v6471 = vpop.permute.xlu0 %6470
  %6472 = vrot.lane.b32.xlu0 %v6295, 40
  %v6473 = vpop.permute.xlu0 %6472
  %6474 = vrot.lane.b32.xlu0 %v6296, 40
  %v6475 = vpop.permute.xlu0 %6474
  %6476 = vrot.lane.b32.xlu0 %v6297, 40
  %v6477 = vpop.permute.xlu0 %6476
  %6478 = vrot.lane.b32.xlu0 %v6298, 40
  %v6479 = vpop.permute.xlu0 %6478
  %6480 = vrot.lane.b32.xlu0 %v6299, 40
  %v6481 = vpop.permute.xlu0 %6480
  %6482 = vrot.lane.b32.xlu0 %v6300, 40
  %v6483 = vpop.permute.xlu0 %6482
  %6484 = vrot.lane.b32.xlu0 %v6301, 40
  %v6485 = vpop.permute.xlu0 %6484
  %6486 = vrot.lane.b32.xlu0 %v6302, 40
  %v6487 = vpop.permute.xlu0 %6486
  %6488 = vrot.lane.b32.xlu0 %v6303, 40
  %v6489 = vpop.permute.xlu0 %6488
  %6490 = vrot.lane.b32.xlu0 %v6304, 40
  %v6491 = vpop.permute.xlu0 %6490
  %6492 = vrot.lane.b32.xlu0 %v6305, 40
  %v6493 = vpop.permute.xlu0 %6492
  %6494 = vrot.lane.b32.xlu0 %v6306, 40
  %v6495 = vpop.permute.xlu0 %6494
  %6496 = vrot.lane.b32.xlu0 %v6307, 40
  %v6497 = vpop.permute.xlu0 %6496
  %6498 = vrot.lane.b32.xlu0 %v6308, 40
  %v6499 = vpop.permute.xlu0 %6498
  %6500 = vrot.lane.b32.xlu0 %v6309, 40
  %v6501 = vpop.permute.xlu0 %6500
  %vm6566 = vcmask 392512
  %6567 = vst.msk [vmem:[#allocation4] sm:$0xff] %vm6566, %v6375
  %6568 = vst.msk [vmem:[#allocation4 + $0x8] sm:$0xff] %vm6566, %v6377
  %6569 = vst.msk [vmem:[#allocation4 + $0x10] sm:$0xff] %vm6566, %v6379
  %6570 = vst.msk [vmem:[#allocation4 + $0x18] sm:$0xff] %vm6566, %v6381
  %6571 = vst.msk [vmem:[#allocation4 + $0x20] sm:$0xff] %vm6566, %v6383
  %6572 = vst.msk [vmem:[#allocation4 + $0x28] sm:$0xff] %vm6566, %v6385
  %6573 = vst.msk [vmem:[#allocation4 + $0x30] sm:$0xff] %vm6566, %v6387
  %6574 = vst.msk [vmem:[#allocation4 + $0x38] sm:$0xff] %vm6566, %v6389
  %6575 = vst.msk [vmem:[#allocation4 + $0x40] sm:$0xff] %vm6566, %v6391
  %6576 = vst.msk [vmem:[#allocation4 + $0x48] sm:$0xff] %vm6566, %v6393
  %6577 = vst.msk [vmem:[#allocation4 + $0x50] sm:$0xff] %vm6566, %v6395
  %6578 = vst.msk [vmem:[#allocation4 + $0x58] sm:$0xff] %vm6566, %v6397
  %6579 = vst.msk [vmem:[#allocation4 + $0x60] sm:$0xff] %vm6566, %v6399
  %6580 = vst.msk [vmem:[#allocation4 + $0x68] sm:$0xff] %vm6566, %v6401
  %6581 = vst.msk [vmem:[#allocation4 + $0x70] sm:$0xff] %vm6566, %v6403
  %6582 = vst.msk [vmem:[#allocation4 + $0x78] sm:$0xff] %vm6566, %v6405
  %6583 = vst.msk [vmem:[#allocation4 + $0x80] sm:$0xff] %vm6566, %v6407
  %6584 = vst.msk [vmem:[#allocation4 + $0x88] sm:$0xff] %vm6566, %v6409
  %6585 = vst.msk [vmem:[#allocation4 + $0x90] sm:$0xff] %vm6566, %v6411
  %6586 = vst.msk [vmem:[#allocation4 + $0x98] sm:$0xff] %vm6566, %v6413
  %6587 = vst.msk [vmem:[#allocation4 + $0xa0] sm:$0xff] %vm6566, %v6415
  %6588 = vst.msk [vmem:[#allocation4 + $0xa8] sm:$0xff] %vm6566, %v6417
  %6589 = vst.msk [vmem:[#allocation4 + $0xb0] sm:$0xff] %vm6566, %v6419
  %6590 = vst.msk [vmem:[#allocation4 + $0xb8] sm:$0xff] %vm6566, %v6421
  %6591 = vst.msk [vmem:[#allocation4 + $0xc0] sm:$0xff] %vm6566, %v6423
  %6592 = vst.msk [vmem:[#allocation4 + $0xc8] sm:$0xff] %vm6566, %v6425
  %6593 = vst.msk [vmem:[#allocation4 + $0xd0] sm:$0xff] %vm6566, %v6427
  %6594 = vst.msk [vmem:[#allocation4 + $0xd8] sm:$0xff] %vm6566, %v6429
  %6595 = vst.msk [vmem:[#allocation4 + $0xe0] sm:$0xff] %vm6566, %v6431
  %6596 = vst.msk [vmem:[#allocation4 + $0xe8] sm:$0xff] %vm6566, %v6433
  %6597 = vst.msk [vmem:[#allocation4 + $0xf0] sm:$0xff] %vm6566, %v6435
  %6598 = vst.msk [vmem:[#allocation4 + $0xf8] sm:$0xff] %vm6566, %v6437
  %6599 = vst.msk [vmem:[#allocation4 + $0x100] sm:$0xff] %vm6566, %v6439
  %6600 = vst.msk [vmem:[#allocation4 + $0x108] sm:$0xff] %vm6566, %v6441
  %6601 = vst.msk [vmem:[#allocation4 + $0x110] sm:$0xff] %vm6566, %v6443
  %6602 = vst.msk [vmem:[#allocation4 + $0x118] sm:$0xff] %vm6566, %v6445
  %6603 = vst.msk [vmem:[#allocation4 + $0x120] sm:$0xff] %vm6566, %v6447
  %6604 = vst.msk [vmem:[#allocation4 + $0x128] sm:$0xff] %vm6566, %v6449
  %6605 = vst.msk [vmem:[#allocation4 + $0x130] sm:$0xff] %vm6566, %v6451
  %6606 = vst.msk [vmem:[#allocation4 + $0x138] sm:$0xff] %vm6566, %v6453
  %6607 = vst.msk [vmem:[#allocation4 + $0x140] sm:$0xff] %vm6566, %v6455
  %6608 = vst.msk [vmem:[#allocation4 + $0x148] sm:$0xff] %vm6566, %v6457
  %6609 = vst.msk [vmem:[#allocation4 + $0x150] sm:$0xff] %vm6566, %v6459
  %6610 = vst.msk [vmem:[#allocation4 + $0x158] sm:$0xff] %vm6566, %v6461
  %6611 = vst.msk [vmem:[#allocation4 + $0x160] sm:$0xff] %vm6566, %v6463
  %6612 = vst.msk [vmem:[#allocation4 + $0x168] sm:$0xff] %vm6566, %v6465
  %6613 = vst.msk [vmem:[#allocation4 + $0x170] sm:$0xff] %vm6566, %v6467
  %6614 = vst.msk [vmem:[#allocation4 + $0x178] sm:$0xff] %vm6566, %v6469
  %6615 = vst.msk [vmem:[#allocation4 + $0x180] sm:$0xff] %vm6566, %v6471
  %6616 = vst.msk [vmem:[#allocation4 + $0x188] sm:$0xff] %vm6566, %v6473
  %6617 = vst.msk [vmem:[#allocation4 + $0x190] sm:$0xff] %vm6566, %v6475
  %6618 = vst.msk [vmem:[#allocation4 + $0x198] sm:$0xff] %vm6566, %v6477
  %6619 = vst.msk [vmem:[#allocation4 + $0x1a0] sm:$0xff] %vm6566, %v6479
  %6620 = vst.msk [vmem:[#allocation4 + $0x1a8] sm:$0xff] %vm6566, %v6481
  %6621 = vst.msk [vmem:[#allocation4 + $0x1b0] sm:$0xff] %vm6566, %v6483
  %6622 = vst.msk [vmem:[#allocation4 + $0x1b8] sm:$0xff] %vm6566, %v6485
  %6623 = vst.msk [vmem:[#allocation4 + $0x1c0] sm:$0xff] %vm6566, %v6487
  %6624 = vst.msk [vmem:[#allocation4 + $0x1c8] sm:$0xff] %vm6566, %v6489
  %6625 = vst.msk [vmem:[#allocation4 + $0x1d0] sm:$0xff] %vm6566, %v6491
  %6626 = vst.msk [vmem:[#allocation4 + $0x1d8] sm:$0xff] %vm6566, %v6493
  %6627 = vst.msk [vmem:[#allocation4 + $0x1e0] sm:$0xff] %vm6566, %v6495
  %6628 = vst.msk [vmem:[#allocation4 + $0x1e8] sm:$0xff] %vm6566, %v6497
  %6629 = vst.msk [vmem:[#allocation4 + $0x1f0] sm:$0xff] %vm6566, %v6499
  %6630 = vst.msk [vmem:[#allocation4 + $0x1f8] sm:$0xff] %vm6566, %v6501
  %s6631 = scalar_lea.vmem [#allocation3], 48
  %v6632 = vld [vmem:[%s6631] sm:$0xff]
  %v6633 = vld [vmem:[%s6631 + $0x8] sm:$0xff]
  %v6634 = vld [vmem:[%s6631 + $0x18] sm:$0xff]
  %v6635 = vld [vmem:[%s6631 + $0x20] sm:$0xff]
  %v6636 = vld [vmem:[%s6631 + $0x30] sm:$0xff]
  %v6637 = vld [vmem:[%s6631 + $0x38] sm:$0xff]
  %v6638 = vld [vmem:[%s6631 + $0x48] sm:$0xff]
  %v6639 = vld [vmem:[%s6631 + $0x50] sm:$0xff]
  %v6640 = vld [vmem:[%s6631 + $0x60] sm:$0xff]
  %v6641 = vld [vmem:[%s6631 + $0x68] sm:$0xff]
  %v6642 = vld [vmem:[%s6631 + $0x78] sm:$0xff]
  %v6643 = vld [vmem:[%s6631 + $0x80] sm:$0xff]
  %v6644 = vld [vmem:[%s6631 + $0x90] sm:$0xff]
  %v6645 = vld [vmem:[%s6631 + $0x98] sm:$0xff]
  %v6646 = vld [vmem:[%s6631 + $0xa8] sm:$0xff]
  %v6647 = vld [vmem:[%s6631 + $0xb0] sm:$0xff]
  %v6648 = vld [vmem:[%s6631 + $0xc0] sm:$0xff]
  %v6649 = vld [vmem:[%s6631 + $0xc8] sm:$0xff]
  %v6650 = vld [vmem:[%s6631 + $0xd8] sm:$0xff]
  %v6651 = vld [vmem:[%s6631 + $0xe0] sm:$0xff]
  %v6652 = vld [vmem:[%s6631 + $0xf0] sm:$0xff]
  %v6653 = vld [vmem:[%s6631 + $0xf8] sm:$0xff]
  %v6654 = vld [vmem:[%s6631 + $0x108] sm:$0xff]
  %v6655 = vld [vmem:[%s6631 + $0x110] sm:$0xff]
  %v6656 = vld [vmem:[%s6631 + $0x120] sm:$0xff]
  %v6657 = vld [vmem:[%s6631 + $0x128] sm:$0xff]
  %v6658 = vld [vmem:[%s6631 + $0x138] sm:$0xff]
  %v6659 = vld [vmem:[%s6631 + $0x140] sm:$0xff]
  %v6660 = vld [vmem:[%s6631 + $0x150] sm:$0xff]
  %v6661 = vld [vmem:[%s6631 + $0x158] sm:$0xff]
  %v6662 = vld [vmem:[%s6631 + $0x168] sm:$0xff]
  %v6663 = vld [vmem:[%s6631 + $0x170] sm:$0xff]
  %v6664 = vld [vmem:[%s6631 + $0x1b0] sm:$0xff]
  %v6665 = vld [vmem:[%s6631 + $0x1b8] sm:$0xff]
  %v6666 = vld [vmem:[%s6631 + $0x1c8] sm:$0xff]
  %v6667 = vld [vmem:[%s6631 + $0x1d0] sm:$0xff]
  %v6668 = vld [vmem:[%s6631 + $0x1e0] sm:$0xff]
  %v6669 = vld [vmem:[%s6631 + $0x1e8] sm:$0xff]
  %v6670 = vld [vmem:[%s6631 + $0x1f8] sm:$0xff]
  %v6671 = vld [vmem:[%s6631 + $0x200] sm:$0xff]
  %v6672 = vld [vmem:[%s6631 + $0x210] sm:$0xff]
  %v6673 = vld [vmem:[%s6631 + $0x218] sm:$0xff]
  %v6674 = vld [vmem:[%s6631 + $0x228] sm:$0xff]
  %v6675 = vld [vmem:[%s6631 + $0x230] sm:$0xff]
  %v6676 = vld [vmem:[%s6631 + $0x240] sm:$0xff]
  %v6677 = vld [vmem:[%s6631 + $0x248] sm:$0xff]
  %v6678 = vld [vmem:[%s6631 + $0x258] sm:$0xff]
  %v6679 = vld [vmem:[%s6631 + $0x260] sm:$0xff]
  %v6680 = vld [vmem:[%s6631 + $0x270] sm:$0xff]
  %v6681 = vld [vmem:[%s6631 + $0x278] sm:$0xff]
  %v6682 = vld [vmem:[%s6631 + $0x288] sm:$0xff]
  %v6683 = vld [vmem:[%s6631 + $0x290] sm:$0xff]
  %v6684 = vld [vmem:[%s6631 + $0x2a0] sm:$0xff]
  %v6685 = vld [vmem:[%s6631 + $0x2a8] sm:$0xff]
  %v6686 = vld [vmem:[%s6631 + $0x2b8] sm:$0xff]
  %v6687 = vld [vmem:[%s6631 + $0x2c0] sm:$0xff]
  %v6688 = vld [vmem:[%s6631 + $0x2d0] sm:$0xff]
  %v6689 = vld [vmem:[%s6631 + $0x2d8] sm:$0xff]
  %v6690 = vld [vmem:[%s6631 + $0x2e8] sm:$0xff]
  %v6691 = vld [vmem:[%s6631 + $0x2f0] sm:$0xff]
  %v6692 = vld [vmem:[%s6631 + $0x300] sm:$0xff]
  %v6693 = vld [vmem:[%s6631 + $0x308] sm:$0xff]
  %v6694 = vld [vmem:[%s6631 + $0x318] sm:$0xff]
  %v6695 = vld [vmem:[%s6631 + $0x320] sm:$0xff]
  %6760 = vrot.lane.b32.xlu0 %v6632, 48
  %v6761 = vpop.permute.xlu0 %6760
  %6762 = vrot.lane.b32.xlu0 %v6633, 48
  %v6763 = vpop.permute.xlu0 %6762
  %6764 = vrot.lane.b32.xlu0 %v6634, 48
  %v6765 = vpop.permute.xlu0 %6764
  %6766 = vrot.lane.b32.xlu0 %v6635, 48
  %v6767 = vpop.permute.xlu0 %6766
  %6768 = vrot.lane.b32.xlu0 %v6636, 48
  %v6769 = vpop.permute.xlu0 %6768
  %6770 = vrot.lane.b32.xlu0 %v6637, 48
  %v6771 = vpop.permute.xlu0 %6770
  %6772 = vrot.lane.b32.xlu0 %v6638, 48
  %v6773 = vpop.permute.xlu0 %6772
  %6774 = vrot.lane.b32.xlu0 %v6639, 48
  %v6775 = vpop.permute.xlu0 %6774
  %6776 = vrot.lane.b32.xlu0 %v6640, 48
  %v6777 = vpop.permute.xlu0 %6776
  %6778 = vrot.lane.b32.xlu0 %v6641, 48
  %v6779 = vpop.permute.xlu0 %6778
  %6780 = vrot.lane.b32.xlu0 %v6642, 48
  %v6781 = vpop.permute.xlu0 %6780
  %6782 = vrot.lane.b32.xlu0 %v6643, 48
  %v6783 = vpop.permute.xlu0 %6782
  %6784 = vrot.lane.b32.xlu0 %v6644, 48
  %v6785 = vpop.permute.xlu0 %6784
  %6786 = vrot.lane.b32.xlu0 %v6645, 48
  %v6787 = vpop.permute.xlu0 %6786
  %6788 = vrot.lane.b32.xlu0 %v6646, 48
  %v6789 = vpop.permute.xlu0 %6788
  %6790 = vrot.lane.b32.xlu0 %v6647, 48
  %v6791 = vpop.permute.xlu0 %6790
  %6792 = vrot.lane.b32.xlu0 %v6648, 48
  %v6793 = vpop.permute.xlu0 %6792
  %6794 = vrot.lane.b32.xlu0 %v6649, 48
  %v6795 = vpop.permute.xlu0 %6794
  %6796 = vrot.lane.b32.xlu0 %v6650, 48
  %v6797 = vpop.permute.xlu0 %6796
  %6798 = vrot.lane.b32.xlu0 %v6651, 48
  %v6799 = vpop.permute.xlu0 %6798
  %6800 = vrot.lane.b32.xlu0 %v6652, 48
  %v6801 = vpop.permute.xlu0 %6800
  %6802 = vrot.lane.b32.xlu0 %v6653, 48
  %v6803 = vpop.permute.xlu0 %6802
  %6804 = vrot.lane.b32.xlu0 %v6654, 48
  %v6805 = vpop.permute.xlu0 %6804
  %6806 = vrot.lane.b32.xlu0 %v6655, 48
  %v6807 = vpop.permute.xlu0 %6806
  %6808 = vrot.lane.b32.xlu0 %v6656, 48
  %v6809 = vpop.permute.xlu0 %6808
  %6810 = vrot.lane.b32.xlu0 %v6657, 48
  %v6811 = vpop.permute.xlu0 %6810
  %6812 = vrot.lane.b32.xlu0 %v6658, 48
  %v6813 = vpop.permute.xlu0 %6812
  %6814 = vrot.lane.b32.xlu0 %v6659, 48
  %v6815 = vpop.permute.xlu0 %6814
  %6816 = vrot.lane.b32.xlu0 %v6660, 48
  %v6817 = vpop.permute.xlu0 %6816
  %6818 = vrot.lane.b32.xlu0 %v6661, 48
  %v6819 = vpop.permute.xlu0 %6818
  %6820 = vrot.lane.b32.xlu0 %v6662, 48
  %v6821 = vpop.permute.xlu0 %6820
  %6822 = vrot.lane.b32.xlu0 %v6663, 48
  %v6823 = vpop.permute.xlu0 %6822
  %6824 = vrot.lane.b32.xlu0 %v6664, 48
  %v6825 = vpop.permute.xlu0 %6824
  %6826 = vrot.lane.b32.xlu0 %v6665, 48
  %v6827 = vpop.permute.xlu0 %6826
  %6828 = vrot.lane.b32.xlu0 %v6666, 48
  %v6829 = vpop.permute.xlu0 %6828
  %6830 = vrot.lane.b32.xlu0 %v6667, 48
  %v6831 = vpop.permute.xlu0 %6830
  %6832 = vrot.lane.b32.xlu0 %v6668, 48
  %v6833 = vpop.permute.xlu0 %6832
  %6834 = vrot.lane.b32.xlu0 %v6669, 48
  %v6835 = vpop.permute.xlu0 %6834
  %6836 = vrot.lane.b32.xlu0 %v6670, 48
  %v6837 = vpop.permute.xlu0 %6836
  %6838 = vrot.lane.b32.xlu0 %v6671, 48
  %v6839 = vpop.permute.xlu0 %6838
  %6840 = vrot.lane.b32.xlu0 %v6672, 48
  %v6841 = vpop.permute.xlu0 %6840
  %6842 = vrot.lane.b32.xlu0 %v6673, 48
  %v6843 = vpop.permute.xlu0 %6842
  %6844 = vrot.lane.b32.xlu0 %v6674, 48
  %v6845 = vpop.permute.xlu0 %6844
  %6846 = vrot.lane.b32.xlu0 %v6675, 48
  %v6847 = vpop.permute.xlu0 %6846
  %6848 = vrot.lane.b32.xlu0 %v6676, 48
  %v6849 = vpop.permute.xlu0 %6848
  %6850 = vrot.lane.b32.xlu0 %v6677, 48
  %v6851 = vpop.permute.xlu0 %6850
  %6852 = vrot.lane.b32.xlu0 %v6678, 48
  %v6853 = vpop.permute.xlu0 %6852
  %6854 = vrot.lane.b32.xlu0 %v6679, 48
  %v6855 = vpop.permute.xlu0 %6854
  %6856 = vrot.lane.b32.xlu0 %v6680, 48
  %v6857 = vpop.permute.xlu0 %6856
  %6858 = vrot.lane.b32.xlu0 %v6681, 48
  %v6859 = vpop.permute.xlu0 %6858
  %6860 = vrot.lane.b32.xlu0 %v6682, 48
  %v6861 = vpop.permute.xlu0 %6860
  %6862 = vrot.lane.b32.xlu0 %v6683, 48
  %v6863 = vpop.permute.xlu0 %6862
  %6864 = vrot.lane.b32.xlu0 %v6684, 48
  %v6865 = vpop.permute.xlu0 %6864
  %6866 = vrot.lane.b32.xlu0 %v6685, 48
  %v6867 = vpop.permute.xlu0 %6866
  %6868 = vrot.lane.b32.xlu0 %v6686, 48
  %v6869 = vpop.permute.xlu0 %6868
  %6870 = vrot.lane.b32.xlu0 %v6687, 48
  %v6871 = vpop.permute.xlu0 %6870
  %6872 = vrot.lane.b32.xlu0 %v6688, 48
  %v6873 = vpop.permute.xlu0 %6872
  %6874 = vrot.lane.b32.xlu0 %v6689, 48
  %v6875 = vpop.permute.xlu0 %6874
  %6876 = vrot.lane.b32.xlu0 %v6690, 48
  %v6877 = vpop.permute.xlu0 %6876
  %6878 = vrot.lane.b32.xlu0 %v6691, 48
  %v6879 = vpop.permute.xlu0 %6878
  %6880 = vrot.lane.b32.xlu0 %v6692, 48
  %v6881 = vpop.permute.xlu0 %6880
  %6882 = vrot.lane.b32.xlu0 %v6693, 48
  %v6883 = vpop.permute.xlu0 %6882
  %6884 = vrot.lane.b32.xlu0 %v6694, 48
  %v6885 = vpop.permute.xlu0 %6884
  %6886 = vrot.lane.b32.xlu0 %v6695, 48
  %v6887 = vpop.permute.xlu0 %6886
  %vm6952 = vcmask 458112
  %6953 = vst.msk [vmem:[#allocation4] sm:$0xff] %vm6952, %v6761
  %6954 = vst.msk [vmem:[#allocation4 + $0x8] sm:$0xff] %vm6952, %v6763
  %6955 = vst.msk [vmem:[#allocation4 + $0x10] sm:$0xff] %vm6952, %v6765
  %6956 = vst.msk [vmem:[#allocation4 + $0x18] sm:$0xff] %vm6952, %v6767
  %6957 = vst.msk [vmem:[#allocation4 + $0x20] sm:$0xff] %vm6952, %v6769
  %6958 = vst.msk [vmem:[#allocation4 + $0x28] sm:$0xff] %vm6952, %v6771
  %6959 = vst.msk [vmem:[#allocation4 + $0x30] sm:$0xff] %vm6952, %v6773
  %6960 = vst.msk [vmem:[#allocation4 + $0x38] sm:$0xff] %vm6952, %v6775
  %6961 = vst.msk [vmem:[#allocation4 + $0x40] sm:$0xff] %vm6952, %v6777
  %6962 = vst.msk [vmem:[#allocation4 + $0x48] sm:$0xff] %vm6952, %v6779
  %6963 = vst.msk [vmem:[#allocation4 + $0x50] sm:$0xff] %vm6952, %v6781
  %6964 = vst.msk [vmem:[#allocation4 + $0x58] sm:$0xff] %vm6952, %v6783
  %6965 = vst.msk [vmem:[#allocation4 + $0x60] sm:$0xff] %vm6952, %v6785
  %6966 = vst.msk [vmem:[#allocation4 + $0x68] sm:$0xff] %vm6952, %v6787
  %6967 = vst.msk [vmem:[#allocation4 + $0x70] sm:$0xff] %vm6952, %v6789
  %6968 = vst.msk [vmem:[#allocation4 + $0x78] sm:$0xff] %vm6952, %v6791
  %6969 = vst.msk [vmem:[#allocation4 + $0x80] sm:$0xff] %vm6952, %v6793
  %6970 = vst.msk [vmem:[#allocation4 + $0x88] sm:$0xff] %vm6952, %v6795
  %6971 = vst.msk [vmem:[#allocation4 + $0x90] sm:$0xff] %vm6952, %v6797
  %6972 = vst.msk [vmem:[#allocation4 + $0x98] sm:$0xff] %vm6952, %v6799
  %6973 = vst.msk [vmem:[#allocation4 + $0xa0] sm:$0xff] %vm6952, %v6801
  %6974 = vst.msk [vmem:[#allocation4 + $0xa8] sm:$0xff] %vm6952, %v6803
  %6975 = vst.msk [vmem:[#allocation4 + $0xb0] sm:$0xff] %vm6952, %v6805
  %6976 = vst.msk [vmem:[#allocation4 + $0xb8] sm:$0xff] %vm6952, %v6807
  %6977 = vst.msk [vmem:[#allocation4 + $0xc0] sm:$0xff] %vm6952, %v6809
  %6978 = vst.msk [vmem:[#allocation4 + $0xc8] sm:$0xff] %vm6952, %v6811
  %6979 = vst.msk [vmem:[#allocation4 + $0xd0] sm:$0xff] %vm6952, %v6813
  %6980 = vst.msk [vmem:[#allocation4 + $0xd8] sm:$0xff] %vm6952, %v6815
  %6981 = vst.msk [vmem:[#allocation4 + $0xe0] sm:$0xff] %vm6952, %v6817
  %6982 = vst.msk [vmem:[#allocation4 + $0xe8] sm:$0xff] %vm6952, %v6819
  %6983 = vst.msk [vmem:[#allocation4 + $0xf0] sm:$0xff] %vm6952, %v6821
  %6984 = vst.msk [vmem:[#allocation4 + $0xf8] sm:$0xff] %vm6952, %v6823
  %6985 = vst.msk [vmem:[#allocation4 + $0x100] sm:$0xff] %vm6952, %v6825
  %6986 = vst.msk [vmem:[#allocation4 + $0x108] sm:$0xff] %vm6952, %v6827
  %6987 = vst.msk [vmem:[#allocation4 + $0x110] sm:$0xff] %vm6952, %v6829
  %6988 = vst.msk [vmem:[#allocation4 + $0x118] sm:$0xff] %vm6952, %v6831
  %6989 = vst.msk [vmem:[#allocation4 + $0x120] sm:$0xff] %vm6952, %v6833
  %6990 = vst.msk [vmem:[#allocation4 + $0x128] sm:$0xff] %vm6952, %v6835
  %6991 = vst.msk [vmem:[#allocation4 + $0x130] sm:$0xff] %vm6952, %v6837
  %6992 = vst.msk [vmem:[#allocation4 + $0x138] sm:$0xff] %vm6952, %v6839
  %6993 = vst.msk [vmem:[#allocation4 + $0x140] sm:$0xff] %vm6952, %v6841
  %6994 = vst.msk [vmem:[#allocation4 + $0x148] sm:$0xff] %vm6952, %v6843
  %6995 = vst.msk [vmem:[#allocation4 + $0x150] sm:$0xff] %vm6952, %v6845
  %6996 = vst.msk [vmem:[#allocation4 + $0x158] sm:$0xff] %vm6952, %v6847
  %6997 = vst.msk [vmem:[#allocation4 + $0x160] sm:$0xff] %vm6952, %v6849
  %6998 = vst.msk [vmem:[#allocation4 + $0x168] sm:$0xff] %vm6952, %v6851
  %6999 = vst.msk [vmem:[#allocation4 + $0x170] sm:$0xff] %vm6952, %v6853
  %7000 = vst.msk [vmem:[#allocation4 + $0x178] sm:$0xff] %vm6952, %v6855
  %7001 = vst.msk [vmem:[#allocation4 + $0x180] sm:$0xff] %vm6952, %v6857
  %7002 = vst.msk [vmem:[#allocation4 + $0x188] sm:$0xff] %vm6952, %v6859
  %7003 = vst.msk [vmem:[#allocation4 + $0x190] sm:$0xff] %vm6952, %v6861
  %7004 = vst.msk [vmem:[#allocation4 + $0x198] sm:$0xff] %vm6952, %v6863
  %7005 = vst.msk [vmem:[#allocation4 + $0x1a0] sm:$0xff] %vm6952, %v6865
  %7006 = vst.msk [vmem:[#allocation4 + $0x1a8] sm:$0xff] %vm6952, %v6867
  %7007 = vst.msk [vmem:[#allocation4 + $0x1b0] sm:$0xff] %vm6952, %v6869
  %7008 = vst.msk [vmem:[#allocation4 + $0x1b8] sm:$0xff] %vm6952, %v6871
  %7009 = vst.msk [vmem:[#allocation4 + $0x1c0] sm:$0xff] %vm6952, %v6873
  %7010 = vst.msk [vmem:[#allocation4 + $0x1c8] sm:$0xff] %vm6952, %v6875
  %7011 = vst.msk [vmem:[#allocation4 + $0x1d0] sm:$0xff] %vm6952, %v6877
  %7012 = vst.msk [vmem:[#allocation4 + $0x1d8] sm:$0xff] %vm6952, %v6879
  %7013 = vst.msk [vmem:[#allocation4 + $0x1e0] sm:$0xff] %vm6952, %v6881
  %7014 = vst.msk [vmem:[#allocation4 + $0x1e8] sm:$0xff] %vm6952, %v6883
  %7015 = vst.msk [vmem:[#allocation4 + $0x1f0] sm:$0xff] %vm6952, %v6885
  %7016 = vst.msk [vmem:[#allocation4 + $0x1f8] sm:$0xff] %vm6952, %v6887
  %v7017 = vld [vmem:[%s6631 + $0x1] sm:$0xff]
  %v7018 = vld [vmem:[%s6631 + $0x9] sm:$0xff]
  %v7019 = vld [vmem:[%s6631 + $0x19] sm:$0xff]
  %v7020 = vld [vmem:[%s6631 + $0x21] sm:$0xff]
  %v7021 = vld [vmem:[%s6631 + $0x31] sm:$0xff]
  %v7022 = vld [vmem:[%s6631 + $0x39] sm:$0xff]
  %v7023 = vld [vmem:[%s6631 + $0x49] sm:$0xff]
  %v7024 = vld [vmem:[%s6631 + $0x51] sm:$0xff]
  %v7025 = vld [vmem:[%s6631 + $0x61] sm:$0xff]
  %v7026 = vld [vmem:[%s6631 + $0x69] sm:$0xff]
  %v7027 = vld [vmem:[%s6631 + $0x79] sm:$0xff]
  %v7028 = vld [vmem:[%s6631 + $0x81] sm:$0xff]
  %v7029 = vld [vmem:[%s6631 + $0x91] sm:$0xff]
  %v7030 = vld [vmem:[%s6631 + $0x99] sm:$0xff]
  %v7031 = vld [vmem:[%s6631 + $0xa9] sm:$0xff]
  %v7032 = vld [vmem:[%s6631 + $0xb1] sm:$0xff]
  %v7033 = vld [vmem:[%s6631 + $0xc1] sm:$0xff]
  %v7034 = vld [vmem:[%s6631 + $0xc9] sm:$0xff]
  %v7035 = vld [vmem:[%s6631 + $0xd9] sm:$0xff]
  %v7036 = vld [vmem:[%s6631 + $0xe1] sm:$0xff]
  %v7037 = vld [vmem:[%s6631 + $0xf1] sm:$0xff]
  %v7038 = vld [vmem:[%s6631 + $0xf9] sm:$0xff]
  %v7039 = vld [vmem:[%s6631 + $0x109] sm:$0xff]
  %v7040 = vld [vmem:[%s6631 + $0x111] sm:$0xff]
  %v7041 = vld [vmem:[%s6631 + $0x121] sm:$0xff]
  %v7042 = vld [vmem:[%s6631 + $0x129] sm:$0xff]
  %v7043 = vld [vmem:[%s6631 + $0x139] sm:$0xff]
  %v7044 = vld [vmem:[%s6631 + $0x141] sm:$0xff]
  %v7045 = vld [vmem:[%s6631 + $0x151] sm:$0xff]
  %v7046 = vld [vmem:[%s6631 + $0x159] sm:$0xff]
  %v7047 = vld [vmem:[%s6631 + $0x169] sm:$0xff]
  %v7048 = vld [vmem:[%s6631 + $0x171] sm:$0xff]
  %v7049 = vld [vmem:[%s6631 + $0x1b1] sm:$0xff]
  %v7050 = vld [vmem:[%s6631 + $0x1b9] sm:$0xff]
  %v7051 = vld [vmem:[%s6631 + $0x1c9] sm:$0xff]
  %v7052 = vld [vmem:[%s6631 + $0x1d1] sm:$0xff]
  %v7053 = vld [vmem:[%s6631 + $0x1e1] sm:$0xff]
  %v7054 = vld [vmem:[%s6631 + $0x1e9] sm:$0xff]
  %v7055 = vld [vmem:[%s6631 + $0x1f9] sm:$0xff]
  %v7056 = vld [vmem:[%s6631 + $0x201] sm:$0xff]
  %v7057 = vld [vmem:[%s6631 + $0x211] sm:$0xff]
  %v7058 = vld [vmem:[%s6631 + $0x219] sm:$0xff]
  %v7059 = vld [vmem:[%s6631 + $0x229] sm:$0xff]
  %v7060 = vld [vmem:[%s6631 + $0x231] sm:$0xff]
  %v7061 = vld [vmem:[%s6631 + $0x241] sm:$0xff]
  %v7062 = vld [vmem:[%s6631 + $0x249] sm:$0xff]
  %v7063 = vld [vmem:[%s6631 + $0x259] sm:$0xff]
  %v7064 = vld [vmem:[%s6631 + $0x261] sm:$0xff]
  %v7065 = vld [vmem:[%s6631 + $0x271] sm:$0xff]
  %v7066 = vld [vmem:[%s6631 + $0x279] sm:$0xff]
  %v7067 = vld [vmem:[%s6631 + $0x289] sm:$0xff]
  %v7068 = vld [vmem:[%s6631 + $0x291] sm:$0xff]
  %v7069 = vld [vmem:[%s6631 + $0x2a1] sm:$0xff]
  %v7070 = vld [vmem:[%s6631 + $0x2a9] sm:$0xff]
  %v7071 = vld [vmem:[%s6631 + $0x2b9] sm:$0xff]
  %v7072 = vld [vmem:[%s6631 + $0x2c1] sm:$0xff]
  %v7073 = vld [vmem:[%s6631 + $0x2d1] sm:$0xff]
  %v7074 = vld [vmem:[%s6631 + $0x2d9] sm:$0xff]
  %v7075 = vld [vmem:[%s6631 + $0x2e9] sm:$0xff]
  %v7076 = vld [vmem:[%s6631 + $0x2f1] sm:$0xff]
  %v7077 = vld [vmem:[%s6631 + $0x301] sm:$0xff]
  %v7078 = vld [vmem:[%s6631 + $0x309] sm:$0xff]
  %v7079 = vld [vmem:[%s6631 + $0x319] sm:$0xff]
  %v7080 = vld [vmem:[%s6631 + $0x321] sm:$0xff]
  %7145 = vrot.lane.b32.xlu0 %v7017, 56
  %v7146 = vpop.permute.xlu0 %7145
  %7147 = vrot.lane.b32.xlu0 %v7018, 56
  %v7148 = vpop.permute.xlu0 %7147
  %7149 = vrot.lane.b32.xlu0 %v7019, 56
  %v7150 = vpop.permute.xlu0 %7149
  %7151 = vrot.lane.b32.xlu0 %v7020, 56
  %v7152 = vpop.permute.xlu0 %7151
  %7153 = vrot.lane.b32.xlu0 %v7021, 56
  %v7154 = vpop.permute.xlu0 %7153
  %7155 = vrot.lane.b32.xlu0 %v7022, 56
  %v7156 = vpop.permute.xlu0 %7155
  %7157 = vrot.lane.b32.xlu0 %v7023, 56
  %v7158 = vpop.permute.xlu0 %7157
  %7159 = vrot.lane.b32.xlu0 %v7024, 56
  %v7160 = vpop.permute.xlu0 %7159
  %7161 = vrot.lane.b32.xlu0 %v7025, 56
  %v7162 = vpop.permute.xlu0 %7161
  %7163 = vrot.lane.b32.xlu0 %v7026, 56
  %v7164 = vpop.permute.xlu0 %7163
  %7165 = vrot.lane.b32.xlu0 %v7027, 56
  %v7166 = vpop.permute.xlu0 %7165
  %7167 = vrot.lane.b32.xlu0 %v7028, 56
  %v7168 = vpop.permute.xlu0 %7167
  %7169 = vrot.lane.b32.xlu0 %v7029, 56
  %v7170 = vpop.permute.xlu0 %7169
  %7171 = vrot.lane.b32.xlu0 %v7030, 56
  %v7172 = vpop.permute.xlu0 %7171
  %7173 = vrot.lane.b32.xlu0 %v7031, 56
  %v7174 = vpop.permute.xlu0 %7173
  %7175 = vrot.lane.b32.xlu0 %v7032, 56
  %v7176 = vpop.permute.xlu0 %7175
  %7177 = vrot.lane.b32.xlu0 %v7033, 56
  %v7178 = vpop.permute.xlu0 %7177
  %7179 = vrot.lane.b32.xlu0 %v7034, 56
  %v7180 = vpop.permute.xlu0 %7179
  %7181 = vrot.lane.b32.xlu0 %v7035, 56
  %v7182 = vpop.permute.xlu0 %7181
  %7183 = vrot.lane.b32.xlu0 %v7036, 56
  %v7184 = vpop.permute.xlu0 %7183
  %7185 = vrot.lane.b32.xlu0 %v7037, 56
  %v7186 = vpop.permute.xlu0 %7185
  %7187 = vrot.lane.b32.xlu0 %v7038, 56
  %v7188 = vpop.permute.xlu0 %7187
  %7189 = vrot.lane.b32.xlu0 %v7039, 56
  %v7190 = vpop.permute.xlu0 %7189
  %7191 = vrot.lane.b32.xlu0 %v7040, 56
  %v7192 = vpop.permute.xlu0 %7191
  %7193 = vrot.lane.b32.xlu0 %v7041, 56
  %v7194 = vpop.permute.xlu0 %7193
  %7195 = vrot.lane.b32.xlu0 %v7042, 56
  %v7196 = vpop.permute.xlu0 %7195
  %7197 = vrot.lane.b32.xlu0 %v7043, 56
  %v7198 = vpop.permute.xlu0 %7197
  %7199 = vrot.lane.b32.xlu0 %v7044, 56
  %v7200 = vpop.permute.xlu0 %7199
  %7201 = vrot.lane.b32.xlu0 %v7045, 56
  %v7202 = vpop.permute.xlu0 %7201
  %7203 = vrot.lane.b32.xlu0 %v7046, 56
  %v7204 = vpop.permute.xlu0 %7203
  %7205 = vrot.lane.b32.xlu0 %v7047, 56
  %v7206 = vpop.permute.xlu0 %7205
  %7207 = vrot.lane.b32.xlu0 %v7048, 56
  %v7208 = vpop.permute.xlu0 %7207
  %7209 = vrot.lane.b32.xlu0 %v7049, 56
  %v7210 = vpop.permute.xlu0 %7209
  %7211 = vrot.lane.b32.xlu0 %v7050, 56
  %v7212 = vpop.permute.xlu0 %7211
  %7213 = vrot.lane.b32.xlu0 %v7051, 56
  %v7214 = vpop.permute.xlu0 %7213
  %7215 = vrot.lane.b32.xlu0 %v7052, 56
  %v7216 = vpop.permute.xlu0 %7215
  %7217 = vrot.lane.b32.xlu0 %v7053, 56
  %v7218 = vpop.permute.xlu0 %7217
  %7219 = vrot.lane.b32.xlu0 %v7054, 56
  %v7220 = vpop.permute.xlu0 %7219
  %7221 = vrot.lane.b32.xlu0 %v7055, 56
  %v7222 = vpop.permute.xlu0 %7221
  %7223 = vrot.lane.b32.xlu0 %v7056, 56
  %v7224 = vpop.permute.xlu0 %7223
  %7225 = vrot.lane.b32.xlu0 %v7057, 56
  %v7226 = vpop.permute.xlu0 %7225
  %7227 = vrot.lane.b32.xlu0 %v7058, 56
  %v7228 = vpop.permute.xlu0 %7227
  %7229 = vrot.lane.b32.xlu0 %v7059, 56
  %v7230 = vpop.permute.xlu0 %7229
  %7231 = vrot.lane.b32.xlu0 %v7060, 56
  %v7232 = vpop.permute.xlu0 %7231
  %7233 = vrot.lane.b32.xlu0 %v7061, 56
  %v7234 = vpop.permute.xlu0 %7233
  %7235 = vrot.lane.b32.xlu0 %v7062, 56
  %v7236 = vpop.permute.xlu0 %7235
  %7237 = vrot.lane.b32.xlu0 %v7063, 56
  %v7238 = vpop.permute.xlu0 %7237
  %7239 = vrot.lane.b32.xlu0 %v7064, 56
  %v7240 = vpop.permute.xlu0 %7239
  %7241 = vrot.lane.b32.xlu0 %v7065, 56
  %v7242 = vpop.permute.xlu0 %7241
  %7243 = vrot.lane.b32.xlu0 %v7066, 56
  %v7244 = vpop.permute.xlu0 %7243
  %7245 = vrot.lane.b32.xlu0 %v7067, 56
  %v7246 = vpop.permute.xlu0 %7245
  %7247 = vrot.lane.b32.xlu0 %v7068, 56
  %v7248 = vpop.permute.xlu0 %7247
  %7249 = vrot.lane.b32.xlu0 %v7069, 56
  %v7250 = vpop.permute.xlu0 %7249
  %7251 = vrot.lane.b32.xlu0 %v7070, 56
  %v7252 = vpop.permute.xlu0 %7251
  %7253 = vrot.lane.b32.xlu0 %v7071, 56
  %v7254 = vpop.permute.xlu0 %7253
  %7255 = vrot.lane.b32.xlu0 %v7072, 56
  %v7256 = vpop.permute.xlu0 %7255
  %7257 = vrot.lane.b32.xlu0 %v7073, 56
  %v7258 = vpop.permute.xlu0 %7257
  %7259 = vrot.lane.b32.xlu0 %v7074, 56
  %v7260 = vpop.permute.xlu0 %7259
  %7261 = vrot.lane.b32.xlu0 %v7075, 56
  %v7262 = vpop.permute.xlu0 %7261
  %7263 = vrot.lane.b32.xlu0 %v7076, 56
  %v7264 = vpop.permute.xlu0 %7263
  %7265 = vrot.lane.b32.xlu0 %v7077, 56
  %v7266 = vpop.permute.xlu0 %7265
  %7267 = vrot.lane.b32.xlu0 %v7078, 56
  %v7268 = vpop.permute.xlu0 %7267
  %7269 = vrot.lane.b32.xlu0 %v7079, 56
  %v7270 = vpop.permute.xlu0 %7269
  %7271 = vrot.lane.b32.xlu0 %v7080, 56
  %v7272 = vpop.permute.xlu0 %7271
  %vm7337 = vcmask 523712
  %7338 = vst.msk [vmem:[#allocation4] sm:$0xff] %vm7337, %v7146
  %7339 = vst.msk [vmem:[#allocation4 + $0x8] sm:$0xff] %vm7337, %v7148
  %7340 = vst.msk [vmem:[#allocation4 + $0x10] sm:$0xff] %vm7337, %v7150
  %7341 = vst.msk [vmem:[#allocation4 + $0x18] sm:$0xff] %vm7337, %v7152
  %7342 = vst.msk [vmem:[#allocation4 + $0x20] sm:$0xff] %vm7337, %v7154
  %7343 = vst.msk [vmem:[#allocation4 + $0x28] sm:$0xff] %vm7337, %v7156
  %7344 = vst.msk [vmem:[#allocation4 + $0x30] sm:$0xff] %vm7337, %v7158
  %7345 = vst.msk [vmem:[#allocation4 + $0x38] sm:$0xff] %vm7337, %v7160
  %7346 = vst.msk [vmem:[#allocation4 + $0x40] sm:$0xff] %vm7337, %v7162
  %7347 = vst.msk [vmem:[#allocation4 + $0x48] sm:$0xff] %vm7337, %v7164
  %7348 = vst.msk [vmem:[#allocation4 + $0x50] sm:$0xff] %vm7337, %v7166
  %7349 = vst.msk [vmem:[#allocation4 + $0x58] sm:$0xff] %vm7337, %v7168
  %7350 = vst.msk [vmem:[#allocation4 + $0x60] sm:$0xff] %vm7337, %v7170
  %7351 = vst.msk [vmem:[#allocation4 + $0x68] sm:$0xff] %vm7337, %v7172
  %7352 = vst.msk [vmem:[#allocation4 + $0x70] sm:$0xff] %vm7337, %v7174
  %7353 = vst.msk [vmem:[#allocation4 + $0x78] sm:$0xff] %vm7337, %v7176
  %7354 = vst.msk [vmem:[#allocation4 + $0x80] sm:$0xff] %vm7337, %v7178
  %7355 = vst.msk [vmem:[#allocation4 + $0x88] sm:$0xff] %vm7337, %v7180
  %7356 = vst.msk [vmem:[#allocation4 + $0x90] sm:$0xff] %vm7337, %v7182
  %7357 = vst.msk [vmem:[#allocation4 + $0x98] sm:$0xff] %vm7337, %v7184
  %7358 = vst.msk [vmem:[#allocation4 + $0xa0] sm:$0xff] %vm7337, %v7186
  %7359 = vst.msk [vmem:[#allocation4 + $0xa8] sm:$0xff] %vm7337, %v7188
  %7360 = vst.msk [vmem:[#allocation4 + $0xb0] sm:$0xff] %vm7337, %v7190
  %7361 = vst.msk [vmem:[#allocation4 + $0xb8] sm:$0xff] %vm7337, %v7192
  %7362 = vst.msk [vmem:[#allocation4 + $0xc0] sm:$0xff] %vm7337, %v7194
  %7363 = vst.msk [vmem:[#allocation4 + $0xc8] sm:$0xff] %vm7337, %v7196
  %7364 = vst.msk [vmem:[#allocation4 + $0xd0] sm:$0xff] %vm7337, %v7198
  %7365 = vst.msk [vmem:[#allocation4 + $0xd8] sm:$0xff] %vm7337, %v7200
  %7366 = vst.msk [vmem:[#allocation4 + $0xe0] sm:$0xff] %vm7337, %v7202
  %7367 = vst.msk [vmem:[#allocation4 + $0xe8] sm:$0xff] %vm7337, %v7204
  %7368 = vst.msk [vmem:[#allocation4 + $0xf0] sm:$0xff] %vm7337, %v7206
  %7369 = vst.msk [vmem:[#allocation4 + $0xf8] sm:$0xff] %vm7337, %v7208
  %7370 = vst.msk [vmem:[#allocation4 + $0x100] sm:$0xff] %vm7337, %v7210
  %7371 = vst.msk [vmem:[#allocation4 + $0x108] sm:$0xff] %vm7337, %v7212
  %7372 = vst.msk [vmem:[#allocation4 + $0x110] sm:$0xff] %vm7337, %v7214
  %7373 = vst.msk [vmem:[#allocation4 + $0x118] sm:$0xff] %vm7337, %v7216
  %7374 = vst.msk [vmem:[#allocation4 + $0x120] sm:$0xff] %vm7337, %v7218
  %7375 = vst.msk [vmem:[#allocation4 + $0x128] sm:$0xff] %vm7337, %v7220
  %7376 = vst.msk [vmem:[#allocation4 + $0x130] sm:$0xff] %vm7337, %v7222
  %7377 = vst.msk [vmem:[#allocation4 + $0x138] sm:$0xff] %vm7337, %v7224
  %7378 = vst.msk [vmem:[#allocation4 + $0x140] sm:$0xff] %vm7337, %v7226
  %7379 = vst.msk [vmem:[#allocation4 + $0x148] sm:$0xff] %vm7337, %v7228
  %7380 = vst.msk [vmem:[#allocation4 + $0x150] sm:$0xff] %vm7337, %v7230
  %7381 = vst.msk [vmem:[#allocation4 + $0x158] sm:$0xff] %vm7337, %v7232
  %7382 = vst.msk [vmem:[#allocation4 + $0x160] sm:$0xff] %vm7337, %v7234
  %7383 = vst.msk [vmem:[#allocation4 + $0x168] sm:$0xff] %vm7337, %v7236
  %7384 = vst.msk [vmem:[#allocation4 + $0x170] sm:$0xff] %vm7337, %v7238
  %7385 = vst.msk [vmem:[#allocation4 + $0x178] sm:$0xff] %vm7337, %v7240
  %7386 = vst.msk [vmem:[#allocation4 + $0x180] sm:$0xff] %vm7337, %v7242
  %7387 = vst.msk [vmem:[#allocation4 + $0x188] sm:$0xff] %vm7337, %v7244
  %7388 = vst.msk [vmem:[#allocation4 + $0x190] sm:$0xff] %vm7337, %v7246
  %7389 = vst.msk [vmem:[#allocation4 + $0x198] sm:$0xff] %vm7337, %v7248
  %7390 = vst.msk [vmem:[#allocation4 + $0x1a0] sm:$0xff] %vm7337, %v7250
  %7391 = vst.msk [vmem:[#allocation4 + $0x1a8] sm:$0xff] %vm7337, %v7252
  %7392 = vst.msk [vmem:[#allocation4 + $0x1b0] sm:$0xff] %vm7337, %v7254
  %7393 = vst.msk [vmem:[#allocation4 + $0x1b8] sm:$0xff] %vm7337, %v7256
  %7394 = vst.msk [vmem:[#allocation4 + $0x1c0] sm:$0xff] %vm7337, %v7258
  %7395 = vst.msk [vmem:[#allocation4 + $0x1c8] sm:$0xff] %vm7337, %v7260
  %7396 = vst.msk [vmem:[#allocation4 + $0x1d0] sm:$0xff] %vm7337, %v7262
  %7397 = vst.msk [vmem:[#allocation4 + $0x1d8] sm:$0xff] %vm7337, %v7264
  %7398 = vst.msk [vmem:[#allocation4 + $0x1e0] sm:$0xff] %vm7337, %v7266
  %7399 = vst.msk [vmem:[#allocation4 + $0x1e8] sm:$0xff] %vm7337, %v7268
  %7400 = vst.msk [vmem:[#allocation4 + $0x1f0] sm:$0xff] %vm7337, %v7270
  %7401 = vst.msk [vmem:[#allocation4 + $0x1f8] sm:$0xff] %vm7337, %v7272
  %v7402 = vld [vmem:[%s6631 + $0x2] sm:$0xff]
  %v7403 = vld [vmem:[%s6631 + $0xa] sm:$0xff]
  %v7404 = vld [vmem:[%s6631 + $0x1a] sm:$0xff]
  %v7405 = vld [vmem:[%s6631 + $0x22] sm:$0xff]
  %v7406 = vld [vmem:[%s6631 + $0x32] sm:$0xff]
  %v7407 = vld [vmem:[%s6631 + $0x3a] sm:$0xff]
  %v7408 = vld [vmem:[%s6631 + $0x4a] sm:$0xff]
  %v7409 = vld [vmem:[%s6631 + $0x52] sm:$0xff]
  %v7410 = vld [vmem:[%s6631 + $0x62] sm:$0xff]
  %v7411 = vld [vmem:[%s6631 + $0x6a] sm:$0xff]
  %v7412 = vld [vmem:[%s6631 + $0x7a] sm:$0xff]
  %v7413 = vld [vmem:[%s6631 + $0x82] sm:$0xff]
  %v7414 = vld [vmem:[%s6631 + $0x92] sm:$0xff]
  %v7415 = vld [vmem:[%s6631 + $0x9a] sm:$0xff]
  %v7416 = vld [vmem:[%s6631 + $0xaa] sm:$0xff]
  %v7417 = vld [vmem:[%s6631 + $0xb2] sm:$0xff]
  %v7418 = vld [vmem:[%s6631 + $0xc2] sm:$0xff]
  %v7419 = vld [vmem:[%s6631 + $0xca] sm:$0xff]
  %v7420 = vld [vmem:[%s6631 + $0xda] sm:$0xff]
  %v7421 = vld [vmem:[%s6631 + $0xe2] sm:$0xff]
  %v7422 = vld [vmem:[%s6631 + $0xf2] sm:$0xff]
  %v7423 = vld [vmem:[%s6631 + $0xfa] sm:$0xff]
  %v7424 = vld [vmem:[%s6631 + $0x10a] sm:$0xff]
  %v7425 = vld [vmem:[%s6631 + $0x112] sm:$0xff]
  %v7426 = vld [vmem:[%s6631 + $0x122] sm:$0xff]
  %v7427 = vld [vmem:[%s6631 + $0x12a] sm:$0xff]
  %v7428 = vld [vmem:[%s6631 + $0x13a] sm:$0xff]
  %v7429 = vld [vmem:[%s6631 + $0x142] sm:$0xff]
  %v7430 = vld [vmem:[%s6631 + $0x152] sm:$0xff]
  %v7431 = vld [vmem:[%s6631 + $0x15a] sm:$0xff]
  %v7432 = vld [vmem:[%s6631 + $0x16a] sm:$0xff]
  %v7433 = vld [vmem:[%s6631 + $0x172] sm:$0xff]
  %v7434 = vld [vmem:[%s6631 + $0x1b2] sm:$0xff]
  %v7435 = vld [vmem:[%s6631 + $0x1ba] sm:$0xff]
  %v7436 = vld [vmem:[%s6631 + $0x1ca] sm:$0xff]
  %v7437 = vld [vmem:[%s6631 + $0x1d2] sm:$0xff]
  %v7438 = vld [vmem:[%s6631 + $0x1e2] sm:$0xff]
  %v7439 = vld [vmem:[%s6631 + $0x1ea] sm:$0xff]
  %v7440 = vld [vmem:[%s6631 + $0x1fa] sm:$0xff]
  %v7441 = vld [vmem:[%s6631 + $0x202] sm:$0xff]
  %v7442 = vld [vmem:[%s6631 + $0x212] sm:$0xff]
  %v7443 = vld [vmem:[%s6631 + $0x21a] sm:$0xff]
  %v7444 = vld [vmem:[%s6631 + $0x22a] sm:$0xff]
  %v7445 = vld [vmem:[%s6631 + $0x232] sm:$0xff]
  %v7446 = vld [vmem:[%s6631 + $0x242] sm:$0xff]
  %v7447 = vld [vmem:[%s6631 + $0x24a] sm:$0xff]
  %v7448 = vld [vmem:[%s6631 + $0x25a] sm:$0xff]
  %v7449 = vld [vmem:[%s6631 + $0x262] sm:$0xff]
  %v7450 = vld [vmem:[%s6631 + $0x272] sm:$0xff]
  %v7451 = vld [vmem:[%s6631 + $0x27a] sm:$0xff]
  %v7452 = vld [vmem:[%s6631 + $0x28a] sm:$0xff]
  %v7453 = vld [vmem:[%s6631 + $0x292] sm:$0xff]
  %v7454 = vld [vmem:[%s6631 + $0x2a2] sm:$0xff]
  %v7455 = vld [vmem:[%s6631 + $0x2aa] sm:$0xff]
  %v7456 = vld [vmem:[%s6631 + $0x2ba] sm:$0xff]
  %v7457 = vld [vmem:[%s6631 + $0x2c2] sm:$0xff]
  %v7458 = vld [vmem:[%s6631 + $0x2d2] sm:$0xff]
  %v7459 = vld [vmem:[%s6631 + $0x2da] sm:$0xff]
  %v7460 = vld [vmem:[%s6631 + $0x2ea] sm:$0xff]
  %v7461 = vld [vmem:[%s6631 + $0x2f2] sm:$0xff]
  %v7462 = vld [vmem:[%s6631 + $0x302] sm:$0xff]
  %v7463 = vld [vmem:[%s6631 + $0x30a] sm:$0xff]
  %v7464 = vld [vmem:[%s6631 + $0x31a] sm:$0xff]
  %v7465 = vld [vmem:[%s6631 + $0x322] sm:$0xff]
  %7530 = vrot.lane.b32.xlu0 %v7402, 64
  %v7531 = vpop.permute.xlu0 %7530
  %7532 = vrot.lane.b32.xlu0 %v7403, 64
  %v7533 = vpop.permute.xlu0 %7532
  %7534 = vrot.lane.b32.xlu0 %v7404, 64
  %v7535 = vpop.permute.xlu0 %7534
  %7536 = vrot.lane.b32.xlu0 %v7405, 64
  %v7537 = vpop.permute.xlu0 %7536
  %7538 = vrot.lane.b32.xlu0 %v7406, 64
  %v7539 = vpop.permute.xlu0 %7538
  %7540 = vrot.lane.b32.xlu0 %v7407, 64
  %v7541 = vpop.permute.xlu0 %7540
  %7542 = vrot.lane.b32.xlu0 %v7408, 64
  %v7543 = vpop.permute.xlu0 %7542
  %7544 = vrot.lane.b32.xlu0 %v7409, 64
  %v7545 = vpop.permute.xlu0 %7544
  %7546 = vrot.lane.b32.xlu0 %v7410, 64
  %v7547 = vpop.permute.xlu0 %7546
  %7548 = vrot.lane.b32.xlu0 %v7411, 64
  %v7549 = vpop.permute.xlu0 %7548
  %7550 = vrot.lane.b32.xlu0 %v7412, 64
  %v7551 = vpop.permute.xlu0 %7550
  %7552 = vrot.lane.b32.xlu0 %v7413, 64
  %v7553 = vpop.permute.xlu0 %7552
  %7554 = vrot.lane.b32.xlu0 %v7414, 64
  %v7555 = vpop.permute.xlu0 %7554
  %7556 = vrot.lane.b32.xlu0 %v7415, 64
  %v7557 = vpop.permute.xlu0 %7556
  %7558 = vrot.lane.b32.xlu0 %v7416, 64
  %v7559 = vpop.permute.xlu0 %7558
  %7560 = vrot.lane.b32.xlu0 %v7417, 64
  %v7561 = vpop.permute.xlu0 %7560
  %7562 = vrot.lane.b32.xlu0 %v7418, 64
  %v7563 = vpop.permute.xlu0 %7562
  %7564 = vrot.lane.b32.xlu0 %v7419, 64
  %v7565 = vpop.permute.xlu0 %7564
  %7566 = vrot.lane.b32.xlu0 %v7420, 64
  %v7567 = vpop.permute.xlu0 %7566
  %7568 = vrot.lane.b32.xlu0 %v7421, 64
  %v7569 = vpop.permute.xlu0 %7568
  %7570 = vrot.lane.b32.xlu0 %v7422, 64
  %v7571 = vpop.permute.xlu0 %7570
  %7572 = vrot.lane.b32.xlu0 %v7423, 64
  %v7573 = vpop.permute.xlu0 %7572
  %7574 = vrot.lane.b32.xlu0 %v7424, 64
  %v7575 = vpop.permute.xlu0 %7574
  %7576 = vrot.lane.b32.xlu0 %v7425, 64
  %v7577 = vpop.permute.xlu0 %7576
  %7578 = vrot.lane.b32.xlu0 %v7426, 64
  %v7579 = vpop.permute.xlu0 %7578
  %7580 = vrot.lane.b32.xlu0 %v7427, 64
  %v7581 = vpop.permute.xlu0 %7580
  %7582 = vrot.lane.b32.xlu0 %v7428, 64
  %v7583 = vpop.permute.xlu0 %7582
  %7584 = vrot.lane.b32.xlu0 %v7429, 64
  %v7585 = vpop.permute.xlu0 %7584
  %7586 = vrot.lane.b32.xlu0 %v7430, 64
  %v7587 = vpop.permute.xlu0 %7586
  %7588 = vrot.lane.b32.xlu0 %v7431, 64
  %v7589 = vpop.permute.xlu0 %7588
  %7590 = vrot.lane.b32.xlu0 %v7432, 64
  %v7591 = vpop.permute.xlu0 %7590
  %7592 = vrot.lane.b32.xlu0 %v7433, 64
  %v7593 = vpop.permute.xlu0 %7592
  %7594 = vrot.lane.b32.xlu0 %v7434, 64
  %v7595 = vpop.permute.xlu0 %7594
  %7596 = vrot.lane.b32.xlu0 %v7435, 64
  %v7597 = vpop.permute.xlu0 %7596
  %7598 = vrot.lane.b32.xlu0 %v7436, 64
  %v7599 = vpop.permute.xlu0 %7598
  %7600 = vrot.lane.b32.xlu0 %v7437, 64
  %v7601 = vpop.permute.xlu0 %7600
  %7602 = vrot.lane.b32.xlu0 %v7438, 64
  %v7603 = vpop.permute.xlu0 %7602
  %7604 = vrot.lane.b32.xlu0 %v7439, 64
  %v7605 = vpop.permute.xlu0 %7604
  %7606 = vrot.lane.b32.xlu0 %v7440, 64
  %v7607 = vpop.permute.xlu0 %7606
  %7608 = vrot.lane.b32.xlu0 %v7441, 64
  %v7609 = vpop.permute.xlu0 %7608
  %7610 = vrot.lane.b32.xlu0 %v7442, 64
  %v7611 = vpop.permute.xlu0 %7610
  %7612 = vrot.lane.b32.xlu0 %v7443, 64
  %v7613 = vpop.permute.xlu0 %7612
  %7614 = vrot.lane.b32.xlu0 %v7444, 64
  %v7615 = vpop.permute.xlu0 %7614
  %7616 = vrot.lane.b32.xlu0 %v7445, 64
  %v7617 = vpop.permute.xlu0 %7616
  %7618 = vrot.lane.b32.xlu0 %v7446, 64
  %v7619 = vpop.permute.xlu0 %7618
  %7620 = vrot.lane.b32.xlu0 %v7447, 64
  %v7621 = vpop.permute.xlu0 %7620
  %7622 = vrot.lane.b32.xlu0 %v7448, 64
  %v7623 = vpop.permute.xlu0 %7622
  %7624 = vrot.lane.b32.xlu0 %v7449, 64
  %v7625 = vpop.permute.xlu0 %7624
  %7626 = vrot.lane.b32.xlu0 %v7450, 64
  %v7627 = vpop.permute.xlu0 %7626
  %7628 = vrot.lane.b32.xlu0 %v7451, 64
  %v7629 = vpop.permute.xlu0 %7628
  %7630 = vrot.lane.b32.xlu0 %v7452, 64
  %v7631 = vpop.permute.xlu0 %7630
  %7632 = vrot.lane.b32.xlu0 %v7453, 64
  %v7633 = vpop.permute.xlu0 %7632
  %7634 = vrot.lane.b32.xlu0 %v7454, 64
  %v7635 = vpop.permute.xlu0 %7634
  %7636 = vrot.lane.b32.xlu0 %v7455, 64
  %v7637 = vpop.permute.xlu0 %7636
  %7638 = vrot.lane.b32.xlu0 %v7456, 64
  %v7639 = vpop.permute.xlu0 %7638
  %7640 = vrot.lane.b32.xlu0 %v7457, 64
  %v7641 = vpop.permute.xlu0 %7640
  %7642 = vrot.lane.b32.xlu0 %v7458, 64
  %v7643 = vpop.permute.xlu0 %7642
  %7644 = vrot.lane.b32.xlu0 %v7459, 64
  %v7645 = vpop.permute.xlu0 %7644
  %7646 = vrot.lane.b32.xlu0 %v7460, 64
  %v7647 = vpop.permute.xlu0 %7646
  %7648 = vrot.lane.b32.xlu0 %v7461, 64
  %v7649 = vpop.permute.xlu0 %7648
  %7650 = vrot.lane.b32.xlu0 %v7462, 64
  %v7651 = vpop.permute.xlu0 %7650
  %7652 = vrot.lane.b32.xlu0 %v7463, 64
  %v7653 = vpop.permute.xlu0 %7652
  %7654 = vrot.lane.b32.xlu0 %v7464, 64
  %v7655 = vpop.permute.xlu0 %7654
  %7656 = vrot.lane.b32.xlu0 %v7465, 64
  %v7657 = vpop.permute.xlu0 %7656
  %vm7722 = vcmask 589312
  %7723 = vst.msk [vmem:[#allocation4] sm:$0xff] %vm7722, %v7531
  %7724 = vst.msk [vmem:[#allocation4 + $0x8] sm:$0xff] %vm7722, %v7533
  %7725 = vst.msk [vmem:[#allocation4 + $0x10] sm:$0xff] %vm7722, %v7535
  %7726 = vst.msk [vmem:[#allocation4 + $0x18] sm:$0xff] %vm7722, %v7537
  %7727 = vst.msk [vmem:[#allocation4 + $0x20] sm:$0xff] %vm7722, %v7539
  %7728 = vst.msk [vmem:[#allocation4 + $0x28] sm:$0xff] %vm7722, %v7541
  %7729 = vst.msk [vmem:[#allocation4 + $0x30] sm:$0xff] %vm7722, %v7543
  %7730 = vst.msk [vmem:[#allocation4 + $0x38] sm:$0xff] %vm7722, %v7545
  %7731 = vst.msk [vmem:[#allocation4 + $0x40] sm:$0xff] %vm7722, %v7547
  %7732 = vst.msk [vmem:[#allocation4 + $0x48] sm:$0xff] %vm7722, %v7549
  %7733 = vst.msk [vmem:[#allocation4 + $0x50] sm:$0xff] %vm7722, %v7551
  %7734 = vst.msk [vmem:[#allocation4 + $0x58] sm:$0xff] %vm7722, %v7553
  %7735 = vst.msk [vmem:[#allocation4 + $0x60] sm:$0xff] %vm7722, %v7555
  %7736 = vst.msk [vmem:[#allocation4 + $0x68] sm:$0xff] %vm7722, %v7557
  %7737 = vst.msk [vmem:[#allocation4 + $0x70] sm:$0xff] %vm7722, %v7559
  %7738 = vst.msk [vmem:[#allocation4 + $0x78] sm:$0xff] %vm7722, %v7561
  %7739 = vst.msk [vmem:[#allocation4 + $0x80] sm:$0xff] %vm7722, %v7563
  %7740 = vst.msk [vmem:[#allocation4 + $0x88] sm:$0xff] %vm7722, %v7565
  %7741 = vst.msk [vmem:[#allocation4 + $0x90] sm:$0xff] %vm7722, %v7567
  %7742 = vst.msk [vmem:[#allocation4 + $0x98] sm:$0xff] %vm7722, %v7569
  %7743 = vst.msk [vmem:[#allocation4 + $0xa0] sm:$0xff] %vm7722, %v7571
  %7744 = vst.msk [vmem:[#allocation4 + $0xa8] sm:$0xff] %vm7722, %v7573
  %7745 = vst.msk [vmem:[#allocation4 + $0xb0] sm:$0xff] %vm7722, %v7575
  %7746 = vst.msk [vmem:[#allocation4 + $0xb8] sm:$0xff] %vm7722, %v7577
  %7747 = vst.msk [vmem:[#allocation4 + $0xc0] sm:$0xff] %vm7722, %v7579
  %7748 = vst.msk [vmem:[#allocation4 + $0xc8] sm:$0xff] %vm7722, %v7581
  %7749 = vst.msk [vmem:[#allocation4 + $0xd0] sm:$0xff] %vm7722, %v7583
  %7750 = vst.msk [vmem:[#allocation4 + $0xd8] sm:$0xff] %vm7722, %v7585
  %7751 = vst.msk [vmem:[#allocation4 + $0xe0] sm:$0xff] %vm7722, %v7587
  %7752 = vst.msk [vmem:[#allocation4 + $0xe8] sm:$0xff] %vm7722, %v7589
  %7753 = vst.msk [vmem:[#allocation4 + $0xf0] sm:$0xff] %vm7722, %v7591
  %7754 = vst.msk [vmem:[#allocation4 + $0xf8] sm:$0xff] %vm7722, %v7593
  %7755 = vst.msk [vmem:[#allocation4 + $0x100] sm:$0xff] %vm7722, %v7595
  %7756 = vst.msk [vmem:[#allocation4 + $0x108] sm:$0xff] %vm7722, %v7597
  %7757 = vst.msk [vmem:[#allocation4 + $0x110] sm:$0xff] %vm7722, %v7599
  %7758 = vst.msk [vmem:[#allocation4 + $0x118] sm:$0xff] %vm7722, %v7601
  %7759 = vst.msk [vmem:[#allocation4 + $0x120] sm:$0xff] %vm7722, %v7603
  %7760 = vst.msk [vmem:[#allocation4 + $0x128] sm:$0xff] %vm7722, %v7605
  %7761 = vst.msk [vmem:[#allocation4 + $0x130] sm:$0xff] %vm7722, %v7607
  %7762 = vst.msk [vmem:[#allocation4 + $0x138] sm:$0xff] %vm7722, %v7609
  %7763 = vst.msk [vmem:[#allocation4 + $0x140] sm:$0xff] %vm7722, %v7611
  %7764 = vst.msk [vmem:[#allocation4 + $0x148] sm:$0xff] %vm7722, %v7613
  %7765 = vst.msk [vmem:[#allocation4 + $0x150] sm:$0xff] %vm7722, %v7615
  %7766 = vst.msk [vmem:[#allocation4 + $0x158] sm:$0xff] %vm7722, %v7617
  %7767 = vst.msk [vmem:[#allocation4 + $0x160] sm:$0xff] %vm7722, %v7619
  %7768 = vst.msk [vmem:[#allocation4 + $0x168] sm:$0xff] %vm7722, %v7621
  %7769 = vst.msk [vmem:[#allocation4 + $0x170] sm:$0xff] %vm7722, %v7623
  %7770 = vst.msk [vmem:[#allocation4 + $0x178] sm:$0xff] %vm7722, %v7625
  %7771 = vst.msk [vmem:[#allocation4 + $0x180] sm:$0xff] %vm7722, %v7627
  %7772 = vst.msk [vmem:[#allocation4 + $0x188] sm:$0xff] %vm7722, %v7629
  %7773 = vst.msk [vmem:[#allocation4 + $0x190] sm:$0xff] %vm7722, %v7631
  %7774 = vst.msk [vmem:[#allocation4 + $0x198] sm:$0xff] %vm7722, %v7633
  %7775 = vst.msk [vmem:[#allocation4 + $0x1a0] sm:$0xff] %vm7722, %v7635
  %7776 = vst.msk [vmem:[#allocation4 + $0x1a8] sm:$0xff] %vm7722, %v7637
  %7777 = vst.msk [vmem:[#allocation4 + $0x1b0] sm:$0xff] %vm7722, %v7639
  %7778 = vst.msk [vmem:[#allocation4 + $0x1b8] sm:$0xff] %vm7722, %v7641
  %7779 = vst.msk [vmem:[#allocation4 + $0x1c0] sm:$0xff] %vm7722, %v7643
  %7780 = vst.msk [vmem:[#allocation4 + $0x1c8] sm:$0xff] %vm7722, %v7645
  %7781 = vst.msk [vmem:[#allocation4 + $0x1d0] sm:$0xff] %vm7722, %v7647
  %7782 = vst.msk [vmem:[#allocation4 + $0x1d8] sm:$0xff] %vm7722, %v7649
  %7783 = vst.msk [vmem:[#allocation4 + $0x1e0] sm:$0xff] %vm7722, %v7651
  %7784 = vst.msk [vmem:[#allocation4 + $0x1e8] sm:$0xff] %vm7722, %v7653
  %7785 = vst.msk [vmem:[#allocation4 + $0x1f0] sm:$0xff] %vm7722, %v7655
  %7786 = vst.msk [vmem:[#allocation4 + $0x1f8] sm:$0xff] %vm7722, %v7657
  %v7787 = vld [vmem:[#allocation4] sm:$0xff]
  %v7788 = vld [vmem:[#allocation4 + $0x8] sm:$0xff]
  %v7789 = vld [vmem:[#allocation4 + $0x10] sm:$0xff]
  %v7790 = vld [vmem:[#allocation4 + $0x18] sm:$0xff]
  %v7791 = vld [vmem:[#allocation4 + $0x20] sm:$0xff]
  %v7792 = vld [vmem:[#allocation4 + $0x28] sm:$0xff]
  %v7793 = vld [vmem:[#allocation4 + $0x30] sm:$0xff]
  %v7794 = vld [vmem:[#allocation4 + $0x38] sm:$0xff]
  %v7795 = vld [vmem:[#allocation4 + $0x40] sm:$0xff]
  %v7796 = vld [vmem:[#allocation4 + $0x48] sm:$0xff]
  %v7797 = vld [vmem:[#allocation4 + $0x50] sm:$0xff]
  %v7798 = vld [vmem:[#allocation4 + $0x58] sm:$0xff]
  %v7799 = vld [vmem:[#allocation4 + $0x60] sm:$0xff]
  %v7800 = vld [vmem:[#allocation4 + $0x68] sm:$0xff]
  %v7801 = vld [vmem:[#allocation4 + $0x70] sm:$0xff]
  %v7802 = vld [vmem:[#allocation4 + $0x78] sm:$0xff]
  %v7803 = vld [vmem:[#allocation4 + $0x80] sm:$0xff]
  %v7804 = vld [vmem:[#allocation4 + $0x88] sm:$0xff]
  %v7805 = vld [vmem:[#allocation4 + $0x90] sm:$0xff]
  %v7806 = vld [vmem:[#allocation4 + $0x98] sm:$0xff]
  %v7807 = vld [vmem:[#allocation4 + $0xa0] sm:$0xff]
  %v7808 = vld [vmem:[#allocation4 + $0xa8] sm:$0xff]
  %v7809 = vld [vmem:[#allocation4 + $0xb0] sm:$0xff]
  %v7810 = vld [vmem:[#allocation4 + $0xb8] sm:$0xff]
  %v7811 = vld [vmem:[#allocation4 + $0xc0] sm:$0xff]
  %v7812 = vld [vmem:[#allocation4 + $0xc8] sm:$0xff]
  %v7813 = vld [vmem:[#allocation4 + $0xd0] sm:$0xff]
  %v7814 = vld [vmem:[#allocation4 + $0xd8] sm:$0xff]
  %v7815 = vld [vmem:[#allocation4 + $0xe0] sm:$0xff]
  %v7816 = vld [vmem:[#allocation4 + $0xe8] sm:$0xff]
  %v7817 = vld [vmem:[#allocation4 + $0xf0] sm:$0xff]
  %v7818 = vld [vmem:[#allocation4 + $0xf8] sm:$0xff]
  %v7819 = vld [vmem:[#allocation4 + $0x100] sm:$0xff]
  %v7820 = vld [vmem:[#allocation4 + $0x108] sm:$0xff]
  %v7821 = vld [vmem:[#allocation4 + $0x110] sm:$0xff]
  %v7822 = vld [vmem:[#allocation4 + $0x118] sm:$0xff]
  %v7823 = vld [vmem:[#allocation4 + $0x120] sm:$0xff]
  %v7824 = vld [vmem:[#allocation4 + $0x128] sm:$0xff]
  %v7825 = vld [vmem:[#allocation4 + $0x130] sm:$0xff]
  %v7826 = vld [vmem:[#allocation4 + $0x138] sm:$0xff]
  %v7827 = vld [vmem:[#allocation4 + $0x140] sm:$0xff]
  %v7828 = vld [vmem:[#allocation4 + $0x148] sm:$0xff]
  %v7829 = vld [vmem:[#allocation4 + $0x150] sm:$0xff]
  %v7830 = vld [vmem:[#allocation4 + $0x158] sm:$0xff]
  %v7831 = vld [vmem:[#allocation4 + $0x160] sm:$0xff]
  %v7832 = vld [vmem:[#allocation4 + $0x168] sm:$0xff]
  %v7833 = vld [vmem:[#allocation4 + $0x170] sm:$0xff]
  %v7834 = vld [vmem:[#allocation4 + $0x178] sm:$0xff]
  %v7835 = vld [vmem:[#allocation4 + $0x180] sm:$0xff]
  %v7836 = vld [vmem:[#allocation4 + $0x188] sm:$0xff]
  %v7837 = vld [vmem:[#allocation4 + $0x190] sm:$0xff]
  %v7838 = vld [vmem:[#allocation4 + $0x198] sm:$0xff]
  %v7839 = vld [vmem:[#allocation4 + $0x1a0] sm:$0xff]
  %v7840 = vld [vmem:[#allocation4 + $0x1a8] sm:$0xff]
  %v7841 = vld [vmem:[#allocation4 + $0x1b0] sm:$0xff]
  %v7842 = vld [vmem:[#allocation4 + $0x1b8] sm:$0xff]
  %v7843 = vld [vmem:[#allocation4 + $0x1c0] sm:$0xff]
  %v7844 = vld [vmem:[#allocation4 + $0x1c8] sm:$0xff]
  %v7845 = vld [vmem:[#allocation4 + $0x1d0] sm:$0xff]
  %v7846 = vld [vmem:[#allocation4 + $0x1d8] sm:$0xff]
  %v7847 = vld [vmem:[#allocation4 + $0x1e0] sm:$0xff]
  %v7848 = vld [vmem:[#allocation4 + $0x1e8] sm:$0xff]
  %v7849 = vld [vmem:[#allocation4 + $0x1f0] sm:$0xff]
  %v7850 = vld [vmem:[#allocation4 + $0x1f8] sm:$0xff]
  %v7851 = vld [vmem:[%s4] sm:$0xff]
  %v7852 = vld [vmem:[%s4 + $0x8] sm:$0xff]
  %v7853 = vld [vmem:[%s4 + $0x10] sm:$0xff]
  %v7854 = vld [vmem:[%s4 + $0x18] sm:$0xff]
  %v7855 = vld [vmem:[%s4 + $0x20] sm:$0xff]
  %v7856 = vld [vmem:[%s4 + $0x28] sm:$0xff]
  %v7857 = vld [vmem:[%s4 + $0x30] sm:$0xff]
  %v7858 = vld [vmem:[%s4 + $0x38] sm:$0xff]
  %v7859 = vld [vmem:[%s4 + $0x40] sm:$0xff]
  %vm7860 = vcmask 588800
  %v7862 = vsel %vm7860, %v7787, 0
  %v7865 = vsel %vm7860, %v7788, 0
  %v7868 = vsel %vm7860, %v7789, 0
  %v7871 = vsel %vm7860, %v7790, 0
  %v7874 = vsel %vm7860, %v7791, 0
  %v7877 = vsel %vm7860, %v7792, 0
  %v7880 = vsel %vm7860, %v7793, 0
  %v7883 = vsel %vm7860, %v7794, 0
  %v7886 = vsel %vm7860, %v7795, 0
  %v7889 = vsel %vm7860, %v7796, 0
  %v7892 = vsel %vm7860, %v7797, 0
  %v7895 = vsel %vm7860, %v7798, 0
  %v7898 = vsel %vm7860, %v7799, 0
  %v7901 = vsel %vm7860, %v7800, 0
  %v7904 = vsel %vm7860, %v7801, 0
  %v7907 = vsel %vm7860, %v7802, 0
  %v7910 = vsel %vm7860, %v7803, 0
  %v7913 = vsel %vm7860, %v7804, 0
  %v7916 = vsel %vm7860, %v7805, 0
  %v7919 = vsel %vm7860, %v7806, 0
  %v7922 = vsel %vm7860, %v7807, 0
  %v7925 = vsel %vm7860, %v7808, 0
  %v7928 = vsel %vm7860, %v7809, 0
  %v7931 = vsel %vm7860, %v7810, 0
  %v7934 = vsel %vm7860, %v7811, 0
  %v7937 = vsel %vm7860, %v7812, 0
  %v7940 = vsel %vm7860, %v7813, 0
  %v7943 = vsel %vm7860, %v7814, 0
  %v7946 = vsel %vm7860, %v7815, 0
  %v7949 = vsel %vm7860, %v7816, 0
  %v7952 = vsel %vm7860, %v7817, 0
  %v7955 = vsel %vm7860, %v7818, 0
  %v7958 = vsel %vm7860, %v7819, 0
  %v7961 = vsel %vm7860, %v7820, 0
  %v7964 = vsel %vm7860, %v7821, 0
  %v7967 = vsel %vm7860, %v7822, 0
  %v7970 = vsel %vm7860, %v7823, 0
  %v7973 = vsel %vm7860, %v7824, 0
  %v7976 = vsel %vm7860, %v7825, 0
  %v7979 = vsel %vm7860, %v7826, 0
  %v7982 = vsel %vm7860, %v7827, 0
  %v7985 = vsel %vm7860, %v7828, 0
  %v7988 = vsel %vm7860, %v7829, 0
  %v7991 = vsel %vm7860, %v7830, 0
  %v7994 = vsel %vm7860, %v7831, 0
  %v7997 = vsel %vm7860, %v7832, 0
  %v8000 = vsel %vm7860, %v7833, 0
  %v8003 = vsel %vm7860, %v7834, 0
  %v8006 = vsel %vm7860, %v7835, 0
  %v8009 = vsel %vm7860, %v7836, 0
  %v8012 = vsel %vm7860, %v7837, 0
  %v8015 = vsel %vm7860, %v7838, 0
  %v8018 = vsel %vm7860, %v7839, 0
  %v8021 = vsel %vm7860, %v7840, 0
  %v8024 = vsel %vm7860, %v7841, 0
  %v8027 = vsel %vm7860, %v7842, 0
  %v8030 = vsel %vm7860, %v7843, 0
  %v8033 = vsel %vm7860, %v7844, 0
  %v8036 = vsel %vm7860, %v7845, 0
  %v8039 = vsel %vm7860, %v7846, 0
  %v8042 = vsel %vm7860, %v7847, 0
  %v8045 = vsel %vm7860, %v7848, 0
  %v8048 = vsel %vm7860, %v7849, 0
  %v8051 = vsel %vm7860, %v7850, 0
  %8053 = vmatprep.subr.mxu0 0.0
  %8054 = vmatpush1.msra.mxu0 %v7851
  %8055 = vmatprep.subr.mxu0 0.0
  %8056 = vmatpush1.msra.mxu0 %v7852
  %8057 = vmatprep.subr.mxu0 0.0
  %8058 = vmatpush1.msra.mxu0 %v7853
  %8059 = vmatprep.subr.mxu0 0.0
  %8060 = vmatpush1.msra.mxu0 %v7854
  %8061 = vmatprep.subr.mxu0 0.0
  %8062 = vmatpush1.msra.mxu0 %v7855
  %8063 = vmatprep.subr.mxu0 0.0
  %8064 = vmatpush1.msra.mxu0 %v7856
  %8065 = vmatprep.subr.mxu0 0.0
  %8066 = vmatpush1.msra.mxu0 %v7857
  %8067 = vmatprep.subr.mxu0 0.0
  %8068 = vmatpush1.msra.mxu0 %v7858
  %8069 = vmatprep.subr.mxu0 0.0
  %8070 = vmatpush1.msra.mxu0 %v7859
  %8071 = vmatprep.subr.mxu0 0.0
  %8072 = vmatpush1.msra.mxu0 0.0
  %8073 = vmatprep.subr.mxu0 0.0
  %8074 = vmatpush1.msra.mxu0 0.0
  %8075 = vmatprep.subr.mxu0 0.0
  %8076 = vmatpush1.msra.mxu0 0.0
  %8077 = vmatprep.subr.mxu0 0.0
  %8078 = vmatpush1.msra.mxu0 0.0
  %8079 = vmatprep.subr.mxu0 0.0
  %8080 = vmatpush1.msra.mxu0 0.0
  %8081 = vmatprep.subr.mxu0 0.0
  %8082 = vmatpush1.msra.mxu0 0.0
  %8083 = vmatprep.subr.mxu0 0.0
  %8084 = vmatpush1.msra.mxu0 0.0
  %8085 = vmatprep.subr.mxu0 0.0
  %8086 = vmatpush1.msra.mxu0 0.0
  %8087 = vmatprep.subr.mxu0 0.0
  %8088 = vmatpush1.msra.mxu0 0.0
  %8089 = vmatprep.subr.mxu0 0.0
  %8090 = vmatpush1.msra.mxu0 0.0
  %8091 = vmatprep.subr.mxu0 0.0
  %8092 = vmatpush1.msra.mxu0 0.0
  %8093 = vmatprep.subr.mxu0 0.0
  %8094 = vmatpush1.msra.mxu0 0.0
  %8095 = vmatprep.subr.mxu0 0.0
  %8096 = vmatpush1.msra.mxu0 0.0
  %8097 = vmatprep.subr.mxu0 0.0
  %8098 = vmatpush1.msra.mxu0 0.0
  %8099 = vmatprep.subr.mxu0 0.0
  %8100 = vmatpush1.msra.mxu0 0.0
  %8101 = vmatprep.subr.mxu0 0.0
  %8102 = vmatpush1.msra.mxu0 0.0
  %8103 = vmatprep.subr.mxu0 0.0
  %8104 = vmatpush1.msra.mxu0 0.0
  %8105 = vmatprep.subr.mxu0 0.0
  %8106 = vmatpush1.msra.mxu0 0.0
  %8107 = vmatprep.subr.mxu0 0.0
  %8108 = vmatpush1.msra.mxu0 0.0
  %8109 = vmatprep.subr.mxu0 0.0
  %8110 = vmatpush1.msra.mxu0 0.0
  %8111 = vmatprep.subr.mxu0 0.0
  %8112 = vmatpush1.msra.mxu0 0.0
  %8113 = vmatprep.subr.mxu0 0.0
  %8114 = vmatpush1.msra.mxu0 0.0
  %8115 = vmatprep.subr.mxu0 0.0
  %8116 = vmatpush1.msra.mxu0 0.0
  %8117 = vmatprep.mubr.f32.mxu0 0.0
  %8118 = vmatmul.mubr.f32.gmra.mrb[0].mxu0 %v7862
  %v8119 = vpop.f32.mrb[0].mxu0
  %v8120 = vadd.f32 0.0, %v8119
  %v8121 = vpop.f32.mrb[0].mxu0
  %8122 = vmatprep.mubr.f32.mxu0 0.0
  %8123 = vmatmul.mubr.f32.gmra.mrb[0].mxu0 %v7865
  %v8124 = vpop.f32.mrb[0].mxu0
  %v8125 = vadd.f32 0.0, %v8124
  %v8126 = vpop.f32.mrb[0].mxu0
  %8127 = vmatprep.mubr.f32.mxu0 0.0
  %8128 = vmatmul.mubr.f32.gmra.mrb[0].mxu0 %v7868
  %v8129 = vpop.f32.mrb[0].mxu0
  %v8130 = vadd.f32 0.0, %v8129
  %v8131 = vpop.f32.mrb[0].mxu0
  %8132 = vmatprep.mubr.f32.mxu0 0.0
  %8133 = vmatmul.mubr.f32.gmra.mrb[0].mxu0 %v7871
  %v8134 = vpop.f32.mrb[0].mxu0
  %v8135 = vadd.f32 0.0, %v8134
  %v8136 = vpop.f32.mrb[0].mxu0
  %8137 = vmatprep.mubr.f32.mxu0 0.0
  %8138 = vmatmul.mubr.f32.gmra.mrb[0].mxu0 %v7874
  %v8139 = vpop.f32.mrb[0].mxu0
  %v8140 = vadd.f32 0.0, %v8139
  %v8141 = vpop.f32.mrb[0].mxu0
  %8142 = vmatprep.mubr.f32.mxu0 0.0
  %8143 = vmatmul.mubr.f32.gmra.mrb[0].mxu0 %v7877
  %v8144 = vpop.f32.mrb[0].mxu0
  %v8145 = vadd.f32 0.0, %v8144
  %v8146 = vpop.f32.mrb[0].mxu0
  %8147 = vmatprep.mubr.f32.mxu0 0.0
  %8148 = vmatmul.mubr.f32.gmra.mrb[0].mxu0 %v7880
  %v8149 = vpop.f32.mrb[0].mxu0
  %v8150 = vadd.f32 0.0, %v8149
  %v8151 = vpop.f32.mrb[0].mxu0
  %8152 = vmatprep.mubr.f32.mxu0 0.0
  %8153 = vmatmul.mubr.f32.gmra.mrb[0].mxu0 %v7883
  %v8154 = vpop.f32.mrb[0].mxu0
  %v8155 = vadd.f32 0.0, %v8154
  %v8156 = vpop.f32.mrb[0].mxu0
  %8157 = vmatprep.mubr.f32.mxu0 0.0
  %8158 = vmatmul.mubr.f32.gmra.mrb[0].mxu0 %v7886
  %v8159 = vpop.f32.mrb[0].mxu0
  %v8160 = vadd.f32 0.0, %v8159
  %v8161 = vpop.f32.mrb[0].mxu0
  %8162 = vmatprep.mubr.f32.mxu0 0.0
  %8163 = vmatmul.mubr.f32.gmra.mrb[0].mxu0 %v7889
  %v8164 = vpop.f32.mrb[0].mxu0
  %v8165 = vadd.f32 0.0, %v8164
  %v8166 = vpop.f32.mrb[0].mxu0
  %8167 = vmatprep.mubr.f32.mxu0 0.0
  %8168 = vmatmul.mubr.f32.gmra.mrb[0].mxu0 %v7892
  %v8169 = vpop.f32.mrb[0].mxu0
  %v8170 = vadd.f32 0.0, %v8169
  %v8171 = vpop.f32.mrb[0].mxu0
  %8172 = vmatprep.mubr.f32.mxu0 0.0
  %8173 = vmatmul.mubr.f32.gmra.mrb[0].mxu0 %v7895
  %v8174 = vpop.f32.mrb[0].mxu0
  %v8175 = vadd.f32 0.0, %v8174
  %v8176 = vpop.f32.mrb[0].mxu0
  %8177 = vmatprep.mubr.f32.mxu0 0.0
  %8178 = vmatmul.mubr.f32.gmra.mrb[0].mxu0 %v7898
  %v8179 = vpop.f32.mrb[0].mxu0
  %v8180 = vadd.f32 0.0, %v8179
  %v8181 = vpop.f32.mrb[0].mxu0
  %8182 = vmatprep.mubr.f32.mxu0 0.0
  %8183 = vmatmul.mubr.f32.gmra.mrb[0].mxu0 %v7901
  %v8184 = vpop.f32.mrb[0].mxu0
  %v8185 = vadd.f32 0.0, %v8184
  %v8186 = vpop.f32.mrb[0].mxu0
  %8187 = vmatprep.mubr.f32.mxu0 0.0
  %8188 = vmatmul.mubr.f32.gmra.mrb[0].mxu0 %v7904
  %v8189 = vpop.f32.mrb[0].mxu0
  %v8190 = vadd.f32 0.0, %v8189
  %v8191 = vpop.f32.mrb[0].mxu0
  %8192 = vmatprep.mubr.f32.mxu0 0.0
  %8193 = vmatmul.mubr.f32.gmra.mrb[0].mxu0 %v7907
  %v8194 = vpop.f32.mrb[0].mxu0
  %v8195 = vadd.f32 0.0, %v8194
  %v8196 = vpop.f32.mrb[0].mxu0
  %8197 = vmatprep.mubr.f32.mxu0 0.0
  %8198 = vmatmul.mubr.f32.gmra.mrb[0].mxu0 %v7910
  %v8199 = vpop.f32.mrb[0].mxu0
  %v8200 = vadd.f32 0.0, %v8199
  %v8201 = vpop.f32.mrb[0].mxu0
  %8202 = vmatprep.mubr.f32.mxu0 0.0
  %8203 = vmatmul.mubr.f32.gmra.mrb[0].mxu0 %v7913
  %v8204 = vpop.f32.mrb[0].mxu0
  %v8205 = vadd.f32 0.0, %v8204
  %v8206 = vpop.f32.mrb[0].mxu0
  %8207 = vmatprep.mubr.f32.mxu0 0.0
  %8208 = vmatmul.mubr.f32.gmra.mrb[0].mxu0 %v7916
  %v8209 = vpop.f32.mrb[0].mxu0
  %v8210 = vadd.f32 0.0, %v8209
  %v8211 = vpop.f32.mrb[0].mxu0
  %8212 = vmatprep.mubr.f32.mxu0 0.0
  %8213 = vmatmul.mubr.f32.gmra.mrb[0].mxu0 %v7919
  %v8214 = vpop.f32.mrb[0].mxu0
  %v8215 = vadd.f32 0.0, %v8214
  %v8216 = vpop.f32.mrb[0].mxu0
  %8217 = vmatprep.mubr.f32.mxu0 0.0
  %8218 = vmatmul.mubr.f32.gmra.mrb[0].mxu0 %v7922
  %v8219 = vpop.f32.mrb[0].mxu0
  %v8220 = vadd.f32 0.0, %v8219
  %v8221 = vpop.f32.mrb[0].mxu0
  %8222 = vmatprep.mubr.f32.mxu0 0.0
  %8223 = vmatmul.mubr.f32.gmra.mrb[0].mxu0 %v7925
  %v8224 = vpop.f32.mrb[0].mxu0
  %v8225 = vadd.f32 0.0, %v8224
  %v8226 = vpop.f32.mrb[0].mxu0
  %8227 = vmatprep.mubr.f32.mxu0 0.0
  %8228 = vmatmul.mubr.f32.gmra.mrb[0].mxu0 %v7928
  %v8229 = vpop.f32.mrb[0].mxu0
  %v8230 = vadd.f32 0.0, %v8229
  %v8231 = vpop.f32.mrb[0].mxu0
  %8232 = vmatprep.mubr.f32.mxu0 0.0
  %8233 = vmatmul.mubr.f32.gmra.mrb[0].mxu0 %v7931
  %v8234 = vpop.f32.mrb[0].mxu0
  %v8235 = vadd.f32 0.0, %v8234
  %v8236 = vpop.f32.mrb[0].mxu0
  %8237 = vmatprep.mubr.f32.mxu0 0.0
  %8238 = vmatmul.mubr.f32.gmra.mrb[0].mxu0 %v7934
  %v8239 = vpop.f32.mrb[0].mxu0
  %v8240 = vadd.f32 0.0, %v8239
  %v8241 = vpop.f32.mrb[0].mxu0
  %8242 = vmatprep.mubr.f32.mxu0 0.0
  %8243 = vmatmul.mubr.f32.gmra.mrb[0].mxu0 %v7937
  %v8244 = vpop.f32.mrb[0].mxu0
  %v8245 = vadd.f32 0.0, %v8244
  %v8246 = vpop.f32.mrb[0].mxu0
  %8247 = vmatprep.mubr.f32.mxu0 0.0
  %8248 = vmatmul.mubr.f32.gmra.mrb[0].mxu0 %v7940
  %v8249 = vpop.f32.mrb[0].mxu0
  %v8250 = vadd.f32 0.0, %v8249
  %v8251 = vpop.f32.mrb[0].mxu0
  %8252 = vmatprep.mubr.f32.mxu0 0.0
  %8253 = vmatmul.mubr.f32.gmra.mrb[0].mxu0 %v7943
  %v8254 = vpop.f32.mrb[0].mxu0
  %v8255 = vadd.f32 0.0, %v8254
  %v8256 = vpop.f32.mrb[0].mxu0
  %8257 = vmatprep.mubr.f32.mxu0 0.0
  %8258 = vmatmul.mubr.f32.gmra.mrb[0].mxu0 %v7946
  %v8259 = vpop.f32.mrb[0].mxu0
  %v8260 = vadd.f32 0.0, %v8259
  %v8261 = vpop.f32.mrb[0].mxu0
  %8262 = vmatprep.mubr.f32.mxu0 0.0
  %8263 = vmatmul.mubr.f32.gmra.mrb[0].mxu0 %v7949
  %v8264 = vpop.f32.mrb[0].mxu0
  %v8265 = vadd.f32 0.0, %v8264
  %v8266 = vpop.f32.mrb[0].mxu0
  %8267 = vmatprep.mubr.f32.mxu0 0.0
  %8268 = vmatmul.mubr.f32.gmra.mrb[0].mxu0 %v7952
  %v8269 = vpop.f32.mrb[0].mxu0
  %v8270 = vadd.f32 0.0, %v8269
  %v8271 = vpop.f32.mrb[0].mxu0
  %8272 = vmatprep.mubr.f32.mxu0 0.0
  %8273 = vmatmul.mubr.f32.gmra.mrb[0].mxu0 %v7955
  %v8274 = vpop.f32.mrb[0].mxu0
  %v8275 = vadd.f32 0.0, %v8274
  %v8276 = vpop.f32.mrb[0].mxu0
  %8277 = vmatprep.mubr.f32.mxu0 0.0
  %8278 = vmatmul.mubr.f32.gmra.mrb[0].mxu0 %v7958
  %v8279 = vpop.f32.mrb[0].mxu0
  %v8280 = vadd.f32 0.0, %v8279
  %v8281 = vpop.f32.mrb[0].mxu0
  %8282 = vmatprep.mubr.f32.mxu0 0.0
  %8283 = vmatmul.mubr.f32.gmra.mrb[0].mxu0 %v7961
  %v8284 = vpop.f32.mrb[0].mxu0
  %v8285 = vadd.f32 0.0, %v8284
  %v8286 = vpop.f32.mrb[0].mxu0
  %8287 = vmatprep.mubr.f32.mxu0 0.0
  %8288 = vmatmul.mubr.f32.gmra.mrb[0].mxu0 %v7964
  %v8289 = vpop.f32.mrb[0].mxu0
  %v8290 = vadd.f32 0.0, %v8289
  %v8291 = vpop.f32.mrb[0].mxu0
  %8292 = vmatprep.mubr.f32.mxu0 0.0
  %8293 = vmatmul.mubr.f32.gmra.mrb[0].mxu0 %v7967
  %v8294 = vpop.f32.mrb[0].mxu0
  %v8295 = vadd.f32 0.0, %v8294
  %v8296 = vpop.f32.mrb[0].mxu0
  %8297 = vmatprep.mubr.f32.mxu0 0.0
  %8298 = vmatmul.mubr.f32.gmra.mrb[0].mxu0 %v7970
  %v8299 = vpop.f32.mrb[0].mxu0
  %v8300 = vadd.f32 0.0, %v8299
  %v8301 = vpop.f32.mrb[0].mxu0
  %8302 = vmatprep.mubr.f32.mxu0 0.0
  %8303 = vmatmul.mubr.f32.gmra.mrb[0].mxu0 %v7973
  %v8304 = vpop.f32.mrb[0].mxu0
  %v8305 = vadd.f32 0.0, %v8304
  %v8306 = vpop.f32.mrb[0].mxu0
  %8307 = vmatprep.mubr.f32.mxu0 0.0
  %8308 = vmatmul.mubr.f32.gmra.mrb[0].mxu0 %v7976
  %v8309 = vpop.f32.mrb[0].mxu0
  %v8310 = vadd.f32 0.0, %v8309
  %v8311 = vpop.f32.mrb[0].mxu0
  %8312 = vmatprep.mubr.f32.mxu0 0.0
  %8313 = vmatmul.mubr.f32.gmra.mrb[0].mxu0 %v7979
  %v8314 = vpop.f32.mrb[0].mxu0
  %v8315 = vadd.f32 0.0, %v8314
  %v8316 = vpop.f32.mrb[0].mxu0
  %8317 = vmatprep.mubr.f32.mxu0 0.0
  %8318 = vmatmul.mubr.f32.gmra.mrb[0].mxu0 %v7982
  %v8319 = vpop.f32.mrb[0].mxu0
  %v8320 = vadd.f32 0.0, %v8319
  %v8321 = vpop.f32.mrb[0].mxu0
  %8322 = vmatprep.mubr.f32.mxu0 0.0
  %8323 = vmatmul.mubr.f32.gmra.mrb[0].mxu0 %v7985
  %v8324 = vpop.f32.mrb[0].mxu0
  %v8325 = vadd.f32 0.0, %v8324
  %v8326 = vpop.f32.mrb[0].mxu0
  %8327 = vmatprep.mubr.f32.mxu0 0.0
  %8328 = vmatmul.mubr.f32.gmra.mrb[0].mxu0 %v7988
  %v8329 = vpop.f32.mrb[0].mxu0
  %v8330 = vadd.f32 0.0, %v8329
  %v8331 = vpop.f32.mrb[0].mxu0
  %8332 = vmatprep.mubr.f32.mxu0 0.0
  %8333 = vmatmul.mubr.f32.gmra.mrb[0].mxu0 %v7991
  %v8334 = vpop.f32.mrb[0].mxu0
  %v8335 = vadd.f32 0.0, %v8334
  %v8336 = vpop.f32.mrb[0].mxu0
  %8337 = vmatprep.mubr.f32.mxu0 0.0
  %8338 = vmatmul.mubr.f32.gmra.mrb[0].mxu0 %v7994
  %v8339 = vpop.f32.mrb[0].mxu0
  %v8340 = vadd.f32 0.0, %v8339
  %v8341 = vpop.f32.mrb[0].mxu0
  %8342 = vmatprep.mubr.f32.mxu0 0.0
  %8343 = vmatmul.mubr.f32.gmra.mrb[0].mxu0 %v7997
  %v8344 = vpop.f32.mrb[0].mxu0
  %v8345 = vadd.f32 0.0, %v8344
  %v8346 = vpop.f32.mrb[0].mxu0
  %8347 = vmatprep.mubr.f32.mxu0 0.0
  %8348 = vmatmul.mubr.f32.gmra.mrb[0].mxu0 %v8000
  %v8349 = vpop.f32.mrb[0].mxu0
  %v8350 = vadd.f32 0.0, %v8349
  %v8351 = vpop.f32.mrb[0].mxu0
  %8352 = vmatprep.mubr.f32.mxu0 0.0
  %8353 = vmatmul.mubr.f32.gmra.mrb[0].mxu0 %v8003
  %v8354 = vpop.f32.mrb[0].mxu0
  %v8355 = vadd.f32 0.0, %v8354
  %v8356 = vpop.f32.mrb[0].mxu0
  %8357 = vmatprep.mubr.f32.mxu0 0.0
  %8358 = vmatmul.mubr.f32.gmra.mrb[0].mxu0 %v8006
  %v8359 = vpop.f32.mrb[0].mxu0
  %v8360 = vadd.f32 0.0, %v8359
  %v8361 = vpop.f32.mrb[0].mxu0
  %8362 = vmatprep.mubr.f32.mxu0 0.0
  %8363 = vmatmul.mubr.f32.gmra.mrb[0].mxu0 %v8009
  %v8364 = vpop.f32.mrb[0].mxu0
  %v8365 = vadd.f32 0.0, %v8364
  %v8366 = vpop.f32.mrb[0].mxu0
  %8367 = vmatprep.mubr.f32.mxu0 0.0
  %8368 = vmatmul.mubr.f32.gmra.mrb[0].mxu0 %v8012
  %v8369 = vpop.f32.mrb[0].mxu0
  %v8370 = vadd.f32 0.0, %v8369
  %v8371 = vpop.f32.mrb[0].mxu0
  %8372 = vmatprep.mubr.f32.mxu0 0.0
  %8373 = vmatmul.mubr.f32.gmra.mrb[0].mxu0 %v8015
  %v8374 = vpop.f32.mrb[0].mxu0
  %v8375 = vadd.f32 0.0, %v8374
  %v8376 = vpop.f32.mrb[0].mxu0
  %8377 = vmatprep.mubr.f32.mxu0 0.0
  %8378 = vmatmul.mubr.f32.gmra.mrb[0].mxu0 %v8018
  %v8379 = vpop.f32.mrb[0].mxu0
  %v8380 = vadd.f32 0.0, %v8379
  %v8381 = vpop.f32.mrb[0].mxu0
  %8382 = vmatprep.mubr.f32.mxu0 0.0
  %8383 = vmatmul.mubr.f32.gmra.mrb[0].mxu0 %v8021
  %v8384 = vpop.f32.mrb[0].mxu0
  %v8385 = vadd.f32 0.0, %v8384
  %v8386 = vpop.f32.mrb[0].mxu0
  %8387 = vmatprep.mubr.f32.mxu0 0.0
  %8388 = vmatmul.mubr.f32.gmra.mrb[0].mxu0 %v8024
  %v8389 = vpop.f32.mrb[0].mxu0
  %v8390 = vadd.f32 0.0, %v8389
  %v8391 = vpop.f32.mrb[0].mxu0
  %8392 = vmatprep.mubr.f32.mxu0 0.0
  %8393 = vmatmul.mubr.f32.gmra.mrb[0].mxu0 %v8027
  %v8394 = vpop.f32.mrb[0].mxu0
  %v8395 = vadd.f32 0.0, %v8394
  %v8396 = vpop.f32.mrb[0].mxu0
  %8397 = vmatprep.mubr.f32.mxu0 0.0
  %8398 = vmatmul.mubr.f32.gmra.mrb[0].mxu0 %v8030
  %v8399 = vpop.f32.mrb[0].mxu0
  %v8400 = vadd.f32 0.0, %v8399
  %v8401 = vpop.f32.mrb[0].mxu0
  %8402 = vmatprep.mubr.f32.mxu0 0.0
  %8403 = vmatmul.mubr.f32.gmra.mrb[0].mxu0 %v8033
  %v8404 = vpop.f32.mrb[0].mxu0
  %v8405 = vadd.f32 0.0, %v8404
  %v8406 = vpop.f32.mrb[0].mxu0
  %8407 = vmatprep.mubr.f32.mxu0 0.0
  %8408 = vmatmul.mubr.f32.gmra.mrb[0].mxu0 %v8036
  %v8409 = vpop.f32.mrb[0].mxu0
  %v8410 = vadd.f32 0.0, %v8409
  %v8411 = vpop.f32.mrb[0].mxu0
  %8412 = vmatprep.mubr.f32.mxu0 0.0
  %8413 = vmatmul.mubr.f32.gmra.mrb[0].mxu0 %v8039
  %v8414 = vpop.f32.mrb[0].mxu0
  %v8415 = vadd.f32 0.0, %v8414
  %v8416 = vpop.f32.mrb[0].mxu0
  %8417 = vmatprep.mubr.f32.mxu0 0.0
  %8418 = vmatmul.mubr.f32.gmra.mrb[0].mxu0 %v8042
  %v8419 = vpop.f32.mrb[0].mxu0
  %v8420 = vadd.f32 0.0, %v8419
  %v8421 = vpop.f32.mrb[0].mxu0
  %8422 = vmatprep.mubr.f32.mxu0 0.0
  %8423 = vmatmul.mubr.f32.gmra.mrb[0].mxu0 %v8045
  %v8424 = vpop.f32.mrb[0].mxu0
  %v8425 = vadd.f32 0.0, %v8424
  %v8426 = vpop.f32.mrb[0].mxu0
  %8427 = vmatprep.mubr.f32.mxu0 0.0
  %8428 = vmatmul.mubr.f32.gmra.mrb[0].mxu0 %v8048
  %v8429 = vpop.f32.mrb[0].mxu0
  %v8430 = vadd.f32 0.0, %v8429
  %v8431 = vpop.f32.mrb[0].mxu0
  %8432 = vmatprep.mubr.f32.mxu0 0.0
  %8433 = vmatmul.mubr.f32.gmra.mrb[0].mxu0 %v8051
  %v8434 = vpop.f32.mrb[0].mxu0
  %v8435 = vadd.f32 0.0, %v8434
  %v8436 = vpop.f32.mrb[0].mxu0
  %8437 = vdwg.mxu0
  %v8438 = vsel %vm3888, %v8120, 0.0
  %v8439 = vsel %vm3888, %v8125, 0.0
  %v8440 = vadd.f32 %v8438, %v8439
  %v8441 = vsel %vm3888, %v8130, 0.0
  %v8442 = vadd.f32 %v8440, %v8441
  %v8443 = vsel %vm3888, %v8135, 0.0
  %v8444 = vadd.f32 %v8442, %v8443
  %v8445 = vsel %vm3888, %v8140, 0.0
  %v8446 = vadd.f32 %v8444, %v8445
  %v8447 = vsel %vm3888, %v8145, 0.0
  %v8448 = vadd.f32 %v8446, %v8447
  %v8449 = vsel %vm3888, %v8150, 0.0
  %v8450 = vadd.f32 %v8448, %v8449
  %v8451 = vsel %vm3888, %v8155, 0.0
  %v8452 = vadd.f32 %v8450, %v8451
  %v8453 = vsel %vm3888, %v8160, 0.0
  %v8454 = vadd.f32 %v8452, %v8453
  %v8455 = vsel %vm3888, %v8165, 0.0
  %v8456 = vadd.f32 %v8454, %v8455
  %v8457 = vsel %vm3888, %v8170, 0.0
  %v8458 = vadd.f32 %v8456, %v8457
  %v8459 = vsel %vm3888, %v8175, 0.0
  %v8460 = vadd.f32 %v8458, %v8459
  %v8461 = vsel %vm3888, %v8180, 0.0
  %v8462 = vadd.f32 %v8460, %v8461
  %v8463 = vsel %vm3888, %v8185, 0.0
  %v8464 = vadd.f32 %v8462, %v8463
  %v8465 = vsel %vm3888, %v8190, 0.0
  %v8466 = vadd.f32 %v8464, %v8465
  %v8467 = vsel %vm3888, %v8195, 0.0
  %v8468 = vadd.f32 %v8466, %v8467
  %v8469 = vsel %vm3888, %v8200, 0.0
  %v8470 = vadd.f32 %v8468, %v8469
  %v8471 = vsel %vm3888, %v8205, 0.0
  %v8472 = vadd.f32 %v8470, %v8471
  %v8473 = vsel %vm3888, %v8210, 0.0
  %v8474 = vadd.f32 %v8472, %v8473
  %v8475 = vsel %vm3888, %v8215, 0.0
  %v8476 = vadd.f32 %v8474, %v8475
  %v8477 = vsel %vm3888, %v8220, 0.0
  %v8478 = vadd.f32 %v8476, %v8477
  %v8479 = vsel %vm3888, %v8225, 0.0
  %v8480 = vadd.f32 %v8478, %v8479
  %v8481 = vsel %vm3888, %v8230, 0.0
  %v8482 = vadd.f32 %v8480, %v8481
  %v8483 = vsel %vm3888, %v8235, 0.0
  %v8484 = vadd.f32 %v8482, %v8483
  %v8485 = vsel %vm3888, %v8240, 0.0
  %v8486 = vadd.f32 %v8484, %v8485
  %v8487 = vsel %vm3888, %v8245, 0.0
  %v8488 = vadd.f32 %v8486, %v8487
  %v8489 = vsel %vm3888, %v8250, 0.0
  %v8490 = vadd.f32 %v8488, %v8489
  %v8491 = vsel %vm3888, %v8255, 0.0
  %v8492 = vadd.f32 %v8490, %v8491
  %v8493 = vsel %vm3888, %v8260, 0.0
  %v8494 = vadd.f32 %v8492, %v8493
  %v8495 = vsel %vm3888, %v8265, 0.0
  %v8496 = vadd.f32 %v8494, %v8495
  %v8497 = vsel %vm3888, %v8270, 0.0
  %v8498 = vadd.f32 %v8496, %v8497
  %v8499 = vsel %vm3888, %v8275, 0.0
  %v8500 = vadd.f32 %v8498, %v8499
  %v8501 = vsel %vm3888, %v8280, 0.0
  %v8502 = vadd.f32 %v8500, %v8501
  %v8503 = vsel %vm3888, %v8285, 0.0
  %v8504 = vadd.f32 %v8502, %v8503
  %v8505 = vsel %vm3888, %v8290, 0.0
  %v8506 = vadd.f32 %v8504, %v8505
  %v8507 = vsel %vm3888, %v8295, 0.0
  %v8508 = vadd.f32 %v8506, %v8507
  %v8509 = vsel %vm3888, %v8300, 0.0
  %v8510 = vadd.f32 %v8508, %v8509
  %v8511 = vsel %vm3888, %v8305, 0.0
  %v8512 = vadd.f32 %v8510, %v8511
  %v8513 = vsel %vm3888, %v8310, 0.0
  %v8514 = vadd.f32 %v8512, %v8513
  %v8515 = vsel %vm3888, %v8315, 0.0
  %v8516 = vadd.f32 %v8514, %v8515
  %v8517 = vsel %vm3888, %v8320, 0.0
  %v8518 = vadd.f32 %v8516, %v8517
  %v8519 = vsel %vm3888, %v8325, 0.0
  %v8520 = vadd.f32 %v8518, %v8519
  %v8521 = vsel %vm3888, %v8330, 0.0
  %v8522 = vadd.f32 %v8520, %v8521
  %v8523 = vsel %vm3888, %v8335, 0.0
  %v8524 = vadd.f32 %v8522, %v8523
  %v8525 = vsel %vm3888, %v8340, 0.0
  %v8526 = vadd.f32 %v8524, %v8525
  %v8527 = vsel %vm3888, %v8345, 0.0
  %v8528 = vadd.f32 %v8526, %v8527
  %v8529 = vsel %vm3888, %v8350, 0.0
  %v8530 = vadd.f32 %v8528, %v8529
  %v8531 = vsel %vm3888, %v8355, 0.0
  %v8532 = vadd.f32 %v8530, %v8531
  %v8533 = vsel %vm3888, %v8360, 0.0
  %v8534 = vadd.f32 %v8532, %v8533
  %v8535 = vsel %vm3888, %v8365, 0.0
  %v8536 = vadd.f32 %v8534, %v8535
  %v8537 = vsel %vm3888, %v8370, 0.0
  %v8538 = vadd.f32 %v8536, %v8537
  %v8539 = vsel %vm3888, %v8375, 0.0
  %v8540 = vadd.f32 %v8538, %v8539
  %v8541 = vsel %vm3888, %v8380, 0.0
  %v8542 = vadd.f32 %v8540, %v8541
  %v8543 = vsel %vm3888, %v8385, 0.0
  %v8544 = vadd.f32 %v8542, %v8543
  %v8545 = vsel %vm3888, %v8390, 0.0
  %v8546 = vadd.f32 %v8544, %v8545
  %v8547 = vsel %vm3888, %v8395, 0.0
  %v8548 = vadd.f32 %v8546, %v8547
  %v8549 = vsel %vm3888, %v8400, 0.0
  %v8550 = vadd.f32 %v8548, %v8549
  %v8551 = vsel %vm3888, %v8405, 0.0
  %v8552 = vadd.f32 %v8550, %v8551
  %v8553 = vsel %vm3888, %v8410, 0.0
  %v8554 = vadd.f32 %v8552, %v8553
  %v8555 = vsel %vm3888, %v8415, 0.0
  %v8556 = vadd.f32 %v8554, %v8555
  %v8557 = vsel %vm3888, %v8420, 0.0
  %v8558 = vadd.f32 %v8556, %v8557
  %v8559 = vsel %vm3888, %v8425, 0.0
  %v8560 = vadd.f32 %v8558, %v8559
  %v8561 = vsel %vm3888, %v8430, 0.0
  %v8562 = vadd.f32 %v8560, %v8561
  %v8563 = vsel %vm3888, %v8435, 0.0
  %v8564 = vadd.f32 %v8562, %v8563
  %v8565 = vrot.slane %v8564, 4
  %v8566 = vadd.f32 %v8564, %v8565
  %v8567 = vrot.slane %v8566, 2
  %v8568 = vadd.f32 %v8566, %v8567
  %v8569 = vrot.slane %v8568, 1
  %v8570 = vadd.f32 %v8568, %v8569
  %v8571 = vmul.f32 %v8120, %v8120
  %v8572 = vmul.f32 %v8125, %v8125
  %v8573 = vmul.f32 %v8130, %v8130
  %v8574 = vmul.f32 %v8135, %v8135
  %v8575 = vmul.f32 %v8140, %v8140
  %v8576 = vmul.f32 %v8145, %v8145
  %v8577 = vmul.f32 %v8150, %v8150
  %v8578 = vmul.f32 %v8155, %v8155
  %v8579 = vmul.f32 %v8160, %v8160
  %v8580 = vmul.f32 %v8165, %v8165
  %v8581 = vmul.f32 %v8170, %v8170
  %v8582 = vmul.f32 %v8175, %v8175
  %v8583 = vmul.f32 %v8180, %v8180
  %v8584 = vmul.f32 %v8185, %v8185
  %v8585 = vmul.f32 %v8190, %v8190
  %v8586 = vmul.f32 %v8195, %v8195
  %v8587 = vmul.f32 %v8200, %v8200
  %v8588 = vmul.f32 %v8205, %v8205
  %v8589 = vmul.f32 %v8210, %v8210
  %v8590 = vmul.f32 %v8215, %v8215
  %v8591 = vmul.f32 %v8220, %v8220
  %v8592 = vmul.f32 %v8225, %v8225
  %v8593 = vmul.f32 %v8230, %v8230
  %v8594 = vmul.f32 %v8235, %v8235
  %v8595 = vmul.f32 %v8240, %v8240
  %v8596 = vmul.f32 %v8245, %v8245
  %v8597 = vmul.f32 %v8250, %v8250
  %v8598 = vmul.f32 %v8255, %v8255
  %v8599 = vmul.f32 %v8260, %v8260
  %v8600 = vmul.f32 %v8265, %v8265
  %v8601 = vmul.f32 %v8270, %v8270
  %v8602 = vmul.f32 %v8275, %v8275
  %v8603 = vmul.f32 %v8280, %v8280
  %v8604 = vmul.f32 %v8285, %v8285
  %v8605 = vmul.f32 %v8290, %v8290
  %v8606 = vmul.f32 %v8295, %v8295
  %v8607 = vmul.f32 %v8300, %v8300
  %v8608 = vmul.f32 %v8305, %v8305
  %v8609 = vmul.f32 %v8310, %v8310
  %v8610 = vmul.f32 %v8315, %v8315
  %v8611 = vmul.f32 %v8320, %v8320
  %v8612 = vmul.f32 %v8325, %v8325
  %v8613 = vmul.f32 %v8330, %v8330
  %v8614 = vmul.f32 %v8335, %v8335
  %v8615 = vmul.f32 %v8340, %v8340
  %v8616 = vmul.f32 %v8345, %v8345
  %v8617 = vmul.f32 %v8350, %v8350
  %v8618 = vmul.f32 %v8355, %v8355
  %v8619 = vmul.f32 %v8360, %v8360
  %v8620 = vmul.f32 %v8365, %v8365
  %v8621 = vmul.f32 %v8370, %v8370
  %v8622 = vmul.f32 %v8375, %v8375
  %v8623 = vmul.f32 %v8380, %v8380
  %v8624 = vmul.f32 %v8385, %v8385
  %v8625 = vmul.f32 %v8390, %v8390
  %v8626 = vmul.f32 %v8395, %v8395
  %v8627 = vmul.f32 %v8400, %v8400
  %v8628 = vmul.f32 %v8405, %v8405
  %v8629 = vmul.f32 %v8410, %v8410
  %v8630 = vmul.f32 %v8415, %v8415
  %v8631 = vmul.f32 %v8420, %v8420
  %v8632 = vmul.f32 %v8425, %v8425
  %v8633 = vmul.f32 %v8430, %v8430
  %v8634 = vmul.f32 %v8435, %v8435
  %v8635 = vsel %vm3888, %v8571, 0.0
  %v8636 = vsel %vm3888, %v8572, 0.0
  %v8637 = vadd.f32 %v8635, %v8636
  %v8638 = vsel %vm3888, %v8573, 0.0
  %v8639 = vadd.f32 %v8637, %v8638
  %v8640 = vsel %vm3888, %v8574, 0.0
  %v8641 = vadd.f32 %v8639, %v8640
  %v8642 = vsel %vm3888, %v8575, 0.0
  %v8643 = vadd.f32 %v8641, %v8642
  %v8644 = vsel %vm3888, %v8576, 0.0
  %v8645 = vadd.f32 %v8643, %v8644
  %v8646 = vsel %vm3888, %v8577, 0.0
  %v8647 = vadd.f32 %v8645, %v8646
  %v8648 = vsel %vm3888, %v8578, 0.0
  %v8649 = vadd.f32 %v8647, %v8648
  %v8650 = vsel %vm3888, %v8579, 0.0
  %v8651 = vadd.f32 %v8649, %v8650
  %v8652 = vsel %vm3888, %v8580, 0.0
  %v8653 = vadd.f32 %v8651, %v8652
  %v8654 = vsel %vm3888, %v8581, 0.0
  %v8655 = vadd.f32 %v8653, %v8654
  %v8656 = vsel %vm3888, %v8582, 0.0
  %v8657 = vadd.f32 %v8655, %v8656
  %v8658 = vsel %vm3888, %v8583, 0.0
  %v8659 = vadd.f32 %v8657, %v8658
  %v8660 = vsel %vm3888, %v8584, 0.0
  %v8661 = vadd.f32 %v8659, %v8660
  %v8662 = vsel %vm3888, %v8585, 0.0
  %v8663 = vadd.f32 %v8661, %v8662
  %v8664 = vsel %vm3888, %v8586, 0.0
  %v8665 = vadd.f32 %v8663, %v8664
  %v8666 = vsel %vm3888, %v8587, 0.0
  %v8667 = vadd.f32 %v8665, %v8666
  %v8668 = vsel %vm3888, %v8588, 0.0
  %v8669 = vadd.f32 %v8667, %v8668
  %v8670 = vsel %vm3888, %v8589, 0.0
  %v8671 = vadd.f32 %v8669, %v8670
  %v8672 = vsel %vm3888, %v8590, 0.0
  %v8673 = vadd.f32 %v8671, %v8672
  %v8674 = vsel %vm3888, %v8591, 0.0
  %v8675 = vadd.f32 %v8673, %v8674
  %v8676 = vsel %vm3888, %v8592, 0.0
  %v8677 = vadd.f32 %v8675, %v8676
  %v8678 = vsel %vm3888, %v8593, 0.0
  %v8679 = vadd.f32 %v8677, %v8678
  %v8680 = vsel %vm3888, %v8594, 0.0
  %v8681 = vadd.f32 %v8679, %v8680
  %v8682 = vsel %vm3888, %v8595, 0.0
  %v8683 = vadd.f32 %v8681, %v8682
  %v8684 = vsel %vm3888, %v8596, 0.0
  %v8685 = vadd.f32 %v8683, %v8684
  %v8686 = vsel %vm3888, %v8597, 0.0
  %v8687 = vadd.f32 %v8685, %v8686
  %v8688 = vsel %vm3888, %v8598, 0.0
  %v8689 = vadd.f32 %v8687, %v8688
  %v8690 = vsel %vm3888, %v8599, 0.0
  %v8691 = vadd.f32 %v8689, %v8690
  %v8692 = vsel %vm3888, %v8600, 0.0
  %v8693 = vadd.f32 %v8691, %v8692
  %v8694 = vsel %vm3888, %v8601, 0.0
  %v8695 = vadd.f32 %v8693, %v8694
  %v8696 = vsel %vm3888, %v8602, 0.0
  %v8697 = vadd.f32 %v8695, %v8696
  %v8698 = vsel %vm3888, %v8603, 0.0
  %v8699 = vadd.f32 %v8697, %v8698
  %v8700 = vsel %vm3888, %v8604, 0.0
  %v8701 = vadd.f32 %v8699, %v8700
  %v8702 = vsel %vm3888, %v8605, 0.0
  %v8703 = vadd.f32 %v8701, %v8702
  %v8704 = vsel %vm3888, %v8606, 0.0
  %v8705 = vadd.f32 %v8703, %v8704
  %v8706 = vsel %vm3888, %v8607, 0.0
  %v8707 = vadd.f32 %v8705, %v8706
  %v8708 = vsel %vm3888, %v8608, 0.0
  %v8709 = vadd.f32 %v8707, %v8708
  %v8710 = vsel %vm3888, %v8609, 0.0
  %v8711 = vadd.f32 %v8709, %v8710
  %v8712 = vsel %vm3888, %v8610, 0.0
  %v8713 = vadd.f32 %v8711, %v8712
  %v8714 = vsel %vm3888, %v8611, 0.0
  %v8715 = vadd.f32 %v8713, %v8714
  %v8716 = vsel %vm3888, %v8612, 0.0
  %v8717 = vadd.f32 %v8715, %v8716
  %v8718 = vsel %vm3888, %v8613, 0.0
  %v8719 = vadd.f32 %v8717, %v8718
  %v8720 = vsel %vm3888, %v8614, 0.0
  %v8721 = vadd.f32 %v8719, %v8720
  %v8722 = vsel %vm3888, %v8615, 0.0
  %v8723 = vadd.f32 %v8721, %v8722
  %v8724 = vsel %vm3888, %v8616, 0.0
  %v8725 = vadd.f32 %v8723, %v8724
  %v8726 = vsel %vm3888, %v8617, 0.0
  %v8727 = vadd.f32 %v8725, %v8726
  %v8728 = vsel %vm3888, %v8618, 0.0
  %v8729 = vadd.f32 %v8727, %v8728
  %v8730 = vsel %vm3888, %v8619, 0.0
  %v8731 = vadd.f32 %v8729, %v8730
  %v8732 = vsel %vm3888, %v8620, 0.0
  %v8733 = vadd.f32 %v8731, %v8732
  %v8734 = vsel %vm3888, %v8621, 0.0
  %v8735 = vadd.f32 %v8733, %v8734
  %v8736 = vsel %vm3888, %v8622, 0.0
  %v8737 = vadd.f32 %v8735, %v8736
  %v8738 = vsel %vm3888, %v8623, 0.0
  %v8739 = vadd.f32 %v8737, %v8738
  %v8740 = vsel %vm3888, %v8624, 0.0
  %v8741 = vadd.f32 %v8739, %v8740
  %v8742 = vsel %vm3888, %v8625, 0.0
  %v8743 = vadd.f32 %v8741, %v8742
  %v8744 = vsel %vm3888, %v8626, 0.0
  %v8745 = vadd.f32 %v8743, %v8744
  %v8746 = vsel %vm3888, %v8627, 0.0
  %v8747 = vadd.f32 %v8745, %v8746
  %v8748 = vsel %vm3888, %v8628, 0.0
  %v8749 = vadd.f32 %v8747, %v8748
  %v8750 = vsel %vm3888, %v8629, 0.0
  %v8751 = vadd.f32 %v8749, %v8750
  %v8752 = vsel %vm3888, %v8630, 0.0
  %v8753 = vadd.f32 %v8751, %v8752
  %v8754 = vsel %vm3888, %v8631, 0.0
  %v8755 = vadd.f32 %v8753, %v8754
  %v8756 = vsel %vm3888, %v8632, 0.0
  %v8757 = vadd.f32 %v8755, %v8756
  %v8758 = vsel %vm3888, %v8633, 0.0
  %v8759 = vadd.f32 %v8757, %v8758
  %v8760 = vsel %vm3888, %v8634, 0.0
  %v8761 = vadd.f32 %v8759, %v8760
  %v8762 = vrot.slane %v8761, 4
  %v8763 = vadd.f32 %v8761, %v8762
  %v8764 = vrot.slane %v8763, 2
  %v8765 = vadd.f32 %v8763, %v8764
  %v8766 = vrot.slane %v8765, 1
  %v8767 = vadd.f32 %v8765, %v8766
  %v8768 = vmul.f32 %v8570, 0.001953125
  %v8769 = vmul.f32 %v8767, 0.001953125
  %v8770 = vmul.f32 %v8768, %v8768
  %v8771 = vsub.f32 %v8769, %v8770
  %v8772 = vld [vmem:[%s5] sm:$0x1]
  %v8773 = vadd.f32 %v8771, 1e-05
  %v8774 = vrsqrt.pop %v8773
  %v8775 = vmul.f32 %v8772, %v8774
  %v8776 = vld [vmem:[%s6] sm:$0x1]
  %v8777 = vmul.f32 %v8768, %v8775
  %v8778 = vsub.f32 %v8776, %v8777
  %v8780 = vlaneseq
  %v8781 = vshrl.u32 %v8780, 7
  %v8782 = vsub.s32 0, %v8781
  %v8783 = vrot.slane %v8775, %v8782
  %v8785 = vmul.f32 %v8120, %v8783
  %v8786 = vmul.f32 %v8125, %v8783
  %v8787 = vmul.f32 %v8130, %v8783
  %v8788 = vmul.f32 %v8135, %v8783
  %v8789 = vmul.f32 %v8140, %v8783
  %v8790 = vmul.f32 %v8145, %v8783
  %v8791 = vmul.f32 %v8150, %v8783
  %v8792 = vmul.f32 %v8155, %v8783
  %v8793 = vmul.f32 %v8160, %v8783
  %v8794 = vmul.f32 %v8165, %v8783
  %v8795 = vmul.f32 %v8170, %v8783
  %v8796 = vmul.f32 %v8175, %v8783
  %v8797 = vmul.f32 %v8180, %v8783
  %v8798 = vmul.f32 %v8185, %v8783
  %v8799 = vmul.f32 %v8190, %v8783
  %v8800 = vmul.f32 %v8195, %v8783
  %v8801 = vmul.f32 %v8200, %v8783
  %v8802 = vmul.f32 %v8205, %v8783
  %v8803 = vmul.f32 %v8210, %v8783
  %v8804 = vmul.f32 %v8215, %v8783
  %v8805 = vmul.f32 %v8220, %v8783
  %v8806 = vmul.f32 %v8225, %v8783
  %v8807 = vmul.f32 %v8230, %v8783
  %v8808 = vmul.f32 %v8235, %v8783
  %v8809 = vmul.f32 %v8240, %v8783
  %v8810 = vmul.f32 %v8245, %v8783
  %v8811 = vmul.f32 %v8250, %v8783
  %v8812 = vmul.f32 %v8255, %v8783
  %v8813 = vmul.f32 %v8260, %v8783
  %v8814 = vmul.f32 %v8265, %v8783
  %v8815 = vmul.f32 %v8270, %v8783
  %v8816 = vmul.f32 %v8275, %v8783
  %v8817 = vmul.f32 %v8280, %v8783
  %v8818 = vmul.f32 %v8285, %v8783
  %v8819 = vmul.f32 %v8290, %v8783
  %v8820 = vmul.f32 %v8295, %v8783
  %v8821 = vmul.f32 %v8300, %v8783
  %v8822 = vmul.f32 %v8305, %v8783
  %v8823 = vmul.f32 %v8310, %v8783
  %v8824 = vmul.f32 %v8315, %v8783
  %v8825 = vmul.f32 %v8320, %v8783
  %v8826 = vmul.f32 %v8325, %v8783
  %v8827 = vmul.f32 %v8330, %v8783
  %v8828 = vmul.f32 %v8335, %v8783
  %v8829 = vmul.f32 %v8340, %v8783
  %v8830 = vmul.f32 %v8345, %v8783
  %v8831 = vmul.f32 %v8350, %v8783
  %v8832 = vmul.f32 %v8355, %v8783
  %v8833 = vmul.f32 %v8360, %v8783
  %v8834 = vmul.f32 %v8365, %v8783
  %v8835 = vmul.f32 %v8370, %v8783
  %v8836 = vmul.f32 %v8375, %v8783
  %v8837 = vmul.f32 %v8380, %v8783
  %v8838 = vmul.f32 %v8385, %v8783
  %v8839 = vmul.f32 %v8390, %v8783
  %v8840 = vmul.f32 %v8395, %v8783
  %v8841 = vmul.f32 %v8400, %v8783
  %v8842 = vmul.f32 %v8405, %v8783
  %v8843 = vmul.f32 %v8410, %v8783
  %v8844 = vmul.f32 %v8415, %v8783
  %v8845 = vmul.f32 %v8420, %v8783
  %v8846 = vmul.f32 %v8425, %v8783
  %v8847 = vmul.f32 %v8430, %v8783
  %v8848 = vmul.f32 %v8435, %v8783
  %v8850 = vlaneseq
  %v8851 = vshrl.u32 %v8850, 7
  %v8852 = vsub.s32 0, %v8851
  %v8853 = vrot.slane %v8778, %v8852
  %v8855 = vadd.f32 %v8785, %v8853
  %v8856 = vadd.f32 %v8786, %v8853
  %v8857 = vadd.f32 %v8787, %v8853
  %v8858 = vadd.f32 %v8788, %v8853
  %v8859 = vadd.f32 %v8789, %v8853
  %v8860 = vadd.f32 %v8790, %v8853
  %v8861 = vadd.f32 %v8791, %v8853
  %v8862 = vadd.f32 %v8792, %v8853
  %v8863 = vadd.f32 %v8793, %v8853
  %v8864 = vadd.f32 %v8794, %v8853
  %v8865 = vadd.f32 %v8795, %v8853
  %v8866 = vadd.f32 %v8796, %v8853
  %v8867 = vadd.f32 %v8797, %v8853
  %v8868 = vadd.f32 %v8798, %v8853
  %v8869 = vadd.f32 %v8799, %v8853
  %v8870 = vadd.f32 %v8800, %v8853
  %v8871 = vadd.f32 %v8801, %v8853
  %v8872 = vadd.f32 %v8802, %v8853
  %v8873 = vadd.f32 %v8803, %v8853
  %v8874 = vadd.f32 %v8804, %v8853
  %v8875 = vadd.f32 %v8805, %v8853
  %v8876 = vadd.f32 %v8806, %v8853
  %v8877 = vadd.f32 %v8807, %v8853
  %v8878 = vadd.f32 %v8808, %v8853
  %v8879 = vadd.f32 %v8809, %v8853
  %v8880 = vadd.f32 %v8810, %v8853
  %v8881 = vadd.f32 %v8811, %v8853
  %v8882 = vadd.f32 %v8812, %v8853
  %v8883 = vadd.f32 %v8813, %v8853
  %v8884 = vadd.f32 %v8814, %v8853
  %v8885 = vadd.f32 %v8815, %v8853
  %v8886 = vadd.f32 %v8816, %v8853
  %v8887 = vadd.f32 %v8817, %v8853
  %v8888 = vadd.f32 %v8818, %v8853
  %v8889 = vadd.f32 %v8819, %v8853
  %v8890 = vadd.f32 %v8820, %v8853
  %v8891 = vadd.f32 %v8821, %v8853
  %v8892 = vadd.f32 %v8822, %v8853
  %v8893 = vadd.f32 %v8823, %v8853
  %v8894 = vadd.f32 %v8824, %v8853
  %v8895 = vadd.f32 %v8825, %v8853
  %v8896 = vadd.f32 %v8826, %v8853
  %v8897 = vadd.f32 %v8827, %v8853
  %v8898 = vadd.f32 %v8828, %v8853
  %v8899 = vadd.f32 %v8829, %v8853
  %v8900 = vadd.f32 %v8830, %v8853
  %v8901 = vadd.f32 %v8831, %v8853
  %v8902 = vadd.f32 %v8832, %v8853
  %v8903 = vadd.f32 %v8833, %v8853
  %v8904 = vadd.f32 %v8834, %v8853
  %v8905 = vadd.f32 %v8835, %v8853
  %v8906 = vadd.f32 %v8836, %v8853
  %v8907 = vadd.f32 %v8837, %v8853
  %v8908 = vadd.f32 %v8838, %v8853
  %v8909 = vadd.f32 %v8839, %v8853
  %v8910 = vadd.f32 %v8840, %v8853
  %v8911 = vadd.f32 %v8841, %v8853
  %v8912 = vadd.f32 %v8842, %v8853
  %v8913 = vadd.f32 %v8843, %v8853
  %v8914 = vadd.f32 %v8844, %v8853
  %v8915 = vadd.f32 %v8845, %v8853
  %v8916 = vadd.f32 %v8846, %v8853
  %v8917 = vadd.f32 %v8847, %v8853
  %v8918 = vadd.f32 %v8848, %v8853
  %v8919 = vmax.f32 %v8855, 0.0
  %v8920 = vmax.f32 %v8856, 0.0
  %v8921 = vmax.f32 %v8857, 0.0
  %v8922 = vmax.f32 %v8858, 0.0
  %v8923 = vmax.f32 %v8859, 0.0
  %v8924 = vmax.f32 %v8860, 0.0
  %v8925 = vmax.f32 %v8861, 0.0
  %v8926 = vmax.f32 %v8862, 0.0
  %v8927 = vmax.f32 %v8863, 0.0
  %v8928 = vmax.f32 %v8864, 0.0
  %v8929 = vmax.f32 %v8865, 0.0
  %v8930 = vmax.f32 %v8866, 0.0
  %v8931 = vmax.f32 %v8867, 0.0
  %v8932 = vmax.f32 %v8868, 0.0
  %v8933 = vmax.f32 %v8869, 0.0
  %v8934 = vmax.f32 %v8870, 0.0
  %v8935 = vmax.f32 %v8871, 0.0
  %v8936 = vmax.f32 %v8872, 0.0
  %v8937 = vmax.f32 %v8873, 0.0
  %v8938 = vmax.f32 %v8874, 0.0
  %v8939 = vmax.f32 %v8875, 0.0
  %v8940 = vmax.f32 %v8876, 0.0
  %v8941 = vmax.f32 %v8877, 0.0
  %v8942 = vmax.f32 %v8878, 0.0
  %v8943 = vmax.f32 %v8879, 0.0
  %v8944 = vmax.f32 %v8880, 0.0
  %v8945 = vmax.f32 %v8881, 0.0
  %v8946 = vmax.f32 %v8882, 0.0
  %v8947 = vmax.f32 %v8883, 0.0
  %v8948 = vmax.f32 %v8884, 0.0
  %v8949 = vmax.f32 %v8885, 0.0
  %v8950 = vmax.f32 %v8886, 0.0
  %v8951 = vmax.f32 %v8887, 0.0
  %v8952 = vmax.f32 %v8888, 0.0
  %v8953 = vmax.f32 %v8889, 0.0
  %v8954 = vmax.f32 %v8890, 0.0
  %v8955 = vmax.f32 %v8891, 0.0
  %v8956 = vmax.f32 %v8892, 0.0
  %v8957 = vmax.f32 %v8893, 0.0
  %v8958 = vmax.f32 %v8894, 0.0
  %v8959 = vmax.f32 %v8895, 0.0
  %v8960 = vmax.f32 %v8896, 0.0
  %v8961 = vmax.f32 %v8897, 0.0
  %v8962 = vmax.f32 %v8898, 0.0
  %v8963 = vmax.f32 %v8899, 0.0
  %v8964 = vmax.f32 %v8900, 0.0
  %v8965 = vmax.f32 %v8901, 0.0
  %v8966 = vmax.f32 %v8902, 0.0
  %v8967 = vmax.f32 %v8903, 0.0
  %v8968 = vmax.f32 %v8904, 0.0
  %v8969 = vmax.f32 %v8905, 0.0
  %v8970 = vmax.f32 %v8906, 0.0
  %v8971 = vmax.f32 %v8907, 0.0
  %v8972 = vmax.f32 %v8908, 0.0
  %v8973 = vmax.f32 %v8909, 0.0
  %v8974 = vmax.f32 %v8910, 0.0
  %v8975 = vmax.f32 %v8911, 0.0
  %v8976 = vmax.f32 %v8912, 0.0
  %v8977 = vmax.f32 %v8913, 0.0
  %v8978 = vmax.f32 %v8914, 0.0
  %v8979 = vmax.f32 %v8915, 0.0
  %v8980 = vmax.f32 %v8916, 0.0
  %v8981 = vmax.f32 %v8917, 0.0
  %v8982 = vmax.f32 %v8918, 0.0
  %8983 = vst.msk [vmem:[%s7] sm:$0xff] %vm3888, %v8919
  %8984 = vst.msk [vmem:[%s7 + $0x8] sm:$0xff] %vm3888, %v8920
  %8985 = vst.msk [vmem:[%s7 + $0x10] sm:$0xff] %vm3888, %v8921
  %8986 = vst.msk [vmem:[%s7 + $0x18] sm:$0xff] %vm3888, %v8922
  %8987 = vst.msk [vmem:[%s7 + $0x20] sm:$0xff] %vm3888, %v8923
  %8988 = vst.msk [vmem:[%s7 + $0x28] sm:$0xff] %vm3888, %v8924
  %8989 = vst.msk [vmem:[%s7 + $0x30] sm:$0xff] %vm3888, %v8925
  %8990 = vst.msk [vmem:[%s7 + $0x38] sm:$0xff] %vm3888, %v8926
  %8991 = vst.msk [vmem:[%s7 + $0x40] sm:$0xff] %vm3888, %v8927
  %8992 = vst.msk [vmem:[%s7 + $0x48] sm:$0xff] %vm3888, %v8928
  %8993 = vst.msk [vmem:[%s7 + $0x50] sm:$0xff] %vm3888, %v8929
  %8994 = vst.msk [vmem:[%s7 + $0x58] sm:$0xff] %vm3888, %v8930
  %8995 = vst.msk [vmem:[%s7 + $0x60] sm:$0xff] %vm3888, %v8931
  %8996 = vst.msk [vmem:[%s7 + $0x68] sm:$0xff] %vm3888, %v8932
  %8997 = vst.msk [vmem:[%s7 + $0x70] sm:$0xff] %vm3888, %v8933
  %8998 = vst.msk [vmem:[%s7 + $0x78] sm:$0xff] %vm3888, %v8934
  %8999 = vst.msk [vmem:[%s7 + $0x80] sm:$0xff] %vm3888, %v8935
  %9000 = vst.msk [vmem:[%s7 + $0x88] sm:$0xff] %vm3888, %v8936
  %9001 = vst.msk [vmem:[%s7 + $0x90] sm:$0xff] %vm3888, %v8937
  %9002 = vst.msk [vmem:[%s7 + $0x98] sm:$0xff] %vm3888, %v8938
  %9003 = vst.msk [vmem:[%s7 + $0xa0] sm:$0xff] %vm3888, %v8939
  %9004 = vst.msk [vmem:[%s7 + $0xa8] sm:$0xff] %vm3888, %v8940
  %9005 = vst.msk [vmem:[%s7 + $0xb0] sm:$0xff] %vm3888, %v8941
  %9006 = vst.msk [vmem:[%s7 + $0xb8] sm:$0xff] %vm3888, %v8942
  %9007 = vst.msk [vmem:[%s7 + $0xc0] sm:$0xff] %vm3888, %v8943
  %9008 = vst.msk [vmem:[%s7 + $0xc8] sm:$0xff] %vm3888, %v8944
  %9009 = vst.msk [vmem:[%s7 + $0xd0] sm:$0xff] %vm3888, %v8945
  %9010 = vst.msk [vmem:[%s7 + $0xd8] sm:$0xff] %vm3888, %v8946
  %9011 = vst.msk [vmem:[%s7 + $0xe0] sm:$0xff] %vm3888, %v8947
  %9012 = vst.msk [vmem:[%s7 + $0xe8] sm:$0xff] %vm3888, %v8948
  %9013 = vst.msk [vmem:[%s7 + $0xf0] sm:$0xff] %vm3888, %v8949
  %9014 = vst.msk [vmem:[%s7 + $0xf8] sm:$0xff] %vm3888, %v8950
  %9015 = vst.msk [vmem:[%s7 + $0x100] sm:$0xff] %vm3888, %v8951
  %9016 = vst.msk [vmem:[%s7 + $0x108] sm:$0xff] %vm3888, %v8952
  %9017 = vst.msk [vmem:[%s7 + $0x110] sm:$0xff] %vm3888, %v8953
  %9018 = vst.msk [vmem:[%s7 + $0x118] sm:$0xff] %vm3888, %v8954
  %9019 = vst.msk [vmem:[%s7 + $0x120] sm:$0xff] %vm3888, %v8955
  %9020 = vst.msk [vmem:[%s7 + $0x128] sm:$0xff] %vm3888, %v8956
  %9021 = vst.msk [vmem:[%s7 + $0x130] sm:$0xff] %vm3888, %v8957
  %9022 = vst.msk [vmem:[%s7 + $0x138] sm:$0xff] %vm3888, %v8958
  %9023 = vst.msk [vmem:[%s7 + $0x140] sm:$0xff] %vm3888, %v8959
  %9024 = vst.msk [vmem:[%s7 + $0x148] sm:$0xff] %vm3888, %v8960
  %9025 = vst.msk [vmem:[%s7 + $0x150] sm:$0xff] %vm3888, %v8961
  %9026 = vst.msk [vmem:[%s7 + $0x158] sm:$0xff] %vm3888, %v8962
  %9027 = vst.msk [vmem:[%s7 + $0x160] sm:$0xff] %vm3888, %v8963
  %9028 = vst.msk [vmem:[%s7 + $0x168] sm:$0xff] %vm3888, %v8964
  %9029 = vst.msk [vmem:[%s7 + $0x170] sm:$0xff] %vm3888, %v8965
  %9030 = vst.msk [vmem:[%s7 + $0x178] sm:$0xff] %vm3888, %v8966
  %9031 = vst.msk [vmem:[%s7 + $0x180] sm:$0xff] %vm3888, %v8967
  %9032 = vst.msk [vmem:[%s7 + $0x188] sm:$0xff] %vm3888, %v8968
  %9033 = vst.msk [vmem:[%s7 + $0x190] sm:$0xff] %vm3888, %v8969
  %9034 = vst.msk [vmem:[%s7 + $0x198] sm:$0xff] %vm3888, %v8970
  %9035 = vst.msk [vmem:[%s7 + $0x1a0] sm:$0xff] %vm3888, %v8971
  %9036 = vst.msk [vmem:[%s7 + $0x1a8] sm:$0xff] %vm3888, %v8972
  %9037 = vst.msk [vmem:[%s7 + $0x1b0] sm:$0xff] %vm3888, %v8973
  %9038 = vst.msk [vmem:[%s7 + $0x1b8] sm:$0xff] %vm3888, %v8974
  %9039 = vst.msk [vmem:[%s7 + $0x1c0] sm:$0xff] %vm3888, %v8975
  %9040 = vst.msk [vmem:[%s7 + $0x1c8] sm:$0xff] %vm3888, %v8976
  %9041 = vst.msk [vmem:[%s7 + $0x1d0] sm:$0xff] %vm3888, %v8977
  %9042 = vst.msk [vmem:[%s7 + $0x1d8] sm:$0xff] %vm3888, %v8978
  %9043 = vst.msk [vmem:[%s7 + $0x1e0] sm:$0xff] %vm3888, %v8979
  %9044 = vst.msk [vmem:[%s7 + $0x1e8] sm:$0xff] %vm3888, %v8980
  %9045 = vst.msk [vmem:[%s7 + $0x1f0] sm:$0xff] %vm3888, %v8981
  %9046 = vst.msk [vmem:[%s7 + $0x1f8] sm:$0xff] %vm3888, %v8982
  // Predicated region
  $region30: #{tpu_custom_call.1} parent=0 // pred_check
    _
  $region31: #{tpu_custom_call.1} parent=0 // pred_check_branch
    %9048 = sbr.rel (0) target = $region33
  $region32: #{tpu_custom_call.1} parent=0 // pred_region
    _
  $region33: #{tpu_custom_call.1} parent=0 // pred_fallthru
    _
  // Predicated region
  $region34: #{tpu_custom_call.1} parent=0 // pred_check
    _
  $region35: #{tpu_custom_call.1} parent=0 // pred_check_branch
    %9050 = sbr.rel (0) target = $region37
  $region36: #{tpu_custom_call.1} parent=0 // pred_region
    _
  $region37: #{tpu_custom_call.1} parent=0 // pred_fallthru
    _

</llo_original>
